<compile_context>
chip_gen: v6e
topology: v6e:2x2x1
jax: 0.10.0
libtpu: 0.0.40
codegen_flags: <defaults>
</compile_context>

<pallas_src>
import jax
import jax.numpy as jnp
from jax.experimental import pallas as pl
from jax.experimental.pallas import tpu as pltpu

LEAKY_SLOPE = 0.1
BN_EPS = 1e-5

# Static per-stage plan: (H, W, Cin, Cout) before its 2x2 pool.
_STAGES = ((16, 16, 3, 32), (8, 8, 32, 64), (4, 4, 64, 128))


def _pool_select_matrix(h, w):
    """(OH*OW, H*W) 0/1 matrix that selects the top-left element of every 2x2 window."""
    oh, ow = h // 2, w // 2
    rows = jnp.arange(oh * ow)
    picks = (rows // ow) * (2 * w) + (rows % ow) * 2
    return (jnp.arange(h * w)[None, :] == picks[:, None]).astype(jnp.float32)


# -----------------------------------------------------------------------------
# Fused backbone kernel (one grid step = one image)
# -----------------------------------------------------------------------------
def _backbone_kernel(x_ref,
                     w1_ref, s1_ref, b1_ref, m1_ref,
                     w2_ref, s2_ref, b2_ref, m2_ref,
                     w3_ref, s3_ref, b3_ref, m3_ref,
                     o_ref,
                     pad2_ref, pad3_ref, c1_ref, c2_ref, c3_ref):
    # The flat padded stage buffers: their top/bottom pad rows must read as zeros.
    pad2_ref[...] = jnp.zeros_like(pad2_ref)
    pad3_ref[...] = jnp.zeros_like(pad3_ref)

    def stage(load_tap, h, w, cin, wk_ref, s_ref, b_ref, pm_ref, c_ref):
        """conv3x3(same) + folded BN + LeakyReLU + 2x2 maxpool for one stage.

        load_tap(off, n): contiguous slice [off, off+n) of the stage's flat padded
        input buffer (layout: 2*w zero rows, then the h*w image rows, then zero rows;
        channels on the lane axis).
        """
        p = h * w
        cout = wk_ref.shape[2]

        # Column masks for the horizontally-shifted taps (zero the wrapped column).
        col = jax.lax.broadcasted_iota(jnp.int32, (p, cin), 0) % w
        not_left = col != 0          # valid positions for kx = -1 taps
        not_right = col != (w - 1)   # valid positions for kx = +1 taps

        # 3x3 conv as 9 accumulated MXU dots; each tap is one contiguous flat slice.
        acc = jnp.zeros((p, cout), jnp.float32)
        for k in range(9):
            ky, kx = k // 3 - 1, k % 3 - 1
            tap = load_tap((ky + 2) * w + kx, p)          # (p, cin)
            if kx == -1:
                tap = jnp.where(not_left, tap, 0.0)
            elif kx == 1:
                tap = jnp.where(not_right, tap, 0.0)
            acc = acc + jnp.dot(tap, wk_ref[k], preferred_element_type=jnp.float32)

        # Folded BatchNorm + LeakyReLU(0.1).
        y = acc * s_ref[...] + b_ref[...]
        y = jnp.where(y > 0, y, LEAKY_SLOPE * y)

        # Fused 2x2 max-pool:
        #   z[q] = max(y[q], y[q+1], y[q+w], y[q+w+1])   (shift-max via the scratch ref)
        #   pooled = PoolSelect @ z                      (picks q = 2*oh*w + 2*ow)
        tail = c_ref.shape[0] - p
        c_ref[pl.ds(0, p), :] = y
        c_ref[pl.ds(p, tail), :] = jnp.zeros((tail, cout), jnp.float32)
        z = jnp.maximum(
            jnp.maximum(c_ref[pl.ds(0, p), :], c_ref[pl.ds(1, p), :]),
            jnp.maximum(c_ref[pl.ds(w, p), :], c_ref[pl.ds(w + 1, p), :]))
        return jnp.dot(pm_ref[...], z, preferred_element_type=jnp.float32)

    h1, wd1, ci1, _ = _STAGES[0]
    h2, wd2, ci2, _ = _STAGES[1]
    h3, wd3, ci3, _ = _STAGES[2]

    # Stage 1: reads the pre-padded input block, writes pooled output into pad2's interior.
    pooled1 = stage(lambda off, n: x_ref[0, pl.ds(off, n), :],
                    h1, wd1, ci1, w1_ref, s1_ref, b1_ref, m1_ref, c1_ref)
    pad2_ref[pl.ds(2 * wd2, h2 * wd2), :] = pooled1

    # Stage 2.
    pooled2 = stage(lambda off, n: pad2_ref[pl.ds(off, n), :],
                    h2, wd2, ci2, w2_ref, s2_ref, b2_ref, m2_ref, c2_ref)
    pad3_ref[pl.ds(2 * wd3, h3 * wd3), :] = pooled2

    # Stage 3: final (2*2, 128) result -> lane-dense HBM store.
    pooled3 = stage(lambda off, n: pad3_ref[pl.ds(off, n), :],
                    h3, wd3, ci3, w3_ref, s3_ref, b3_ref, m3_ref, c3_ref)
    o_ref[0] = pooled3


# -----------------------------------------------------------------------------
# Wrapper
# -----------------------------------------------------------------------------
def yolo_backbone(x_nchw, params):
    """x_nchw: (N, 3, 16, 16) float32 (PyTorch layout).  Returns (N, 128, 2, 2)."""
    n = x_nchw.shape[0]
    h1, wd1, ci1, co1 = _STAGES[0]
    h2, wd2, ci2, co2 = _STAGES[1]
    h3, wd3, ci3, co3 = _STAGES[2]

    # NCHW -> NHWC, pad 2 zero rows above/below, flatten spatial (channels on lanes).
    x = jnp.transpose(x_nchw, (0, 2, 3, 1)).astype(jnp.float32)
    xf = jnp.pad(x, ((0, 0), (2, 2), (0, 0), (0, 0))).reshape(n, (h1 + 4) * wd1, ci1)

    (w1p, s1p, b1p), (w2p, s2p, b2p), (w3p, s3p, b3p) = params
    f32 = jnp.float32
    args = (
        xf,
        w1p.astype(f32), s1p.reshape(1, co1).astype(f32), b1p.reshape(1, co1).astype(f32),
        _pool_select_matrix(h1, wd1),
        w2p.astype(f32), s2p.reshape(1, co2).astype(f32), b2p.reshape(1, co2).astype(f32),
        _pool_select_matrix(h2, wd2),
        w3p.astype(f32), s3p.reshape(1, co3).astype(f32), b3p.reshape(1, co3).astype(f32),
        _pool_select_matrix(h3, wd3),
    )

    def spec2(shape):
        return pl.BlockSpec(shape, lambda i: (0, 0))

    def spec3(shape):
        return pl.BlockSpec(shape, lambda i: (0, 0, 0))

    out = pl.pallas_call(
        _backbone_kernel,
        out_shape=jax.ShapeDtypeStruct((n, (h3 // 2) * (wd3 // 2), co3), jnp.float32),
        grid=(n,),
        in_specs=[
            pl.BlockSpec((1, (h1 + 4) * wd1, ci1), lambda i: (i, 0, 0)),
            spec3((9, ci1, co1)), spec2((1, co1)), spec2((1, co1)), spec2((h2 * wd2, h1 * wd1)),
            spec3((9, ci2, co2)), spec2((1, co2)), spec2((1, co2)), spec2((h3 * wd3, h2 * wd2)),
            spec3((9, ci3, co3)), spec2((1, co3)), spec2((1, co3)),
            spec2(((h3 // 2) * (wd3 // 2), h3 * wd3)),
        ],
        out_specs=pl.BlockSpec((1, (h3 // 2) * (wd3 // 2), co3), lambda i: (i, 0, 0)),
        scratch_shapes=[
            pltpu.VMEM(((h2 + 4) * wd2, ci2), jnp.float32),        # flat padded stage-2 input
            pltpu.VMEM(((h3 + 4) * wd3, ci3), jnp.float32),        # flat padded stage-3 input
            pltpu.VMEM((h1 * wd1 + wd1 + 8, co1), jnp.float32),    # stage-1 conv/pool scratch
            pltpu.VMEM((h2 * wd2 + wd2 + 8, co2), jnp.float32),    # stage-2 conv/pool scratch
            pltpu.VMEM((h3 * wd3 + wd3 + 8, co3), jnp.float32),    # stage-3 conv/pool scratch
        ],
        compiler_params=pltpu.CompilerParams(dimension_semantics=("parallel",)),
    )(*args)

    out = out.reshape(n, h3 // 2, wd3 // 2, co3)
    return jnp.transpose(out, (0, 3, 1, 2))  # back to NCHW


# -----------------------------------------------------------------------------
# Synthetic parameter init (deterministic) and pure-JAX reference
# -----------------------------------------------------------------------------
def init_params(key):
    """[(w9 (9,cin,cout), scale (cout,), bias (cout,))] for the 3 ConvBlocks."""
    params = []
    for i, (_, _, cin, cout) in enumerate(_STAGES):
        k = jax.random.fold_in(key, i)
        kw, kg, kb, km, kv = jax.random.split(k, 5)
        fan_in = cin * 9
        w = jax.random.normal(kw, (3, 3, cin, cout), jnp.float32) * (2.0 / fan_in) ** 0.5
        gamma = jax.random.uniform(kg, (cout,), jnp.float32, 0.5, 1.5)
        beta = jax.random.normal(kb, (cout,), jnp.float32) * 0.1
        running_mean = jax.random.normal(km, (cout,), jnp.float32) * 0.1
        running_var = jax.random.uniform(kv, (cout,), jnp.float32, 0.5, 1.5)
        scale = gamma / jnp.sqrt(running_var + BN_EPS)
        bias = beta - running_mean * scale
        params.append((w.reshape(9, cin, cout), scale, bias))
    return params


def _reference(x_nchw, params):
    x = jnp.transpose(x_nchw, (0, 2, 3, 1)).astype(jnp.float32)
    for w9, s, b in params:
        cin, cout = w9.shape[1], w9.shape[2]
        wk = w9.reshape(3, 3, cin, cout)
        y = jax.lax.conv_general_dilated(
            x, wk, (1, 1), "SAME",
            dimension_numbers=("NHWC", "HWIO", "NHWC"),
            precision=jax.lax.Precision.HIGHEST)
        y = y * s + b
        y = jnp.where(y > 0, y, LEAKY_SLOPE * y)
        x = jax.lax.reduce_window(y, -jnp.inf, jax.lax.max,
                                  (1, 2, 2, 1), (1, 2, 2, 1), "VALID")
    return jnp.transpose(x, (0, 3, 1, 2))


if __name__ == "__main__":
    key = jax.random.PRNGKey(0)
    k_x, k_p = jax.random.split(key)
    x = jax.random.normal(k_x, (2, 3, 16, 16), jnp.float32)  # NCHW, like PyTorch
    params = init_params(k_p)

    fwd = jax.jit(lambda inp: yolo_backbone(inp, params))
    out = jax.block_until_ready(fwd(x))

    assert out.shape == (2, 128, 2, 2), out.shape  # 16 -> 8 -> 4 -> 2 spatial, 128 ch
    assert bool(jnp.all(jnp.isfinite(out)))

    ref = _reference(x, params)
    assert bool(jnp.allclose(out, ref, rtol=2e-2, atol=2e-2)), (
        float(jnp.max(jnp.abs(out - ref))))
    print("KERNEL_OK")
</pallas_src>

<mosaic_0001>
module attributes {stable_mosaic.version = 11 : i64} {
  func.func @_backbone_kernel(%arg0: i32, %arg1: memref<1x320x3xf32, #tpu.memory_space<vmem>>, %arg2: memref<9x3x32xf32, #tpu.memory_space<vmem>>, %arg3: memref<1x32xf32, #tpu.memory_space<vmem>>, %arg4: memref<1x32xf32, #tpu.memory_space<vmem>>, %arg5: memref<64x256xf32, #tpu.memory_space<vmem>>, %arg6: memref<9x32x64xf32, #tpu.memory_space<vmem>>, %arg7: memref<1x64xf32, #tpu.memory_space<vmem>>, %arg8: memref<1x64xf32, #tpu.memory_space<vmem>>, %arg9: memref<16x64xf32, #tpu.memory_space<vmem>>, %arg10: memref<9x64x128xf32, #tpu.memory_space<vmem>>, %arg11: memref<1x128xf32, #tpu.memory_space<vmem>>, %arg12: memref<1x128xf32, #tpu.memory_space<vmem>>, %arg13: memref<4x16xf32, #tpu.memory_space<vmem>>, %arg14: memref<1x4x128xf32, #tpu.memory_space<vmem>>, %arg15: memref<96x32xf32, #tpu.memory_space<vmem>>, %arg16: memref<32x64xf32, #tpu.memory_space<vmem>>, %arg17: memref<280x32xf32, #tpu.memory_space<vmem>>, %arg18: memref<80x64xf32, #tpu.memory_space<vmem>>, %arg19: memref<28x128xf32, #tpu.memory_space<vmem>>) attributes {dimension_semantics = [#tpu.dimension_semantics<parallel>], iteration_bounds = array<i64: 2>, scalar_prefetch = 0 : i64, scratch_operands = 5 : i64, tpu.core_type = #tpu.core_type<tc>, window_params = [{transform_indices = @transform_0, window_bounds = array<i64: 1, 320, 3>}, {pipeline_mode = #tpu.pipeline_mode<synchronous>, transform_indices = @transform_1, window_bounds = array<i64: 9, 3, 32>}, {pipeline_mode = #tpu.pipeline_mode<synchronous>, transform_indices = @transform_2, window_bounds = array<i64: 1, 32>}, {pipeline_mode = #tpu.pipeline_mode<synchronous>, transform_indices = @transform_3, window_bounds = array<i64: 1, 32>}, {pipeline_mode = #tpu.pipeline_mode<synchronous>, transform_indices = @transform_4, window_bounds = array<i64: 64, 256>}, {pipeline_mode = #tpu.pipeline_mode<synchronous>, transform_indices = @transform_5, window_bounds = array<i64: 9, 32, 64>}, {pipeline_mode = #tpu.pipeline_mode<synchronous>, transform_indices = @transform_6, window_bounds = array<i64: 1, 64>}, {pipeline_mode = #tpu.pipeline_mode<synchronous>, transform_indices = @transform_7, window_bounds = array<i64: 1, 64>}, {pipeline_mode = #tpu.pipeline_mode<synchronous>, transform_indices = @transform_8, window_bounds = array<i64: 16, 64>}, {pipeline_mode = #tpu.pipeline_mode<synchronous>, transform_indices = @transform_9, window_bounds = array<i64: 9, 64, 128>}, {pipeline_mode = #tpu.pipeline_mode<synchronous>, transform_indices = @transform_10, window_bounds = array<i64: 1, 128>}, {pipeline_mode = #tpu.pipeline_mode<synchronous>, transform_indices = @transform_11, window_bounds = array<i64: 1, 128>}, {pipeline_mode = #tpu.pipeline_mode<synchronous>, transform_indices = @transform_12, window_bounds = array<i64: 4, 16>}, {transform_indices = @transform_13, window_bounds = array<i64: 1, 4, 128>}]} {
    %cst = arith.constant 0.000000e+00 : f32
    %0 = vector.broadcast %cst : f32 to vector<96x32xf32>
    %c0 = arith.constant 0 : index
    %c0_0 = arith.constant 0 : index
    %1 = vector.load %arg15[%c0, %c0_0] : memref<96x32xf32, #tpu.memory_space<vmem>>, vector<96x32xf32>
    tpu.vector_store %arg15[%c0, %c0_0], %0 {strides = array<i32>} : memref<96x32xf32, #tpu.memory_space<vmem>>, vector<96x32xf32>,
    %cst_1 = arith.constant 0.000000e+00 : f32
    %2 = vector.broadcast %cst_1 : f32 to vector<32x64xf32>
    %c0_2 = arith.constant 0 : index
    %c0_3 = arith.constant 0 : index
    %3 = vector.load %arg16[%c0_2, %c0_3] : memref<32x64xf32, #tpu.memory_space<vmem>>, vector<32x64xf32>
    tpu.vector_store %arg16[%c0_2, %c0_3], %2 {strides = array<i32>} : memref<32x64xf32, #tpu.memory_space<vmem>>, vector<32x64xf32>,
    %4 = tpu.iota {dimensions = array<i32: 0>} : vector<256x3xi32>
    %c16_i32 = arith.constant 16 : i32
    %c0_i32 = arith.constant 0 : i32
    %5 = arith.cmpi eq, %c16_i32, %c0_i32 : i32
    %c1_i32 = arith.constant 1 : i32
    %6 = arith.select %5, %c1_i32, %c16_i32 : i32
    %7 = vector.broadcast %6 : i32 to vector<256x3xi32>
    %8 = arith.remsi %4, %7 : vector<256x3xi32>
    %c0_i32_4 = arith.constant 0 : i32
    %9 = vector.broadcast %c0_i32_4 : i32 to vector<256x3xi32>
    %10 = arith.cmpi ne, %8, %9 : vector<256x3xi32>
    %c0_i32_5 = arith.constant 0 : i32
    %11 = vector.broadcast %c0_i32_5 : i32 to vector<256x3xi32>
    %12 = arith.cmpi slt, %8, %11 : vector<256x3xi32>
    %c0_i32_6 = arith.constant 0 : i32
    %13 = arith.cmpi slt, %6, %c0_i32_6 : i32
    %14 = vector.broadcast %13 : i1 to vector<256x3xi1>
    %15 = vector.broadcast %14 : vector<256x3xi1> to vector<256x3xi1>
    %16 = arith.xori %12, %15 : vector<256x3xi1>
    %17 = arith.andi %16, %10 : vector<256x3xi1>
    %18 = vector.broadcast %6 : i32 to vector<256x3xi32>
    %19 = arith.addi %8, %18 : vector<256x3xi32>
    %20 = arith.select %17, %19, %8 : vector<256x3xi1>, vector<256x3xi32>
    %c0_i32_7 = arith.constant 0 : i32
    %21 = vector.broadcast %c0_i32_7 : i32 to vector<256x3xi32>
    %22 = arith.cmpi ne, %20, %21 : vector<256x3xi32>
    %c15_i32 = arith.constant 15 : i32
    %23 = vector.broadcast %c15_i32 : i32 to vector<256x3xi32>
    %24 = arith.cmpi ne, %20, %23 : vector<256x3xi32>
    %cst_8 = arith.constant 0.000000e+00 : f32
    %25 = vector.broadcast %cst_8 : f32 to vector<256x32xf32>
    %c0_9 = arith.constant 0 : index
    %c15 = arith.constant 15 : index
    %c0_10 = arith.constant 0 : index
    %26 = vector.load %arg1[%c0_9, %c15, %c0_10] : memref<1x320x3xf32, #tpu.memory_space<vmem>>, vector<1x256x3xf32>
    %27 = vector.shape_cast %26 : vector<1x256x3xf32> to vector<256x3xf32>
    %cst_11 = arith.constant 0.000000e+00 : f32
    %28 = vector.broadcast %cst_11 : f32 to vector<256x3xf32>
    %29 = arith.select %22, %27, %28 : vector<256x3xi1>, vector<256x3xf32>
    %c0_12 = arith.constant 0 : index
    %c0_13 = arith.constant 0 : index
    %c0_14 = arith.constant 0 : index
    %30 = vector.load %arg2[%c0_12, %c0_13, %c0_14] : memref<9x3x32xf32, #tpu.memory_space<vmem>>, vector<1x3x32xf32>
    %31 = vector.shape_cast %30 : vector<1x3x32xf32> to vector<3x32xf32>
    %cst_15 = arith.constant dense<0.000000e+00> : vector<256x32xf32>
    %32 = tpu.matmul %29, %31, %cst_15 {dimension_numbers = #tpu.dot_dimension_numbers<[1], [0], [0], [1], [0, 0, 1, 1], [], []>} : vector<256x3xf32>, vector<3x32xf32>, vector<256x32xf32> -> vector<256x32xf32>
    %33 = arith.addf %25, %32 : vector<256x32xf32>
    %c0_16 = arith.constant 0 : index
    %c16 = arith.constant 16 : index
    %c0_17 = arith.constant 0 : index
    %34 = vector.load %arg1[%c0_16, %c16, %c0_17] : memref<1x320x3xf32, #tpu.memory_space<vmem>>, vector<1x256x3xf32>
    %35 = vector.shape_cast %34 : vector<1x256x3xf32> to vector<256x3xf32>
    %c1 = arith.constant 1 : index
    %c0_18 = arith.constant 0 : index
    %c0_19 = arith.constant 0 : index
    %36 = vector.load %arg2[%c1, %c0_18, %c0_19] : memref<9x3x32xf32, #tpu.memory_space<vmem>>, vector<1x3x32xf32>
    %37 = vector.shape_cast %36 : vector<1x3x32xf32> to vector<3x32xf32>
    %cst_20 = arith.constant dense<0.000000e+00> : vector<256x32xf32>
    %38 = tpu.matmul %35, %37, %cst_20 {dimension_numbers = #tpu.dot_dimension_numbers<[1], [0], [0], [1], [0, 0, 1, 1], [], []>} : vector<256x3xf32>, vector<3x32xf32>, vector<256x32xf32> -> vector<256x32xf32>
    %39 = arith.addf %33, %38 : vector<256x32xf32>
    %c0_21 = arith.constant 0 : index
    %c17 = arith.constant 17 : index
    %c0_22 = arith.constant 0 : index
    %40 = vector.load %arg1[%c0_21, %c17, %c0_22] : memref<1x320x3xf32, #tpu.memory_space<vmem>>, vector<1x256x3xf32>
    %41 = vector.shape_cast %40 : vector<1x256x3xf32> to vector<256x3xf32>
    %cst_23 = arith.constant 0.000000e+00 : f32
    %42 = vector.broadcast %cst_23 : f32 to vector<256x3xf32>
    %43 = arith.select %24, %41, %42 : vector<256x3xi1>, vector<256x3xf32>
    %c2 = arith.constant 2 : index
    %c0_24 = arith.constant 0 : index
    %c0_25 = arith.constant 0 : index
    %44 = vector.load %arg2[%c2, %c0_24, %c0_25] : memref<9x3x32xf32, #tpu.memory_space<vmem>>, vector<1x3x32xf32>
    %45 = vector.shape_cast %44 : vector<1x3x32xf32> to vector<3x32xf32>
    %cst_26 = arith.constant dense<0.000000e+00> : vector<256x32xf32>
    %46 = tpu.matmul %43, %45, %cst_26 {dimension_numbers = #tpu.dot_dimension_numbers<[1], [0], [0], [1], [0, 0, 1, 1], [], []>} : vector<256x3xf32>, vector<3x32xf32>, vector<256x32xf32> -> vector<256x32xf32>
    %47 = arith.addf %39, %46 : vector<256x32xf32>
    %c0_27 = arith.constant 0 : index
    %c31 = arith.constant 31 : index
    %c0_28 = arith.constant 0 : index
    %48 = vector.load %arg1[%c0_27, %c31, %c0_28] : memref<1x320x3xf32, #tpu.memory_space<vmem>>, vector<1x256x3xf32>
    %49 = vector.shape_cast %48 : vector<1x256x3xf32> to vector<256x3xf32>
    %cst_29 = arith.constant 0.000000e+00 : f32
    %50 = vector.broadcast %cst_29 : f32 to vector<256x3xf32>
    %51 = arith.select %22, %49, %50 : vector<256x3xi1>, vector<256x3xf32>
    %c3 = arith.constant 3 : index
    %c0_30 = arith.constant 0 : index
    %c0_31 = arith.constant 0 : index
    %52 = vector.load %arg2[%c3, %c0_30, %c0_31] : memref<9x3x32xf32, #tpu.memory_space<vmem>>, vector<1x3x32xf32>
    %53 = vector.shape_cast %52 : vector<1x3x32xf32> to vector<3x32xf32>
    %cst_32 = arith.constant dense<0.000000e+00> : vector<256x32xf32>
    %54 = tpu.matmul %51, %53, %cst_32 {dimension_numbers = #tpu.dot_dimension_numbers<[1], [0], [0], [1], [0, 0, 1, 1], [], []>} : vector<256x3xf32>, vector<3x32xf32>, vector<256x32xf32> -> vector<256x32xf32>
    %55 = arith.addf %47, %54 : vector<256x32xf32>
    %c0_33 = arith.constant 0 : index
    %c32 = arith.constant 32 : index
    %c0_34 = arith.constant 0 : index
    %56 = vector.load %arg1[%c0_33, %c32, %c0_34] : memref<1x320x3xf32, #tpu.memory_space<vmem>>, vector<1x256x3xf32>
    %57 = vector.shape_cast %56 : vector<1x256x3xf32> to vector<256x3xf32>
    %c4 = arith.constant 4 : index
    %c0_35 = arith.constant 0 : index
    %c0_36 = arith.constant 0 : index
    %58 = vector.load %arg2[%c4, %c0_35, %c0_36] : memref<9x3x32xf32, #tpu.memory_space<vmem>>, vector<1x3x32xf32>
    %59 = vector.shape_cast %58 : vector<1x3x32xf32> to vector<3x32xf32>
    %cst_37 = arith.constant dense<0.000000e+00> : vector<256x32xf32>
    %60 = tpu.matmul %57, %59, %cst_37 {dimension_numbers = #tpu.dot_dimension_numbers<[1], [0], [0], [1], [0, 0, 1, 1], [], []>} : vector<256x3xf32>, vector<3x32xf32>, vector<256x32xf32> -> vector<256x32xf32>
    %61 = arith.addf %55, %60 : vector<256x32xf32>
    %c0_38 = arith.constant 0 : index
    %c33 = arith.constant 33 : index
    %c0_39 = arith.constant 0 : index
    %62 = vector.load %arg1[%c0_38, %c33, %c0_39] : memref<1x320x3xf32, #tpu.memory_space<vmem>>, vector<1x256x3xf32>
    %63 = vector.shape_cast %62 : vector<1x256x3xf32> to vector<256x3xf32>
    %cst_40 = arith.constant 0.000000e+00 : f32
    %64 = vector.broadcast %cst_40 : f32 to vector<256x3xf32>
    %65 = arith.select %24, %63, %64 : vector<256x3xi1>, vector<256x3xf32>
    %c5 = arith.constant 5 : index
    %c0_41 = arith.constant 0 : index
    %c0_42 = arith.constant 0 : index
    %66 = vector.load %arg2[%c5, %c0_41, %c0_42] : memref<9x3x32xf32, #tpu.memory_space<vmem>>, vector<1x3x32xf32>
    %67 = vector.shape_cast %66 : vector<1x3x32xf32> to vector<3x32xf32>
    %cst_43 = arith.constant dense<0.000000e+00> : vector<256x32xf32>
    %68 = tpu.matmul %65, %67, %cst_43 {dimension_numbers = #tpu.dot_dimension_numbers<[1], [0], [0], [1], [0, 0, 1, 1], [], []>} : vector<256x3xf32>, vector<3x32xf32>, vector<256x32xf32> -> vector<256x32xf32>
    %69 = arith.addf %61, %68 : vector<256x32xf32>
    %c0_44 = arith.constant 0 : index
    %c47 = arith.constant 47 : index
    %c0_45 = arith.constant 0 : index
    %70 = vector.load %arg1[%c0_44, %c47, %c0_45] : memref<1x320x3xf32, #tpu.memory_space<vmem>>, vector<1x256x3xf32>
    %71 = vector.shape_cast %70 : vector<1x256x3xf32> to vector<256x3xf32>
    %cst_46 = arith.constant 0.000000e+00 : f32
    %72 = vector.broadcast %cst_46 : f32 to vector<256x3xf32>
    %73 = arith.select %22, %71, %72 : vector<256x3xi1>, vector<256x3xf32>
    %c6 = arith.constant 6 : index
    %c0_47 = arith.constant 0 : index
    %c0_48 = arith.constant 0 : index
    %74 = vector.load %arg2[%c6, %c0_47, %c0_48] : memref<9x3x32xf32, #tpu.memory_space<vmem>>, vector<1x3x32xf32>
    %75 = vector.shape_cast %74 : vector<1x3x32xf32> to vector<3x32xf32>
    %cst_49 = arith.constant dense<0.000000e+00> : vector<256x32xf32>
    %76 = tpu.matmul %73, %75, %cst_49 {dimension_numbers = #tpu.dot_dimension_numbers<[1], [0], [0], [1], [0, 0, 1, 1], [], []>} : vector<256x3xf32>, vector<3x32xf32>, vector<256x32xf32> -> vector<256x32xf32>
    %77 = arith.addf %69, %76 : vector<256x32xf32>
    %c0_50 = arith.constant 0 : index
    %c48 = arith.constant 48 : index
    %c0_51 = arith.constant 0 : index
    %78 = vector.load %arg1[%c0_50, %c48, %c0_51] : memref<1x320x3xf32, #tpu.memory_space<vmem>>, vector<1x256x3xf32>
    %79 = vector.shape_cast %78 : vector<1x256x3xf32> to vector<256x3xf32>
    %c7 = arith.constant 7 : index
    %c0_52 = arith.constant 0 : index
    %c0_53 = arith.constant 0 : index
    %80 = vector.load %arg2[%c7, %c0_52, %c0_53] : memref<9x3x32xf32, #tpu.memory_space<vmem>>, vector<1x3x32xf32>
    %81 = vector.shape_cast %80 : vector<1x3x32xf32> to vector<3x32xf32>
    %cst_54 = arith.constant dense<0.000000e+00> : vector<256x32xf32>
    %82 = tpu.matmul %79, %81, %cst_54 {dimension_numbers = #tpu.dot_dimension_numbers<[1], [0], [0], [1], [0, 0, 1, 1], [], []>} : vector<256x3xf32>, vector<3x32xf32>, vector<256x32xf32> -> vector<256x32xf32>
    %83 = arith.addf %77, %82 : vector<256x32xf32>
    %c0_55 = arith.constant 0 : index
    %c49 = arith.constant 49 : index
    %c0_56 = arith.constant 0 : index
    %84 = vector.load %arg1[%c0_55, %c49, %c0_56] : memref<1x320x3xf32, #tpu.memory_space<vmem>>, vector<1x256x3xf32>
    %85 = vector.shape_cast %84 : vector<1x256x3xf32> to vector<256x3xf32>
    %cst_57 = arith.constant 0.000000e+00 : f32
    %86 = vector.broadcast %cst_57 : f32 to vector<256x3xf32>
    %87 = arith.select %24, %85, %86 : vector<256x3xi1>, vector<256x3xf32>
    %c8 = arith.constant 8 : index
    %c0_58 = arith.constant 0 : index
    %c0_59 = arith.constant 0 : index
    %88 = vector.load %arg2[%c8, %c0_58, %c0_59] : memref<9x3x32xf32, #tpu.memory_space<vmem>>, vector<1x3x32xf32>
    %89 = vector.shape_cast %88 : vector<1x3x32xf32> to vector<3x32xf32>
    %cst_60 = arith.constant dense<0.000000e+00> : vector<256x32xf32>
    %90 = tpu.matmul %87, %89, %cst_60 {dimension_numbers = #tpu.dot_dimension_numbers<[1], [0], [0], [1], [0, 0, 1, 1], [], []>} : vector<256x3xf32>, vector<3x32xf32>, vector<256x32xf32> -> vector<256x32xf32>
    %91 = arith.addf %83, %90 : vector<256x32xf32>
    %c0_61 = arith.constant 0 : index
    %c0_62 = arith.constant 0 : index
    %92 = vector.load %arg3[%c0_61, %c0_62] : memref<1x32xf32, #tpu.memory_space<vmem>>, vector<1x32xf32>
    %93 = vector.broadcast %92 : vector<1x32xf32> to vector<256x32xf32>
    %94 = arith.mulf %91, %93 : vector<256x32xf32>
    %c0_63 = arith.constant 0 : index
    %c0_64 = arith.constant 0 : index
    %95 = vector.load %arg4[%c0_63, %c0_64] : memref<1x32xf32, #tpu.memory_space<vmem>>, vector<1x32xf32>
    %96 = vector.broadcast %95 : vector<1x32xf32> to vector<256x32xf32>
    %97 = arith.addf %94, %96 : vector<256x32xf32>
    %cst_65 = arith.constant 0.000000e+00 : f32
    %98 = vector.broadcast %cst_65 : f32 to vector<256x32xf32>
    %99 = arith.cmpf ogt, %97, %98 : vector<256x32xf32>
    %cst_66 = arith.constant 1.000000e-01 : f32
    %100 = vector.broadcast %cst_66 : f32 to vector<256x32xf32>
    %101 = arith.mulf %100, %97 : vector<256x32xf32>
    %102 = arith.select %99, %97, %101 : vector<256x32xi1>, vector<256x32xf32>
    %c0_67 = arith.constant 0 : index
    %c0_68 = arith.constant 0 : index
    %103 = vector.load %arg17[%c0_67, %c0_68] : memref<280x32xf32, #tpu.memory_space<vmem>>, vector<256x32xf32>
    tpu.vector_store %arg17[%c0_67, %c0_68], %102 {strides = array<i32>} : memref<280x32xf32, #tpu.memory_space<vmem>>, vector<256x32xf32>,
    %cst_69 = arith.constant 0.000000e+00 : f32
    %104 = vector.broadcast %cst_69 : f32 to vector<24x32xf32>
    %c256 = arith.constant 256 : index
    %c0_70 = arith.constant 0 : index
    %105 = vector.load %arg17[%c256, %c0_70] : memref<280x32xf32, #tpu.memory_space<vmem>>, vector<24x32xf32>
    tpu.vector_store %arg17[%c256, %c0_70], %104 {strides = array<i32>} : memref<280x32xf32, #tpu.memory_space<vmem>>, vector<24x32xf32>,
    %c0_71 = arith.constant 0 : index
    %c0_72 = arith.constant 0 : index
    %106 = vector.load %arg17[%c0_71, %c0_72] : memref<280x32xf32, #tpu.memory_space<vmem>>, vector<256x32xf32>
    %c1_73 = arith.constant 1 : index
    %c0_74 = arith.constant 0 : index
    %107 = vector.load %arg17[%c1_73, %c0_74] : memref<280x32xf32, #tpu.memory_space<vmem>>, vector<256x32xf32>
    %108 = arith.maximumf %106, %107 : vector<256x32xf32>
    %c16_75 = arith.constant 16 : index
    %c0_76 = arith.constant 0 : index
    %109 = vector.load %arg17[%c16_75, %c0_76] : memref<280x32xf32, #tpu.memory_space<vmem>>, vector<256x32xf32>
    %c17_77 = arith.constant 17 : index
    %c0_78 = arith.constant 0 : index
    %110 = vector.load %arg17[%c17_77, %c0_78] : memref<280x32xf32, #tpu.memory_space<vmem>>, vector<256x32xf32>
    %111 = arith.maximumf %109, %110 : vector<256x32xf32>
    %112 = arith.maximumf %108, %111 : vector<256x32xf32>
    %c0_79 = arith.constant 0 : index
    %c0_80 = arith.constant 0 : index
    %113 = vector.load %arg5[%c0_79, %c0_80] : memref<64x256xf32, #tpu.memory_space<vmem>>, vector<64x256xf32>
    %cst_81 = arith.constant dense<0.000000e+00> : vector<64x32xf32>
    %114 = tpu.matmul %113, %112, %cst_81 {dimension_numbers = #tpu.dot_dimension_numbers<[1], [0], [0], [1], [0, 0, 1, 1], [], []>} : vector<64x256xf32>, vector<256x32xf32>, vector<64x32xf32> -> vector<64x32xf32>
    %c16_82 = arith.constant 16 : index
    %c0_83 = arith.constant 0 : index
    %115 = vector.load %arg15[%c16_82, %c0_83] : memref<96x32xf32, #tpu.memory_space<vmem>>, vector<64x32xf32>
    tpu.vector_store %arg15[%c16_82, %c0_83], %114 {strides = array<i32>} : memref<96x32xf32, #tpu.memory_space<vmem>>, vector<64x32xf32>,
    %116 = tpu.iota {dimensions = array<i32: 0>} : vector<64x32xi32>
    %c8_i32 = arith.constant 8 : i32
    %c0_i32_84 = arith.constant 0 : i32
    %117 = arith.cmpi eq, %c8_i32, %c0_i32_84 : i32
    %c1_i32_85 = arith.constant 1 : i32
    %118 = arith.select %117, %c1_i32_85, %c8_i32 : i32
    %119 = vector.broadcast %118 : i32 to vector<64x32xi32>
    %120 = arith.remsi %116, %119 : vector<64x32xi32>
    %c0_i32_86 = arith.constant 0 : i32
    %121 = vector.broadcast %c0_i32_86 : i32 to vector<64x32xi32>
    %122 = arith.cmpi ne, %120, %121 : vector<64x32xi32>
    %c0_i32_87 = arith.constant 0 : i32
    %123 = vector.broadcast %c0_i32_87 : i32 to vector<64x32xi32>
    %124 = arith.cmpi slt, %120, %123 : vector<64x32xi32>
    %c0_i32_88 = arith.constant 0 : i32
    %125 = arith.cmpi slt, %118, %c0_i32_88 : i32
    %126 = vector.broadcast %125 : i1 to vector<64x32xi1>
    %127 = vector.broadcast %126 : vector<64x32xi1> to vector<64x32xi1>
    %128 = arith.xori %124, %127 : vector<64x32xi1>
    %129 = arith.andi %128, %122 : vector<64x32xi1>
    %130 = vector.broadcast %118 : i32 to vector<64x32xi32>
    %131 = arith.addi %120, %130 : vector<64x32xi32>
    %132 = arith.select %129, %131, %120 : vector<64x32xi1>, vector<64x32xi32>
    %c0_i32_89 = arith.constant 0 : i32
    %133 = vector.broadcast %c0_i32_89 : i32 to vector<64x32xi32>
    %134 = arith.cmpi ne, %132, %133 : vector<64x32xi32>
    %c7_i32 = arith.constant 7 : i32
    %135 = vector.broadcast %c7_i32 : i32 to vector<64x32xi32>
    %136 = arith.cmpi ne, %132, %135 : vector<64x32xi32>
    %cst_90 = arith.constant 0.000000e+00 : f32
    %137 = vector.broadcast %cst_90 : f32 to vector<64x64xf32>
    %c7_91 = arith.constant 7 : index
    %c0_92 = arith.constant 0 : index
    %138 = vector.load %arg15[%c7_91, %c0_92] : memref<96x32xf32, #tpu.memory_space<vmem>>, vector<64x32xf32>
    %cst_93 = arith.constant 0.000000e+00 : f32
    %139 = vector.broadcast %cst_93 : f32 to vector<64x32xf32>
    %140 = arith.select %134, %138, %139 : vector<64x32xi1>, vector<64x32xf32>
    %c0_94 = arith.constant 0 : index
    %c0_95 = arith.constant 0 : index
    %c0_96 = arith.constant 0 : index
    %141 = vector.load %arg6[%c0_94, %c0_95, %c0_96] : memref<9x32x64xf32, #tpu.memory_space<vmem>>, vector<1x32x64xf32>
    %142 = vector.shape_cast %141 : vector<1x32x64xf32> to vector<32x64xf32>
    %cst_97 = arith.constant dense<0.000000e+00> : vector<64x64xf32>
    %143 = tpu.matmul %140, %142, %cst_97 {dimension_numbers = #tpu.dot_dimension_numbers<[1], [0], [0], [1], [0, 0, 1, 1], [], []>} : vector<64x32xf32>, vector<32x64xf32>, vector<64x64xf32> -> vector<64x64xf32>
    %144 = arith.addf %137, %143 : vector<64x64xf32>
    %c8_98 = arith.constant 8 : index
    %c0_99 = arith.constant 0 : index
    %145 = vector.load %arg15[%c8_98, %c0_99] : memref<96x32xf32, #tpu.memory_space<vmem>>, vector<64x32xf32>
    %c1_100 = arith.constant 1 : index
    %c0_101 = arith.constant 0 : index
    %c0_102 = arith.constant 0 : index
    %146 = vector.load %arg6[%c1_100, %c0_101, %c0_102] : memref<9x32x64xf32, #tpu.memory_space<vmem>>, vector<1x32x64xf32>
    %147 = vector.shape_cast %146 : vector<1x32x64xf32> to vector<32x64xf32>
    %cst_103 = arith.constant dense<0.000000e+00> : vector<64x64xf32>
    %148 = tpu.matmul %145, %147, %cst_103 {dimension_numbers = #tpu.dot_dimension_numbers<[1], [0], [0], [1], [0, 0, 1, 1], [], []>} : vector<64x32xf32>, vector<32x64xf32>, vector<64x64xf32> -> vector<64x64xf32>
    %149 = arith.addf %144, %148 : vector<64x64xf32>
    %c9 = arith.constant 9 : index
    %c0_104 = arith.constant 0 : index
    %150 = vector.load %arg15[%c9, %c0_104] : memref<96x32xf32, #tpu.memory_space<vmem>>, vector<64x32xf32>
    %cst_105 = arith.constant 0.000000e+00 : f32
    %151 = vector.broadcast %cst_105 : f32 to vector<64x32xf32>
    %152 = arith.select %136, %150, %151 : vector<64x32xi1>, vector<64x32xf32>
    %c2_106 = arith.constant 2 : index
    %c0_107 = arith.constant 0 : index
    %c0_108 = arith.constant 0 : index
    %153 = vector.load %arg6[%c2_106, %c0_107, %c0_108] : memref<9x32x64xf32, #tpu.memory_space<vmem>>, vector<1x32x64xf32>
    %154 = vector.shape_cast %153 : vector<1x32x64xf32> to vector<32x64xf32>
    %cst_109 = arith.constant dense<0.000000e+00> : vector<64x64xf32>
    %155 = tpu.matmul %152, %154, %cst_109 {dimension_numbers = #tpu.dot_dimension_numbers<[1], [0], [0], [1], [0, 0, 1, 1], [], []>} : vector<64x32xf32>, vector<32x64xf32>, vector<64x64xf32> -> vector<64x64xf32>
    %156 = arith.addf %149, %155 : vector<64x64xf32>
    %c15_110 = arith.constant 15 : index
    %c0_111 = arith.constant 0 : index
    %157 = vector.load %arg15[%c15_110, %c0_111] : memref<96x32xf32, #tpu.memory_space<vmem>>, vector<64x32xf32>
    %cst_112 = arith.constant 0.000000e+00 : f32
    %158 = vector.broadcast %cst_112 : f32 to vector<64x32xf32>
    %159 = arith.select %134, %157, %158 : vector<64x32xi1>, vector<64x32xf32>
    %c3_113 = arith.constant 3 : index
    %c0_114 = arith.constant 0 : index
    %c0_115 = arith.constant 0 : index
    %160 = vector.load %arg6[%c3_113, %c0_114, %c0_115] : memref<9x32x64xf32, #tpu.memory_space<vmem>>, vector<1x32x64xf32>
    %161 = vector.shape_cast %160 : vector<1x32x64xf32> to vector<32x64xf32>
    %cst_116 = arith.constant dense<0.000000e+00> : vector<64x64xf32>
    %162 = tpu.matmul %159, %161, %cst_116 {dimension_numbers = #tpu.dot_dimension_numbers<[1], [0], [0], [1], [0, 0, 1, 1], [], []>} : vector<64x32xf32>, vector<32x64xf32>, vector<64x64xf32> -> vector<64x64xf32>
    %163 = arith.addf %156, %162 : vector<64x64xf32>
    %c16_117 = arith.constant 16 : index
    %c0_118 = arith.constant 0 : index
    %164 = vector.load %arg15[%c16_117, %c0_118] : memref<96x32xf32, #tpu.memory_space<vmem>>, vector<64x32xf32>
    %c4_119 = arith.constant 4 : index
    %c0_120 = arith.constant 0 : index
    %c0_121 = arith.constant 0 : index
    %165 = vector.load %arg6[%c4_119, %c0_120, %c0_121] : memref<9x32x64xf32, #tpu.memory_space<vmem>>, vector<1x32x64xf32>
    %166 = vector.shape_cast %165 : vector<1x32x64xf32> to vector<32x64xf32>
    %cst_122 = arith.constant dense<0.000000e+00> : vector<64x64xf32>
    %167 = tpu.matmul %164, %166, %cst_122 {dimension_numbers = #tpu.dot_dimension_numbers<[1], [0], [0], [1], [0, 0, 1, 1], [], []>} : vector<64x32xf32>, vector<32x64xf32>, vector<64x64xf32> -> vector<64x64xf32>
    %168 = arith.addf %163, %167 : vector<64x64xf32>
    %c17_123 = arith.constant 17 : index
    %c0_124 = arith.constant 0 : index
    %169 = vector.load %arg15[%c17_123, %c0_124] : memref<96x32xf32, #tpu.memory_space<vmem>>, vector<64x32xf32>
    %cst_125 = arith.constant 0.000000e+00 : f32
    %170 = vector.broadcast %cst_125 : f32 to vector<64x32xf32>
    %171 = arith.select %136, %169, %170 : vector<64x32xi1>, vector<64x32xf32>
    %c5_126 = arith.constant 5 : index
    %c0_127 = arith.constant 0 : index
    %c0_128 = arith.constant 0 : index
    %172 = vector.load %arg6[%c5_126, %c0_127, %c0_128] : memref<9x32x64xf32, #tpu.memory_space<vmem>>, vector<1x32x64xf32>
    %173 = vector.shape_cast %172 : vector<1x32x64xf32> to vector<32x64xf32>
    %cst_129 = arith.constant dense<0.000000e+00> : vector<64x64xf32>
    %174 = tpu.matmul %171, %173, %cst_129 {dimension_numbers = #tpu.dot_dimension_numbers<[1], [0], [0], [1], [0, 0, 1, 1], [], []>} : vector<64x32xf32>, vector<32x64xf32>, vector<64x64xf32> -> vector<64x64xf32>
    %175 = arith.addf %168, %174 : vector<64x64xf32>
    %c23 = arith.constant 23 : index
    %c0_130 = arith.constant 0 : index
    %176 = vector.load %arg15[%c23, %c0_130] : memref<96x32xf32, #tpu.memory_space<vmem>>, vector<64x32xf32>
    %cst_131 = arith.constant 0.000000e+00 : f32
    %177 = vector.broadcast %cst_131 : f32 to vector<64x32xf32>
    %178 = arith.select %134, %176, %177 : vector<64x32xi1>, vector<64x32xf32>
    %c6_132 = arith.constant 6 : index
    %c0_133 = arith.constant 0 : index
    %c0_134 = arith.constant 0 : index
    %179 = vector.load %arg6[%c6_132, %c0_133, %c0_134] : memref<9x32x64xf32, #tpu.memory_space<vmem>>, vector<1x32x64xf32>
    %180 = vector.shape_cast %179 : vector<1x32x64xf32> to vector<32x64xf32>
    %cst_135 = arith.constant dense<0.000000e+00> : vector<64x64xf32>
    %181 = tpu.matmul %178, %180, %cst_135 {dimension_numbers = #tpu.dot_dimension_numbers<[1], [0], [0], [1], [0, 0, 1, 1], [], []>} : vector<64x32xf32>, vector<32x64xf32>, vector<64x64xf32> -> vector<64x64xf32>
    %182 = arith.addf %175, %181 : vector<64x64xf32>
    %c24 = arith.constant 24 : index
    %c0_136 = arith.constant 0 : index
    %183 = vector.load %arg15[%c24, %c0_136] : memref<96x32xf32, #tpu.memory_space<vmem>>, vector<64x32xf32>
    %c7_137 = arith.constant 7 : index
    %c0_138 = arith.constant 0 : index
    %c0_139 = arith.constant 0 : index
    %184 = vector.load %arg6[%c7_137, %c0_138, %c0_139] : memref<9x32x64xf32, #tpu.memory_space<vmem>>, vector<1x32x64xf32>
    %185 = vector.shape_cast %184 : vector<1x32x64xf32> to vector<32x64xf32>
    %cst_140 = arith.constant dense<0.000000e+00> : vector<64x64xf32>
    %186 = tpu.matmul %183, %185, %cst_140 {dimension_numbers = #tpu.dot_dimension_numbers<[1], [0], [0], [1], [0, 0, 1, 1], [], []>} : vector<64x32xf32>, vector<32x64xf32>, vector<64x64xf32> -> vector<64x64xf32>
    %187 = arith.addf %182, %186 : vector<64x64xf32>
    %c25 = arith.constant 25 : index
    %c0_141 = arith.constant 0 : index
    %188 = vector.load %arg15[%c25, %c0_141] : memref<96x32xf32, #tpu.memory_space<vmem>>, vector<64x32xf32>
    %cst_142 = arith.constant 0.000000e+00 : f32
    %189 = vector.broadcast %cst_142 : f32 to vector<64x32xf32>
    %190 = arith.select %136, %188, %189 : vector<64x32xi1>, vector<64x32xf32>
    %c8_143 = arith.constant 8 : index
    %c0_144 = arith.constant 0 : index
    %c0_145 = arith.constant 0 : index
    %191 = vector.load %arg6[%c8_143, %c0_144, %c0_145] : memref<9x32x64xf32, #tpu.memory_space<vmem>>, vector<1x32x64xf32>
    %192 = vector.shape_cast %191 : vector<1x32x64xf32> to vector<32x64xf32>
    %cst_146 = arith.constant dense<0.000000e+00> : vector<64x64xf32>
    %193 = tpu.matmul %190, %192, %cst_146 {dimension_numbers = #tpu.dot_dimension_numbers<[1], [0], [0], [1], [0, 0, 1, 1], [], []>} : vector<64x32xf32>, vector<32x64xf32>, vector<64x64xf32> -> vector<64x64xf32>
    %194 = arith.addf %187, %193 : vector<64x64xf32>
    %c0_147 = arith.constant 0 : index
    %c0_148 = arith.constant 0 : index
    %195 = vector.load %arg7[%c0_147, %c0_148] : memref<1x64xf32, #tpu.memory_space<vmem>>, vector<1x64xf32>
    %196 = vector.broadcast %195 : vector<1x64xf32> to vector<64x64xf32>
    %197 = arith.mulf %194, %196 : vector<64x64xf32>
    %c0_149 = arith.constant 0 : index
    %c0_150 = arith.constant 0 : index
    %198 = vector.load %arg8[%c0_149, %c0_150] : memref<1x64xf32, #tpu.memory_space<vmem>>, vector<1x64xf32>
    %199 = vector.broadcast %198 : vector<1x64xf32> to vector<64x64xf32>
    %200 = arith.addf %197, %199 : vector<64x64xf32>
    %cst_151 = arith.constant 0.000000e+00 : f32
    %201 = vector.broadcast %cst_151 : f32 to vector<64x64xf32>
    %202 = arith.cmpf ogt, %200, %201 : vector<64x64xf32>
    %cst_152 = arith.constant 1.000000e-01 : f32
    %203 = vector.broadcast %cst_152 : f32 to vector<64x64xf32>
    %204 = arith.mulf %203, %200 : vector<64x64xf32>
    %205 = arith.select %202, %200, %204 : vector<64x64xi1>, vector<64x64xf32>
    %c0_153 = arith.constant 0 : index
    %c0_154 = arith.constant 0 : index
    %206 = vector.load %arg18[%c0_153, %c0_154] : memref<80x64xf32, #tpu.memory_space<vmem>>, vector<64x64xf32>
    tpu.vector_store %arg18[%c0_153, %c0_154], %205 {strides = array<i32>} : memref<80x64xf32, #tpu.memory_space<vmem>>, vector<64x64xf32>,
    %cst_155 = arith.constant 0.000000e+00 : f32
    %207 = vector.broadcast %cst_155 : f32 to vector<16x64xf32>
    %c64 = arith.constant 64 : index
    %c0_156 = arith.constant 0 : index
    %208 = vector.load %arg18[%c64, %c0_156] : memref<80x64xf32, #tpu.memory_space<vmem>>, vector<16x64xf32>
    tpu.vector_store %arg18[%c64, %c0_156], %207 {strides = array<i32>} : memref<80x64xf32, #tpu.memory_space<vmem>>, vector<16x64xf32>,
    %c0_157 = arith.constant 0 : index
    %c0_158 = arith.constant 0 : index
    %209 = vector.load %arg18[%c0_157, %c0_158] : memref<80x64xf32, #tpu.memory_space<vmem>>, vector<64x64xf32>
    %c1_159 = arith.constant 1 : index
    %c0_160 = arith.constant 0 : index
    %210 = vector.load %arg18[%c1_159, %c0_160] : memref<80x64xf32, #tpu.memory_space<vmem>>, vector<64x64xf32>
    %211 = arith.maximumf %209, %210 : vector<64x64xf32>
    %c8_161 = arith.constant 8 : index
    %c0_162 = arith.constant 0 : index
    %212 = vector.load %arg18[%c8_161, %c0_162] : memref<80x64xf32, #tpu.memory_space<vmem>>, vector<64x64xf32>
    %c9_163 = arith.constant 9 : index
    %c0_164 = arith.constant 0 : index
    %213 = vector.load %arg18[%c9_163, %c0_164] : memref<80x64xf32, #tpu.memory_space<vmem>>, vector<64x64xf32>
    %214 = arith.maximumf %212, %213 : vector<64x64xf32>
    %215 = arith.maximumf %211, %214 : vector<64x64xf32>
    %c0_165 = arith.constant 0 : index
    %c0_166 = arith.constant 0 : index
    %216 = vector.load %arg9[%c0_165, %c0_166] : memref<16x64xf32, #tpu.memory_space<vmem>>, vector<16x64xf32>
    %cst_167 = arith.constant dense<0.000000e+00> : vector<16x64xf32>
    %217 = tpu.matmul %216, %215, %cst_167 {dimension_numbers = #tpu.dot_dimension_numbers<[1], [0], [0], [1], [0, 0, 1, 1], [], []>} : vector<16x64xf32>, vector<64x64xf32>, vector<16x64xf32> -> vector<16x64xf32>
    %c8_168 = arith.constant 8 : index
    %c0_169 = arith.constant 0 : index
    %218 = vector.load %arg16[%c8_168, %c0_169] : memref<32x64xf32, #tpu.memory_space<vmem>>, vector<16x64xf32>
    tpu.vector_store %arg16[%c8_168, %c0_169], %217 {strides = array<i32>} : memref<32x64xf32, #tpu.memory_space<vmem>>, vector<16x64xf32>,
    %219 = tpu.iota {dimensions = array<i32: 0>} : vector<16x64xi32>
    %c4_i32 = arith.constant 4 : i32
    %c0_i32_170 = arith.constant 0 : i32
    %220 = arith.cmpi eq, %c4_i32, %c0_i32_170 : i32
    %c1_i32_171 = arith.constant 1 : i32
    %221 = arith.select %220, %c1_i32_171, %c4_i32 : i32
    %222 = vector.broadcast %221 : i32 to vector<16x64xi32>
    %223 = arith.remsi %219, %222 : vector<16x64xi32>
    %c0_i32_172 = arith.constant 0 : i32
    %224 = vector.broadcast %c0_i32_172 : i32 to vector<16x64xi32>
    %225 = arith.cmpi ne, %223, %224 : vector<16x64xi32>
    %c0_i32_173 = arith.constant 0 : i32
    %226 = vector.broadcast %c0_i32_173 : i32 to vector<16x64xi32>
    %227 = arith.cmpi slt, %223, %226 : vector<16x64xi32>
    %c0_i32_174 = arith.constant 0 : i32
    %228 = arith.cmpi slt, %221, %c0_i32_174 : i32
    %229 = vector.broadcast %228 : i1 to vector<16x64xi1>
    %230 = vector.broadcast %229 : vector<16x64xi1> to vector<16x64xi1>
    %231 = arith.xori %227, %230 : vector<16x64xi1>
    %232 = arith.andi %231, %225 : vector<16x64xi1>
    %233 = vector.broadcast %221 : i32 to vector<16x64xi32>
    %234 = arith.addi %223, %233 : vector<16x64xi32>
    %235 = arith.select %232, %234, %223 : vector<16x64xi1>, vector<16x64xi32>
    %c0_i32_175 = arith.constant 0 : i32
    %236 = vector.broadcast %c0_i32_175 : i32 to vector<16x64xi32>
    %237 = arith.cmpi ne, %235, %236 : vector<16x64xi32>
    %c3_i32 = arith.constant 3 : i32
    %238 = vector.broadcast %c3_i32 : i32 to vector<16x64xi32>
    %239 = arith.cmpi ne, %235, %238 : vector<16x64xi32>
    %cst_176 = arith.constant 0.000000e+00 : f32
    %240 = vector.broadcast %cst_176 : f32 to vector<16x128xf32>
    %c3_177 = arith.constant 3 : index
    %c0_178 = arith.constant 0 : index
    %241 = vector.load %arg16[%c3_177, %c0_178] : memref<32x64xf32, #tpu.memory_space<vmem>>, vector<16x64xf32>
    %cst_179 = arith.constant 0.000000e+00 : f32
    %242 = vector.broadcast %cst_179 : f32 to vector<16x64xf32>
    %243 = arith.select %237, %241, %242 : vector<16x64xi1>, vector<16x64xf32>
    %c0_180 = arith.constant 0 : index
    %c0_181 = arith.constant 0 : index
    %c0_182 = arith.constant 0 : index
    %244 = vector.load %arg10[%c0_180, %c0_181, %c0_182] : memref<9x64x128xf32, #tpu.memory_space<vmem>>, vector<1x64x128xf32>
    %245 = vector.shape_cast %244 : vector<1x64x128xf32> to vector<64x128xf32>
    %cst_183 = arith.constant dense<0.000000e+00> : vector<16x128xf32>
    %246 = tpu.matmul %243, %245, %cst_183 {dimension_numbers = #tpu.dot_dimension_numbers<[1], [0], [0], [1], [0, 0, 1, 1], [], []>} : vector<16x64xf32>, vector<64x128xf32>, vector<16x128xf32> -> vector<16x128xf32>
    %247 = arith.addf %240, %246 : vector<16x128xf32>
    %c4_184 = arith.constant 4 : index
    %c0_185 = arith.constant 0 : index
    %248 = vector.load %arg16[%c4_184, %c0_185] : memref<32x64xf32, #tpu.memory_space<vmem>>, vector<16x64xf32>
    %c1_186 = arith.constant 1 : index
    %c0_187 = arith.constant 0 : index
    %c0_188 = arith.constant 0 : index
    %249 = vector.load %arg10[%c1_186, %c0_187, %c0_188] : memref<9x64x128xf32, #tpu.memory_space<vmem>>, vector<1x64x128xf32>
    %250 = vector.shape_cast %249 : vector<1x64x128xf32> to vector<64x128xf32>
    %cst_189 = arith.constant dense<0.000000e+00> : vector<16x128xf32>
    %251 = tpu.matmul %248, %250, %cst_189 {dimension_numbers = #tpu.dot_dimension_numbers<[1], [0], [0], [1], [0, 0, 1, 1], [], []>} : vector<16x64xf32>, vector<64x128xf32>, vector<16x128xf32> -> vector<16x128xf32>
    %252 = arith.addf %247, %251 : vector<16x128xf32>
    %c5_190 = arith.constant 5 : index
    %c0_191 = arith.constant 0 : index
    %253 = vector.load %arg16[%c5_190, %c0_191] : memref<32x64xf32, #tpu.memory_space<vmem>>, vector<16x64xf32>
    %cst_192 = arith.constant 0.000000e+00 : f32
    %254 = vector.broadcast %cst_192 : f32 to vector<16x64xf32>
    %255 = arith.select %239, %253, %254 : vector<16x64xi1>, vector<16x64xf32>
    %c2_193 = arith.constant 2 : index
    %c0_194 = arith.constant 0 : index
    %c0_195 = arith.constant 0 : index
    %256 = vector.load %arg10[%c2_193, %c0_194, %c0_195] : memref<9x64x128xf32, #tpu.memory_space<vmem>>, vector<1x64x128xf32>
    %257 = vector.shape_cast %256 : vector<1x64x128xf32> to vector<64x128xf32>
    %cst_196 = arith.constant dense<0.000000e+00> : vector<16x128xf32>
    %258 = tpu.matmul %255, %257, %cst_196 {dimension_numbers = #tpu.dot_dimension_numbers<[1], [0], [0], [1], [0, 0, 1, 1], [], []>} : vector<16x64xf32>, vector<64x128xf32>, vector<16x128xf32> -> vector<16x128xf32>
    %259 = arith.addf %252, %258 : vector<16x128xf32>
    %c7_197 = arith.constant 7 : index
    %c0_198 = arith.constant 0 : index
    %260 = vector.load %arg16[%c7_197, %c0_198] : memref<32x64xf32, #tpu.memory_space<vmem>>, vector<16x64xf32>
    %cst_199 = arith.constant 0.000000e+00 : f32
    %261 = vector.broadcast %cst_199 : f32 to vector<16x64xf32>
    %262 = arith.select %237, %260, %261 : vector<16x64xi1>, vector<16x64xf32>
    %c3_200 = arith.constant 3 : index
    %c0_201 = arith.constant 0 : index
    %c0_202 = arith.constant 0 : index
    %263 = vector.load %arg10[%c3_200, %c0_201, %c0_202] : memref<9x64x128xf32, #tpu.memory_space<vmem>>, vector<1x64x128xf32>
    %264 = vector.shape_cast %263 : vector<1x64x128xf32> to vector<64x128xf32>
    %cst_203 = arith.constant dense<0.000000e+00> : vector<16x128xf32>
    %265 = tpu.matmul %262, %264, %cst_203 {dimension_numbers = #tpu.dot_dimension_numbers<[1], [0], [0], [1], [0, 0, 1, 1], [], []>} : vector<16x64xf32>, vector<64x128xf32>, vector<16x128xf32> -> vector<16x128xf32>
    %266 = arith.addf %259, %265 : vector<16x128xf32>
    %c8_204 = arith.constant 8 : index
    %c0_205 = arith.constant 0 : index
    %267 = vector.load %arg16[%c8_204, %c0_205] : memref<32x64xf32, #tpu.memory_space<vmem>>, vector<16x64xf32>
    %c4_206 = arith.constant 4 : index
    %c0_207 = arith.constant 0 : index
    %c0_208 = arith.constant 0 : index
    %268 = vector.load %arg10[%c4_206, %c0_207, %c0_208] : memref<9x64x128xf32, #tpu.memory_space<vmem>>, vector<1x64x128xf32>
    %269 = vector.shape_cast %268 : vector<1x64x128xf32> to vector<64x128xf32>
    %cst_209 = arith.constant dense<0.000000e+00> : vector<16x128xf32>
    %270 = tpu.matmul %267, %269, %cst_209 {dimension_numbers = #tpu.dot_dimension_numbers<[1], [0], [0], [1], [0, 0, 1, 1], [], []>} : vector<16x64xf32>, vector<64x128xf32>, vector<16x128xf32> -> vector<16x128xf32>
    %271 = arith.addf %266, %270 : vector<16x128xf32>
    %c9_210 = arith.constant 9 : index
    %c0_211 = arith.constant 0 : index
    %272 = vector.load %arg16[%c9_210, %c0_211] : memref<32x64xf32, #tpu.memory_space<vmem>>, vector<16x64xf32>
    %cst_212 = arith.constant 0.000000e+00 : f32
    %273 = vector.broadcast %cst_212 : f32 to vector<16x64xf32>
    %274 = arith.select %239, %272, %273 : vector<16x64xi1>, vector<16x64xf32>
    %c5_213 = arith.constant 5 : index
    %c0_214 = arith.constant 0 : index
    %c0_215 = arith.constant 0 : index
    %275 = vector.load %arg10[%c5_213, %c0_214, %c0_215] : memref<9x64x128xf32, #tpu.memory_space<vmem>>, vector<1x64x128xf32>
    %276 = vector.shape_cast %275 : vector<1x64x128xf32> to vector<64x128xf32>
    %cst_216 = arith.constant dense<0.000000e+00> : vector<16x128xf32>
    %277 = tpu.matmul %274, %276, %cst_216 {dimension_numbers = #tpu.dot_dimension_numbers<[1], [0], [0], [1], [0, 0, 1, 1], [], []>} : vector<16x64xf32>, vector<64x128xf32>, vector<16x128xf32> -> vector<16x128xf32>
    %278 = arith.addf %271, %277 : vector<16x128xf32>
    %c11 = arith.constant 11 : index
    %c0_217 = arith.constant 0 : index
    %279 = vector.load %arg16[%c11, %c0_217] : memref<32x64xf32, #tpu.memory_space<vmem>>, vector<16x64xf32>
    %cst_218 = arith.constant 0.000000e+00 : f32
    %280 = vector.broadcast %cst_218 : f32 to vector<16x64xf32>
    %281 = arith.select %237, %279, %280 : vector<16x64xi1>, vector<16x64xf32>
    %c6_219 = arith.constant 6 : index
    %c0_220 = arith.constant 0 : index
    %c0_221 = arith.constant 0 : index
    %282 = vector.load %arg10[%c6_219, %c0_220, %c0_221] : memref<9x64x128xf32, #tpu.memory_space<vmem>>, vector<1x64x128xf32>
    %283 = vector.shape_cast %282 : vector<1x64x128xf32> to vector<64x128xf32>
    %cst_222 = arith.constant dense<0.000000e+00> : vector<16x128xf32>
    %284 = tpu.matmul %281, %283, %cst_222 {dimension_numbers = #tpu.dot_dimension_numbers<[1], [0], [0], [1], [0, 0, 1, 1], [], []>} : vector<16x64xf32>, vector<64x128xf32>, vector<16x128xf32> -> vector<16x128xf32>
    %285 = arith.addf %278, %284 : vector<16x128xf32>
    %c12 = arith.constant 12 : index
    %c0_223 = arith.constant 0 : index
    %286 = vector.load %arg16[%c12, %c0_223] : memref<32x64xf32, #tpu.memory_space<vmem>>, vector<16x64xf32>
    %c7_224 = arith.constant 7 : index
    %c0_225 = arith.constant 0 : index
    %c0_226 = arith.constant 0 : index
    %287 = vector.load %arg10[%c7_224, %c0_225, %c0_226] : memref<9x64x128xf32, #tpu.memory_space<vmem>>, vector<1x64x128xf32>
    %288 = vector.shape_cast %287 : vector<1x64x128xf32> to vector<64x128xf32>
    %cst_227 = arith.constant dense<0.000000e+00> : vector<16x128xf32>
    %289 = tpu.matmul %286, %288, %cst_227 {dimension_numbers = #tpu.dot_dimension_numbers<[1], [0], [0], [1], [0, 0, 1, 1], [], []>} : vector<16x64xf32>, vector<64x128xf32>, vector<16x128xf32> -> vector<16x128xf32>
    %290 = arith.addf %285, %289 : vector<16x128xf32>
    %c13 = arith.constant 13 : index
    %c0_228 = arith.constant 0 : index
    %291 = vector.load %arg16[%c13, %c0_228] : memref<32x64xf32, #tpu.memory_space<vmem>>, vector<16x64xf32>
    %cst_229 = arith.constant 0.000000e+00 : f32
    %292 = vector.broadcast %cst_229 : f32 to vector<16x64xf32>
    %293 = arith.select %239, %291, %292 : vector<16x64xi1>, vector<16x64xf32>
    %c8_230 = arith.constant 8 : index
    %c0_231 = arith.constant 0 : index
    %c0_232 = arith.constant 0 : index
    %294 = vector.load %arg10[%c8_230, %c0_231, %c0_232] : memref<9x64x128xf32, #tpu.memory_space<vmem>>, vector<1x64x128xf32>
    %295 = vector.shape_cast %294 : vector<1x64x128xf32> to vector<64x128xf32>
    %cst_233 = arith.constant dense<0.000000e+00> : vector<16x128xf32>
    %296 = tpu.matmul %293, %295, %cst_233 {dimension_numbers = #tpu.dot_dimension_numbers<[1], [0], [0], [1], [0, 0, 1, 1], [], []>} : vector<16x64xf32>, vector<64x128xf32>, vector<16x128xf32> -> vector<16x128xf32>
    %297 = arith.addf %290, %296 : vector<16x128xf32>
    %c0_234 = arith.constant 0 : index
    %c0_235 = arith.constant 0 : index
    %298 = vector.load %arg11[%c0_234, %c0_235] : memref<1x128xf32, #tpu.memory_space<vmem>>, vector<1x128xf32>
    %299 = vector.broadcast %298 : vector<1x128xf32> to vector<16x128xf32>
    %300 = arith.mulf %297, %299 : vector<16x128xf32>
    %c0_236 = arith.constant 0 : index
    %c0_237 = arith.constant 0 : index
    %301 = vector.load %arg12[%c0_236, %c0_237] : memref<1x128xf32, #tpu.memory_space<vmem>>, vector<1x128xf32>
    %302 = vector.broadcast %301 : vector<1x128xf32> to vector<16x128xf32>
    %303 = arith.addf %300, %302 : vector<16x128xf32>
    %cst_238 = arith.constant 0.000000e+00 : f32
    %304 = vector.broadcast %cst_238 : f32 to vector<16x128xf32>
    %305 = arith.cmpf ogt, %303, %304 : vector<16x128xf32>
    %cst_239 = arith.constant 1.000000e-01 : f32
    %306 = vector.broadcast %cst_239 : f32 to vector<16x128xf32>
    %307 = arith.mulf %306, %303 : vector<16x128xf32>
    %308 = arith.select %305, %303, %307 : vector<16x128xi1>, vector<16x128xf32>
    %c0_240 = arith.constant 0 : index
    %c0_241 = arith.constant 0 : index
    %309 = vector.load %arg19[%c0_240, %c0_241] : memref<28x128xf32, #tpu.memory_space<vmem>>, vector<16x128xf32>
    tpu.vector_store %arg19[%c0_240, %c0_241], %308 {strides = array<i32>} : memref<28x128xf32, #tpu.memory_space<vmem>>, vector<16x128xf32>,
    %cst_242 = arith.constant 0.000000e+00 : f32
    %310 = vector.broadcast %cst_242 : f32 to vector<12x128xf32>
    %c16_243 = arith.constant 16 : index
    %c0_244 = arith.constant 0 : index
    %311 = vector.load %arg19[%c16_243, %c0_244] : memref<28x128xf32, #tpu.memory_space<vmem>>, vector<12x128xf32>
    tpu.vector_store %arg19[%c16_243, %c0_244], %310 {strides = array<i32>} : memref<28x128xf32, #tpu.memory_space<vmem>>, vector<12x128xf32>,
    %c0_245 = arith.constant 0 : index
    %c0_246 = arith.constant 0 : index
    %312 = vector.load %arg19[%c0_245, %c0_246] : memref<28x128xf32, #tpu.memory_space<vmem>>, vector<16x128xf32>
    %c1_247 = arith.constant 1 : index
    %c0_248 = arith.constant 0 : index
    %313 = vector.load %arg19[%c1_247, %c0_248] : memref<28x128xf32, #tpu.memory_space<vmem>>, vector<16x128xf32>
    %314 = arith.maximumf %312, %313 : vector<16x128xf32>
    %c4_249 = arith.constant 4 : index
    %c0_250 = arith.constant 0 : index
    %315 = vector.load %arg19[%c4_249, %c0_250] : memref<28x128xf32, #tpu.memory_space<vmem>>, vector<16x128xf32>
    %c5_251 = arith.constant 5 : index
    %c0_252 = arith.constant 0 : index
    %316 = vector.load %arg19[%c5_251, %c0_252] : memref<28x128xf32, #tpu.memory_space<vmem>>, vector<16x128xf32>
    %317 = arith.maximumf %315, %316 : vector<16x128xf32>
    %318 = arith.maximumf %314, %317 : vector<16x128xf32>
    %c0_253 = arith.constant 0 : index
    %c0_254 = arith.constant 0 : index
    %319 = vector.load %arg13[%c0_253, %c0_254] : memref<4x16xf32, #tpu.memory_space<vmem>>, vector<4x16xf32>
    %cst_255 = arith.constant dense<0.000000e+00> : vector<4x128xf32>
    %320 = tpu.matmul %319, %318, %cst_255 {dimension_numbers = #tpu.dot_dimension_numbers<[1], [0], [0], [1], [0, 0, 1, 1], [], []>} : vector<4x16xf32>, vector<16x128xf32>, vector<4x128xf32> -> vector<4x128xf32>
    %c0_256 = arith.constant 0 : index
    %c0_257 = arith.constant 0 : index
    %c0_258 = arith.constant 0 : index
    %321 = vector.load %arg14[%c0_256, %c0_257, %c0_258] : memref<1x4x128xf32, #tpu.memory_space<vmem>>, vector<1x4x128xf32>
    %322 = vector.shape_cast %321 : vector<1x4x128xf32> to vector<4x128xf32>
    %323 = vector.shape_cast %320 : vector<4x128xf32> to vector<1x4x128xf32>
    tpu.vector_store %arg14[%c0_256, %c0_257, %c0_258], %323 {strides = array<i32>} : memref<1x4x128xf32, #tpu.memory_space<vmem>>, vector<1x4x128xf32>,
    return
  }
  func.func @transform_0(%arg0: i32) -> (i32, i32, i32) {
    %c0_i32 = arith.constant 0 : i32
    %c0_i32_0 = arith.constant 0 : i32
    %c0_i32_1 = arith.constant 0 : i32
    return %arg0, %c0_i32, %c0_i32_0 : i32, i32, i32
  }
  func.func @transform_1(%arg0: i32) -> (i32, i32, i32) {
    %c0_i32 = arith.constant 0 : i32
    %c0_i32_0 = arith.constant 0 : i32
    %c0_i32_1 = arith.constant 0 : i32
    %c0_i32_2 = arith.constant 0 : i32
    return %c0_i32, %c0_i32_0, %c0_i32_1 : i32, i32, i32
  }
  func.func @transform_2(%arg0: i32) -> (i32, i32) {
    %c0_i32 = arith.constant 0 : i32
    %c0_i32_0 = arith.constant 0 : i32
    %c0_i32_1 = arith.constant 0 : i32
    return %c0_i32, %c0_i32_0 : i32, i32
  }
  func.func @transform_3(%arg0: i32) -> (i32, i32) {
    %c0_i32 = arith.constant 0 : i32
    %c0_i32_0 = arith.constant 0 : i32
    %c0_i32_1 = arith.constant 0 : i32
    return %c0_i32, %c0_i32_0 : i32, i32
  }
  func.func @transform_4(%arg0: i32) -> (i32, i32) {
    %c0_i32 = arith.constant 0 : i32
    %c0_i32_0 = arith.constant 0 : i32
    %c0_i32_1 = arith.constant 0 : i32
    return %c0_i32, %c0_i32_0 : i32, i32
  }
  func.func @transform_5(%arg0: i32) -> (i32, i32, i32) {
    %c0_i32 = arith.constant 0 : i32
    %c0_i32_0 = arith.constant 0 : i32
    %c0_i32_1 = arith.constant 0 : i32
    %c0_i32_2 = arith.constant 0 : i32
    return %c0_i32, %c0_i32_0, %c0_i32_1 : i32, i32, i32
  }
  func.func @transform_6(%arg0: i32) -> (i32, i32) {
    %c0_i32 = arith.constant 0 : i32
    %c0_i32_0 = arith.constant 0 : i32
    %c0_i32_1 = arith.constant 0 : i32
    return %c0_i32, %c0_i32_0 : i32, i32
  }
  func.func @transform_7(%arg0: i32) -> (i32, i32) {
    %c0_i32 = arith.constant 0 : i32
    %c0_i32_0 = arith.constant 0 : i32
    %c0_i32_1 = arith.constant 0 : i32
    return %c0_i32, %c0_i32_0 : i32, i32
  }
  func.func @transform_8(%arg0: i32) -> (i32, i32) {
    %c0_i32 = arith.constant 0 : i32
    %c0_i32_0 = arith.constant 0 : i32
    %c0_i32_1 = arith.constant 0 : i32
    return %c0_i32, %c0_i32_0 : i32, i32
  }
  func.func @transform_9(%arg0: i32) -> (i32, i32, i32) {
    %c0_i32 = arith.constant 0 : i32
    %c0_i32_0 = arith.constant 0 : i32
    %c0_i32_1 = arith.constant 0 : i32
    %c0_i32_2 = arith.constant 0 : i32
    return %c0_i32, %c0_i32_0, %c0_i32_1 : i32, i32, i32
  }
  func.func @transform_10(%arg0: i32) -> (i32, i32) {
    %c0_i32 = arith.constant 0 : i32
    %c0_i32_0 = arith.constant 0 : i32
    %c0_i32_1 = arith.constant 0 : i32
    return %c0_i32, %c0_i32_0 : i32, i32
  }
  func.func @transform_11(%arg0: i32) -> (i32, i32) {
    %c0_i32 = arith.constant 0 : i32
    %c0_i32_0 = arith.constant 0 : i32
    %c0_i32_1 = arith.constant 0 : i32
    return %c0_i32, %c0_i32_0 : i32, i32
  }
  func.func @transform_12(%arg0: i32) -> (i32, i32) {
    %c0_i32 = arith.constant 0 : i32
    %c0_i32_0 = arith.constant 0 : i32
    %c0_i32_1 = arith.constant 0 : i32
    return %c0_i32, %c0_i32_0 : i32, i32
  }
  func.func @transform_13(%arg0: i32) -> (i32, i32, i32) {
    %c0_i32 = arith.constant 0 : i32
    %c0_i32_0 = arith.constant 0 : i32
    %c0_i32_1 = arith.constant 0 : i32
    return %arg0, %c0_i32, %c0_i32_0 : i32, i32, i32
  }
}

</mosaic_0001>

<llo_original>
// kernel: _lambda_.1
$region0: #{_lambda_.1}
  #allocation0 [shape = 'u32[]', space=smem, size = 0x4, offset = 0x4, fixed_abs, tag = 'smem constant byte address 0x4 - core index']
  #allocation1 [shape = 'u32[144,128]{1,0:T(1,128)}', space=vmem, size = 0x12000, scoped, tag = 'internal scratch']
  #allocation2 [shape = 'f32[96,32]{1,0:T(8,128)}', space=vmem, size = 0xc000, scoped, tag = 'scratch operand']
  #allocation3 [shape = 'f32[32,64]{1,0:T(8,128)}', space=vmem, size = 0x4000, scoped, tag = 'scratch operand']
  #allocation4 [shape = 'f32[280,32]{1,0:T(8,128)}', space=vmem, size = 0x23000, scoped, tag = 'scratch operand']
  #allocation5 [shape = 'f32[80,64]{1,0:T(8,128)}', space=vmem, size = 0xa000, scoped, tag = 'scratch operand']
  #allocation6 [shape = 'f32[28,128]{1,0:T(8,128)}', space=vmem, size = 0x4000, scoped, tag = 'scratch operand']
  %s0 = inlined_call_operand.vmem [shape: f32[2,320,3], index: 0, kind: input, shape index: {}]
  %s1 = inlined_call_operand.vmem [shape: f32[9,3,32], index: 1, kind: input, shape index: {}]
  %s2 = inlined_call_operand.vmem [shape: f32[1,32], index: 2, kind: input, shape index: {}]
  %s3 = inlined_call_operand.vmem [shape: f32[1,32], index: 3, kind: input, shape index: {}]
  %s4 = inlined_call_operand.vmem [shape: f32[64,256], index: 4, kind: input, shape index: {}]
  %s5 = inlined_call_operand.vmem [shape: f32[9,32,64], index: 5, kind: input, shape index: {}]
  %s6 = inlined_call_operand.vmem [shape: f32[1,64], index: 6, kind: input, shape index: {}]
  %s7 = inlined_call_operand.vmem [shape: f32[1,64], index: 7, kind: input, shape index: {}]
  %s8 = inlined_call_operand.vmem [shape: f32[16,64], index: 8, kind: input, shape index: {}]
  %s9 = inlined_call_operand.vmem [shape: f32[9,64,128], index: 9, kind: input, shape index: {}]
  %s10 = inlined_call_operand.vmem [shape: f32[1,128], index: 10, kind: input, shape index: {}]
  %s11 = inlined_call_operand.vmem [shape: f32[1,128], index: 11, kind: input, shape index: {}]
  %s12 = inlined_call_operand.vmem [shape: f32[4,16], index: 12, kind: input, shape index: {}]
  %s13 = inlined_call_operand.hbm [shape: f32[2,4,128], index: 13, kind: output, shape index: {}]
  %s14 = sld [smem:[#allocation0]]
  $region85: #{_lambda_.1} parent=0
    _
  %s16 = ssub.s32 1, %s14
  %s17 = scalar_select 0, %s16, %s14
  $region1: #{_lambda_.1} parent=0
    #allocation7 [shape = 'u8[4096]{0}', space=vmem, size = 0x1000, scoped, tag = 'output window, operand 0']
    #allocation8 [shape = 's32[2]{0}', space=sflag, size = 0x8, scoped, tag = 'scoped memory for _lambda_.1']
    %18 = vsyncpa [#allocation8], 0
    %s19 = scalar_lea.sflag [#allocation8], 1
    %20 = vsyncpa %s19, 0
    loop: start=0, step=1, limit=4
    $region2: #{_lambda_.1} parent=1 // loop_pre_header
      _
    $region3: #{_lambda_.1} parent=1 // loop_header
      %s22 = sphi 0, %s26
      %p23 = scmp.ge.s32.totalorder %s22, 4
      %s32 = sphi 0, %s34
      %s35 = sphi 0, %s32
      %s36 = sphi 0, %s35
      %s52 = sphi 0, %s36
      %s56 = sphi 0, %s56
      %s58 = sphi 0, %s56
      %s59 = sphi 0, %s58
      %s73 = sphi 0, %s59
      %s77 = sphi 0, %s77
      %s79 = sphi 0, %s77
      %s80 = sphi 0, %s79
      %s94 = sphi 0, %s80
      %s98 = sphi 0, %s98
      %s100 = sphi 0, %s98
      %s101 = sphi 0, %s100
      %s115 = sphi 0, %s101
      %s119 = sphi 0, %s119
      %s121 = sphi 0, %s119
      %s122 = sphi 0, %s121
      %s136 = sphi 0, %s122
      %s140 = sphi 0, %s140
      %s142 = sphi 0, %s140
      %s143 = sphi 0, %s142
      %s157 = sphi 0, %s143
      %s161 = sphi 0, %s161
      %s163 = sphi 0, %s161
      %s164 = sphi 0, %s163
      %s178 = sphi 0, %s164
      %s182 = sphi 0, %s182
      %s184 = sphi 0, %s182
      %s185 = sphi 0, %s184
      %s199 = sphi 0, %s185
      %s203 = sphi 0, %s203
      %s205 = sphi 0, %s203
      %s206 = sphi 0, %s205
      %s220 = sphi 0, %s206
      %s224 = sphi 0, %s224
      %s226 = sphi 0, %s224
      %s227 = sphi 0, %s226
      %s241 = sphi 0, %s227
      %s245 = sphi 0, %s245
      %s247 = sphi 0, %s245
      %s248 = sphi 0, %s247
      %s262 = sphi 0, %s248
      %s266 = sphi 0, %s266
      %s268 = sphi 0, %s266
      %s269 = sphi 0, %s268
      %s283 = sphi 0, %s269
      %s287 = sphi 0, %s287
      %s289 = sphi 0, %s287
      %s290 = sphi 0, %s289
      %s304 = sphi 0, %s290
      %s310 = sphi 0, %s312
      %s313 = sphi 0, %s310
      %s314 = sphi 0, %s313
      %s330 = sphi 0, %s314
    $region4: #{_lambda_.1} parent=1 // loop_header_branch
      %25 = sbr.rel (%p23) target = $region8
    $region5: #{_lambda_.1} parent=1 // loop_body
      %s27 = ssub.s32 %s22, 1
      %s28 = ssub.s32 %s22, 2
      %s29 = sadd.s32 %s22, 1
      %s30 = ssub.s32 %s22, %s29
      %p31 = scmp.eq.s32.totalorder %s30, 0
      %s33 = sadd.s32 %s32, 1
      %s34 = scalar_select %p31, %s32, %s33
      %p37 = pneg %p31
      %p38 = scmp.eq.s32.totalorder %s22, 1
      %p39 = por %p37, %p38
      %p40 = scmp.ne.s32.totalorder %s32, %s35
      %p41 = scmp.eq.s32.totalorder %s22, 0
      %p42 = por %p40, %p41
      %p43 = scmp.ne.s32.totalorder %s32, %s35
      %p44 = scmp.eq.s32.totalorder %s27, 1
      %p45 = por %p43, %p44
      %p46 = scmp.ne.s32.totalorder %s35, %s36
      %p47 = scmp.eq.s32.totalorder %s27, 0
      %p48 = por %p46, %p47
      %p49 = scmp.ne.s32.totalorder %s35, %s36
      %p50 = scmp.eq.s32.totalorder %s28, 1
      %p51 = por %p49, %p50
      %p53 = scmp.ne.s32.totalorder %s36, %s52
      %p54 = scmp.eq.s32.totalorder %s28, 0
      %p55 = por %p53, %p54
      %s57 = sadd.s32 %s56, 1
      %p60 = scmp.eq.s32.totalorder %s22, 1
      %p61 = scmp.ne.s32.totalorder %s56, %s58
      %p62 = scmp.eq.s32.totalorder %s22, 0
      %p63 = por %p61, %p62
      %p64 = scmp.ne.s32.totalorder %s56, %s58
      %p65 = scmp.eq.s32.totalorder %s27, 1
      %p66 = por %p64, %p65
      %p67 = scmp.ne.s32.totalorder %s58, %s59
      %p68 = scmp.eq.s32.totalorder %s27, 0
      %p69 = por %p67, %p68
      %p70 = scmp.ne.s32.totalorder %s58, %s59
      %p71 = scmp.eq.s32.totalorder %s28, 1
      %p72 = por %p70, %p71
      %p74 = scmp.ne.s32.totalorder %s59, %s73
      %p75 = scmp.eq.s32.totalorder %s28, 0
      %p76 = por %p74, %p75
      %s78 = sadd.s32 %s77, 1
      %p81 = scmp.eq.s32.totalorder %s22, 1
      %p82 = scmp.ne.s32.totalorder %s77, %s79
      %p83 = scmp.eq.s32.totalorder %s22, 0
      %p84 = por %p82, %p83
      %p85 = scmp.ne.s32.totalorder %s77, %s79
      %p86 = scmp.eq.s32.totalorder %s27, 1
      %p87 = por %p85, %p86
      %p88 = scmp.ne.s32.totalorder %s79, %s80
      %p89 = scmp.eq.s32.totalorder %s27, 0
      %p90 = por %p88, %p89
      %p91 = scmp.ne.s32.totalorder %s79, %s80
      %p92 = scmp.eq.s32.totalorder %s28, 1
      %p93 = por %p91, %p92
      %p95 = scmp.ne.s32.totalorder %s80, %s94
      %p96 = scmp.eq.s32.totalorder %s28, 0
      %p97 = por %p95, %p96
      %s99 = sadd.s32 %s98, 1
      %p102 = scmp.eq.s32.totalorder %s22, 1
      %p103 = scmp.ne.s32.totalorder %s98, %s100
      %p104 = scmp.eq.s32.totalorder %s22, 0
      %p105 = por %p103, %p104
      %p106 = scmp.ne.s32.totalorder %s98, %s100
      %p107 = scmp.eq.s32.totalorder %s27, 1
      %p108 = por %p106, %p107
      %p109 = scmp.ne.s32.totalorder %s100, %s101
      %p110 = scmp.eq.s32.totalorder %s27, 0
      %p111 = por %p109, %p110
      %p112 = scmp.ne.s32.totalorder %s100, %s101
      %p113 = scmp.eq.s32.totalorder %s28, 1
      %p114 = por %p112, %p113
      %p116 = scmp.ne.s32.totalorder %s101, %s115
      %p117 = scmp.eq.s32.totalorder %s28, 0
      %p118 = por %p116, %p117
      %s120 = sadd.s32 %s119, 1
      %p123 = scmp.eq.s32.totalorder %s22, 1
      %p124 = scmp.ne.s32.totalorder %s119, %s121
      %p125 = scmp.eq.s32.totalorder %s22, 0
      %p126 = por %p124, %p125
      %p127 = scmp.ne.s32.totalorder %s119, %s121
      %p128 = scmp.eq.s32.totalorder %s27, 1
      %p129 = por %p127, %p128
      %p130 = scmp.ne.s32.totalorder %s121, %s122
      %p131 = scmp.eq.s32.totalorder %s27, 0
      %p132 = por %p130, %p131
      %p133 = scmp.ne.s32.totalorder %s121, %s122
      %p134 = scmp.eq.s32.totalorder %s28, 1
      %p135 = por %p133, %p134
      %p137 = scmp.ne.s32.totalorder %s122, %s136
      %p138 = scmp.eq.s32.totalorder %s28, 0
      %p139 = por %p137, %p138
      %s141 = sadd.s32 %s140, 1
      %p144 = scmp.eq.s32.totalorder %s22, 1
      %p145 = scmp.ne.s32.totalorder %s140, %s142
      %p146 = scmp.eq.s32.totalorder %s22, 0
      %p147 = por %p145, %p146
      %p148 = scmp.ne.s32.totalorder %s140, %s142
      %p149 = scmp.eq.s32.totalorder %s27, 1
      %p150 = por %p148, %p149
      %p151 = scmp.ne.s32.totalorder %s142, %s143
      %p152 = scmp.eq.s32.totalorder %s27, 0
      %p153 = por %p151, %p152
      %p154 = scmp.ne.s32.totalorder %s142, %s143
      %p155 = scmp.eq.s32.totalorder %s28, 1
      %p156 = por %p154, %p155
      %p158 = scmp.ne.s32.totalorder %s143, %s157
      %p159 = scmp.eq.s32.totalorder %s28, 0
      %p160 = por %p158, %p159
      %s162 = sadd.s32 %s161, 1
      %p165 = scmp.eq.s32.totalorder %s22, 1
      %p166 = scmp.ne.s32.totalorder %s161, %s163
      %p167 = scmp.eq.s32.totalorder %s22, 0
      %p168 = por %p166, %p167
      %p169 = scmp.ne.s32.totalorder %s161, %s163
      %p170 = scmp.eq.s32.totalorder %s27, 1
      %p171 = por %p169, %p170
      %p172 = scmp.ne.s32.totalorder %s163, %s164
      %p173 = scmp.eq.s32.totalorder %s27, 0
      %p174 = por %p172, %p173
      %p175 = scmp.ne.s32.totalorder %s163, %s164
      %p176 = scmp.eq.s32.totalorder %s28, 1
      %p177 = por %p175, %p176
      %p179 = scmp.ne.s32.totalorder %s164, %s178
      %p180 = scmp.eq.s32.totalorder %s28, 0
      %p181 = por %p179, %p180
      %s183 = sadd.s32 %s182, 1
      %p186 = scmp.eq.s32.totalorder %s22, 1
      %p187 = scmp.ne.s32.totalorder %s182, %s184
      %p188 = scmp.eq.s32.totalorder %s22, 0
      %p189 = por %p187, %p188
      %p190 = scmp.ne.s32.totalorder %s182, %s184
      %p191 = scmp.eq.s32.totalorder %s27, 1
      %p192 = por %p190, %p191
      %p193 = scmp.ne.s32.totalorder %s184, %s185
      %p194 = scmp.eq.s32.totalorder %s27, 0
      %p195 = por %p193, %p194
      %p196 = scmp.ne.s32.totalorder %s184, %s185
      %p197 = scmp.eq.s32.totalorder %s28, 1
      %p198 = por %p196, %p197
      %p200 = scmp.ne.s32.totalorder %s185, %s199
      %p201 = scmp.eq.s32.totalorder %s28, 0
      %p202 = por %p200, %p201
      %s204 = sadd.s32 %s203, 1
      %p207 = scmp.eq.s32.totalorder %s22, 1
      %p208 = scmp.ne.s32.totalorder %s203, %s205
      %p209 = scmp.eq.s32.totalorder %s22, 0
      %p210 = por %p208, %p209
      %p211 = scmp.ne.s32.totalorder %s203, %s205
      %p212 = scmp.eq.s32.totalorder %s27, 1
      %p213 = por %p211, %p212
      %p214 = scmp.ne.s32.totalorder %s205, %s206
      %p215 = scmp.eq.s32.totalorder %s27, 0
      %p216 = por %p214, %p215
      %p217 = scmp.ne.s32.totalorder %s205, %s206
      %p218 = scmp.eq.s32.totalorder %s28, 1
      %p219 = por %p217, %p218
      %p221 = scmp.ne.s32.totalorder %s206, %s220
      %p222 = scmp.eq.s32.totalorder %s28, 0
      %p223 = por %p221, %p222
      %s225 = sadd.s32 %s224, 1
      %p228 = scmp.eq.s32.totalorder %s22, 1
      %p229 = scmp.ne.s32.totalorder %s224, %s226
      %p230 = scmp.eq.s32.totalorder %s22, 0
      %p231 = por %p229, %p230
      %p232 = scmp.ne.s32.totalorder %s224, %s226
      %p233 = scmp.eq.s32.totalorder %s27, 1
      %p234 = por %p232, %p233
      %p235 = scmp.ne.s32.totalorder %s226, %s227
      %p236 = scmp.eq.s32.totalorder %s27, 0
      %p237 = por %p235, %p236
      %p238 = scmp.ne.s32.totalorder %s226, %s227
      %p239 = scmp.eq.s32.totalorder %s28, 1
      %p240 = por %p238, %p239
      %p242 = scmp.ne.s32.totalorder %s227, %s241
      %p243 = scmp.eq.s32.totalorder %s28, 0
      %p244 = por %p242, %p243
      %s246 = sadd.s32 %s245, 1
      %p249 = scmp.eq.s32.totalorder %s22, 1
      %p250 = scmp.ne.s32.totalorder %s245, %s247
      %p251 = scmp.eq.s32.totalorder %s22, 0
      %p252 = por %p250, %p251
      %p253 = scmp.ne.s32.totalorder %s245, %s247
      %p254 = scmp.eq.s32.totalorder %s27, 1
      %p255 = por %p253, %p254
      %p256 = scmp.ne.s32.totalorder %s247, %s248
      %p257 = scmp.eq.s32.totalorder %s27, 0
      %p258 = por %p256, %p257
      %p259 = scmp.ne.s32.totalorder %s247, %s248
      %p260 = scmp.eq.s32.totalorder %s28, 1
      %p261 = por %p259, %p260
      %p263 = scmp.ne.s32.totalorder %s248, %s262
      %p264 = scmp.eq.s32.totalorder %s28, 0
      %p265 = por %p263, %p264
      %s267 = sadd.s32 %s266, 1
      %p270 = scmp.eq.s32.totalorder %s22, 1
      %p271 = scmp.ne.s32.totalorder %s266, %s268
      %p272 = scmp.eq.s32.totalorder %s22, 0
      %p273 = por %p271, %p272
      %p274 = scmp.ne.s32.totalorder %s266, %s268
      %p275 = scmp.eq.s32.totalorder %s27, 1
      %p276 = por %p274, %p275
      %p277 = scmp.ne.s32.totalorder %s268, %s269
      %p278 = scmp.eq.s32.totalorder %s27, 0
      %p279 = por %p277, %p278
      %p280 = scmp.ne.s32.totalorder %s268, %s269
      %p281 = scmp.eq.s32.totalorder %s28, 1
      %p282 = por %p280, %p281
      %p284 = scmp.ne.s32.totalorder %s269, %s283
      %p285 = scmp.eq.s32.totalorder %s28, 0
      %p286 = por %p284, %p285
      %s288 = sadd.s32 %s287, 1
      %p291 = scmp.eq.s32.totalorder %s22, 1
      %p292 = scmp.ne.s32.totalorder %s287, %s289
      %p293 = scmp.eq.s32.totalorder %s22, 0
      %p294 = por %p292, %p293
      %p295 = scmp.ne.s32.totalorder %s287, %s289
      %p296 = scmp.eq.s32.totalorder %s27, 1
      %p297 = por %p295, %p296
      %p298 = scmp.ne.s32.totalorder %s289, %s290
      %p299 = scmp.eq.s32.totalorder %s27, 0
      %p300 = por %p298, %p299
      %p301 = scmp.ne.s32.totalorder %s289, %s290
      %p302 = scmp.eq.s32.totalorder %s28, 1
      %p303 = por %p301, %p302
      %p305 = scmp.ne.s32.totalorder %s290, %s304
      %p306 = scmp.eq.s32.totalorder %s28, 0
      %p307 = por %p305, %p306
      %s308 = ssub.s32 %s22, %s29
      %p309 = scmp.eq.s32.totalorder %s308, 0
      %s311 = sadd.s32 %s310, 1
      %s312 = scalar_select %p309, %s310, %s311
      %p315 = pneg %p309
      %p316 = scmp.eq.s32.totalorder %s22, 1
      %p317 = por %p315, %p316
      %p318 = scmp.ne.s32.totalorder %s310, %s313
      %p319 = scmp.eq.s32.totalorder %s22, 0
      %p320 = por %p318, %p319
      %p321 = scmp.ne.s32.totalorder %s310, %s313
      %p322 = scmp.eq.s32.totalorder %s27, 1
      %p323 = por %p321, %p322
      %p324 = scmp.ne.s32.totalorder %s313, %s314
      %p325 = scmp.eq.s32.totalorder %s27, 0
      %p326 = por %p324, %p325
      %p327 = scmp.ne.s32.totalorder %s313, %s314
      %p328 = scmp.eq.s32.totalorder %s28, 1
      %p329 = por %p327, %p328
      %p331 = scmp.ne.s32.totalorder %s314, %s330
      %p332 = scmp.eq.s32.totalorder %s28, 0
      %p333 = por %p331, %p332
      %p334 = scmp.le.s32.totalorder 1, %s22
      %p335 = scmp.lt.s32.totalorder %s22, 3
      %p336 = pnand %p334, %p335
      %p337 = pneg %p336
      // Predicated region
      $region9: #{_lambda_.1} parent=5 // pred_check
        _
      $region10: #{_lambda_.1} parent=5 // pred_check_branch
        %339 = sbr.rel (%p336) target = $region12
      $region11: #{_lambda_.1} parent=5 // pred_region
        %s340 = ssub.s32 %s22, 1
        // Predicated region
        $region13: #{_lambda_.1} parent=11 // pred_check
          %p341 = pneg %p69
        $region14: #{_lambda_.1} parent=11 // pred_check_branch
          %343 = sbr.rel (%p341) target = $region16
        $region15: #{_lambda_.1} parent=11 // pred_region
          _
        $region16: #{_lambda_.1} parent=11 // pred_fallthru
          _
        // Predicated region
        $region17: #{_lambda_.1} parent=11 // pred_check
          %p344 = pneg %p90
        $region18: #{_lambda_.1} parent=11 // pred_check_branch
          %346 = sbr.rel (%p344) target = $region20
        $region19: #{_lambda_.1} parent=11 // pred_region
          _
        $region20: #{_lambda_.1} parent=11 // pred_fallthru
          _
        // Predicated region
        $region21: #{_lambda_.1} parent=11 // pred_check
          %p347 = pneg %p111
        $region22: #{_lambda_.1} parent=11 // pred_check_branch
          %349 = sbr.rel (%p347) target = $region24
        $region23: #{_lambda_.1} parent=11 // pred_region
          _
        $region24: #{_lambda_.1} parent=11 // pred_fallthru
          _
        // Predicated region
        $region25: #{_lambda_.1} parent=11 // pred_check
          %p350 = pneg %p132
        $region26: #{_lambda_.1} parent=11 // pred_check_branch
          %352 = sbr.rel (%p350) target = $region28
        $region27: #{_lambda_.1} parent=11 // pred_region
          _
        $region28: #{_lambda_.1} parent=11 // pred_fallthru
          _
        // Predicated region
        $region29: #{_lambda_.1} parent=11 // pred_check
          %p353 = pneg %p153
        $region30: #{_lambda_.1} parent=11 // pred_check_branch
          %355 = sbr.rel (%p353) target = $region32
        $region31: #{_lambda_.1} parent=11 // pred_region
          _
        $region32: #{_lambda_.1} parent=11 // pred_fallthru
          _
        // Predicated region
        $region33: #{_lambda_.1} parent=11 // pred_check
          %p356 = pneg %p174
        $region34: #{_lambda_.1} parent=11 // pred_check_branch
          %358 = sbr.rel (%p356) target = $region36
        $region35: #{_lambda_.1} parent=11 // pred_region
          _
        $region36: #{_lambda_.1} parent=11 // pred_fallthru
          _
        // Predicated region
        $region37: #{_lambda_.1} parent=11 // pred_check
          %p359 = pneg %p195
        $region38: #{_lambda_.1} parent=11 // pred_check_branch
          %361 = sbr.rel (%p359) target = $region40
        $region39: #{_lambda_.1} parent=11 // pred_region
          _
        $region40: #{_lambda_.1} parent=11 // pred_fallthru
          _
        // Predicated region
        $region41: #{_lambda_.1} parent=11 // pred_check
          %p362 = pneg %p216
        $region42: #{_lambda_.1} parent=11 // pred_check_branch
          %364 = sbr.rel (%p362) target = $region44
        $region43: #{_lambda_.1} parent=11 // pred_region
          _
        $region44: #{_lambda_.1} parent=11 // pred_fallthru
          _
        // Predicated region
        $region45: #{_lambda_.1} parent=11 // pred_check
          %p365 = pneg %p237
        $region46: #{_lambda_.1} parent=11 // pred_check_branch
          %367 = sbr.rel (%p365) target = $region48
        $region47: #{_lambda_.1} parent=11 // pred_region
          _
        $region48: #{_lambda_.1} parent=11 // pred_fallthru
          _
        // Predicated region
        $region49: #{_lambda_.1} parent=11 // pred_check
          %p368 = pneg %p258
        $region50: #{_lambda_.1} parent=11 // pred_check_branch
          %370 = sbr.rel (%p368) target = $region52
        $region51: #{_lambda_.1} parent=11 // pred_region
          _
        $region52: #{_lambda_.1} parent=11 // pred_fallthru
          _
        // Predicated region
        $region53: #{_lambda_.1} parent=11 // pred_check
          %p371 = pneg %p279
        $region54: #{_lambda_.1} parent=11 // pred_check_branch
          %373 = sbr.rel (%p371) target = $region56
        $region55: #{_lambda_.1} parent=11 // pred_region
          _
        $region56: #{_lambda_.1} parent=11 // pred_fallthru
          _
        // Predicated region
        $region57: #{_lambda_.1} parent=11 // pred_check
          %p374 = pneg %p300
        $region58: #{_lambda_.1} parent=11 // pred_check_branch
          %376 = sbr.rel (%p374) target = $region60
        $region59: #{_lambda_.1} parent=11 // pred_region
          _
        $region60: #{_lambda_.1} parent=11 // pred_fallthru
          _
      $region12: #{_lambda_.1} parent=5 // pred_fallthru
        _
      %p377 = scmp.lt.s32.totalorder %s22, 2
      // Predicated region
      $region61: #{_lambda_.1} parent=5 // pred_check
        %p378 = pneg %p377
      $region62: #{_lambda_.1} parent=5 // pred_check_branch
        %380 = sbr.rel (%p378) target = $region64
      $region63: #{_lambda_.1} parent=5 // pred_region
        // Predicated region
        $region65: #{_lambda_.1} parent=63 // pred_check
          %p381 = pneg %p42
        $region66: #{_lambda_.1} parent=63 // pred_check_branch
          %383 = sbr.rel (%p381) target = $region68
        $region67: #{_lambda_.1} parent=63 // pred_region
          %p384 = scmp.lt.s32.totalorder %s22, 1
          %s385 = scalar_select %p384, %s22, 1
          %s386 = smul.addr %s385, 40
          %s387 = smul.addr %s386, 8
          %s388 = scalar_lea.vmem %s0, %s387
        $region68: #{_lambda_.1} parent=63 // pred_fallthru
          _
      $region64: #{_lambda_.1} parent=5 // pred_fallthru
        _
      %p389 = scmp.le.s32.totalorder 1, %s22
      %p390 = scmp.lt.s32.totalorder %s22, 3
      %p391 = pnand %p389, %p390
      %p392 = pneg %p391
      // Predicated region
      $region69: #{_lambda_.1} parent=5 // pred_check
        _
      $region70: #{_lambda_.1} parent=5 // pred_check_branch
        %394 = sbr.rel (%p391) target = $region72
      $region71: #{_lambda_.1} parent=5 // pred_region
        %s395 = ssub.s32 %s22, 1
        %p396 = scmp.lt.s32.totalorder %s27, 1
        %s397 = scalar_select %p396, %s27, 1
        %s398 = smul.addr %s397, 40
        %s399 = smul.addr %s398, 8
        %s400 = scalar_lea.vmem %s0, %s399
        %p401 = pneg %p48
        %p402 = pneg %p45
        %p403 = pneg %p69
        %p404 = pneg %p66
        %p405 = pneg %p90
        %p406 = pneg %p87
        %p407 = pneg %p111
        %p408 = pneg %p108
        %p409 = pneg %p132
        %p410 = pneg %p129
        %p411 = pneg %p153
        %p412 = pneg %p150
        %p413 = pneg %p174
        %p414 = pneg %p171
        %p415 = pneg %p195
        %p416 = pneg %p192
        %p417 = pneg %p216
        %p418 = pneg %p213
        %p419 = pneg %p237
        %p420 = pneg %p234
        %p421 = pneg %p258
        %p422 = pneg %p255
        %p423 = pneg %p279
        %p424 = pneg %p276
        %p425 = pneg %p300
        %p426 = pneg %p297
        %p427 = pneg %p326
        %p428 = pneg %p323
        %s429 = sand.u32 %s313, 1
        %s430 = scalar_lea.sflag [#allocation8], %s429
        %s431 = sand.u32 %s313, 1
        %s432 = smul.addr %s431, 4
        %s433 = scalar_lea.vmem [#allocation7], %s432
        %p434 = scmp.lt.s32.totalorder %s27, 1
        %s435 = scalar_select %p434, %s27, 1
        %s436 = smul.addr %s435, 40
        %s437 = smul.addr %s436, 8
        %s438 = scalar_lea.vmem %s0, %s437
        %vm439 = vcmask 261120
        %440 = vst.msk [vmem:[#allocation2] sm:$0xff] %vm439, 0.0
        %441 = vst.msk [vmem:[#allocation2 + $0x8] sm:$0xff] %vm439, 0.0
        %442 = vst.msk [vmem:[#allocation2 + $0x10] sm:$0xff] %vm439, 0.0
        %443 = vst.msk [vmem:[#allocation2 + $0x18] sm:$0xff] %vm439, 0.0
        %444 = vst.msk [vmem:[#allocation2 + $0x20] sm:$0xff] %vm439, 0.0
        %445 = vst.msk [vmem:[#allocation2 + $0x28] sm:$0xff] %vm439, 0.0
        %446 = vst.msk [vmem:[#allocation2 + $0x30] sm:$0xff] %vm439, 0.0
        %447 = vst.msk [vmem:[#allocation2 + $0x38] sm:$0xff] %vm439, 0.0
        %448 = vst.msk [vmem:[#allocation2 + $0x40] sm:$0xff] %vm439, 0.0
        %449 = vst.msk [vmem:[#allocation2 + $0x48] sm:$0xff] %vm439, 0.0
        %450 = vst.msk [vmem:[#allocation2 + $0x50] sm:$0xff] %vm439, 0.0
        %451 = vst.msk [vmem:[#allocation2 + $0x58] sm:$0xff] %vm439, 0.0
        %vm452 = vcmask 523264
        %453 = vst.msk [vmem:[#allocation3] sm:$0xff] %vm452, 0.0
        %454 = vst.msk [vmem:[#allocation3 + $0x8] sm:$0xff] %vm452, 0.0
        %455 = vst.msk [vmem:[#allocation3 + $0x10] sm:$0xff] %vm452, 0.0
        %456 = vst.msk [vmem:[#allocation3 + $0x18] sm:$0xff] %vm452, 0.0
        %v457 = vlaneseq
        %v458 = vshrl.u32 %v457, 7
        %v459 = vadd.s32 %v458, 8
        %v460 = vadd.s32 %v458, 16
        %v461 = vadd.s32 %v458, 24
        %v462 = vadd.s32 %v458, 32
        %v463 = vadd.s32 %v458, 40
        %v464 = vadd.s32 %v458, 48
        %v465 = vadd.s32 %v458, 56
        %v466 = vadd.s32 %v458, 64
        %v467 = vadd.s32 %v458, 72
        %v468 = vadd.s32 %v458, 80
        %v469 = vadd.s32 %v458, 88
        %v470 = vadd.s32 %v458, 96
        %v471 = vadd.s32 %v458, 104
        %v472 = vadd.s32 %v458, 112
        %v473 = vadd.s32 %v458, 120
        %v474 = vadd.s32 %v458, 128
        %v475 = vadd.s32 %v458, 136
        %v476 = vadd.s32 %v458, 144
        %v477 = vadd.s32 %v458, 152
        %v478 = vadd.s32 %v458, 160
        %v479 = vadd.s32 %v458, 168
        %v480 = vadd.s32 %v458, 176
        %v481 = vadd.s32 %v458, 184
        %v482 = vadd.s32 %v458, 192
        %v483 = vadd.s32 %v458, 200
        %v484 = vadd.s32 %v458, 208
        %v485 = vadd.s32 %v458, 216
        %v486 = vadd.s32 %v458, 224
        %v487 = vadd.s32 %v458, 232
        %v488 = vadd.s32 %v458, 240
        %v489 = vadd.s32 %v458, 248
        %vm490 = vcmp.lt.s32.totalorder %v458, 0
        %v491 = vsub.s32 0, %v458
        %v492 = vsel %vm490, %v491, %v458
        %v493 = vshrl.u32 %v492, 4
        %v494 = vand.u32 %v492, 15
        %v495 = vsub.s32 0, %v494
        %v496 = vsel %vm490, %v495, %v494
        %vm497 = vcmp.lt.s32.totalorder %v459, 0
        %v498 = vsub.s32 0, %v459
        %v499 = vsel %vm497, %v498, %v459
        %v500 = vshrl.u32 %v499, 4
        %v501 = vand.u32 %v499, 15
        %v502 = vsub.s32 0, %v501
        %v503 = vsel %vm497, %v502, %v501
        %vm504 = vcmp.lt.s32.totalorder %v460, 0
        %v505 = vsub.s32 0, %v460
        %v506 = vsel %vm504, %v505, %v460
        %v507 = vshrl.u32 %v506, 4
        %v508 = vand.u32 %v506, 15
        %v509 = vsub.s32 0, %v508
        %v510 = vsel %vm504, %v509, %v508
        %vm511 = vcmp.lt.s32.totalorder %v461, 0
        %v512 = vsub.s32 0, %v461
        %v513 = vsel %vm511, %v512, %v461
        %v514 = vshrl.u32 %v513, 4
        %v515 = vand.u32 %v513, 15
        %v516 = vsub.s32 0, %v515
        %v517 = vsel %vm511, %v516, %v515
        %vm518 = vcmp.lt.s32.totalorder %v462, 0
        %v519 = vsub.s32 0, %v462
        %v520 = vsel %vm518, %v519, %v462
        %v521 = vshrl.u32 %v520, 4
        %v522 = vand.u32 %v520, 15
        %v523 = vsub.s32 0, %v522
        %v524 = vsel %vm518, %v523, %v522
        %vm525 = vcmp.lt.s32.totalorder %v463, 0
        %v526 = vsub.s32 0, %v463
        %v527 = vsel %vm525, %v526, %v463
        %v528 = vshrl.u32 %v527, 4
        %v529 = vand.u32 %v527, 15
        %v530 = vsub.s32 0, %v529
        %v531 = vsel %vm525, %v530, %v529
        %vm532 = vcmp.lt.s32.totalorder %v464, 0
        %v533 = vsub.s32 0, %v464
        %v534 = vsel %vm532, %v533, %v464
        %v535 = vshrl.u32 %v534, 4
        %v536 = vand.u32 %v534, 15
        %v537 = vsub.s32 0, %v536
        %v538 = vsel %vm532, %v537, %v536
        %vm539 = vcmp.lt.s32.totalorder %v465, 0
        %v540 = vsub.s32 0, %v465
        %v541 = vsel %vm539, %v540, %v465
        %v542 = vshrl.u32 %v541, 4
        %v543 = vand.u32 %v541, 15
        %v544 = vsub.s32 0, %v543
        %v545 = vsel %vm539, %v544, %v543
        %vm546 = vcmp.lt.s32.totalorder %v466, 0
        %v547 = vsub.s32 0, %v466
        %v548 = vsel %vm546, %v547, %v466
        %v549 = vshrl.u32 %v548, 4
        %v550 = vand.u32 %v548, 15
        %v551 = vsub.s32 0, %v550
        %v552 = vsel %vm546, %v551, %v550
        %vm553 = vcmp.lt.s32.totalorder %v467, 0
        %v554 = vsub.s32 0, %v467
        %v555 = vsel %vm553, %v554, %v467
        %v556 = vshrl.u32 %v555, 4
        %v557 = vand.u32 %v555, 15
        %v558 = vsub.s32 0, %v557
        %v559 = vsel %vm553, %v558, %v557
        %vm560 = vcmp.lt.s32.totalorder %v468, 0
        %v561 = vsub.s32 0, %v468
        %v562 = vsel %vm560, %v561, %v468
        %v563 = vshrl.u32 %v562, 4
        %v564 = vand.u32 %v562, 15
        %v565 = vsub.s32 0, %v564
        %v566 = vsel %vm560, %v565, %v564
        %vm567 = vcmp.lt.s32.totalorder %v469, 0
        %v568 = vsub.s32 0, %v469
        %v569 = vsel %vm567, %v568, %v469
        %v570 = vshrl.u32 %v569, 4
        %v571 = vand.u32 %v569, 15
        %v572 = vsub.s32 0, %v571
        %v573 = vsel %vm567, %v572, %v571
        %vm574 = vcmp.lt.s32.totalorder %v470, 0
        %v575 = vsub.s32 0, %v470
        %v576 = vsel %vm574, %v575, %v470
        %v577 = vshrl.u32 %v576, 4
        %v578 = vand.u32 %v576, 15
        %v579 = vsub.s32 0, %v578
        %v580 = vsel %vm574, %v579, %v578
        %vm581 = vcmp.lt.s32.totalorder %v471, 0
        %v582 = vsub.s32 0, %v471
        %v583 = vsel %vm581, %v582, %v471
        %v584 = vshrl.u32 %v583, 4
        %v585 = vand.u32 %v583, 15
        %v586 = vsub.s32 0, %v585
        %v587 = vsel %vm581, %v586, %v585
        %vm588 = vcmp.lt.s32.totalorder %v472, 0
        %v589 = vsub.s32 0, %v472
        %v590 = vsel %vm588, %v589, %v472
        %v591 = vshrl.u32 %v590, 4
        %v592 = vand.u32 %v590, 15
        %v593 = vsub.s32 0, %v592
        %v594 = vsel %vm588, %v593, %v592
        %vm595 = vcmp.lt.s32.totalorder %v473, 0
        %v596 = vsub.s32 0, %v473
        %v597 = vsel %vm595, %v596, %v473
        %v598 = vshrl.u32 %v597, 4
        %v599 = vand.u32 %v597, 15
        %v600 = vsub.s32 0, %v599
        %v601 = vsel %vm595, %v600, %v599
        %vm602 = vcmp.lt.s32.totalorder %v474, 0
        %v603 = vsub.s32 0, %v474
        %v604 = vsel %vm602, %v603, %v474
        %v605 = vshrl.u32 %v604, 4
        %v606 = vand.u32 %v604, 15
        %v607 = vsub.s32 0, %v606
        %v608 = vsel %vm602, %v607, %v606
        %vm609 = vcmp.lt.s32.totalorder %v475, 0
        %v610 = vsub.s32 0, %v475
        %v611 = vsel %vm609, %v610, %v475
        %v612 = vshrl.u32 %v611, 4
        %v613 = vand.u32 %v611, 15
        %v614 = vsub.s32 0, %v613
        %v615 = vsel %vm609, %v614, %v613
        %vm616 = vcmp.lt.s32.totalorder %v476, 0
        %v617 = vsub.s32 0, %v476
        %v618 = vsel %vm616, %v617, %v476
        %v619 = vshrl.u32 %v618, 4
        %v620 = vand.u32 %v618, 15
        %v621 = vsub.s32 0, %v620
        %v622 = vsel %vm616, %v621, %v620
        %vm623 = vcmp.lt.s32.totalorder %v477, 0
        %v624 = vsub.s32 0, %v477
        %v625 = vsel %vm623, %v624, %v477
        %v626 = vshrl.u32 %v625, 4
        %v627 = vand.u32 %v625, 15
        %v628 = vsub.s32 0, %v627
        %v629 = vsel %vm623, %v628, %v627
        %vm630 = vcmp.lt.s32.totalorder %v478, 0
        %v631 = vsub.s32 0, %v478
        %v632 = vsel %vm630, %v631, %v478
        %v633 = vshrl.u32 %v632, 4
        %v634 = vand.u32 %v632, 15
        %v635 = vsub.s32 0, %v634
        %v636 = vsel %vm630, %v635, %v634
        %vm637 = vcmp.lt.s32.totalorder %v479, 0
        %v638 = vsub.s32 0, %v479
        %v639 = vsel %vm637, %v638, %v479
        %v640 = vshrl.u32 %v639, 4
        %v641 = vand.u32 %v639, 15
        %v642 = vsub.s32 0, %v641
        %v643 = vsel %vm637, %v642, %v641
        %vm644 = vcmp.lt.s32.totalorder %v480, 0
        %v645 = vsub.s32 0, %v480
        %v646 = vsel %vm644, %v645, %v480
        %v647 = vshrl.u32 %v646, 4
        %v648 = vand.u32 %v646, 15
        %v649 = vsub.s32 0, %v648
        %v650 = vsel %vm644, %v649, %v648
        %vm651 = vcmp.lt.s32.totalorder %v481, 0
        %v652 = vsub.s32 0, %v481
        %v653 = vsel %vm651, %v652, %v481
        %v654 = vshrl.u32 %v653, 4
        %v655 = vand.u32 %v653, 15
        %v656 = vsub.s32 0, %v655
        %v657 = vsel %vm651, %v656, %v655
        %vm658 = vcmp.lt.s32.totalorder %v482, 0
        %v659 = vsub.s32 0, %v482
        %v660 = vsel %vm658, %v659, %v482
        %v661 = vshrl.u32 %v660, 4
        %v662 = vand.u32 %v660, 15
        %v663 = vsub.s32 0, %v662
        %v664 = vsel %vm658, %v663, %v662
        %vm665 = vcmp.lt.s32.totalorder %v483, 0
        %v666 = vsub.s32 0, %v483
        %v667 = vsel %vm665, %v666, %v483
        %v668 = vshrl.u32 %v667, 4
        %v669 = vand.u32 %v667, 15
        %v670 = vsub.s32 0, %v669
        %v671 = vsel %vm665, %v670, %v669
        %vm672 = vcmp.lt.s32.totalorder %v484, 0
        %v673 = vsub.s32 0, %v484
        %v674 = vsel %vm672, %v673, %v484
        %v675 = vshrl.u32 %v674, 4
        %v676 = vand.u32 %v674, 15
        %v677 = vsub.s32 0, %v676
        %v678 = vsel %vm672, %v677, %v676
        %vm679 = vcmp.lt.s32.totalorder %v485, 0
        %v680 = vsub.s32 0, %v485
        %v681 = vsel %vm679, %v680, %v485
        %v682 = vshrl.u32 %v681, 4
        %v683 = vand.u32 %v681, 15
        %v684 = vsub.s32 0, %v683
        %v685 = vsel %vm679, %v684, %v683
        %vm686 = vcmp.lt.s32.totalorder %v486, 0
        %v687 = vsub.s32 0, %v486
        %v688 = vsel %vm686, %v687, %v486
        %v689 = vshrl.u32 %v688, 4
        %v690 = vand.u32 %v688, 15
        %v691 = vsub.s32 0, %v690
        %v692 = vsel %vm686, %v691, %v690
        %vm693 = vcmp.lt.s32.totalorder %v487, 0
        %v694 = vsub.s32 0, %v487
        %v695 = vsel %vm693, %v694, %v487
        %v696 = vshrl.u32 %v695, 4
        %v697 = vand.u32 %v695, 15
        %v698 = vsub.s32 0, %v697
        %v699 = vsel %vm693, %v698, %v697
        %vm700 = vcmp.lt.s32.totalorder %v488, 0
        %v701 = vsub.s32 0, %v488
        %v702 = vsel %vm700, %v701, %v488
        %v703 = vshrl.u32 %v702, 4
        %v704 = vand.u32 %v702, 15
        %v705 = vsub.s32 0, %v704
        %v706 = vsel %vm700, %v705, %v704
        %vm707 = vcmp.lt.s32.totalorder %v489, 0
        %v708 = vsub.s32 0, %v489
        %v709 = vsel %vm707, %v708, %v489
        %v710 = vshrl.u32 %v709, 4
        %v711 = vand.u32 %v709, 15
        %v712 = vsub.s32 0, %v711
        %v713 = vsel %vm707, %v712, %v711
        %vm714 = vcmp.ne.s32.totalorder %v496, 0
        %vm715 = vcmp.ne.s32.totalorder %v503, 0
        %vm716 = vcmp.ne.s32.totalorder %v510, 0
        %vm717 = vcmp.ne.s32.totalorder %v517, 0
        %vm718 = vcmp.ne.s32.totalorder %v524, 0
        %vm719 = vcmp.ne.s32.totalorder %v531, 0
        %vm720 = vcmp.ne.s32.totalorder %v538, 0
        %vm721 = vcmp.ne.s32.totalorder %v545, 0
        %vm722 = vcmp.ne.s32.totalorder %v552, 0
        %vm723 = vcmp.ne.s32.totalorder %v559, 0
        %vm724 = vcmp.ne.s32.totalorder %v566, 0
        %vm725 = vcmp.ne.s32.totalorder %v573, 0
        %vm726 = vcmp.ne.s32.totalorder %v580, 0
        %vm727 = vcmp.ne.s32.totalorder %v587, 0
        %vm728 = vcmp.ne.s32.totalorder %v594, 0
        %vm729 = vcmp.ne.s32.totalorder %v601, 0
        %vm730 = vcmp.ne.s32.totalorder %v608, 0
        %vm731 = vcmp.ne.s32.totalorder %v615, 0
        %vm732 = vcmp.ne.s32.totalorder %v622, 0
        %vm733 = vcmp.ne.s32.totalorder %v629, 0
        %vm734 = vcmp.ne.s32.totalorder %v636, 0
        %vm735 = vcmp.ne.s32.totalorder %v643, 0
        %vm736 = vcmp.ne.s32.totalorder %v650, 0
        %vm737 = vcmp.ne.s32.totalorder %v657, 0
        %vm738 = vcmp.ne.s32.totalorder %v664, 0
        %vm739 = vcmp.ne.s32.totalorder %v671, 0
        %vm740 = vcmp.ne.s32.totalorder %v678, 0
        %vm741 = vcmp.ne.s32.totalorder %v685, 0
        %vm742 = vcmp.ne.s32.totalorder %v692, 0
        %vm743 = vcmp.ne.s32.totalorder %v699, 0
        %vm744 = vcmp.ne.s32.totalorder %v706, 0
        %vm745 = vcmp.ne.s32.totalorder %v713, 0
        %vm746 = vcmp.lt.s32.totalorder %v496, 0
        %vm747 = vcmp.lt.s32.totalorder %v503, 0
        %vm748 = vcmp.lt.s32.totalorder %v510, 0
        %vm749 = vcmp.lt.s32.totalorder %v517, 0
        %vm750 = vcmp.lt.s32.totalorder %v524, 0
        %vm751 = vcmp.lt.s32.totalorder %v531, 0
        %vm752 = vcmp.lt.s32.totalorder %v538, 0
        %vm753 = vcmp.lt.s32.totalorder %v545, 0
        %vm754 = vcmp.lt.s32.totalorder %v552, 0
        %vm755 = vcmp.lt.s32.totalorder %v559, 0
        %vm756 = vcmp.lt.s32.totalorder %v566, 0
        %vm757 = vcmp.lt.s32.totalorder %v573, 0
        %vm758 = vcmp.lt.s32.totalorder %v580, 0
        %vm759 = vcmp.lt.s32.totalorder %v587, 0
        %vm760 = vcmp.lt.s32.totalorder %v594, 0
        %vm761 = vcmp.lt.s32.totalorder %v601, 0
        %vm762 = vcmp.lt.s32.totalorder %v608, 0
        %vm763 = vcmp.lt.s32.totalorder %v615, 0
        %vm764 = vcmp.lt.s32.totalorder %v622, 0
        %vm765 = vcmp.lt.s32.totalorder %v629, 0
        %vm766 = vcmp.lt.s32.totalorder %v636, 0
        %vm767 = vcmp.lt.s32.totalorder %v643, 0
        %vm768 = vcmp.lt.s32.totalorder %v650, 0
        %vm769 = vcmp.lt.s32.totalorder %v657, 0
        %vm770 = vcmp.lt.s32.totalorder %v664, 0
        %vm771 = vcmp.lt.s32.totalorder %v671, 0
        %vm772 = vcmp.lt.s32.totalorder %v678, 0
        %vm773 = vcmp.lt.s32.totalorder %v685, 0
        %vm774 = vcmp.lt.s32.totalorder %v692, 0
        %vm775 = vcmp.lt.s32.totalorder %v699, 0
        %vm776 = vcmp.lt.s32.totalorder %v706, 0
        %vm777 = vcmp.lt.s32.totalorder %v713, 0
        %vm778 = vmand %vm746, %vm714
        %vm779 = vmand %vm747, %vm715
        %vm780 = vmand %vm748, %vm716
        %vm781 = vmand %vm749, %vm717
        %vm782 = vmand %vm750, %vm718
        %vm783 = vmand %vm751, %vm719
        %vm784 = vmand %vm752, %vm720
        %vm785 = vmand %vm753, %vm721
        %vm786 = vmand %vm754, %vm722
        %vm787 = vmand %vm755, %vm723
        %vm788 = vmand %vm756, %vm724
        %vm789 = vmand %vm757, %vm725
        %vm790 = vmand %vm758, %vm726
        %vm791 = vmand %vm759, %vm727
        %vm792 = vmand %vm760, %vm728
        %vm793 = vmand %vm761, %vm729
        %vm794 = vmand %vm762, %vm730
        %vm795 = vmand %vm763, %vm731
        %vm796 = vmand %vm764, %vm732
        %vm797 = vmand %vm765, %vm733
        %vm798 = vmand %vm766, %vm734
        %vm799 = vmand %vm767, %vm735
        %vm800 = vmand %vm768, %vm736
        %vm801 = vmand %vm769, %vm737
        %vm802 = vmand %vm770, %vm738
        %vm803 = vmand %vm771, %vm739
        %vm804 = vmand %vm772, %vm740
        %vm805 = vmand %vm773, %vm741
        %vm806 = vmand %vm774, %vm742
        %vm807 = vmand %vm775, %vm743
        %vm808 = vmand %vm776, %vm744
        %vm809 = vmand %vm777, %vm745
        %v810 = vadd.s32 %v496, 16
        %v811 = vadd.s32 %v503, 16
        %v812 = vadd.s32 %v510, 16
        %v813 = vadd.s32 %v517, 16
        %v814 = vadd.s32 %v524, 16
        %v815 = vadd.s32 %v531, 16
        %v816 = vadd.s32 %v538, 16
        %v817 = vadd.s32 %v545, 16
        %v818 = vadd.s32 %v552, 16
        %v819 = vadd.s32 %v559, 16
        %v820 = vadd.s32 %v566, 16
        %v821 = vadd.s32 %v573, 16
        %v822 = vadd.s32 %v580, 16
        %v823 = vadd.s32 %v587, 16
        %v824 = vadd.s32 %v594, 16
        %v825 = vadd.s32 %v601, 16
        %v826 = vadd.s32 %v608, 16
        %v827 = vadd.s32 %v615, 16
        %v828 = vadd.s32 %v622, 16
        %v829 = vadd.s32 %v629, 16
        %v830 = vadd.s32 %v636, 16
        %v831 = vadd.s32 %v643, 16
        %v832 = vadd.s32 %v650, 16
        %v833 = vadd.s32 %v657, 16
        %v834 = vadd.s32 %v664, 16
        %v835 = vadd.s32 %v671, 16
        %v836 = vadd.s32 %v678, 16
        %v837 = vadd.s32 %v685, 16
        %v838 = vadd.s32 %v692, 16
        %v839 = vadd.s32 %v699, 16
        %v840 = vadd.s32 %v706, 16
        %v841 = vadd.s32 %v713, 16
        %v842 = vsel %vm778, %v810, %v496
        %v843 = vsel %vm779, %v811, %v503
        %v844 = vsel %vm780, %v812, %v510
        %v845 = vsel %vm781, %v813, %v517
        %v846 = vsel %vm782, %v814, %v524
        %v847 = vsel %vm783, %v815, %v531
        %v848 = vsel %vm784, %v816, %v538
        %v849 = vsel %vm785, %v817, %v545
        %v850 = vsel %vm786, %v818, %v552
        %v851 = vsel %vm787, %v819, %v559
        %v852 = vsel %vm788, %v820, %v566
        %v853 = vsel %vm789, %v821, %v573
        %v854 = vsel %vm790, %v822, %v580
        %v855 = vsel %vm791, %v823, %v587
        %v856 = vsel %vm792, %v824, %v594
        %v857 = vsel %vm793, %v825, %v601
        %v858 = vsel %vm794, %v826, %v608
        %v859 = vsel %vm795, %v827, %v615
        %v860 = vsel %vm796, %v828, %v622
        %v861 = vsel %vm797, %v829, %v629
        %v862 = vsel %vm798, %v830, %v636
        %v863 = vsel %vm799, %v831, %v643
        %v864 = vsel %vm800, %v832, %v650
        %v865 = vsel %vm801, %v833, %v657
        %v866 = vsel %vm802, %v834, %v664
        %v867 = vsel %vm803, %v835, %v671
        %v868 = vsel %vm804, %v836, %v678
        %v869 = vsel %vm805, %v837, %v685
        %v870 = vsel %vm806, %v838, %v692
        %v871 = vsel %vm807, %v839, %v699
        %v872 = vsel %vm808, %v840, %v706
        %v873 = vsel %vm809, %v841, %v713
        %vm874 = vcmp.ne.s32.totalorder %v842, 0
        %vm875 = vcmp.ne.s32.totalorder %v843, 0
        %vm876 = vcmp.ne.s32.totalorder %v844, 0
        %vm877 = vcmp.ne.s32.totalorder %v845, 0
        %vm878 = vcmp.ne.s32.totalorder %v846, 0
        %vm879 = vcmp.ne.s32.totalorder %v847, 0
        %vm880 = vcmp.ne.s32.totalorder %v848, 0
        %vm881 = vcmp.ne.s32.totalorder %v849, 0
        %vm882 = vcmp.ne.s32.totalorder %v850, 0
        %vm883 = vcmp.ne.s32.totalorder %v851, 0
        %vm884 = vcmp.ne.s32.totalorder %v852, 0
        %vm885 = vcmp.ne.s32.totalorder %v853, 0
        %vm886 = vcmp.ne.s32.totalorder %v854, 0
        %vm887 = vcmp.ne.s32.totalorder %v855, 0
        %vm888 = vcmp.ne.s32.totalorder %v856, 0
        %vm889 = vcmp.ne.s32.totalorder %v857, 0
        %vm890 = vcmp.ne.s32.totalorder %v858, 0
        %vm891 = vcmp.ne.s32.totalorder %v859, 0
        %vm892 = vcmp.ne.s32.totalorder %v860, 0
        %vm893 = vcmp.ne.s32.totalorder %v861, 0
        %vm894 = vcmp.ne.s32.totalorder %v862, 0
        %vm895 = vcmp.ne.s32.totalorder %v863, 0
        %vm896 = vcmp.ne.s32.totalorder %v864, 0
        %vm897 = vcmp.ne.s32.totalorder %v865, 0
        %vm898 = vcmp.ne.s32.totalorder %v866, 0
        %vm899 = vcmp.ne.s32.totalorder %v867, 0
        %vm900 = vcmp.ne.s32.totalorder %v868, 0
        %vm901 = vcmp.ne.s32.totalorder %v869, 0
        %vm902 = vcmp.ne.s32.totalorder %v870, 0
        %vm903 = vcmp.ne.s32.totalorder %v871, 0
        %vm904 = vcmp.ne.s32.totalorder %v872, 0
        %vm905 = vcmp.ne.s32.totalorder %v873, 0
        %vm906 = vcmp.ne.s32.totalorder %v842, 15
        %vm907 = vcmp.ne.s32.totalorder %v843, 15
        %vm908 = vcmp.ne.s32.totalorder %v844, 15
        %vm909 = vcmp.ne.s32.totalorder %v845, 15
        %vm910 = vcmp.ne.s32.totalorder %v846, 15
        %vm911 = vcmp.ne.s32.totalorder %v847, 15
        %vm912 = vcmp.ne.s32.totalorder %v848, 15
        %vm913 = vcmp.ne.s32.totalorder %v849, 15
        %vm914 = vcmp.ne.s32.totalorder %v850, 15
        %vm915 = vcmp.ne.s32.totalorder %v851, 15
        %vm916 = vcmp.ne.s32.totalorder %v852, 15
        %vm917 = vcmp.ne.s32.totalorder %v853, 15
        %vm918 = vcmp.ne.s32.totalorder %v854, 15
        %vm919 = vcmp.ne.s32.totalorder %v855, 15
        %vm920 = vcmp.ne.s32.totalorder %v856, 15
        %vm921 = vcmp.ne.s32.totalorder %v857, 15
        %vm922 = vcmp.ne.s32.totalorder %v858, 15
        %vm923 = vcmp.ne.s32.totalorder %v859, 15
        %vm924 = vcmp.ne.s32.totalorder %v860, 15
        %vm925 = vcmp.ne.s32.totalorder %v861, 15
        %vm926 = vcmp.ne.s32.totalorder %v862, 15
        %vm927 = vcmp.ne.s32.totalorder %v863, 15
        %vm928 = vcmp.ne.s32.totalorder %v864, 15
        %vm929 = vcmp.ne.s32.totalorder %v865, 15
        %vm930 = vcmp.ne.s32.totalorder %v866, 15
        %vm931 = vcmp.ne.s32.totalorder %v867, 15
        %vm932 = vcmp.ne.s32.totalorder %v868, 15
        %vm933 = vcmp.ne.s32.totalorder %v869, 15
        %vm934 = vcmp.ne.s32.totalorder %v870, 15
        %vm935 = vcmp.ne.s32.totalorder %v871, 15
        %vm936 = vcmp.ne.s32.totalorder %v872, 15
        %vm937 = vcmp.ne.s32.totalorder %v873, 15
        %v938 = vld [vmem:[%s438 + $0xf] sm:$0xff]
        %v939 = vld [vmem:[%s438 + $0x17] sm:$0xff]
        %v940 = vld [vmem:[%s438 + $0x1f] sm:$0xff]
        %v941 = vld [vmem:[%s438 + $0x27] sm:$0xff]
        %v942 = vld [vmem:[%s438 + $0x2f] sm:$0xff]
        %v943 = vld [vmem:[%s438 + $0x37] sm:$0xff]
        %v944 = vld [vmem:[%s438 + $0x3f] sm:$0xff]
        %v945 = vld [vmem:[%s438 + $0x47] sm:$0xff]
        %v946 = vld [vmem:[%s438 + $0x4f] sm:$0xff]
        %v947 = vld [vmem:[%s438 + $0x57] sm:$0xff]
        %v948 = vld [vmem:[%s438 + $0x5f] sm:$0xff]
        %v949 = vld [vmem:[%s438 + $0x67] sm:$0xff]
        %v950 = vld [vmem:[%s438 + $0x6f] sm:$0xff]
        %v951 = vld [vmem:[%s438 + $0x77] sm:$0xff]
        %v952 = vld [vmem:[%s438 + $0x7f] sm:$0xff]
        %v953 = vld [vmem:[%s438 + $0x87] sm:$0xff]
        %v954 = vld [vmem:[%s438 + $0x8f] sm:$0xff]
        %v955 = vld [vmem:[%s438 + $0x97] sm:$0xff]
        %v956 = vld [vmem:[%s438 + $0x9f] sm:$0xff]
        %v957 = vld [vmem:[%s438 + $0xa7] sm:$0xff]
        %v958 = vld [vmem:[%s438 + $0xaf] sm:$0xff]
        %v959 = vld [vmem:[%s438 + $0xb7] sm:$0xff]
        %v960 = vld [vmem:[%s438 + $0xbf] sm:$0xff]
        %v961 = vld [vmem:[%s438 + $0xc7] sm:$0xff]
        %v962 = vld [vmem:[%s438 + $0xcf] sm:$0xff]
        %v963 = vld [vmem:[%s438 + $0xd7] sm:$0xff]
        %v964 = vld [vmem:[%s438 + $0xdf] sm:$0xff]
        %v965 = vld [vmem:[%s438 + $0xe7] sm:$0xff]
        %v966 = vld [vmem:[%s438 + $0xef] sm:$0xff]
        %v967 = vld [vmem:[%s438 + $0xf7] sm:$0xff]
        %v968 = vld [vmem:[%s438 + $0xff] sm:$0xff]
        %v969 = vld [vmem:[%s438 + $0x107] sm:$0xff]
        %v970 = vsel %vm874, %v938, 0.0
        %v971 = vsel %vm875, %v939, 0.0
        %v972 = vsel %vm876, %v940, 0.0
        %v973 = vsel %vm877, %v941, 0.0
        %v974 = vsel %vm878, %v942, 0.0
        %v975 = vsel %vm879, %v943, 0.0
        %v976 = vsel %vm880, %v944, 0.0
        %v977 = vsel %vm881, %v945, 0.0
        %v978 = vsel %vm882, %v946, 0.0
        %v979 = vsel %vm883, %v947, 0.0
        %v980 = vsel %vm884, %v948, 0.0
        %v981 = vsel %vm885, %v949, 0.0
        %v982 = vsel %vm886, %v950, 0.0
        %v983 = vsel %vm887, %v951, 0.0
        %v984 = vsel %vm888, %v952, 0.0
        %v985 = vsel %vm889, %v953, 0.0
        %v986 = vsel %vm890, %v954, 0.0
        %v987 = vsel %vm891, %v955, 0.0
        %v988 = vsel %vm892, %v956, 0.0
        %v989 = vsel %vm893, %v957, 0.0
        %v990 = vsel %vm894, %v958, 0.0
        %v991 = vsel %vm895, %v959, 0.0
        %v992 = vsel %vm896, %v960, 0.0
        %v993 = vsel %vm897, %v961, 0.0
        %v994 = vsel %vm898, %v962, 0.0
        %v995 = vsel %vm899, %v963, 0.0
        %v996 = vsel %vm900, %v964, 0.0
        %v997 = vsel %vm901, %v965, 0.0
        %v998 = vsel %vm902, %v966, 0.0
        %v999 = vsel %vm903, %v967, 0.0
        %v1000 = vsel %vm904, %v968, 0.0
        %v1001 = vsel %vm905, %v969, 0.0
        %v1002 = vld [vmem:[%s1] sm:$0x7]
        %v1003 = vld [vmem:[%s438 + $0x10] sm:$0xff]
        %v1004 = vld [vmem:[%s438 + $0x18] sm:$0xff]
        %v1005 = vld [vmem:[%s438 + $0x20] sm:$0xff]
        %v1006 = vld [vmem:[%s438 + $0x28] sm:$0xff]
        %v1007 = vld [vmem:[%s438 + $0x30] sm:$0xff]
        %v1008 = vld [vmem:[%s438 + $0x38] sm:$0xff]
        %v1009 = vld [vmem:[%s438 + $0x40] sm:$0xff]
        %v1010 = vld [vmem:[%s438 + $0x48] sm:$0xff]
        %v1011 = vld [vmem:[%s438 + $0x50] sm:$0xff]
        %v1012 = vld [vmem:[%s438 + $0x58] sm:$0xff]
        %v1013 = vld [vmem:[%s438 + $0x60] sm:$0xff]
        %v1014 = vld [vmem:[%s438 + $0x68] sm:$0xff]
        %v1015 = vld [vmem:[%s438 + $0x70] sm:$0xff]
        %v1016 = vld [vmem:[%s438 + $0x78] sm:$0xff]
        %v1017 = vld [vmem:[%s438 + $0x80] sm:$0xff]
        %v1018 = vld [vmem:[%s438 + $0x88] sm:$0xff]
        %v1019 = vld [vmem:[%s438 + $0x90] sm:$0xff]
        %v1020 = vld [vmem:[%s438 + $0x98] sm:$0xff]
        %v1021 = vld [vmem:[%s438 + $0xa0] sm:$0xff]
        %v1022 = vld [vmem:[%s438 + $0xa8] sm:$0xff]
        %v1023 = vld [vmem:[%s438 + $0xb0] sm:$0xff]
        %v1024 = vld [vmem:[%s438 + $0xb8] sm:$0xff]
        %v1025 = vld [vmem:[%s438 + $0xc0] sm:$0xff]
        %v1026 = vld [vmem:[%s438 + $0xc8] sm:$0xff]
        %v1027 = vld [vmem:[%s438 + $0xd0] sm:$0xff]
        %v1028 = vld [vmem:[%s438 + $0xd8] sm:$0xff]
        %v1029 = vld [vmem:[%s438 + $0xe0] sm:$0xff]
        %v1030 = vld [vmem:[%s438 + $0xe8] sm:$0xff]
        %v1031 = vld [vmem:[%s438 + $0xf0] sm:$0xff]
        %v1032 = vld [vmem:[%s438 + $0xf8] sm:$0xff]
        %v1033 = vld [vmem:[%s438 + $0x100] sm:$0xff]
        %v1034 = vld [vmem:[%s438 + $0x108] sm:$0xff]
        %s1035 = scalar_lea.vmem %s1, 4
        %v1036 = vld [vmem:[%s1035] sm:$0x7]
        %vm1037 = vcmask 23552
        %v1039 = vsel %vm1037, %v1003, 0
        %v1042 = vsel %vm1037, %v1004, 0
        %v1045 = vsel %vm1037, %v1005, 0
        %v1048 = vsel %vm1037, %v1006, 0
        %v1051 = vsel %vm1037, %v1007, 0
        %v1054 = vsel %vm1037, %v1008, 0
        %v1057 = vsel %vm1037, %v1009, 0
        %v1060 = vsel %vm1037, %v1010, 0
        %v1063 = vsel %vm1037, %v1011, 0
        %v1066 = vsel %vm1037, %v1012, 0
        %v1069 = vsel %vm1037, %v1013, 0
        %v1072 = vsel %vm1037, %v1014, 0
        %v1075 = vsel %vm1037, %v1015, 0
        %v1078 = vsel %vm1037, %v1016, 0
        %v1081 = vsel %vm1037, %v1017, 0
        %v1084 = vsel %vm1037, %v1018, 0
        %v1087 = vsel %vm1037, %v1019, 0
        %v1090 = vsel %vm1037, %v1020, 0
        %v1093 = vsel %vm1037, %v1021, 0
        %v1096 = vsel %vm1037, %v1022, 0
        %v1099 = vsel %vm1037, %v1023, 0
        %v1102 = vsel %vm1037, %v1024, 0
        %v1105 = vsel %vm1037, %v1025, 0
        %v1108 = vsel %vm1037, %v1026, 0
        %v1111 = vsel %vm1037, %v1027, 0
        %v1114 = vsel %vm1037, %v1028, 0
        %v1117 = vsel %vm1037, %v1029, 0
        %v1120 = vsel %vm1037, %v1030, 0
        %v1123 = vsel %vm1037, %v1031, 0
        %v1126 = vsel %vm1037, %v1032, 0
        %v1129 = vsel %vm1037, %v1033, 0
        %v1132 = vsel %vm1037, %v1034, 0
        %vm1134 = vcmask 1042432
        %v1136 = vsel %vm1134, %v1036, 0
        %1138 = vmatprep.subr.mxu0 0.0
        %1139 = vmatpush1.msra.mxu0 0.0
        %1140 = vmatprep.subr.mxu0 0.0
        %1141 = vmatpush1.msra.mxu0 0.0
        %1142 = vmatprep.subr.mxu0 0.0
        %1143 = vmatpush1.msra.mxu0 0.0
        %1144 = vmatprep.subr.mxu0 0.0
        %1145 = vmatpush1.msra.mxu0 0.0
        %1146 = vmatprep.subr.mxu0 0.0
        %1147 = vmatpush1.msra.mxu0 0.0
        %1148 = vmatprep.subr.mxu0 0.0
        %1149 = vmatpush1.msra.mxu0 0.0
        %1150 = vmatprep.subr.mxu0 0.0
        %1151 = vmatpush1.msra.mxu0 0.0
        %1152 = vmatprep.subr.mxu0 0.0
        %1153 = vmatpush1.msra.mxu0 0.0
        %1154 = vmatprep.subr.mxu0 0.0
        %1155 = vmatpush1.msra.mxu0 0.0
        %1156 = vmatprep.subr.mxu0 0.0
        %1157 = vmatpush1.msra.mxu0 0.0
        %1158 = vmatprep.subr.mxu0 0.0
        %1159 = vmatpush1.msra.mxu0 0.0
        %1160 = vmatprep.subr.mxu0 0.0
        %1161 = vmatpush1.msra.mxu0 0.0
        %1162 = vmatprep.subr.mxu0 0.0
        %1163 = vmatpush1.msra.mxu0 0.0
        %1164 = vmatprep.subr.mxu0 0.0
        %1165 = vmatpush1.msra.mxu0 0.0
        %1166 = vmatprep.subr.mxu0 0.0
        %1167 = vmatpush1.msra.mxu0 0.0
        %1168 = vmatprep.subr.mxu0 0.0
        %1169 = vmatpush1.msra.mxu0 %v1136
        %1170 = vmatprep.subr.mxu0 0.0
        %1171 = vmatpush2.msra.mxu0 0.0
        %1172 = vmatprep.subr.mxu0 0.0
        %1173 = vmatpush2.msra.mxu0 0.0
        %1174 = vmatprep.subr.mxu0 0.0
        %1175 = vmatpush2.msra.mxu0 0.0
        %1176 = vmatprep.subr.mxu0 0.0
        %1177 = vmatpush2.msra.mxu0 0.0
        %1178 = vmatprep.subr.mxu0 0.0
        %1179 = vmatpush2.msra.mxu0 0.0
        %1180 = vmatprep.subr.mxu0 0.0
        %1181 = vmatpush2.msra.mxu0 0.0
        %1182 = vmatprep.subr.mxu0 0.0
        %1183 = vmatpush2.msra.mxu0 0.0
        %1184 = vmatprep.subr.mxu0 0.0
        %1185 = vmatpush2.msra.mxu0 0.0
        %1186 = vmatprep.subr.mxu0 0.0
        %1187 = vmatpush2.msra.mxu0 0.0
        %1188 = vmatprep.subr.mxu0 0.0
        %1189 = vmatpush2.msra.mxu0 0.0
        %1190 = vmatprep.subr.mxu0 0.0
        %1191 = vmatpush2.msra.mxu0 0.0
        %1192 = vmatprep.subr.mxu0 0.0
        %1193 = vmatpush2.msra.mxu0 0.0
        %1194 = vmatprep.subr.mxu0 0.0
        %1195 = vmatpush2.msra.mxu0 0.0
        %1196 = vmatprep.subr.mxu0 0.0
        %1197 = vmatpush2.msra.mxu0 0.0
        %1198 = vmatprep.subr.mxu0 0.0
        %1199 = vmatpush2.msra.mxu0 0.0
        %1200 = vmatprep.subr.mxu0 0.0
        %1201 = vmatpush2.msra.mxu0 0.0
        %1202 = vmatprep.mubr.f32.mxu0 0.0
        %1203 = vmatmul.mubr.f32.gmra.mxu0 %v1039
        %v1204 = vpop.f32.mrf.mxu0
        %v1205 = vadd.f32 0.0, %v1204
        %v1206 = vpop.f32.mrf.mxu0
        %1207 = vmatprep.mubr.f32.mxu0 0.0
        %1208 = vmatmul.mubr.f32.gmra.mxu0 %v1042
        %v1209 = vpop.f32.mrf.mxu0
        %v1210 = vadd.f32 0.0, %v1209
        %v1211 = vpop.f32.mrf.mxu0
        %1212 = vmatprep.mubr.f32.mxu0 0.0
        %1213 = vmatmul.mubr.f32.gmra.mxu0 %v1045
        %v1214 = vpop.f32.mrf.mxu0
        %v1215 = vadd.f32 0.0, %v1214
        %v1216 = vpop.f32.mrf.mxu0
        %1217 = vmatprep.mubr.f32.mxu0 0.0
        %1218 = vmatmul.mubr.f32.gmra.mxu0 %v1048
        %v1219 = vpop.f32.mrf.mxu0
        %v1220 = vadd.f32 0.0, %v1219
        %v1221 = vpop.f32.mrf.mxu0
        %1222 = vmatprep.mubr.f32.mxu0 0.0
        %1223 = vmatmul.mubr.f32.gmra.mxu0 %v1051
        %v1224 = vpop.f32.mrf.mxu0
        %v1225 = vadd.f32 0.0, %v1224
        %v1226 = vpop.f32.mrf.mxu0
        %1227 = vmatprep.mubr.f32.mxu0 0.0
        %1228 = vmatmul.mubr.f32.gmra.mxu0 %v1054
        %v1229 = vpop.f32.mrf.mxu0
        %v1230 = vadd.f32 0.0, %v1229
        %v1231 = vpop.f32.mrf.mxu0
        %1232 = vmatprep.mubr.f32.mxu0 0.0
        %1233 = vmatmul.mubr.f32.gmra.mxu0 %v1057
        %v1234 = vpop.f32.mrf.mxu0
        %v1235 = vadd.f32 0.0, %v1234
        %v1236 = vpop.f32.mrf.mxu0
        %1237 = vmatprep.mubr.f32.mxu0 0.0
        %1238 = vmatmul.mubr.f32.gmra.mxu0 %v1060
        %v1239 = vpop.f32.mrf.mxu0
        %v1240 = vadd.f32 0.0, %v1239
        %v1241 = vpop.f32.mrf.mxu0
        %1242 = vmatprep.mubr.f32.mxu0 0.0
        %1243 = vmatmul.mubr.f32.gmra.mxu0 %v1063
        %v1244 = vpop.f32.mrf.mxu0
        %v1245 = vadd.f32 0.0, %v1244
        %v1246 = vpop.f32.mrf.mxu0
        %1247 = vmatprep.mubr.f32.mxu0 0.0
        %1248 = vmatmul.mubr.f32.gmra.mxu0 %v1066
        %v1249 = vpop.f32.mrf.mxu0
        %v1250 = vadd.f32 0.0, %v1249
        %v1251 = vpop.f32.mrf.mxu0
        %1252 = vmatprep.mubr.f32.mxu0 0.0
        %1253 = vmatmul.mubr.f32.gmra.mxu0 %v1069
        %v1254 = vpop.f32.mrf.mxu0
        %v1255 = vadd.f32 0.0, %v1254
        %v1256 = vpop.f32.mrf.mxu0
        %1257 = vmatprep.mubr.f32.mxu0 0.0
        %1258 = vmatmul.mubr.f32.gmra.mxu0 %v1072
        %v1259 = vpop.f32.mrf.mxu0
        %v1260 = vadd.f32 0.0, %v1259
        %v1261 = vpop.f32.mrf.mxu0
        %1262 = vmatprep.mubr.f32.mxu0 0.0
        %1263 = vmatmul.mubr.f32.gmra.mxu0 %v1075
        %v1264 = vpop.f32.mrf.mxu0
        %v1265 = vadd.f32 0.0, %v1264
        %v1266 = vpop.f32.mrf.mxu0
        %1267 = vmatprep.mubr.f32.mxu0 0.0
        %1268 = vmatmul.mubr.f32.gmra.mxu0 %v1078
        %v1269 = vpop.f32.mrf.mxu0
        %v1270 = vadd.f32 0.0, %v1269
        %v1271 = vpop.f32.mrf.mxu0
        %1272 = vmatprep.mubr.f32.mxu0 0.0
        %1273 = vmatmul.mubr.f32.gmra.mxu0 %v1081
        %v1274 = vpop.f32.mrf.mxu0
        %v1275 = vadd.f32 0.0, %v1274
        %v1276 = vpop.f32.mrf.mxu0
        %1277 = vmatprep.mubr.f32.mxu0 0.0
        %1278 = vmatmul.mubr.f32.gmra.mxu0 %v1084
        %v1279 = vpop.f32.mrf.mxu0
        %v1280 = vadd.f32 0.0, %v1279
        %v1281 = vpop.f32.mrf.mxu0
        %1282 = vmatprep.mubr.f32.mxu0 0.0
        %1283 = vmatmul.mubr.f32.gmra.mxu0 %v1087
        %v1284 = vpop.f32.mrf.mxu0
        %v1285 = vadd.f32 0.0, %v1284
        %v1286 = vpop.f32.mrf.mxu0
        %1287 = vmatprep.mubr.f32.mxu0 0.0
        %1288 = vmatmul.mubr.f32.gmra.mxu0 %v1090
        %v1289 = vpop.f32.mrf.mxu0
        %v1290 = vadd.f32 0.0, %v1289
        %v1291 = vpop.f32.mrf.mxu0
        %1292 = vmatprep.mubr.f32.mxu0 0.0
        %1293 = vmatmul.mubr.f32.gmra.mxu0 %v1093
        %v1294 = vpop.f32.mrf.mxu0
        %v1295 = vadd.f32 0.0, %v1294
        %v1296 = vpop.f32.mrf.mxu0
        %1297 = vmatprep.mubr.f32.mxu0 0.0
        %1298 = vmatmul.mubr.f32.gmra.mxu0 %v1096
        %v1299 = vpop.f32.mrf.mxu0
        %v1300 = vadd.f32 0.0, %v1299
        %v1301 = vpop.f32.mrf.mxu0
        %1302 = vmatprep.mubr.f32.mxu0 0.0
        %1303 = vmatmul.mubr.f32.gmra.mxu0 %v1099
        %v1304 = vpop.f32.mrf.mxu0
        %v1305 = vadd.f32 0.0, %v1304
        %v1306 = vpop.f32.mrf.mxu0
        %1307 = vmatprep.mubr.f32.mxu0 0.0
        %1308 = vmatmul.mubr.f32.gmra.mxu0 %v1102
        %v1309 = vpop.f32.mrf.mxu0
        %v1310 = vadd.f32 0.0, %v1309
        %v1311 = vpop.f32.mrf.mxu0
        %1312 = vmatprep.mubr.f32.mxu0 0.0
        %1313 = vmatmul.mubr.f32.gmra.mxu0 %v1105
        %v1314 = vpop.f32.mrf.mxu0
        %v1315 = vadd.f32 0.0, %v1314
        %v1316 = vpop.f32.mrf.mxu0
        %1317 = vmatprep.mubr.f32.mxu0 0.0
        %1318 = vmatmul.mubr.f32.gmra.mxu0 %v1108
        %v1319 = vpop.f32.mrf.mxu0
        %v1320 = vadd.f32 0.0, %v1319
        %v1321 = vpop.f32.mrf.mxu0
        %1322 = vmatprep.mubr.f32.mxu0 0.0
        %1323 = vmatmul.mubr.f32.gmra.mxu0 %v1111
        %v1324 = vpop.f32.mrf.mxu0
        %v1325 = vadd.f32 0.0, %v1324
        %v1326 = vpop.f32.mrf.mxu0
        %1327 = vmatprep.mubr.f32.mxu0 0.0
        %1328 = vmatmul.mubr.f32.gmra.mxu0 %v1114
        %v1329 = vpop.f32.mrf.mxu0
        %v1330 = vadd.f32 0.0, %v1329
        %v1331 = vpop.f32.mrf.mxu0
        %1332 = vmatprep.mubr.f32.mxu0 0.0
        %1333 = vmatmul.mubr.f32.gmra.mxu0 %v1117
        %v1334 = vpop.f32.mrf.mxu0
        %v1335 = vadd.f32 0.0, %v1334
        %v1336 = vpop.f32.mrf.mxu0
        %1337 = vmatprep.mubr.f32.mxu0 0.0
        %1338 = vmatmul.mubr.f32.gmra.mxu0 %v1120
        %v1339 = vpop.f32.mrf.mxu0
        %v1340 = vadd.f32 0.0, %v1339
        %v1341 = vpop.f32.mrf.mxu0
        %1342 = vmatprep.mubr.f32.mxu0 0.0
        %1343 = vmatmul.mubr.f32.gmra.mxu0 %v1123
        %v1344 = vpop.f32.mrf.mxu0
        %v1345 = vadd.f32 0.0, %v1344
        %v1346 = vpop.f32.mrf.mxu0
        %1347 = vmatprep.mubr.f32.mxu0 0.0
        %1348 = vmatmul.mubr.f32.gmra.mxu0 %v1126
        %v1349 = vpop.f32.mrf.mxu0
        %v1350 = vadd.f32 0.0, %v1349
        %v1351 = vpop.f32.mrf.mxu0
        %1352 = vmatprep.mubr.f32.mxu0 0.0
        %1353 = vmatmul.mubr.f32.gmra.mxu0 %v1129
        %v1354 = vpop.f32.mrf.mxu0
        %v1355 = vadd.f32 0.0, %v1354
        %v1356 = vpop.f32.mrf.mxu0
        %1357 = vmatprep.mubr.f32.mxu0 0.0
        %1358 = vmatmul.mubr.f32.gmra.mxu0 %v1132
        %v1359 = vpop.f32.mrf.mxu0
        %v1360 = vadd.f32 0.0, %v1359
        %v1361 = vpop.f32.mrf.mxu0
        %1362 = vdwg.mxu0
        %v1364 = vsel %vm1037, %v970, 0
        %v1367 = vsel %vm1037, %v971, 0
        %v1370 = vsel %vm1037, %v972, 0
        %v1373 = vsel %vm1037, %v973, 0
        %v1376 = vsel %vm1037, %v974, 0
        %v1379 = vsel %vm1037, %v975, 0
        %v1382 = vsel %vm1037, %v976, 0
        %v1385 = vsel %vm1037, %v977, 0
        %v1388 = vsel %vm1037, %v978, 0
        %v1391 = vsel %vm1037, %v979, 0
        %v1394 = vsel %vm1037, %v980, 0
        %v1397 = vsel %vm1037, %v981, 0
        %v1400 = vsel %vm1037, %v982, 0
        %v1403 = vsel %vm1037, %v983, 0
        %v1406 = vsel %vm1037, %v984, 0
        %v1409 = vsel %vm1037, %v985, 0
        %v1412 = vsel %vm1037, %v986, 0
        %v1415 = vsel %vm1037, %v987, 0
        %v1418 = vsel %vm1037, %v988, 0
        %v1421 = vsel %vm1037, %v989, 0
        %v1424 = vsel %vm1037, %v990, 0
        %v1427 = vsel %vm1037, %v991, 0
        %v1430 = vsel %vm1037, %v992, 0
        %v1433 = vsel %vm1037, %v993, 0
        %v1436 = vsel %vm1037, %v994, 0
        %v1439 = vsel %vm1037, %v995, 0
        %v1442 = vsel %vm1037, %v996, 0
        %v1445 = vsel %vm1037, %v997, 0
        %v1448 = vsel %vm1037, %v998, 0
        %v1451 = vsel %vm1037, %v999, 0
        %v1454 = vsel %vm1037, %v1000, 0
        %v1457 = vsel %vm1037, %v1001, 0
        %v1460 = vsel %vm1134, %v1002, 0
        %1462 = vmatprep.subr.mxu0 0.0
        %1463 = vmatpush1.msra.mxu0 0.0
        %1464 = vmatprep.subr.mxu0 0.0
        %1465 = vmatpush1.msra.mxu0 0.0
        %1466 = vmatprep.subr.mxu0 0.0
        %1467 = vmatpush1.msra.mxu0 0.0
        %1468 = vmatprep.subr.mxu0 0.0
        %1469 = vmatpush1.msra.mxu0 0.0
        %1470 = vmatprep.subr.mxu0 0.0
        %1471 = vmatpush1.msra.mxu0 0.0
        %1472 = vmatprep.subr.mxu0 0.0
        %1473 = vmatpush1.msra.mxu0 0.0
        %1474 = vmatprep.subr.mxu0 0.0
        %1475 = vmatpush1.msra.mxu0 0.0
        %1476 = vmatprep.subr.mxu0 0.0
        %1477 = vmatpush1.msra.mxu0 0.0
        %1478 = vmatprep.subr.mxu0 0.0
        %1479 = vmatpush1.msra.mxu0 0.0
        %1480 = vmatprep.subr.mxu0 0.0
        %1481 = vmatpush1.msra.mxu0 0.0
        %1482 = vmatprep.subr.mxu0 0.0
        %1483 = vmatpush1.msra.mxu0 0.0
        %1484 = vmatprep.subr.mxu0 0.0
        %1485 = vmatpush1.msra.mxu0 0.0
        %1486 = vmatprep.subr.mxu0 0.0
        %1487 = vmatpush1.msra.mxu0 0.0
        %1488 = vmatprep.subr.mxu0 0.0
        %1489 = vmatpush1.msra.mxu0 0.0
        %1490 = vmatprep.subr.mxu0 0.0
        %1491 = vmatpush1.msra.mxu0 0.0
        %1492 = vmatprep.subr.mxu0 0.0
        %1493 = vmatpush1.msra.mxu0 %v1460
        %1494 = vmatprep.subr.mxu0 0.0
        %1495 = vmatpush2.msra.mxu0 0.0
        %1496 = vmatprep.subr.mxu0 0.0
        %1497 = vmatpush2.msra.mxu0 0.0
        %1498 = vmatprep.subr.mxu0 0.0
        %1499 = vmatpush2.msra.mxu0 0.0
        %1500 = vmatprep.subr.mxu0 0.0
        %1501 = vmatpush2.msra.mxu0 0.0
        %1502 = vmatprep.subr.mxu0 0.0
        %1503 = vmatpush2.msra.mxu0 0.0
        %1504 = vmatprep.subr.mxu0 0.0
        %1505 = vmatpush2.msra.mxu0 0.0
        %1506 = vmatprep.subr.mxu0 0.0
        %1507 = vmatpush2.msra.mxu0 0.0
        %1508 = vmatprep.subr.mxu0 0.0
        %1509 = vmatpush2.msra.mxu0 0.0
        %1510 = vmatprep.subr.mxu0 0.0
        %1511 = vmatpush2.msra.mxu0 0.0
        %1512 = vmatprep.subr.mxu0 0.0
        %1513 = vmatpush2.msra.mxu0 0.0
        %1514 = vmatprep.subr.mxu0 0.0
        %1515 = vmatpush2.msra.mxu0 0.0
        %1516 = vmatprep.subr.mxu0 0.0
        %1517 = vmatpush2.msra.mxu0 0.0
        %1518 = vmatprep.subr.mxu0 0.0
        %1519 = vmatpush2.msra.mxu0 0.0
        %1520 = vmatprep.subr.mxu0 0.0
        %1521 = vmatpush2.msra.mxu0 0.0
        %1522 = vmatprep.subr.mxu0 0.0
        %1523 = vmatpush2.msra.mxu0 0.0
        %1524 = vmatprep.subr.mxu0 0.0
        %1525 = vmatpush2.msra.mxu0 0.0
        %1526 = vmatprep.mubr.f32.mxu0 0.0
        %1527 = vmatmul.mubr.f32.gmra.mxu0 %v1364
        %v1528 = vpop.f32.mrf.mxu0
        %v1529 = vadd.f32 %v1205, %v1528
        %v1530 = vpop.f32.mrf.mxu0
        %1531 = vmatprep.mubr.f32.mxu0 0.0
        %1532 = vmatmul.mubr.f32.gmra.mxu0 %v1367
        %v1533 = vpop.f32.mrf.mxu0
        %v1534 = vadd.f32 %v1210, %v1533
        %v1535 = vpop.f32.mrf.mxu0
        %1536 = vmatprep.mubr.f32.mxu0 0.0
        %1537 = vmatmul.mubr.f32.gmra.mxu0 %v1370
        %v1538 = vpop.f32.mrf.mxu0
        %v1539 = vadd.f32 %v1215, %v1538
        %v1540 = vpop.f32.mrf.mxu0
        %1541 = vmatprep.mubr.f32.mxu0 0.0
        %1542 = vmatmul.mubr.f32.gmra.mxu0 %v1373
        %v1543 = vpop.f32.mrf.mxu0
        %v1544 = vadd.f32 %v1220, %v1543
        %v1545 = vpop.f32.mrf.mxu0
        %1546 = vmatprep.mubr.f32.mxu0 0.0
        %1547 = vmatmul.mubr.f32.gmra.mxu0 %v1376
        %v1548 = vpop.f32.mrf.mxu0
        %v1549 = vadd.f32 %v1225, %v1548
        %v1550 = vpop.f32.mrf.mxu0
        %1551 = vmatprep.mubr.f32.mxu0 0.0
        %1552 = vmatmul.mubr.f32.gmra.mxu0 %v1379
        %v1553 = vpop.f32.mrf.mxu0
        %v1554 = vadd.f32 %v1230, %v1553
        %v1555 = vpop.f32.mrf.mxu0
        %1556 = vmatprep.mubr.f32.mxu0 0.0
        %1557 = vmatmul.mubr.f32.gmra.mxu0 %v1382
        %v1558 = vpop.f32.mrf.mxu0
        %v1559 = vadd.f32 %v1235, %v1558
        %v1560 = vpop.f32.mrf.mxu0
        %1561 = vmatprep.mubr.f32.mxu0 0.0
        %1562 = vmatmul.mubr.f32.gmra.mxu0 %v1385
        %v1563 = vpop.f32.mrf.mxu0
        %v1564 = vadd.f32 %v1240, %v1563
        %v1565 = vpop.f32.mrf.mxu0
        %1566 = vmatprep.mubr.f32.mxu0 0.0
        %1567 = vmatmul.mubr.f32.gmra.mxu0 %v1388
        %v1568 = vpop.f32.mrf.mxu0
        %v1569 = vadd.f32 %v1245, %v1568
        %v1570 = vpop.f32.mrf.mxu0
        %1571 = vmatprep.mubr.f32.mxu0 0.0
        %1572 = vmatmul.mubr.f32.gmra.mxu0 %v1391
        %v1573 = vpop.f32.mrf.mxu0
        %v1574 = vadd.f32 %v1250, %v1573
        %v1575 = vpop.f32.mrf.mxu0
        %1576 = vmatprep.mubr.f32.mxu0 0.0
        %1577 = vmatmul.mubr.f32.gmra.mxu0 %v1394
        %v1578 = vpop.f32.mrf.mxu0
        %v1579 = vadd.f32 %v1255, %v1578
        %v1580 = vpop.f32.mrf.mxu0
        %1581 = vmatprep.mubr.f32.mxu0 0.0
        %1582 = vmatmul.mubr.f32.gmra.mxu0 %v1397
        %v1583 = vpop.f32.mrf.mxu0
        %v1584 = vadd.f32 %v1260, %v1583
        %v1585 = vpop.f32.mrf.mxu0
        %1586 = vmatprep.mubr.f32.mxu0 0.0
        %1587 = vmatmul.mubr.f32.gmra.mxu0 %v1400
        %v1588 = vpop.f32.mrf.mxu0
        %v1589 = vadd.f32 %v1265, %v1588
        %v1590 = vpop.f32.mrf.mxu0
        %1591 = vmatprep.mubr.f32.mxu0 0.0
        %1592 = vmatmul.mubr.f32.gmra.mxu0 %v1403
        %v1593 = vpop.f32.mrf.mxu0
        %v1594 = vadd.f32 %v1270, %v1593
        %v1595 = vpop.f32.mrf.mxu0
        %1596 = vmatprep.mubr.f32.mxu0 0.0
        %1597 = vmatmul.mubr.f32.gmra.mxu0 %v1406
        %v1598 = vpop.f32.mrf.mxu0
        %v1599 = vadd.f32 %v1275, %v1598
        %v1600 = vpop.f32.mrf.mxu0
        %1601 = vmatprep.mubr.f32.mxu0 0.0
        %1602 = vmatmul.mubr.f32.gmra.mxu0 %v1409
        %v1603 = vpop.f32.mrf.mxu0
        %v1604 = vadd.f32 %v1280, %v1603
        %v1605 = vpop.f32.mrf.mxu0
        %1606 = vmatprep.mubr.f32.mxu0 0.0
        %1607 = vmatmul.mubr.f32.gmra.mxu0 %v1412
        %v1608 = vpop.f32.mrf.mxu0
        %v1609 = vadd.f32 %v1285, %v1608
        %v1610 = vpop.f32.mrf.mxu0
        %1611 = vmatprep.mubr.f32.mxu0 0.0
        %1612 = vmatmul.mubr.f32.gmra.mxu0 %v1415
        %v1613 = vpop.f32.mrf.mxu0
        %v1614 = vadd.f32 %v1290, %v1613
        %v1615 = vpop.f32.mrf.mxu0
        %1616 = vmatprep.mubr.f32.mxu0 0.0
        %1617 = vmatmul.mubr.f32.gmra.mxu0 %v1418
        %v1618 = vpop.f32.mrf.mxu0
        %v1619 = vadd.f32 %v1295, %v1618
        %v1620 = vpop.f32.mrf.mxu0
        %1621 = vmatprep.mubr.f32.mxu0 0.0
        %1622 = vmatmul.mubr.f32.gmra.mxu0 %v1421
        %v1623 = vpop.f32.mrf.mxu0
        %v1624 = vadd.f32 %v1300, %v1623
        %v1625 = vpop.f32.mrf.mxu0
        %1626 = vmatprep.mubr.f32.mxu0 0.0
        %1627 = vmatmul.mubr.f32.gmra.mxu0 %v1424
        %v1628 = vpop.f32.mrf.mxu0
        %v1629 = vadd.f32 %v1305, %v1628
        %v1630 = vpop.f32.mrf.mxu0
        %1631 = vmatprep.mubr.f32.mxu0 0.0
        %1632 = vmatmul.mubr.f32.gmra.mxu0 %v1427
        %v1633 = vpop.f32.mrf.mxu0
        %v1634 = vadd.f32 %v1310, %v1633
        %v1635 = vpop.f32.mrf.mxu0
        %1636 = vmatprep.mubr.f32.mxu0 0.0
        %1637 = vmatmul.mubr.f32.gmra.mxu0 %v1430
        %v1638 = vpop.f32.mrf.mxu0
        %v1639 = vadd.f32 %v1315, %v1638
        %v1640 = vpop.f32.mrf.mxu0
        %1641 = vmatprep.mubr.f32.mxu0 0.0
        %1642 = vmatmul.mubr.f32.gmra.mxu0 %v1433
        %v1643 = vpop.f32.mrf.mxu0
        %v1644 = vadd.f32 %v1320, %v1643
        %v1645 = vpop.f32.mrf.mxu0
        %1646 = vmatprep.mubr.f32.mxu0 0.0
        %1647 = vmatmul.mubr.f32.gmra.mxu0 %v1436
        %v1648 = vpop.f32.mrf.mxu0
        %v1649 = vadd.f32 %v1325, %v1648
        %v1650 = vpop.f32.mrf.mxu0
        %1651 = vmatprep.mubr.f32.mxu0 0.0
        %1652 = vmatmul.mubr.f32.gmra.mxu0 %v1439
        %v1653 = vpop.f32.mrf.mxu0
        %v1654 = vadd.f32 %v1330, %v1653
        %v1655 = vpop.f32.mrf.mxu0
        %1656 = vmatprep.mubr.f32.mxu0 0.0
        %1657 = vmatmul.mubr.f32.gmra.mxu0 %v1442
        %v1658 = vpop.f32.mrf.mxu0
        %v1659 = vadd.f32 %v1335, %v1658
        %v1660 = vpop.f32.mrf.mxu0
        %1661 = vmatprep.mubr.f32.mxu0 0.0
        %1662 = vmatmul.mubr.f32.gmra.mxu0 %v1445
        %v1663 = vpop.f32.mrf.mxu0
        %v1664 = vadd.f32 %v1340, %v1663
        %v1665 = vpop.f32.mrf.mxu0
        %1666 = vmatprep.mubr.f32.mxu0 0.0
        %1667 = vmatmul.mubr.f32.gmra.mxu0 %v1448
        %v1668 = vpop.f32.mrf.mxu0
        %v1669 = vadd.f32 %v1345, %v1668
        %v1670 = vpop.f32.mrf.mxu0
        %1671 = vmatprep.mubr.f32.mxu0 0.0
        %1672 = vmatmul.mubr.f32.gmra.mxu0 %v1451
        %v1673 = vpop.f32.mrf.mxu0
        %v1674 = vadd.f32 %v1350, %v1673
        %v1675 = vpop.f32.mrf.mxu0
        %1676 = vmatprep.mubr.f32.mxu0 0.0
        %1677 = vmatmul.mubr.f32.gmra.mxu0 %v1454
        %v1678 = vpop.f32.mrf.mxu0
        %v1679 = vadd.f32 %v1355, %v1678
        %v1680 = vpop.f32.mrf.mxu0
        %1681 = vmatprep.mubr.f32.mxu0 0.0
        %1682 = vmatmul.mubr.f32.gmra.mxu0 %v1457
        %v1683 = vpop.f32.mrf.mxu0
        %v1684 = vadd.f32 %v1360, %v1683
        %v1685 = vpop.f32.mrf.mxu0
        %1686 = vdwg.mxu0
        %v1687 = vld [vmem:[%s438 + $0x11] sm:$0xff]
        %v1688 = vld [vmem:[%s438 + $0x19] sm:$0xff]
        %v1689 = vld [vmem:[%s438 + $0x21] sm:$0xff]
        %v1690 = vld [vmem:[%s438 + $0x29] sm:$0xff]
        %v1691 = vld [vmem:[%s438 + $0x31] sm:$0xff]
        %v1692 = vld [vmem:[%s438 + $0x39] sm:$0xff]
        %v1693 = vld [vmem:[%s438 + $0x41] sm:$0xff]
        %v1694 = vld [vmem:[%s438 + $0x49] sm:$0xff]
        %v1695 = vld [vmem:[%s438 + $0x51] sm:$0xff]
        %v1696 = vld [vmem:[%s438 + $0x59] sm:$0xff]
        %v1697 = vld [vmem:[%s438 + $0x61] sm:$0xff]
        %v1698 = vld [vmem:[%s438 + $0x69] sm:$0xff]
        %v1699 = vld [vmem:[%s438 + $0x71] sm:$0xff]
        %v1700 = vld [vmem:[%s438 + $0x79] sm:$0xff]
        %v1701 = vld [vmem:[%s438 + $0x81] sm:$0xff]
        %v1702 = vld [vmem:[%s438 + $0x89] sm:$0xff]
        %v1703 = vld [vmem:[%s438 + $0x91] sm:$0xff]
        %v1704 = vld [vmem:[%s438 + $0x99] sm:$0xff]
        %v1705 = vld [vmem:[%s438 + $0xa1] sm:$0xff]
        %v1706 = vld [vmem:[%s438 + $0xa9] sm:$0xff]
        %v1707 = vld [vmem:[%s438 + $0xb1] sm:$0xff]
        %v1708 = vld [vmem:[%s438 + $0xb9] sm:$0xff]
        %v1709 = vld [vmem:[%s438 + $0xc1] sm:$0xff]
        %v1710 = vld [vmem:[%s438 + $0xc9] sm:$0xff]
        %v1711 = vld [vmem:[%s438 + $0xd1] sm:$0xff]
        %v1712 = vld [vmem:[%s438 + $0xd9] sm:$0xff]
        %v1713 = vld [vmem:[%s438 + $0xe1] sm:$0xff]
        %v1714 = vld [vmem:[%s438 + $0xe9] sm:$0xff]
        %v1715 = vld [vmem:[%s438 + $0xf1] sm:$0xff]
        %v1716 = vld [vmem:[%s438 + $0xf9] sm:$0xff]
        %v1717 = vld [vmem:[%s438 + $0x101] sm:$0xff]
        %v1718 = vld [vmem:[%s438 + $0x109] sm:$0xff]
        %v1719 = vsel %vm906, %v1687, 0.0
        %v1720 = vsel %vm907, %v1688, 0.0
        %v1721 = vsel %vm908, %v1689, 0.0
        %v1722 = vsel %vm909, %v1690, 0.0
        %v1723 = vsel %vm910, %v1691, 0.0
        %v1724 = vsel %vm911, %v1692, 0.0
        %v1725 = vsel %vm912, %v1693, 0.0
        %v1726 = vsel %vm913, %v1694, 0.0
        %v1727 = vsel %vm914, %v1695, 0.0
        %v1728 = vsel %vm915, %v1696, 0.0
        %v1729 = vsel %vm916, %v1697, 0.0
        %v1730 = vsel %vm917, %v1698, 0.0
        %v1731 = vsel %vm918, %v1699, 0.0
        %v1732 = vsel %vm919, %v1700, 0.0
        %v1733 = vsel %vm920, %v1701, 0.0
        %v1734 = vsel %vm921, %v1702, 0.0
        %v1735 = vsel %vm922, %v1703, 0.0
        %v1736 = vsel %vm923, %v1704, 0.0
        %v1737 = vsel %vm924, %v1705, 0.0
        %v1738 = vsel %vm925, %v1706, 0.0
        %v1739 = vsel %vm926, %v1707, 0.0
        %v1740 = vsel %vm927, %v1708, 0.0
        %v1741 = vsel %vm928, %v1709, 0.0
        %v1742 = vsel %vm929, %v1710, 0.0
        %v1743 = vsel %vm930, %v1711, 0.0
        %v1744 = vsel %vm931, %v1712, 0.0
        %v1745 = vsel %vm932, %v1713, 0.0
        %v1746 = vsel %vm933, %v1714, 0.0
        %v1747 = vsel %vm934, %v1715, 0.0
        %v1748 = vsel %vm935, %v1716, 0.0
        %v1749 = vsel %vm936, %v1717, 0.0
        %v1750 = vsel %vm937, %v1718, 0.0
        %s1751 = scalar_lea.vmem %s1, 8
        %v1752 = vld [vmem:[%s1751] sm:$0x7]
        %v1754 = vsel %vm1037, %v1719, 0
        %v1757 = vsel %vm1037, %v1720, 0
        %v1760 = vsel %vm1037, %v1721, 0
        %v1763 = vsel %vm1037, %v1722, 0
        %v1766 = vsel %vm1037, %v1723, 0
        %v1769 = vsel %vm1037, %v1724, 0
        %v1772 = vsel %vm1037, %v1725, 0
        %v1775 = vsel %vm1037, %v1726, 0
        %v1778 = vsel %vm1037, %v1727, 0
        %v1781 = vsel %vm1037, %v1728, 0
        %v1784 = vsel %vm1037, %v1729, 0
        %v1787 = vsel %vm1037, %v1730, 0
        %v1790 = vsel %vm1037, %v1731, 0
        %v1793 = vsel %vm1037, %v1732, 0
        %v1796 = vsel %vm1037, %v1733, 0
        %v1799 = vsel %vm1037, %v1734, 0
        %v1802 = vsel %vm1037, %v1735, 0
        %v1805 = vsel %vm1037, %v1736, 0
        %v1808 = vsel %vm1037, %v1737, 0
        %v1811 = vsel %vm1037, %v1738, 0
        %v1814 = vsel %vm1037, %v1739, 0
        %v1817 = vsel %vm1037, %v1740, 0
        %v1820 = vsel %vm1037, %v1741, 0
        %v1823 = vsel %vm1037, %v1742, 0
        %v1826 = vsel %vm1037, %v1743, 0
        %v1829 = vsel %vm1037, %v1744, 0
        %v1832 = vsel %vm1037, %v1745, 0
        %v1835 = vsel %vm1037, %v1746, 0
        %v1838 = vsel %vm1037, %v1747, 0
        %v1841 = vsel %vm1037, %v1748, 0
        %v1844 = vsel %vm1037, %v1749, 0
        %v1847 = vsel %vm1037, %v1750, 0
        %v1850 = vsel %vm1134, %v1752, 0
        %1852 = vmatprep.subr.mxu0 0.0
        %1853 = vmatpush1.msra.mxu0 0.0
        %1854 = vmatprep.subr.mxu0 0.0
        %1855 = vmatpush1.msra.mxu0 0.0
        %1856 = vmatprep.subr.mxu0 0.0
        %1857 = vmatpush1.msra.mxu0 0.0
        %1858 = vmatprep.subr.mxu0 0.0
        %1859 = vmatpush1.msra.mxu0 0.0
        %1860 = vmatprep.subr.mxu0 0.0
        %1861 = vmatpush1.msra.mxu0 0.0
        %1862 = vmatprep.subr.mxu0 0.0
        %1863 = vmatpush1.msra.mxu0 0.0
        %1864 = vmatprep.subr.mxu0 0.0
        %1865 = vmatpush1.msra.mxu0 0.0
        %1866 = vmatprep.subr.mxu0 0.0
        %1867 = vmatpush1.msra.mxu0 0.0
        %1868 = vmatprep.subr.mxu0 0.0
        %1869 = vmatpush1.msra.mxu0 0.0
        %1870 = vmatprep.subr.mxu0 0.0
        %1871 = vmatpush1.msra.mxu0 0.0
        %1872 = vmatprep.subr.mxu0 0.0
        %1873 = vmatpush1.msra.mxu0 0.0
        %1874 = vmatprep.subr.mxu0 0.0
        %1875 = vmatpush1.msra.mxu0 0.0
        %1876 = vmatprep.subr.mxu0 0.0
        %1877 = vmatpush1.msra.mxu0 0.0
        %1878 = vmatprep.subr.mxu0 0.0
        %1879 = vmatpush1.msra.mxu0 0.0
        %1880 = vmatprep.subr.mxu0 0.0
        %1881 = vmatpush1.msra.mxu0 0.0
        %1882 = vmatprep.subr.mxu0 0.0
        %1883 = vmatpush1.msra.mxu0 %v1850
        %1884 = vmatprep.subr.mxu0 0.0
        %1885 = vmatpush2.msra.mxu0 0.0
        %1886 = vmatprep.subr.mxu0 0.0
        %1887 = vmatpush2.msra.mxu0 0.0
        %1888 = vmatprep.subr.mxu0 0.0
        %1889 = vmatpush2.msra.mxu0 0.0
        %1890 = vmatprep.subr.mxu0 0.0
        %1891 = vmatpush2.msra.mxu0 0.0
        %1892 = vmatprep.subr.mxu0 0.0
        %1893 = vmatpush2.msra.mxu0 0.0
        %1894 = vmatprep.subr.mxu0 0.0
        %1895 = vmatpush2.msra.mxu0 0.0
        %1896 = vmatprep.subr.mxu0 0.0
        %1897 = vmatpush2.msra.mxu0 0.0
        %1898 = vmatprep.subr.mxu0 0.0
        %1899 = vmatpush2.msra.mxu0 0.0
        %1900 = vmatprep.subr.mxu0 0.0
        %1901 = vmatpush2.msra.mxu0 0.0
        %1902 = vmatprep.subr.mxu0 0.0
        %1903 = vmatpush2.msra.mxu0 0.0
        %1904 = vmatprep.subr.mxu0 0.0
        %1905 = vmatpush2.msra.mxu0 0.0
        %1906 = vmatprep.subr.mxu0 0.0
        %1907 = vmatpush2.msra.mxu0 0.0
        %1908 = vmatprep.subr.mxu0 0.0
        %1909 = vmatpush2.msra.mxu0 0.0
        %1910 = vmatprep.subr.mxu0 0.0
        %1911 = vmatpush2.msra.mxu0 0.0
        %1912 = vmatprep.subr.mxu0 0.0
        %1913 = vmatpush2.msra.mxu0 0.0
        %1914 = vmatprep.subr.mxu0 0.0
        %1915 = vmatpush2.msra.mxu0 0.0
        %1916 = vmatprep.mubr.f32.mxu0 0.0
        %1917 = vmatmul.mubr.f32.gmra.mxu0 %v1754
        %v1918 = vpop.f32.mrf.mxu0
        %v1919 = vadd.f32 0.0, %v1918
        %v1920 = vpop.f32.mrf.mxu0
        %1921 = vmatprep.mubr.f32.mxu0 0.0
        %1922 = vmatmul.mubr.f32.gmra.mxu0 %v1757
        %v1923 = vpop.f32.mrf.mxu0
        %v1924 = vadd.f32 0.0, %v1923
        %v1925 = vpop.f32.mrf.mxu0
        %1926 = vmatprep.mubr.f32.mxu0 0.0
        %1927 = vmatmul.mubr.f32.gmra.mxu0 %v1760
        %v1928 = vpop.f32.mrf.mxu0
        %v1929 = vadd.f32 0.0, %v1928
        %v1930 = vpop.f32.mrf.mxu0
        %1931 = vmatprep.mubr.f32.mxu0 0.0
        %1932 = vmatmul.mubr.f32.gmra.mxu0 %v1763
        %v1933 = vpop.f32.mrf.mxu0
        %v1934 = vadd.f32 0.0, %v1933
        %v1935 = vpop.f32.mrf.mxu0
        %1936 = vmatprep.mubr.f32.mxu0 0.0
        %1937 = vmatmul.mubr.f32.gmra.mxu0 %v1766
        %v1938 = vpop.f32.mrf.mxu0
        %v1939 = vadd.f32 0.0, %v1938
        %v1940 = vpop.f32.mrf.mxu0
        %1941 = vmatprep.mubr.f32.mxu0 0.0
        %1942 = vmatmul.mubr.f32.gmra.mxu0 %v1769
        %v1943 = vpop.f32.mrf.mxu0
        %v1944 = vadd.f32 0.0, %v1943
        %v1945 = vpop.f32.mrf.mxu0
        %1946 = vmatprep.mubr.f32.mxu0 0.0
        %1947 = vmatmul.mubr.f32.gmra.mxu0 %v1772
        %v1948 = vpop.f32.mrf.mxu0
        %v1949 = vadd.f32 0.0, %v1948
        %v1950 = vpop.f32.mrf.mxu0
        %1951 = vmatprep.mubr.f32.mxu0 0.0
        %1952 = vmatmul.mubr.f32.gmra.mxu0 %v1775
        %v1953 = vpop.f32.mrf.mxu0
        %v1954 = vadd.f32 0.0, %v1953
        %v1955 = vpop.f32.mrf.mxu0
        %1956 = vmatprep.mubr.f32.mxu0 0.0
        %1957 = vmatmul.mubr.f32.gmra.mxu0 %v1778
        %v1958 = vpop.f32.mrf.mxu0
        %v1959 = vadd.f32 0.0, %v1958
        %v1960 = vpop.f32.mrf.mxu0
        %1961 = vmatprep.mubr.f32.mxu0 0.0
        %1962 = vmatmul.mubr.f32.gmra.mxu0 %v1781
        %v1963 = vpop.f32.mrf.mxu0
        %v1964 = vadd.f32 0.0, %v1963
        %v1965 = vpop.f32.mrf.mxu0
        %1966 = vmatprep.mubr.f32.mxu0 0.0
        %1967 = vmatmul.mubr.f32.gmra.mxu0 %v1784
        %v1968 = vpop.f32.mrf.mxu0
        %v1969 = vadd.f32 0.0, %v1968
        %v1970 = vpop.f32.mrf.mxu0
        %1971 = vmatprep.mubr.f32.mxu0 0.0
        %1972 = vmatmul.mubr.f32.gmra.mxu0 %v1787
        %v1973 = vpop.f32.mrf.mxu0
        %v1974 = vadd.f32 0.0, %v1973
        %v1975 = vpop.f32.mrf.mxu0
        %1976 = vmatprep.mubr.f32.mxu0 0.0
        %1977 = vmatmul.mubr.f32.gmra.mxu0 %v1790
        %v1978 = vpop.f32.mrf.mxu0
        %v1979 = vadd.f32 0.0, %v1978
        %v1980 = vpop.f32.mrf.mxu0
        %1981 = vmatprep.mubr.f32.mxu0 0.0
        %1982 = vmatmul.mubr.f32.gmra.mxu0 %v1793
        %v1983 = vpop.f32.mrf.mxu0
        %v1984 = vadd.f32 0.0, %v1983
        %v1985 = vpop.f32.mrf.mxu0
        %1986 = vmatprep.mubr.f32.mxu0 0.0
        %1987 = vmatmul.mubr.f32.gmra.mxu0 %v1796
        %v1988 = vpop.f32.mrf.mxu0
        %v1989 = vadd.f32 0.0, %v1988
        %v1990 = vpop.f32.mrf.mxu0
        %1991 = vmatprep.mubr.f32.mxu0 0.0
        %1992 = vmatmul.mubr.f32.gmra.mxu0 %v1799
        %v1993 = vpop.f32.mrf.mxu0
        %v1994 = vadd.f32 0.0, %v1993
        %v1995 = vpop.f32.mrf.mxu0
        %1996 = vmatprep.mubr.f32.mxu0 0.0
        %1997 = vmatmul.mubr.f32.gmra.mxu0 %v1802
        %v1998 = vpop.f32.mrf.mxu0
        %v1999 = vadd.f32 0.0, %v1998
        %v2000 = vpop.f32.mrf.mxu0
        %2001 = vmatprep.mubr.f32.mxu0 0.0
        %2002 = vmatmul.mubr.f32.gmra.mxu0 %v1805
        %v2003 = vpop.f32.mrf.mxu0
        %v2004 = vadd.f32 0.0, %v2003
        %v2005 = vpop.f32.mrf.mxu0
        %2006 = vmatprep.mubr.f32.mxu0 0.0
        %2007 = vmatmul.mubr.f32.gmra.mxu0 %v1808
        %v2008 = vpop.f32.mrf.mxu0
        %v2009 = vadd.f32 0.0, %v2008
        %v2010 = vpop.f32.mrf.mxu0
        %2011 = vmatprep.mubr.f32.mxu0 0.0
        %2012 = vmatmul.mubr.f32.gmra.mxu0 %v1811
        %v2013 = vpop.f32.mrf.mxu0
        %v2014 = vadd.f32 0.0, %v2013
        %v2015 = vpop.f32.mrf.mxu0
        %2016 = vmatprep.mubr.f32.mxu0 0.0
        %2017 = vmatmul.mubr.f32.gmra.mxu0 %v1814
        %v2018 = vpop.f32.mrf.mxu0
        %v2019 = vadd.f32 0.0, %v2018
        %v2020 = vpop.f32.mrf.mxu0
        %2021 = vmatprep.mubr.f32.mxu0 0.0
        %2022 = vmatmul.mubr.f32.gmra.mxu0 %v1817
        %v2023 = vpop.f32.mrf.mxu0
        %v2024 = vadd.f32 0.0, %v2023
        %v2025 = vpop.f32.mrf.mxu0
        %2026 = vmatprep.mubr.f32.mxu0 0.0
        %2027 = vmatmul.mubr.f32.gmra.mxu0 %v1820
        %v2028 = vpop.f32.mrf.mxu0
        %v2029 = vadd.f32 0.0, %v2028
        %v2030 = vpop.f32.mrf.mxu0
        %2031 = vmatprep.mubr.f32.mxu0 0.0
        %2032 = vmatmul.mubr.f32.gmra.mxu0 %v1823
        %v2033 = vpop.f32.mrf.mxu0
        %v2034 = vadd.f32 0.0, %v2033
        %v2035 = vpop.f32.mrf.mxu0
        %2036 = vmatprep.mubr.f32.mxu0 0.0
        %2037 = vmatmul.mubr.f32.gmra.mxu0 %v1826
        %v2038 = vpop.f32.mrf.mxu0
        %v2039 = vadd.f32 0.0, %v2038
        %v2040 = vpop.f32.mrf.mxu0
        %2041 = vmatprep.mubr.f32.mxu0 0.0
        %2042 = vmatmul.mubr.f32.gmra.mxu0 %v1829
        %v2043 = vpop.f32.mrf.mxu0
        %v2044 = vadd.f32 0.0, %v2043
        %v2045 = vpop.f32.mrf.mxu0
        %2046 = vmatprep.mubr.f32.mxu0 0.0
        %2047 = vmatmul.mubr.f32.gmra.mxu0 %v1832
        %v2048 = vpop.f32.mrf.mxu0
        %v2049 = vadd.f32 0.0, %v2048
        %v2050 = vpop.f32.mrf.mxu0
        %2051 = vmatprep.mubr.f32.mxu0 0.0
        %2052 = vmatmul.mubr.f32.gmra.mxu0 %v1835
        %v2053 = vpop.f32.mrf.mxu0
        %v2054 = vadd.f32 0.0, %v2053
        %v2055 = vpop.f32.mrf.mxu0
        %2056 = vmatprep.mubr.f32.mxu0 0.0
        %2057 = vmatmul.mubr.f32.gmra.mxu0 %v1838
        %v2058 = vpop.f32.mrf.mxu0
        %v2059 = vadd.f32 0.0, %v2058
        %v2060 = vpop.f32.mrf.mxu0
        %2061 = vmatprep.mubr.f32.mxu0 0.0
        %2062 = vmatmul.mubr.f32.gmra.mxu0 %v1841
        %v2063 = vpop.f32.mrf.mxu0
        %v2064 = vadd.f32 0.0, %v2063
        %v2065 = vpop.f32.mrf.mxu0
        %2066 = vmatprep.mubr.f32.mxu0 0.0
        %2067 = vmatmul.mubr.f32.gmra.mxu0 %v1844
        %v2068 = vpop.f32.mrf.mxu0
        %v2069 = vadd.f32 0.0, %v2068
        %v2070 = vpop.f32.mrf.mxu0
        %2071 = vmatprep.mubr.f32.mxu0 0.0
        %2072 = vmatmul.mubr.f32.gmra.mxu0 %v1847
        %v2073 = vpop.f32.mrf.mxu0
        %v2074 = vadd.f32 0.0, %v2073
        %v2075 = vpop.f32.mrf.mxu0
        %2076 = vdwg.mxu0
        %v2077 = vadd.f32 %v1529, %v1919
        %v2078 = vadd.f32 %v1534, %v1924
        %v2079 = vadd.f32 %v1539, %v1929
        %v2080 = vadd.f32 %v1544, %v1934
        %v2081 = vadd.f32 %v1549, %v1939
        %v2082 = vadd.f32 %v1554, %v1944
        %v2083 = vadd.f32 %v1559, %v1949
        %v2084 = vadd.f32 %v1564, %v1954
        %v2085 = vadd.f32 %v1569, %v1959
        %v2086 = vadd.f32 %v1574, %v1964
        %v2087 = vadd.f32 %v1579, %v1969
        %v2088 = vadd.f32 %v1584, %v1974
        %v2089 = vadd.f32 %v1589, %v1979
        %v2090 = vadd.f32 %v1594, %v1984
        %v2091 = vadd.f32 %v1599, %v1989
        %v2092 = vadd.f32 %v1604, %v1994
        %v2093 = vadd.f32 %v1609, %v1999
        %v2094 = vadd.f32 %v1614, %v2004
        %v2095 = vadd.f32 %v1619, %v2009
        %v2096 = vadd.f32 %v1624, %v2014
        %v2097 = vadd.f32 %v1629, %v2019
        %v2098 = vadd.f32 %v1634, %v2024
        %v2099 = vadd.f32 %v1639, %v2029
        %v2100 = vadd.f32 %v1644, %v2034
        %v2101 = vadd.f32 %v1649, %v2039
        %v2102 = vadd.f32 %v1654, %v2044
        %v2103 = vadd.f32 %v1659, %v2049
        %v2104 = vadd.f32 %v1664, %v2054
        %v2105 = vadd.f32 %v1669, %v2059
        %v2106 = vadd.f32 %v1674, %v2064
        %v2107 = vadd.f32 %v1679, %v2069
        %v2108 = vadd.f32 %v1684, %v2074
        %v2109 = vld [vmem:[%s438 + $0x1f] sm:$0xff]
        %v2110 = vld [vmem:[%s438 + $0x27] sm:$0xff]
        %v2111 = vld [vmem:[%s438 + $0x2f] sm:$0xff]
        %v2112 = vld [vmem:[%s438 + $0x37] sm:$0xff]
        %v2113 = vld [vmem:[%s438 + $0x3f] sm:$0xff]
        %v2114 = vld [vmem:[%s438 + $0x47] sm:$0xff]
        %v2115 = vld [vmem:[%s438 + $0x4f] sm:$0xff]
        %v2116 = vld [vmem:[%s438 + $0x57] sm:$0xff]
        %v2117 = vld [vmem:[%s438 + $0x5f] sm:$0xff]
        %v2118 = vld [vmem:[%s438 + $0x67] sm:$0xff]
        %v2119 = vld [vmem:[%s438 + $0x6f] sm:$0xff]
        %v2120 = vld [vmem:[%s438 + $0x77] sm:$0xff]
        %v2121 = vld [vmem:[%s438 + $0x7f] sm:$0xff]
        %v2122 = vld [vmem:[%s438 + $0x87] sm:$0xff]
        %v2123 = vld [vmem:[%s438 + $0x8f] sm:$0xff]
        %v2124 = vld [vmem:[%s438 + $0x97] sm:$0xff]
        %v2125 = vld [vmem:[%s438 + $0x9f] sm:$0xff]
        %v2126 = vld [vmem:[%s438 + $0xa7] sm:$0xff]
        %v2127 = vld [vmem:[%s438 + $0xaf] sm:$0xff]
        %v2128 = vld [vmem:[%s438 + $0xb7] sm:$0xff]
        %v2129 = vld [vmem:[%s438 + $0xbf] sm:$0xff]
        %v2130 = vld [vmem:[%s438 + $0xc7] sm:$0xff]
        %v2131 = vld [vmem:[%s438 + $0xcf] sm:$0xff]
        %v2132 = vld [vmem:[%s438 + $0xd7] sm:$0xff]
        %v2133 = vld [vmem:[%s438 + $0xdf] sm:$0xff]
        %v2134 = vld [vmem:[%s438 + $0xe7] sm:$0xff]
        %v2135 = vld [vmem:[%s438 + $0xef] sm:$0xff]
        %v2136 = vld [vmem:[%s438 + $0xf7] sm:$0xff]
        %v2137 = vld [vmem:[%s438 + $0xff] sm:$0xff]
        %v2138 = vld [vmem:[%s438 + $0x107] sm:$0xff]
        %v2139 = vld [vmem:[%s438 + $0x10f] sm:$0xff]
        %v2140 = vld [vmem:[%s438 + $0x117] sm:$0xff]
        %v2141 = vsel %vm874, %v2109, 0.0
        %v2142 = vsel %vm875, %v2110, 0.0
        %v2143 = vsel %vm876, %v2111, 0.0
        %v2144 = vsel %vm877, %v2112, 0.0
        %v2145 = vsel %vm878, %v2113, 0.0
        %v2146 = vsel %vm879, %v2114, 0.0
        %v2147 = vsel %vm880, %v2115, 0.0
        %v2148 = vsel %vm881, %v2116, 0.0
        %v2149 = vsel %vm882, %v2117, 0.0
        %v2150 = vsel %vm883, %v2118, 0.0
        %v2151 = vsel %vm884, %v2119, 0.0
        %v2152 = vsel %vm885, %v2120, 0.0
        %v2153 = vsel %vm886, %v2121, 0.0
        %v2154 = vsel %vm887, %v2122, 0.0
        %v2155 = vsel %vm888, %v2123, 0.0
        %v2156 = vsel %vm889, %v2124, 0.0
        %v2157 = vsel %vm890, %v2125, 0.0
        %v2158 = vsel %vm891, %v2126, 0.0
        %v2159 = vsel %vm892, %v2127, 0.0
        %v2160 = vsel %vm893, %v2128, 0.0
        %v2161 = vsel %vm894, %v2129, 0.0
        %v2162 = vsel %vm895, %v2130, 0.0
        %v2163 = vsel %vm896, %v2131, 0.0
        %v2164 = vsel %vm897, %v2132, 0.0
        %v2165 = vsel %vm898, %v2133, 0.0
        %v2166 = vsel %vm899, %v2134, 0.0
        %v2167 = vsel %vm900, %v2135, 0.0
        %v2168 = vsel %vm901, %v2136, 0.0
        %v2169 = vsel %vm902, %v2137, 0.0
        %v2170 = vsel %vm903, %v2138, 0.0
        %v2171 = vsel %vm904, %v2139, 0.0
        %v2172 = vsel %vm905, %v2140, 0.0
        %s2173 = scalar_lea.vmem %s1, 12
        %v2174 = vld [vmem:[%s2173] sm:$0x7]
        %v2176 = vsel %vm1037, %v2141, 0
        %v2179 = vsel %vm1037, %v2142, 0
        %v2182 = vsel %vm1037, %v2143, 0
        %v2185 = vsel %vm1037, %v2144, 0
        %v2188 = vsel %vm1037, %v2145, 0
        %v2191 = vsel %vm1037, %v2146, 0
        %v2194 = vsel %vm1037, %v2147, 0
        %v2197 = vsel %vm1037, %v2148, 0
        %v2200 = vsel %vm1037, %v2149, 0
        %v2203 = vsel %vm1037, %v2150, 0
        %v2206 = vsel %vm1037, %v2151, 0
        %v2209 = vsel %vm1037, %v2152, 0
        %v2212 = vsel %vm1037, %v2153, 0
        %v2215 = vsel %vm1037, %v2154, 0
        %v2218 = vsel %vm1037, %v2155, 0
        %v2221 = vsel %vm1037, %v2156, 0
        %v2224 = vsel %vm1037, %v2157, 0
        %v2227 = vsel %vm1037, %v2158, 0
        %v2230 = vsel %vm1037, %v2159, 0
        %v2233 = vsel %vm1037, %v2160, 0
        %v2236 = vsel %vm1037, %v2161, 0
        %v2239 = vsel %vm1037, %v2162, 0
        %v2242 = vsel %vm1037, %v2163, 0
        %v2245 = vsel %vm1037, %v2164, 0
        %v2248 = vsel %vm1037, %v2165, 0
        %v2251 = vsel %vm1037, %v2166, 0
        %v2254 = vsel %vm1037, %v2167, 0
        %v2257 = vsel %vm1037, %v2168, 0
        %v2260 = vsel %vm1037, %v2169, 0
        %v2263 = vsel %vm1037, %v2170, 0
        %v2266 = vsel %vm1037, %v2171, 0
        %v2269 = vsel %vm1037, %v2172, 0
        %v2272 = vsel %vm1134, %v2174, 0
        %2274 = vmatprep.subr.mxu0 0.0
        %2275 = vmatpush1.msra.mxu0 0.0
        %2276 = vmatprep.subr.mxu0 0.0
        %2277 = vmatpush1.msra.mxu0 0.0
        %2278 = vmatprep.subr.mxu0 0.0
        %2279 = vmatpush1.msra.mxu0 0.0
        %2280 = vmatprep.subr.mxu0 0.0
        %2281 = vmatpush1.msra.mxu0 0.0
        %2282 = vmatprep.subr.mxu0 0.0
        %2283 = vmatpush1.msra.mxu0 0.0
        %2284 = vmatprep.subr.mxu0 0.0
        %2285 = vmatpush1.msra.mxu0 0.0
        %2286 = vmatprep.subr.mxu0 0.0
        %2287 = vmatpush1.msra.mxu0 0.0
        %2288 = vmatprep.subr.mxu0 0.0
        %2289 = vmatpush1.msra.mxu0 0.0
        %2290 = vmatprep.subr.mxu0 0.0
        %2291 = vmatpush1.msra.mxu0 0.0
        %2292 = vmatprep.subr.mxu0 0.0
        %2293 = vmatpush1.msra.mxu0 0.0
        %2294 = vmatprep.subr.mxu0 0.0
        %2295 = vmatpush1.msra.mxu0 0.0
        %2296 = vmatprep.subr.mxu0 0.0
        %2297 = vmatpush1.msra.mxu0 0.0
        %2298 = vmatprep.subr.mxu0 0.0
        %2299 = vmatpush1.msra.mxu0 0.0
        %2300 = vmatprep.subr.mxu0 0.0
        %2301 = vmatpush1.msra.mxu0 0.0
        %2302 = vmatprep.subr.mxu0 0.0
        %2303 = vmatpush1.msra.mxu0 0.0
        %2304 = vmatprep.subr.mxu0 0.0
        %2305 = vmatpush1.msra.mxu0 %v2272
        %2306 = vmatprep.subr.mxu0 0.0
        %2307 = vmatpush2.msra.mxu0 0.0
        %2308 = vmatprep.subr.mxu0 0.0
        %2309 = vmatpush2.msra.mxu0 0.0
        %2310 = vmatprep.subr.mxu0 0.0
        %2311 = vmatpush2.msra.mxu0 0.0
        %2312 = vmatprep.subr.mxu0 0.0
        %2313 = vmatpush2.msra.mxu0 0.0
        %2314 = vmatprep.subr.mxu0 0.0
        %2315 = vmatpush2.msra.mxu0 0.0
        %2316 = vmatprep.subr.mxu0 0.0
        %2317 = vmatpush2.msra.mxu0 0.0
        %2318 = vmatprep.subr.mxu0 0.0
        %2319 = vmatpush2.msra.mxu0 0.0
        %2320 = vmatprep.subr.mxu0 0.0
        %2321 = vmatpush2.msra.mxu0 0.0
        %2322 = vmatprep.subr.mxu0 0.0
        %2323 = vmatpush2.msra.mxu0 0.0
        %2324 = vmatprep.subr.mxu0 0.0
        %2325 = vmatpush2.msra.mxu0 0.0
        %2326 = vmatprep.subr.mxu0 0.0
        %2327 = vmatpush2.msra.mxu0 0.0
        %2328 = vmatprep.subr.mxu0 0.0
        %2329 = vmatpush2.msra.mxu0 0.0
        %2330 = vmatprep.subr.mxu0 0.0
        %2331 = vmatpush2.msra.mxu0 0.0
        %2332 = vmatprep.subr.mxu0 0.0
        %2333 = vmatpush2.msra.mxu0 0.0
        %2334 = vmatprep.subr.mxu0 0.0
        %2335 = vmatpush2.msra.mxu0 0.0
        %2336 = vmatprep.subr.mxu0 0.0
        %2337 = vmatpush2.msra.mxu0 0.0
        %2338 = vmatprep.mubr.f32.mxu0 0.0
        %2339 = vmatmul.mubr.f32.gmra.mxu0 %v2176
        %v2340 = vpop.f32.mrf.mxu0
        %v2341 = vadd.f32 0.0, %v2340
        %v2342 = vpop.f32.mrf.mxu0
        %2343 = vmatprep.mubr.f32.mxu0 0.0
        %2344 = vmatmul.mubr.f32.gmra.mxu0 %v2179
        %v2345 = vpop.f32.mrf.mxu0
        %v2346 = vadd.f32 0.0, %v2345
        %v2347 = vpop.f32.mrf.mxu0
        %2348 = vmatprep.mubr.f32.mxu0 0.0
        %2349 = vmatmul.mubr.f32.gmra.mxu0 %v2182
        %v2350 = vpop.f32.mrf.mxu0
        %v2351 = vadd.f32 0.0, %v2350
        %v2352 = vpop.f32.mrf.mxu0
        %2353 = vmatprep.mubr.f32.mxu0 0.0
        %2354 = vmatmul.mubr.f32.gmra.mxu0 %v2185
        %v2355 = vpop.f32.mrf.mxu0
        %v2356 = vadd.f32 0.0, %v2355
        %v2357 = vpop.f32.mrf.mxu0
        %2358 = vmatprep.mubr.f32.mxu0 0.0
        %2359 = vmatmul.mubr.f32.gmra.mxu0 %v2188
        %v2360 = vpop.f32.mrf.mxu0
        %v2361 = vadd.f32 0.0, %v2360
        %v2362 = vpop.f32.mrf.mxu0
        %2363 = vmatprep.mubr.f32.mxu0 0.0
        %2364 = vmatmul.mubr.f32.gmra.mxu0 %v2191
        %v2365 = vpop.f32.mrf.mxu0
        %v2366 = vadd.f32 0.0, %v2365
        %v2367 = vpop.f32.mrf.mxu0
        %2368 = vmatprep.mubr.f32.mxu0 0.0
        %2369 = vmatmul.mubr.f32.gmra.mxu0 %v2194
        %v2370 = vpop.f32.mrf.mxu0
        %v2371 = vadd.f32 0.0, %v2370
        %v2372 = vpop.f32.mrf.mxu0
        %2373 = vmatprep.mubr.f32.mxu0 0.0
        %2374 = vmatmul.mubr.f32.gmra.mxu0 %v2197
        %v2375 = vpop.f32.mrf.mxu0
        %v2376 = vadd.f32 0.0, %v2375
        %v2377 = vpop.f32.mrf.mxu0
        %2378 = vmatprep.mubr.f32.mxu0 0.0
        %2379 = vmatmul.mubr.f32.gmra.mxu0 %v2200
        %v2380 = vpop.f32.mrf.mxu0
        %v2381 = vadd.f32 0.0, %v2380
        %v2382 = vpop.f32.mrf.mxu0
        %2383 = vmatprep.mubr.f32.mxu0 0.0
        %2384 = vmatmul.mubr.f32.gmra.mxu0 %v2203
        %v2385 = vpop.f32.mrf.mxu0
        %v2386 = vadd.f32 0.0, %v2385
        %v2387 = vpop.f32.mrf.mxu0
        %2388 = vmatprep.mubr.f32.mxu0 0.0
        %2389 = vmatmul.mubr.f32.gmra.mxu0 %v2206
        %v2390 = vpop.f32.mrf.mxu0
        %v2391 = vadd.f32 0.0, %v2390
        %v2392 = vpop.f32.mrf.mxu0
        %2393 = vmatprep.mubr.f32.mxu0 0.0
        %2394 = vmatmul.mubr.f32.gmra.mxu0 %v2209
        %v2395 = vpop.f32.mrf.mxu0
        %v2396 = vadd.f32 0.0, %v2395
        %v2397 = vpop.f32.mrf.mxu0
        %2398 = vmatprep.mubr.f32.mxu0 0.0
        %2399 = vmatmul.mubr.f32.gmra.mxu0 %v2212
        %v2400 = vpop.f32.mrf.mxu0
        %v2401 = vadd.f32 0.0, %v2400
        %v2402 = vpop.f32.mrf.mxu0
        %2403 = vmatprep.mubr.f32.mxu0 0.0
        %2404 = vmatmul.mubr.f32.gmra.mxu0 %v2215
        %v2405 = vpop.f32.mrf.mxu0
        %v2406 = vadd.f32 0.0, %v2405
        %v2407 = vpop.f32.mrf.mxu0
        %2408 = vmatprep.mubr.f32.mxu0 0.0
        %2409 = vmatmul.mubr.f32.gmra.mxu0 %v2218
        %v2410 = vpop.f32.mrf.mxu0
        %v2411 = vadd.f32 0.0, %v2410
        %v2412 = vpop.f32.mrf.mxu0
        %2413 = vmatprep.mubr.f32.mxu0 0.0
        %2414 = vmatmul.mubr.f32.gmra.mxu0 %v2221
        %v2415 = vpop.f32.mrf.mxu0
        %v2416 = vadd.f32 0.0, %v2415
        %v2417 = vpop.f32.mrf.mxu0
        %2418 = vmatprep.mubr.f32.mxu0 0.0
        %2419 = vmatmul.mubr.f32.gmra.mxu0 %v2224
        %v2420 = vpop.f32.mrf.mxu0
        %v2421 = vadd.f32 0.0, %v2420
        %v2422 = vpop.f32.mrf.mxu0
        %2423 = vmatprep.mubr.f32.mxu0 0.0
        %2424 = vmatmul.mubr.f32.gmra.mxu0 %v2227
        %v2425 = vpop.f32.mrf.mxu0
        %v2426 = vadd.f32 0.0, %v2425
        %v2427 = vpop.f32.mrf.mxu0
        %2428 = vmatprep.mubr.f32.mxu0 0.0
        %2429 = vmatmul.mubr.f32.gmra.mxu0 %v2230
        %v2430 = vpop.f32.mrf.mxu0
        %v2431 = vadd.f32 0.0, %v2430
        %v2432 = vpop.f32.mrf.mxu0
        %2433 = vmatprep.mubr.f32.mxu0 0.0
        %2434 = vmatmul.mubr.f32.gmra.mxu0 %v2233
        %v2435 = vpop.f32.mrf.mxu0
        %v2436 = vadd.f32 0.0, %v2435
        %v2437 = vpop.f32.mrf.mxu0
        %2438 = vmatprep.mubr.f32.mxu0 0.0
        %2439 = vmatmul.mubr.f32.gmra.mxu0 %v2236
        %v2440 = vpop.f32.mrf.mxu0
        %v2441 = vadd.f32 0.0, %v2440
        %v2442 = vpop.f32.mrf.mxu0
        %2443 = vmatprep.mubr.f32.mxu0 0.0
        %2444 = vmatmul.mubr.f32.gmra.mxu0 %v2239
        %v2445 = vpop.f32.mrf.mxu0
        %v2446 = vadd.f32 0.0, %v2445
        %v2447 = vpop.f32.mrf.mxu0
        %2448 = vmatprep.mubr.f32.mxu0 0.0
        %2449 = vmatmul.mubr.f32.gmra.mxu0 %v2242
        %v2450 = vpop.f32.mrf.mxu0
        %v2451 = vadd.f32 0.0, %v2450
        %v2452 = vpop.f32.mrf.mxu0
        %2453 = vmatprep.mubr.f32.mxu0 0.0
        %2454 = vmatmul.mubr.f32.gmra.mxu0 %v2245
        %v2455 = vpop.f32.mrf.mxu0
        %v2456 = vadd.f32 0.0, %v2455
        %v2457 = vpop.f32.mrf.mxu0
        %2458 = vmatprep.mubr.f32.mxu0 0.0
        %2459 = vmatmul.mubr.f32.gmra.mxu0 %v2248
        %v2460 = vpop.f32.mrf.mxu0
        %v2461 = vadd.f32 0.0, %v2460
        %v2462 = vpop.f32.mrf.mxu0
        %2463 = vmatprep.mubr.f32.mxu0 0.0
        %2464 = vmatmul.mubr.f32.gmra.mxu0 %v2251
        %v2465 = vpop.f32.mrf.mxu0
        %v2466 = vadd.f32 0.0, %v2465
        %v2467 = vpop.f32.mrf.mxu0
        %2468 = vmatprep.mubr.f32.mxu0 0.0
        %2469 = vmatmul.mubr.f32.gmra.mxu0 %v2254
        %v2470 = vpop.f32.mrf.mxu0
        %v2471 = vadd.f32 0.0, %v2470
        %v2472 = vpop.f32.mrf.mxu0
        %2473 = vmatprep.mubr.f32.mxu0 0.0
        %2474 = vmatmul.mubr.f32.gmra.mxu0 %v2257
        %v2475 = vpop.f32.mrf.mxu0
        %v2476 = vadd.f32 0.0, %v2475
        %v2477 = vpop.f32.mrf.mxu0
        %2478 = vmatprep.mubr.f32.mxu0 0.0
        %2479 = vmatmul.mubr.f32.gmra.mxu0 %v2260
        %v2480 = vpop.f32.mrf.mxu0
        %v2481 = vadd.f32 0.0, %v2480
        %v2482 = vpop.f32.mrf.mxu0
        %2483 = vmatprep.mubr.f32.mxu0 0.0
        %2484 = vmatmul.mubr.f32.gmra.mxu0 %v2263
        %v2485 = vpop.f32.mrf.mxu0
        %v2486 = vadd.f32 0.0, %v2485
        %v2487 = vpop.f32.mrf.mxu0
        %2488 = vmatprep.mubr.f32.mxu0 0.0
        %2489 = vmatmul.mubr.f32.gmra.mxu0 %v2266
        %v2490 = vpop.f32.mrf.mxu0
        %v2491 = vadd.f32 0.0, %v2490
        %v2492 = vpop.f32.mrf.mxu0
        %2493 = vmatprep.mubr.f32.mxu0 0.0
        %2494 = vmatmul.mubr.f32.gmra.mxu0 %v2269
        %v2495 = vpop.f32.mrf.mxu0
        %v2496 = vadd.f32 0.0, %v2495
        %v2497 = vpop.f32.mrf.mxu0
        %2498 = vdwg.mxu0
        %v2499 = vadd.f32 %v2077, %v2341
        %v2500 = vadd.f32 %v2078, %v2346
        %v2501 = vadd.f32 %v2079, %v2351
        %v2502 = vadd.f32 %v2080, %v2356
        %v2503 = vadd.f32 %v2081, %v2361
        %v2504 = vadd.f32 %v2082, %v2366
        %v2505 = vadd.f32 %v2083, %v2371
        %v2506 = vadd.f32 %v2084, %v2376
        %v2507 = vadd.f32 %v2085, %v2381
        %v2508 = vadd.f32 %v2086, %v2386
        %v2509 = vadd.f32 %v2087, %v2391
        %v2510 = vadd.f32 %v2088, %v2396
        %v2511 = vadd.f32 %v2089, %v2401
        %v2512 = vadd.f32 %v2090, %v2406
        %v2513 = vadd.f32 %v2091, %v2411
        %v2514 = vadd.f32 %v2092, %v2416
        %v2515 = vadd.f32 %v2093, %v2421
        %v2516 = vadd.f32 %v2094, %v2426
        %v2517 = vadd.f32 %v2095, %v2431
        %v2518 = vadd.f32 %v2096, %v2436
        %v2519 = vadd.f32 %v2097, %v2441
        %v2520 = vadd.f32 %v2098, %v2446
        %v2521 = vadd.f32 %v2099, %v2451
        %v2522 = vadd.f32 %v2100, %v2456
        %v2523 = vadd.f32 %v2101, %v2461
        %v2524 = vadd.f32 %v2102, %v2466
        %v2525 = vadd.f32 %v2103, %v2471
        %v2526 = vadd.f32 %v2104, %v2476
        %v2527 = vadd.f32 %v2105, %v2481
        %v2528 = vadd.f32 %v2106, %v2486
        %v2529 = vadd.f32 %v2107, %v2491
        %v2530 = vadd.f32 %v2108, %v2496
        %v2531 = vld [vmem:[%s438 + $0x20] sm:$0xff]
        %v2532 = vld [vmem:[%s438 + $0x28] sm:$0xff]
        %v2533 = vld [vmem:[%s438 + $0x30] sm:$0xff]
        %v2534 = vld [vmem:[%s438 + $0x38] sm:$0xff]
        %v2535 = vld [vmem:[%s438 + $0x40] sm:$0xff]
        %v2536 = vld [vmem:[%s438 + $0x48] sm:$0xff]
        %v2537 = vld [vmem:[%s438 + $0x50] sm:$0xff]
        %v2538 = vld [vmem:[%s438 + $0x58] sm:$0xff]
        %v2539 = vld [vmem:[%s438 + $0x60] sm:$0xff]
        %v2540 = vld [vmem:[%s438 + $0x68] sm:$0xff]
        %v2541 = vld [vmem:[%s438 + $0x70] sm:$0xff]
        %v2542 = vld [vmem:[%s438 + $0x78] sm:$0xff]
        %v2543 = vld [vmem:[%s438 + $0x80] sm:$0xff]
        %v2544 = vld [vmem:[%s438 + $0x88] sm:$0xff]
        %v2545 = vld [vmem:[%s438 + $0x90] sm:$0xff]
        %v2546 = vld [vmem:[%s438 + $0x98] sm:$0xff]
        %v2547 = vld [vmem:[%s438 + $0xa0] sm:$0xff]
        %v2548 = vld [vmem:[%s438 + $0xa8] sm:$0xff]
        %v2549 = vld [vmem:[%s438 + $0xb0] sm:$0xff]
        %v2550 = vld [vmem:[%s438 + $0xb8] sm:$0xff]
        %v2551 = vld [vmem:[%s438 + $0xc0] sm:$0xff]
        %v2552 = vld [vmem:[%s438 + $0xc8] sm:$0xff]
        %v2553 = vld [vmem:[%s438 + $0xd0] sm:$0xff]
        %v2554 = vld [vmem:[%s438 + $0xd8] sm:$0xff]
        %v2555 = vld [vmem:[%s438 + $0xe0] sm:$0xff]
        %v2556 = vld [vmem:[%s438 + $0xe8] sm:$0xff]
        %v2557 = vld [vmem:[%s438 + $0xf0] sm:$0xff]
        %v2558 = vld [vmem:[%s438 + $0xf8] sm:$0xff]
        %v2559 = vld [vmem:[%s438 + $0x100] sm:$0xff]
        %v2560 = vld [vmem:[%s438 + $0x108] sm:$0xff]
        %v2561 = vld [vmem:[%s438 + $0x110] sm:$0xff]
        %v2562 = vld [vmem:[%s438 + $0x118] sm:$0xff]
        %s2563 = scalar_lea.vmem %s1, 16
        %v2564 = vld [vmem:[%s2563] sm:$0x7]
        %v2566 = vsel %vm1037, %v2531, 0
        %v2569 = vsel %vm1037, %v2532, 0
        %v2572 = vsel %vm1037, %v2533, 0
        %v2575 = vsel %vm1037, %v2534, 0
        %v2578 = vsel %vm1037, %v2535, 0
        %v2581 = vsel %vm1037, %v2536, 0
        %v2584 = vsel %vm1037, %v2537, 0
        %v2587 = vsel %vm1037, %v2538, 0
        %v2590 = vsel %vm1037, %v2539, 0
        %v2593 = vsel %vm1037, %v2540, 0
        %v2596 = vsel %vm1037, %v2541, 0
        %v2599 = vsel %vm1037, %v2542, 0
        %v2602 = vsel %vm1037, %v2543, 0
        %v2605 = vsel %vm1037, %v2544, 0
        %v2608 = vsel %vm1037, %v2545, 0
        %v2611 = vsel %vm1037, %v2546, 0
        %v2614 = vsel %vm1037, %v2547, 0
        %v2617 = vsel %vm1037, %v2548, 0
        %v2620 = vsel %vm1037, %v2549, 0
        %v2623 = vsel %vm1037, %v2550, 0
        %v2626 = vsel %vm1037, %v2551, 0
        %v2629 = vsel %vm1037, %v2552, 0
        %v2632 = vsel %vm1037, %v2553, 0
        %v2635 = vsel %vm1037, %v2554, 0
        %v2638 = vsel %vm1037, %v2555, 0
        %v2641 = vsel %vm1037, %v2556, 0
        %v2644 = vsel %vm1037, %v2557, 0
        %v2647 = vsel %vm1037, %v2558, 0
        %v2650 = vsel %vm1037, %v2559, 0
        %v2653 = vsel %vm1037, %v2560, 0
        %v2656 = vsel %vm1037, %v2561, 0
        %v2659 = vsel %vm1037, %v2562, 0
        %v2662 = vsel %vm1134, %v2564, 0
        %2664 = vmatprep.subr.mxu0 0.0
        %2665 = vmatpush1.msra.mxu0 0.0
        %2666 = vmatprep.subr.mxu0 0.0
        %2667 = vmatpush1.msra.mxu0 0.0
        %2668 = vmatprep.subr.mxu0 0.0
        %2669 = vmatpush1.msra.mxu0 0.0
        %2670 = vmatprep.subr.mxu0 0.0
        %2671 = vmatpush1.msra.mxu0 0.0
        %2672 = vmatprep.subr.mxu0 0.0
        %2673 = vmatpush1.msra.mxu0 0.0
        %2674 = vmatprep.subr.mxu0 0.0
        %2675 = vmatpush1.msra.mxu0 0.0
        %2676 = vmatprep.subr.mxu0 0.0
        %2677 = vmatpush1.msra.mxu0 0.0
        %2678 = vmatprep.subr.mxu0 0.0
        %2679 = vmatpush1.msra.mxu0 0.0
        %2680 = vmatprep.subr.mxu0 0.0
        %2681 = vmatpush1.msra.mxu0 0.0
        %2682 = vmatprep.subr.mxu0 0.0
        %2683 = vmatpush1.msra.mxu0 0.0
        %2684 = vmatprep.subr.mxu0 0.0
        %2685 = vmatpush1.msra.mxu0 0.0
        %2686 = vmatprep.subr.mxu0 0.0
        %2687 = vmatpush1.msra.mxu0 0.0
        %2688 = vmatprep.subr.mxu0 0.0
        %2689 = vmatpush1.msra.mxu0 0.0
        %2690 = vmatprep.subr.mxu0 0.0
        %2691 = vmatpush1.msra.mxu0 0.0
        %2692 = vmatprep.subr.mxu0 0.0
        %2693 = vmatpush1.msra.mxu0 0.0
        %2694 = vmatprep.subr.mxu0 0.0
        %2695 = vmatpush1.msra.mxu0 %v2662
        %2696 = vmatprep.subr.mxu0 0.0
        %2697 = vmatpush2.msra.mxu0 0.0
        %2698 = vmatprep.subr.mxu0 0.0
        %2699 = vmatpush2.msra.mxu0 0.0
        %2700 = vmatprep.subr.mxu0 0.0
        %2701 = vmatpush2.msra.mxu0 0.0
        %2702 = vmatprep.subr.mxu0 0.0
        %2703 = vmatpush2.msra.mxu0 0.0
        %2704 = vmatprep.subr.mxu0 0.0
        %2705 = vmatpush2.msra.mxu0 0.0
        %2706 = vmatprep.subr.mxu0 0.0
        %2707 = vmatpush2.msra.mxu0 0.0
        %2708 = vmatprep.subr.mxu0 0.0
        %2709 = vmatpush2.msra.mxu0 0.0
        %2710 = vmatprep.subr.mxu0 0.0
        %2711 = vmatpush2.msra.mxu0 0.0
        %2712 = vmatprep.subr.mxu0 0.0
        %2713 = vmatpush2.msra.mxu0 0.0
        %2714 = vmatprep.subr.mxu0 0.0
        %2715 = vmatpush2.msra.mxu0 0.0
        %2716 = vmatprep.subr.mxu0 0.0
        %2717 = vmatpush2.msra.mxu0 0.0
        %2718 = vmatprep.subr.mxu0 0.0
        %2719 = vmatpush2.msra.mxu0 0.0
        %2720 = vmatprep.subr.mxu0 0.0
        %2721 = vmatpush2.msra.mxu0 0.0
        %2722 = vmatprep.subr.mxu0 0.0
        %2723 = vmatpush2.msra.mxu0 0.0
        %2724 = vmatprep.subr.mxu0 0.0
        %2725 = vmatpush2.msra.mxu0 0.0
        %2726 = vmatprep.subr.mxu0 0.0
        %2727 = vmatpush2.msra.mxu0 0.0
        %2728 = vmatprep.mubr.f32.mxu0 0.0
        %2729 = vmatmul.mubr.f32.gmra.mxu0 %v2566
        %v2730 = vpop.f32.mrf.mxu0
        %v2731 = vadd.f32 0.0, %v2730
        %v2732 = vpop.f32.mrf.mxu0
        %2733 = vmatprep.mubr.f32.mxu0 0.0
        %2734 = vmatmul.mubr.f32.gmra.mxu0 %v2569
        %v2735 = vpop.f32.mrf.mxu0
        %v2736 = vadd.f32 0.0, %v2735
        %v2737 = vpop.f32.mrf.mxu0
        %2738 = vmatprep.mubr.f32.mxu0 0.0
        %2739 = vmatmul.mubr.f32.gmra.mxu0 %v2572
        %v2740 = vpop.f32.mrf.mxu0
        %v2741 = vadd.f32 0.0, %v2740
        %v2742 = vpop.f32.mrf.mxu0
        %2743 = vmatprep.mubr.f32.mxu0 0.0
        %2744 = vmatmul.mubr.f32.gmra.mxu0 %v2575
        %v2745 = vpop.f32.mrf.mxu0
        %v2746 = vadd.f32 0.0, %v2745
        %v2747 = vpop.f32.mrf.mxu0
        %2748 = vmatprep.mubr.f32.mxu0 0.0
        %2749 = vmatmul.mubr.f32.gmra.mxu0 %v2578
        %v2750 = vpop.f32.mrf.mxu0
        %v2751 = vadd.f32 0.0, %v2750
        %v2752 = vpop.f32.mrf.mxu0
        %2753 = vmatprep.mubr.f32.mxu0 0.0
        %2754 = vmatmul.mubr.f32.gmra.mxu0 %v2581
        %v2755 = vpop.f32.mrf.mxu0
        %v2756 = vadd.f32 0.0, %v2755
        %v2757 = vpop.f32.mrf.mxu0
        %2758 = vmatprep.mubr.f32.mxu0 0.0
        %2759 = vmatmul.mubr.f32.gmra.mxu0 %v2584
        %v2760 = vpop.f32.mrf.mxu0
        %v2761 = vadd.f32 0.0, %v2760
        %v2762 = vpop.f32.mrf.mxu0
        %2763 = vmatprep.mubr.f32.mxu0 0.0
        %2764 = vmatmul.mubr.f32.gmra.mxu0 %v2587
        %v2765 = vpop.f32.mrf.mxu0
        %v2766 = vadd.f32 0.0, %v2765
        %v2767 = vpop.f32.mrf.mxu0
        %2768 = vmatprep.mubr.f32.mxu0 0.0
        %2769 = vmatmul.mubr.f32.gmra.mxu0 %v2590
        %v2770 = vpop.f32.mrf.mxu0
        %v2771 = vadd.f32 0.0, %v2770
        %v2772 = vpop.f32.mrf.mxu0
        %2773 = vmatprep.mubr.f32.mxu0 0.0
        %2774 = vmatmul.mubr.f32.gmra.mxu0 %v2593
        %v2775 = vpop.f32.mrf.mxu0
        %v2776 = vadd.f32 0.0, %v2775
        %v2777 = vpop.f32.mrf.mxu0
        %2778 = vmatprep.mubr.f32.mxu0 0.0
        %2779 = vmatmul.mubr.f32.gmra.mxu0 %v2596
        %v2780 = vpop.f32.mrf.mxu0
        %v2781 = vadd.f32 0.0, %v2780
        %v2782 = vpop.f32.mrf.mxu0
        %2783 = vmatprep.mubr.f32.mxu0 0.0
        %2784 = vmatmul.mubr.f32.gmra.mxu0 %v2599
        %v2785 = vpop.f32.mrf.mxu0
        %v2786 = vadd.f32 0.0, %v2785
        %v2787 = vpop.f32.mrf.mxu0
        %2788 = vmatprep.mubr.f32.mxu0 0.0
        %2789 = vmatmul.mubr.f32.gmra.mxu0 %v2602
        %v2790 = vpop.f32.mrf.mxu0
        %v2791 = vadd.f32 0.0, %v2790
        %v2792 = vpop.f32.mrf.mxu0
        %2793 = vmatprep.mubr.f32.mxu0 0.0
        %2794 = vmatmul.mubr.f32.gmra.mxu0 %v2605
        %v2795 = vpop.f32.mrf.mxu0
        %v2796 = vadd.f32 0.0, %v2795
        %v2797 = vpop.f32.mrf.mxu0
        %2798 = vmatprep.mubr.f32.mxu0 0.0
        %2799 = vmatmul.mubr.f32.gmra.mxu0 %v2608
        %v2800 = vpop.f32.mrf.mxu0
        %v2801 = vadd.f32 0.0, %v2800
        %v2802 = vpop.f32.mrf.mxu0
        %2803 = vmatprep.mubr.f32.mxu0 0.0
        %2804 = vmatmul.mubr.f32.gmra.mxu0 %v2611
        %v2805 = vpop.f32.mrf.mxu0
        %v2806 = vadd.f32 0.0, %v2805
        %v2807 = vpop.f32.mrf.mxu0
        %2808 = vmatprep.mubr.f32.mxu0 0.0
        %2809 = vmatmul.mubr.f32.gmra.mxu0 %v2614
        %v2810 = vpop.f32.mrf.mxu0
        %v2811 = vadd.f32 0.0, %v2810
        %v2812 = vpop.f32.mrf.mxu0
        %2813 = vmatprep.mubr.f32.mxu0 0.0
        %2814 = vmatmul.mubr.f32.gmra.mxu0 %v2617
        %v2815 = vpop.f32.mrf.mxu0
        %v2816 = vadd.f32 0.0, %v2815
        %v2817 = vpop.f32.mrf.mxu0
        %2818 = vmatprep.mubr.f32.mxu0 0.0
        %2819 = vmatmul.mubr.f32.gmra.mxu0 %v2620
        %v2820 = vpop.f32.mrf.mxu0
        %v2821 = vadd.f32 0.0, %v2820
        %v2822 = vpop.f32.mrf.mxu0
        %2823 = vmatprep.mubr.f32.mxu0 0.0
        %2824 = vmatmul.mubr.f32.gmra.mxu0 %v2623
        %v2825 = vpop.f32.mrf.mxu0
        %v2826 = vadd.f32 0.0, %v2825
        %v2827 = vpop.f32.mrf.mxu0
        %2828 = vmatprep.mubr.f32.mxu0 0.0
        %2829 = vmatmul.mubr.f32.gmra.mxu0 %v2626
        %v2830 = vpop.f32.mrf.mxu0
        %v2831 = vadd.f32 0.0, %v2830
        %v2832 = vpop.f32.mrf.mxu0
        %2833 = vmatprep.mubr.f32.mxu0 0.0
        %2834 = vmatmul.mubr.f32.gmra.mxu0 %v2629
        %v2835 = vpop.f32.mrf.mxu0
        %v2836 = vadd.f32 0.0, %v2835
        %v2837 = vpop.f32.mrf.mxu0
        %2838 = vmatprep.mubr.f32.mxu0 0.0
        %2839 = vmatmul.mubr.f32.gmra.mxu0 %v2632
        %v2840 = vpop.f32.mrf.mxu0
        %v2841 = vadd.f32 0.0, %v2840
        %v2842 = vpop.f32.mrf.mxu0
        %2843 = vmatprep.mubr.f32.mxu0 0.0
        %2844 = vmatmul.mubr.f32.gmra.mxu0 %v2635
        %v2845 = vpop.f32.mrf.mxu0
        %v2846 = vadd.f32 0.0, %v2845
        %v2847 = vpop.f32.mrf.mxu0
        %2848 = vmatprep.mubr.f32.mxu0 0.0
        %2849 = vmatmul.mubr.f32.gmra.mxu0 %v2638
        %v2850 = vpop.f32.mrf.mxu0
        %v2851 = vadd.f32 0.0, %v2850
        %v2852 = vpop.f32.mrf.mxu0
        %2853 = vmatprep.mubr.f32.mxu0 0.0
        %2854 = vmatmul.mubr.f32.gmra.mxu0 %v2641
        %v2855 = vpop.f32.mrf.mxu0
        %v2856 = vadd.f32 0.0, %v2855
        %v2857 = vpop.f32.mrf.mxu0
        %2858 = vmatprep.mubr.f32.mxu0 0.0
        %2859 = vmatmul.mubr.f32.gmra.mxu0 %v2644
        %v2860 = vpop.f32.mrf.mxu0
        %v2861 = vadd.f32 0.0, %v2860
        %v2862 = vpop.f32.mrf.mxu0
        %2863 = vmatprep.mubr.f32.mxu0 0.0
        %2864 = vmatmul.mubr.f32.gmra.mxu0 %v2647
        %v2865 = vpop.f32.mrf.mxu0
        %v2866 = vadd.f32 0.0, %v2865
        %v2867 = vpop.f32.mrf.mxu0
        %2868 = vmatprep.mubr.f32.mxu0 0.0
        %2869 = vmatmul.mubr.f32.gmra.mxu0 %v2650
        %v2870 = vpop.f32.mrf.mxu0
        %v2871 = vadd.f32 0.0, %v2870
        %v2872 = vpop.f32.mrf.mxu0
        %2873 = vmatprep.mubr.f32.mxu0 0.0
        %2874 = vmatmul.mubr.f32.gmra.mxu0 %v2653
        %v2875 = vpop.f32.mrf.mxu0
        %v2876 = vadd.f32 0.0, %v2875
        %v2877 = vpop.f32.mrf.mxu0
        %2878 = vmatprep.mubr.f32.mxu0 0.0
        %2879 = vmatmul.mubr.f32.gmra.mxu0 %v2656
        %v2880 = vpop.f32.mrf.mxu0
        %v2881 = vadd.f32 0.0, %v2880
        %v2882 = vpop.f32.mrf.mxu0
        %2883 = vmatprep.mubr.f32.mxu0 0.0
        %2884 = vmatmul.mubr.f32.gmra.mxu0 %v2659
        %v2885 = vpop.f32.mrf.mxu0
        %v2886 = vadd.f32 0.0, %v2885
        %v2887 = vpop.f32.mrf.mxu0
        %2888 = vdwg.mxu0
        %v2889 = vadd.f32 %v2499, %v2731
        %v2890 = vadd.f32 %v2500, %v2736
        %v2891 = vadd.f32 %v2501, %v2741
        %v2892 = vadd.f32 %v2502, %v2746
        %v2893 = vadd.f32 %v2503, %v2751
        %v2894 = vadd.f32 %v2504, %v2756
        %v2895 = vadd.f32 %v2505, %v2761
        %v2896 = vadd.f32 %v2506, %v2766
        %v2897 = vadd.f32 %v2507, %v2771
        %v2898 = vadd.f32 %v2508, %v2776
        %v2899 = vadd.f32 %v2509, %v2781
        %v2900 = vadd.f32 %v2510, %v2786
        %v2901 = vadd.f32 %v2511, %v2791
        %v2902 = vadd.f32 %v2512, %v2796
        %v2903 = vadd.f32 %v2513, %v2801
        %v2904 = vadd.f32 %v2514, %v2806
        %v2905 = vadd.f32 %v2515, %v2811
        %v2906 = vadd.f32 %v2516, %v2816
        %v2907 = vadd.f32 %v2517, %v2821
        %v2908 = vadd.f32 %v2518, %v2826
        %v2909 = vadd.f32 %v2519, %v2831
        %v2910 = vadd.f32 %v2520, %v2836
        %v2911 = vadd.f32 %v2521, %v2841
        %v2912 = vadd.f32 %v2522, %v2846
        %v2913 = vadd.f32 %v2523, %v2851
        %v2914 = vadd.f32 %v2524, %v2856
        %v2915 = vadd.f32 %v2525, %v2861
        %v2916 = vadd.f32 %v2526, %v2866
        %v2917 = vadd.f32 %v2527, %v2871
        %v2918 = vadd.f32 %v2528, %v2876
        %v2919 = vadd.f32 %v2529, %v2881
        %v2920 = vadd.f32 %v2530, %v2886
        %v2921 = vld [vmem:[%s438 + $0x21] sm:$0xff]
        %v2922 = vld [vmem:[%s438 + $0x29] sm:$0xff]
        %v2923 = vld [vmem:[%s438 + $0x31] sm:$0xff]
        %v2924 = vld [vmem:[%s438 + $0x39] sm:$0xff]
        %v2925 = vld [vmem:[%s438 + $0x41] sm:$0xff]
        %v2926 = vld [vmem:[%s438 + $0x49] sm:$0xff]
        %v2927 = vld [vmem:[%s438 + $0x51] sm:$0xff]
        %v2928 = vld [vmem:[%s438 + $0x59] sm:$0xff]
        %v2929 = vld [vmem:[%s438 + $0x61] sm:$0xff]
        %v2930 = vld [vmem:[%s438 + $0x69] sm:$0xff]
        %v2931 = vld [vmem:[%s438 + $0x71] sm:$0xff]
        %v2932 = vld [vmem:[%s438 + $0x79] sm:$0xff]
        %v2933 = vld [vmem:[%s438 + $0x81] sm:$0xff]
        %v2934 = vld [vmem:[%s438 + $0x89] sm:$0xff]
        %v2935 = vld [vmem:[%s438 + $0x91] sm:$0xff]
        %v2936 = vld [vmem:[%s438 + $0x99] sm:$0xff]
        %v2937 = vld [vmem:[%s438 + $0xa1] sm:$0xff]
        %v2938 = vld [vmem:[%s438 + $0xa9] sm:$0xff]
        %v2939 = vld [vmem:[%s438 + $0xb1] sm:$0xff]
        %v2940 = vld [vmem:[%s438 + $0xb9] sm:$0xff]
        %v2941 = vld [vmem:[%s438 + $0xc1] sm:$0xff]
        %v2942 = vld [vmem:[%s438 + $0xc9] sm:$0xff]
        %v2943 = vld [vmem:[%s438 + $0xd1] sm:$0xff]
        %v2944 = vld [vmem:[%s438 + $0xd9] sm:$0xff]
        %v2945 = vld [vmem:[%s438 + $0xe1] sm:$0xff]
        %v2946 = vld [vmem:[%s438 + $0xe9] sm:$0xff]
        %v2947 = vld [vmem:[%s438 + $0xf1] sm:$0xff]
        %v2948 = vld [vmem:[%s438 + $0xf9] sm:$0xff]
        %v2949 = vld [vmem:[%s438 + $0x101] sm:$0xff]
        %v2950 = vld [vmem:[%s438 + $0x109] sm:$0xff]
        %v2951 = vld [vmem:[%s438 + $0x111] sm:$0xff]
        %v2952 = vld [vmem:[%s438 + $0x119] sm:$0xff]
        %v2953 = vsel %vm906, %v2921, 0.0
        %v2954 = vsel %vm907, %v2922, 0.0
        %v2955 = vsel %vm908, %v2923, 0.0
        %v2956 = vsel %vm909, %v2924, 0.0
        %v2957 = vsel %vm910, %v2925, 0.0
        %v2958 = vsel %vm911, %v2926, 0.0
        %v2959 = vsel %vm912, %v2927, 0.0
        %v2960 = vsel %vm913, %v2928, 0.0
        %v2961 = vsel %vm914, %v2929, 0.0
        %v2962 = vsel %vm915, %v2930, 0.0
        %v2963 = vsel %vm916, %v2931, 0.0
        %v2964 = vsel %vm917, %v2932, 0.0
        %v2965 = vsel %vm918, %v2933, 0.0
        %v2966 = vsel %vm919, %v2934, 0.0
        %v2967 = vsel %vm920, %v2935, 0.0
        %v2968 = vsel %vm921, %v2936, 0.0
        %v2969 = vsel %vm922, %v2937, 0.0
        %v2970 = vsel %vm923, %v2938, 0.0
        %v2971 = vsel %vm924, %v2939, 0.0
        %v2972 = vsel %vm925, %v2940, 0.0
        %v2973 = vsel %vm926, %v2941, 0.0
        %v2974 = vsel %vm927, %v2942, 0.0
        %v2975 = vsel %vm928, %v2943, 0.0
        %v2976 = vsel %vm929, %v2944, 0.0
        %v2977 = vsel %vm930, %v2945, 0.0
        %v2978 = vsel %vm931, %v2946, 0.0
        %v2979 = vsel %vm932, %v2947, 0.0
        %v2980 = vsel %vm933, %v2948, 0.0
        %v2981 = vsel %vm934, %v2949, 0.0
        %v2982 = vsel %vm935, %v2950, 0.0
        %v2983 = vsel %vm936, %v2951, 0.0
        %v2984 = vsel %vm937, %v2952, 0.0
        %s2985 = scalar_lea.vmem %s1, 20
        %v2986 = vld [vmem:[%s2985] sm:$0x7]
        %v2988 = vsel %vm1037, %v2953, 0
        %v2991 = vsel %vm1037, %v2954, 0
        %v2994 = vsel %vm1037, %v2955, 0
        %v2997 = vsel %vm1037, %v2956, 0
        %v3000 = vsel %vm1037, %v2957, 0
        %v3003 = vsel %vm1037, %v2958, 0
        %v3006 = vsel %vm1037, %v2959, 0
        %v3009 = vsel %vm1037, %v2960, 0
        %v3012 = vsel %vm1037, %v2961, 0
        %v3015 = vsel %vm1037, %v2962, 0
        %v3018 = vsel %vm1037, %v2963, 0
        %v3021 = vsel %vm1037, %v2964, 0
        %v3024 = vsel %vm1037, %v2965, 0
        %v3027 = vsel %vm1037, %v2966, 0
        %v3030 = vsel %vm1037, %v2967, 0
        %v3033 = vsel %vm1037, %v2968, 0
        %v3036 = vsel %vm1037, %v2969, 0
        %v3039 = vsel %vm1037, %v2970, 0
        %v3042 = vsel %vm1037, %v2971, 0
        %v3045 = vsel %vm1037, %v2972, 0
        %v3048 = vsel %vm1037, %v2973, 0
        %v3051 = vsel %vm1037, %v2974, 0
        %v3054 = vsel %vm1037, %v2975, 0
        %v3057 = vsel %vm1037, %v2976, 0
        %v3060 = vsel %vm1037, %v2977, 0
        %v3063 = vsel %vm1037, %v2978, 0
        %v3066 = vsel %vm1037, %v2979, 0
        %v3069 = vsel %vm1037, %v2980, 0
        %v3072 = vsel %vm1037, %v2981, 0
        %v3075 = vsel %vm1037, %v2982, 0
        %v3078 = vsel %vm1037, %v2983, 0
        %v3081 = vsel %vm1037, %v2984, 0
        %v3084 = vsel %vm1134, %v2986, 0
        %3086 = vmatprep.subr.mxu0 0.0
        %3087 = vmatpush1.msra.mxu0 0.0
        %3088 = vmatprep.subr.mxu0 0.0
        %3089 = vmatpush1.msra.mxu0 0.0
        %3090 = vmatprep.subr.mxu0 0.0
        %3091 = vmatpush1.msra.mxu0 0.0
        %3092 = vmatprep.subr.mxu0 0.0
        %3093 = vmatpush1.msra.mxu0 0.0
        %3094 = vmatprep.subr.mxu0 0.0
        %3095 = vmatpush1.msra.mxu0 0.0
        %3096 = vmatprep.subr.mxu0 0.0
        %3097 = vmatpush1.msra.mxu0 0.0
        %3098 = vmatprep.subr.mxu0 0.0
        %3099 = vmatpush1.msra.mxu0 0.0
        %3100 = vmatprep.subr.mxu0 0.0
        %3101 = vmatpush1.msra.mxu0 0.0
        %3102 = vmatprep.subr.mxu0 0.0
        %3103 = vmatpush1.msra.mxu0 0.0
        %3104 = vmatprep.subr.mxu0 0.0
        %3105 = vmatpush1.msra.mxu0 0.0
        %3106 = vmatprep.subr.mxu0 0.0
        %3107 = vmatpush1.msra.mxu0 0.0
        %3108 = vmatprep.subr.mxu0 0.0
        %3109 = vmatpush1.msra.mxu0 0.0
        %3110 = vmatprep.subr.mxu0 0.0
        %3111 = vmatpush1.msra.mxu0 0.0
        %3112 = vmatprep.subr.mxu0 0.0
        %3113 = vmatpush1.msra.mxu0 0.0
        %3114 = vmatprep.subr.mxu0 0.0
        %3115 = vmatpush1.msra.mxu0 0.0
        %3116 = vmatprep.subr.mxu0 0.0
        %3117 = vmatpush1.msra.mxu0 %v3084
        %3118 = vmatprep.subr.mxu0 0.0
        %3119 = vmatpush2.msra.mxu0 0.0
        %3120 = vmatprep.subr.mxu0 0.0
        %3121 = vmatpush2.msra.mxu0 0.0
        %3122 = vmatprep.subr.mxu0 0.0
        %3123 = vmatpush2.msra.mxu0 0.0
        %3124 = vmatprep.subr.mxu0 0.0
        %3125 = vmatpush2.msra.mxu0 0.0
        %3126 = vmatprep.subr.mxu0 0.0
        %3127 = vmatpush2.msra.mxu0 0.0
        %3128 = vmatprep.subr.mxu0 0.0
        %3129 = vmatpush2.msra.mxu0 0.0
        %3130 = vmatprep.subr.mxu0 0.0
        %3131 = vmatpush2.msra.mxu0 0.0
        %3132 = vmatprep.subr.mxu0 0.0
        %3133 = vmatpush2.msra.mxu0 0.0
        %3134 = vmatprep.subr.mxu0 0.0
        %3135 = vmatpush2.msra.mxu0 0.0
        %3136 = vmatprep.subr.mxu0 0.0
        %3137 = vmatpush2.msra.mxu0 0.0
        %3138 = vmatprep.subr.mxu0 0.0
        %3139 = vmatpush2.msra.mxu0 0.0
        %3140 = vmatprep.subr.mxu0 0.0
        %3141 = vmatpush2.msra.mxu0 0.0
        %3142 = vmatprep.subr.mxu0 0.0
        %3143 = vmatpush2.msra.mxu0 0.0
        %3144 = vmatprep.subr.mxu0 0.0
        %3145 = vmatpush2.msra.mxu0 0.0
        %3146 = vmatprep.subr.mxu0 0.0
        %3147 = vmatpush2.msra.mxu0 0.0
        %3148 = vmatprep.subr.mxu0 0.0
        %3149 = vmatpush2.msra.mxu0 0.0
        %3150 = vmatprep.mubr.f32.mxu0 0.0
        %3151 = vmatmul.mubr.f32.gmra.mxu0 %v2988
        %v3152 = vpop.f32.mrf.mxu0
        %v3153 = vadd.f32 0.0, %v3152
        %v3154 = vpop.f32.mrf.mxu0
        %3155 = vmatprep.mubr.f32.mxu0 0.0
        %3156 = vmatmul.mubr.f32.gmra.mxu0 %v2991
        %v3157 = vpop.f32.mrf.mxu0
        %v3158 = vadd.f32 0.0, %v3157
        %v3159 = vpop.f32.mrf.mxu0
        %3160 = vmatprep.mubr.f32.mxu0 0.0
        %3161 = vmatmul.mubr.f32.gmra.mxu0 %v2994
        %v3162 = vpop.f32.mrf.mxu0
        %v3163 = vadd.f32 0.0, %v3162
        %v3164 = vpop.f32.mrf.mxu0
        %3165 = vmatprep.mubr.f32.mxu0 0.0
        %3166 = vmatmul.mubr.f32.gmra.mxu0 %v2997
        %v3167 = vpop.f32.mrf.mxu0
        %v3168 = vadd.f32 0.0, %v3167
        %v3169 = vpop.f32.mrf.mxu0
        %3170 = vmatprep.mubr.f32.mxu0 0.0
        %3171 = vmatmul.mubr.f32.gmra.mxu0 %v3000
        %v3172 = vpop.f32.mrf.mxu0
        %v3173 = vadd.f32 0.0, %v3172
        %v3174 = vpop.f32.mrf.mxu0
        %3175 = vmatprep.mubr.f32.mxu0 0.0
        %3176 = vmatmul.mubr.f32.gmra.mxu0 %v3003
        %v3177 = vpop.f32.mrf.mxu0
        %v3178 = vadd.f32 0.0, %v3177
        %v3179 = vpop.f32.mrf.mxu0
        %3180 = vmatprep.mubr.f32.mxu0 0.0
        %3181 = vmatmul.mubr.f32.gmra.mxu0 %v3006
        %v3182 = vpop.f32.mrf.mxu0
        %v3183 = vadd.f32 0.0, %v3182
        %v3184 = vpop.f32.mrf.mxu0
        %3185 = vmatprep.mubr.f32.mxu0 0.0
        %3186 = vmatmul.mubr.f32.gmra.mxu0 %v3009
        %v3187 = vpop.f32.mrf.mxu0
        %v3188 = vadd.f32 0.0, %v3187
        %v3189 = vpop.f32.mrf.mxu0
        %3190 = vmatprep.mubr.f32.mxu0 0.0
        %3191 = vmatmul.mubr.f32.gmra.mxu0 %v3012
        %v3192 = vpop.f32.mrf.mxu0
        %v3193 = vadd.f32 0.0, %v3192
        %v3194 = vpop.f32.mrf.mxu0
        %3195 = vmatprep.mubr.f32.mxu0 0.0
        %3196 = vmatmul.mubr.f32.gmra.mxu0 %v3015
        %v3197 = vpop.f32.mrf.mxu0
        %v3198 = vadd.f32 0.0, %v3197
        %v3199 = vpop.f32.mrf.mxu0
        %3200 = vmatprep.mubr.f32.mxu0 0.0
        %3201 = vmatmul.mubr.f32.gmra.mxu0 %v3018
        %v3202 = vpop.f32.mrf.mxu0
        %v3203 = vadd.f32 0.0, %v3202
        %v3204 = vpop.f32.mrf.mxu0
        %3205 = vmatprep.mubr.f32.mxu0 0.0
        %3206 = vmatmul.mubr.f32.gmra.mxu0 %v3021
        %v3207 = vpop.f32.mrf.mxu0
        %v3208 = vadd.f32 0.0, %v3207
        %v3209 = vpop.f32.mrf.mxu0
        %3210 = vmatprep.mubr.f32.mxu0 0.0
        %3211 = vmatmul.mubr.f32.gmra.mxu0 %v3024
        %v3212 = vpop.f32.mrf.mxu0
        %v3213 = vadd.f32 0.0, %v3212
        %v3214 = vpop.f32.mrf.mxu0
        %3215 = vmatprep.mubr.f32.mxu0 0.0
        %3216 = vmatmul.mubr.f32.gmra.mxu0 %v3027
        %v3217 = vpop.f32.mrf.mxu0
        %v3218 = vadd.f32 0.0, %v3217
        %v3219 = vpop.f32.mrf.mxu0
        %3220 = vmatprep.mubr.f32.mxu0 0.0
        %3221 = vmatmul.mubr.f32.gmra.mxu0 %v3030
        %v3222 = vpop.f32.mrf.mxu0
        %v3223 = vadd.f32 0.0, %v3222
        %v3224 = vpop.f32.mrf.mxu0
        %3225 = vmatprep.mubr.f32.mxu0 0.0
        %3226 = vmatmul.mubr.f32.gmra.mxu0 %v3033
        %v3227 = vpop.f32.mrf.mxu0
        %v3228 = vadd.f32 0.0, %v3227
        %v3229 = vpop.f32.mrf.mxu0
        %3230 = vmatprep.mubr.f32.mxu0 0.0
        %3231 = vmatmul.mubr.f32.gmra.mxu0 %v3036
        %v3232 = vpop.f32.mrf.mxu0
        %v3233 = vadd.f32 0.0, %v3232
        %v3234 = vpop.f32.mrf.mxu0
        %3235 = vmatprep.mubr.f32.mxu0 0.0
        %3236 = vmatmul.mubr.f32.gmra.mxu0 %v3039
        %v3237 = vpop.f32.mrf.mxu0
        %v3238 = vadd.f32 0.0, %v3237
        %v3239 = vpop.f32.mrf.mxu0
        %3240 = vmatprep.mubr.f32.mxu0 0.0
        %3241 = vmatmul.mubr.f32.gmra.mxu0 %v3042
        %v3242 = vpop.f32.mrf.mxu0
        %v3243 = vadd.f32 0.0, %v3242
        %v3244 = vpop.f32.mrf.mxu0
        %3245 = vmatprep.mubr.f32.mxu0 0.0
        %3246 = vmatmul.mubr.f32.gmra.mxu0 %v3045
        %v3247 = vpop.f32.mrf.mxu0
        %v3248 = vadd.f32 0.0, %v3247
        %v3249 = vpop.f32.mrf.mxu0
        %3250 = vmatprep.mubr.f32.mxu0 0.0
        %3251 = vmatmul.mubr.f32.gmra.mxu0 %v3048
        %v3252 = vpop.f32.mrf.mxu0
        %v3253 = vadd.f32 0.0, %v3252
        %v3254 = vpop.f32.mrf.mxu0
        %3255 = vmatprep.mubr.f32.mxu0 0.0
        %3256 = vmatmul.mubr.f32.gmra.mxu0 %v3051
        %v3257 = vpop.f32.mrf.mxu0
        %v3258 = vadd.f32 0.0, %v3257
        %v3259 = vpop.f32.mrf.mxu0
        %3260 = vmatprep.mubr.f32.mxu0 0.0
        %3261 = vmatmul.mubr.f32.gmra.mxu0 %v3054
        %v3262 = vpop.f32.mrf.mxu0
        %v3263 = vadd.f32 0.0, %v3262
        %v3264 = vpop.f32.mrf.mxu0
        %3265 = vmatprep.mubr.f32.mxu0 0.0
        %3266 = vmatmul.mubr.f32.gmra.mxu0 %v3057
        %v3267 = vpop.f32.mrf.mxu0
        %v3268 = vadd.f32 0.0, %v3267
        %v3269 = vpop.f32.mrf.mxu0
        %3270 = vmatprep.mubr.f32.mxu0 0.0
        %3271 = vmatmul.mubr.f32.gmra.mxu0 %v3060
        %v3272 = vpop.f32.mrf.mxu0
        %v3273 = vadd.f32 0.0, %v3272
        %v3274 = vpop.f32.mrf.mxu0
        %3275 = vmatprep.mubr.f32.mxu0 0.0
        %3276 = vmatmul.mubr.f32.gmra.mxu0 %v3063
        %v3277 = vpop.f32.mrf.mxu0
        %v3278 = vadd.f32 0.0, %v3277
        %v3279 = vpop.f32.mrf.mxu0
        %3280 = vmatprep.mubr.f32.mxu0 0.0
        %3281 = vmatmul.mubr.f32.gmra.mxu0 %v3066
        %v3282 = vpop.f32.mrf.mxu0
        %v3283 = vadd.f32 0.0, %v3282
        %v3284 = vpop.f32.mrf.mxu0
        %3285 = vmatprep.mubr.f32.mxu0 0.0
        %3286 = vmatmul.mubr.f32.gmra.mxu0 %v3069
        %v3287 = vpop.f32.mrf.mxu0
        %v3288 = vadd.f32 0.0, %v3287
        %v3289 = vpop.f32.mrf.mxu0
        %3290 = vmatprep.mubr.f32.mxu0 0.0
        %3291 = vmatmul.mubr.f32.gmra.mxu0 %v3072
        %v3292 = vpop.f32.mrf.mxu0
        %v3293 = vadd.f32 0.0, %v3292
        %v3294 = vpop.f32.mrf.mxu0
        %3295 = vmatprep.mubr.f32.mxu0 0.0
        %3296 = vmatmul.mubr.f32.gmra.mxu0 %v3075
        %v3297 = vpop.f32.mrf.mxu0
        %v3298 = vadd.f32 0.0, %v3297
        %v3299 = vpop.f32.mrf.mxu0
        %3300 = vmatprep.mubr.f32.mxu0 0.0
        %3301 = vmatmul.mubr.f32.gmra.mxu0 %v3078
        %v3302 = vpop.f32.mrf.mxu0
        %v3303 = vadd.f32 0.0, %v3302
        %v3304 = vpop.f32.mrf.mxu0
        %3305 = vmatprep.mubr.f32.mxu0 0.0
        %3306 = vmatmul.mubr.f32.gmra.mxu0 %v3081
        %v3307 = vpop.f32.mrf.mxu0
        %v3308 = vadd.f32 0.0, %v3307
        %v3309 = vpop.f32.mrf.mxu0
        %3310 = vdwg.mxu0
        %v3311 = vadd.f32 %v2889, %v3153
        %v3312 = vadd.f32 %v2890, %v3158
        %v3313 = vadd.f32 %v2891, %v3163
        %v3314 = vadd.f32 %v2892, %v3168
        %v3315 = vadd.f32 %v2893, %v3173
        %v3316 = vadd.f32 %v2894, %v3178
        %v3317 = vadd.f32 %v2895, %v3183
        %v3318 = vadd.f32 %v2896, %v3188
        %v3319 = vadd.f32 %v2897, %v3193
        %v3320 = vadd.f32 %v2898, %v3198
        %v3321 = vadd.f32 %v2899, %v3203
        %v3322 = vadd.f32 %v2900, %v3208
        %v3323 = vadd.f32 %v2901, %v3213
        %v3324 = vadd.f32 %v2902, %v3218
        %v3325 = vadd.f32 %v2903, %v3223
        %v3326 = vadd.f32 %v2904, %v3228
        %v3327 = vadd.f32 %v2905, %v3233
        %v3328 = vadd.f32 %v2906, %v3238
        %v3329 = vadd.f32 %v2907, %v3243
        %v3330 = vadd.f32 %v2908, %v3248
        %v3331 = vadd.f32 %v2909, %v3253
        %v3332 = vadd.f32 %v2910, %v3258
        %v3333 = vadd.f32 %v2911, %v3263
        %v3334 = vadd.f32 %v2912, %v3268
        %v3335 = vadd.f32 %v2913, %v3273
        %v3336 = vadd.f32 %v2914, %v3278
        %v3337 = vadd.f32 %v2915, %v3283
        %v3338 = vadd.f32 %v2916, %v3288
        %v3339 = vadd.f32 %v2917, %v3293
        %v3340 = vadd.f32 %v2918, %v3298
        %v3341 = vadd.f32 %v2919, %v3303
        %v3342 = vadd.f32 %v2920, %v3308
        %v3343 = vld [vmem:[%s438 + $0x2f] sm:$0xff]
        %v3344 = vld [vmem:[%s438 + $0x37] sm:$0xff]
        %v3345 = vld [vmem:[%s438 + $0x3f] sm:$0xff]
        %v3346 = vld [vmem:[%s438 + $0x47] sm:$0xff]
        %v3347 = vld [vmem:[%s438 + $0x4f] sm:$0xff]
        %v3348 = vld [vmem:[%s438 + $0x57] sm:$0xff]
        %v3349 = vld [vmem:[%s438 + $0x5f] sm:$0xff]
        %v3350 = vld [vmem:[%s438 + $0x67] sm:$0xff]
        %v3351 = vld [vmem:[%s438 + $0x6f] sm:$0xff]
        %v3352 = vld [vmem:[%s438 + $0x77] sm:$0xff]
        %v3353 = vld [vmem:[%s438 + $0x7f] sm:$0xff]
        %v3354 = vld [vmem:[%s438 + $0x87] sm:$0xff]
        %v3355 = vld [vmem:[%s438 + $0x8f] sm:$0xff]
        %v3356 = vld [vmem:[%s438 + $0x97] sm:$0xff]
        %v3357 = vld [vmem:[%s438 + $0x9f] sm:$0xff]
        %v3358 = vld [vmem:[%s438 + $0xa7] sm:$0xff]
        %v3359 = vld [vmem:[%s438 + $0xaf] sm:$0xff]
        %v3360 = vld [vmem:[%s438 + $0xb7] sm:$0xff]
        %v3361 = vld [vmem:[%s438 + $0xbf] sm:$0xff]
        %v3362 = vld [vmem:[%s438 + $0xc7] sm:$0xff]
        %v3363 = vld [vmem:[%s438 + $0xcf] sm:$0xff]
        %v3364 = vld [vmem:[%s438 + $0xd7] sm:$0xff]
        %v3365 = vld [vmem:[%s438 + $0xdf] sm:$0xff]
        %v3366 = vld [vmem:[%s438 + $0xe7] sm:$0xff]
        %v3367 = vld [vmem:[%s438 + $0xef] sm:$0xff]
        %v3368 = vld [vmem:[%s438 + $0xf7] sm:$0xff]
        %v3369 = vld [vmem:[%s438 + $0xff] sm:$0xff]
        %v3370 = vld [vmem:[%s438 + $0x107] sm:$0xff]
        %v3371 = vld [vmem:[%s438 + $0x10f] sm:$0xff]
        %v3372 = vld [vmem:[%s438 + $0x117] sm:$0xff]
        %v3373 = vld [vmem:[%s438 + $0x11f] sm:$0xff]
        %v3374 = vld [vmem:[%s438 + $0x127] sm:$0xff]
        %v3375 = vsel %vm874, %v3343, 0.0
        %v3376 = vsel %vm875, %v3344, 0.0
        %v3377 = vsel %vm876, %v3345, 0.0
        %v3378 = vsel %vm877, %v3346, 0.0
        %v3379 = vsel %vm878, %v3347, 0.0
        %v3380 = vsel %vm879, %v3348, 0.0
        %v3381 = vsel %vm880, %v3349, 0.0
        %v3382 = vsel %vm881, %v3350, 0.0
        %v3383 = vsel %vm882, %v3351, 0.0
        %v3384 = vsel %vm883, %v3352, 0.0
        %v3385 = vsel %vm884, %v3353, 0.0
        %v3386 = vsel %vm885, %v3354, 0.0
        %v3387 = vsel %vm886, %v3355, 0.0
        %v3388 = vsel %vm887, %v3356, 0.0
        %v3389 = vsel %vm888, %v3357, 0.0
        %v3390 = vsel %vm889, %v3358, 0.0
        %v3391 = vsel %vm890, %v3359, 0.0
        %v3392 = vsel %vm891, %v3360, 0.0
        %v3393 = vsel %vm892, %v3361, 0.0
        %v3394 = vsel %vm893, %v3362, 0.0
        %v3395 = vsel %vm894, %v3363, 0.0
        %v3396 = vsel %vm895, %v3364, 0.0
        %v3397 = vsel %vm896, %v3365, 0.0
        %v3398 = vsel %vm897, %v3366, 0.0
        %v3399 = vsel %vm898, %v3367, 0.0
        %v3400 = vsel %vm899, %v3368, 0.0
        %v3401 = vsel %vm900, %v3369, 0.0
        %v3402 = vsel %vm901, %v3370, 0.0
        %v3403 = vsel %vm902, %v3371, 0.0
        %v3404 = vsel %vm903, %v3372, 0.0
        %v3405 = vsel %vm904, %v3373, 0.0
        %v3406 = vsel %vm905, %v3374, 0.0
        %s3407 = scalar_lea.vmem %s1, 24
        %v3408 = vld [vmem:[%s3407] sm:$0x7]
        %v3410 = vsel %vm1037, %v3375, 0
        %v3413 = vsel %vm1037, %v3376, 0
        %v3416 = vsel %vm1037, %v3377, 0
        %v3419 = vsel %vm1037, %v3378, 0
        %v3422 = vsel %vm1037, %v3379, 0
        %v3425 = vsel %vm1037, %v3380, 0
        %v3428 = vsel %vm1037, %v3381, 0
        %v3431 = vsel %vm1037, %v3382, 0
        %v3434 = vsel %vm1037, %v3383, 0
        %v3437 = vsel %vm1037, %v3384, 0
        %v3440 = vsel %vm1037, %v3385, 0
        %v3443 = vsel %vm1037, %v3386, 0
        %v3446 = vsel %vm1037, %v3387, 0
        %v3449 = vsel %vm1037, %v3388, 0
        %v3452 = vsel %vm1037, %v3389, 0
        %v3455 = vsel %vm1037, %v3390, 0
        %v3458 = vsel %vm1037, %v3391, 0
        %v3461 = vsel %vm1037, %v3392, 0
        %v3464 = vsel %vm1037, %v3393, 0
        %v3467 = vsel %vm1037, %v3394, 0
        %v3470 = vsel %vm1037, %v3395, 0
        %v3473 = vsel %vm1037, %v3396, 0
        %v3476 = vsel %vm1037, %v3397, 0
        %v3479 = vsel %vm1037, %v3398, 0
        %v3482 = vsel %vm1037, %v3399, 0
        %v3485 = vsel %vm1037, %v3400, 0
        %v3488 = vsel %vm1037, %v3401, 0
        %v3491 = vsel %vm1037, %v3402, 0
        %v3494 = vsel %vm1037, %v3403, 0
        %v3497 = vsel %vm1037, %v3404, 0
        %v3500 = vsel %vm1037, %v3405, 0
        %v3503 = vsel %vm1037, %v3406, 0
        %v3506 = vsel %vm1134, %v3408, 0
        %3508 = vmatprep.subr.mxu0 0.0
        %3509 = vmatpush1.msra.mxu0 0.0
        %3510 = vmatprep.subr.mxu0 0.0
        %3511 = vmatpush1.msra.mxu0 0.0
        %3512 = vmatprep.subr.mxu0 0.0
        %3513 = vmatpush1.msra.mxu0 0.0
        %3514 = vmatprep.subr.mxu0 0.0
        %3515 = vmatpush1.msra.mxu0 0.0
        %3516 = vmatprep.subr.mxu0 0.0
        %3517 = vmatpush1.msra.mxu0 0.0
        %3518 = vmatprep.subr.mxu0 0.0
        %3519 = vmatpush1.msra.mxu0 0.0
        %3520 = vmatprep.subr.mxu0 0.0
        %3521 = vmatpush1.msra.mxu0 0.0
        %3522 = vmatprep.subr.mxu0 0.0
        %3523 = vmatpush1.msra.mxu0 0.0
        %3524 = vmatprep.subr.mxu0 0.0
        %3525 = vmatpush1.msra.mxu0 0.0
        %3526 = vmatprep.subr.mxu0 0.0
        %3527 = vmatpush1.msra.mxu0 0.0
        %3528 = vmatprep.subr.mxu0 0.0
        %3529 = vmatpush1.msra.mxu0 0.0
        %3530 = vmatprep.subr.mxu0 0.0
        %3531 = vmatpush1.msra.mxu0 0.0
        %3532 = vmatprep.subr.mxu0 0.0
        %3533 = vmatpush1.msra.mxu0 0.0
        %3534 = vmatprep.subr.mxu0 0.0
        %3535 = vmatpush1.msra.mxu0 0.0
        %3536 = vmatprep.subr.mxu0 0.0
        %3537 = vmatpush1.msra.mxu0 0.0
        %3538 = vmatprep.subr.mxu0 0.0
        %3539 = vmatpush1.msra.mxu0 %v3506
        %3540 = vmatprep.subr.mxu0 0.0
        %3541 = vmatpush2.msra.mxu0 0.0
        %3542 = vmatprep.subr.mxu0 0.0
        %3543 = vmatpush2.msra.mxu0 0.0
        %3544 = vmatprep.subr.mxu0 0.0
        %3545 = vmatpush2.msra.mxu0 0.0
        %3546 = vmatprep.subr.mxu0 0.0
        %3547 = vmatpush2.msra.mxu0 0.0
        %3548 = vmatprep.subr.mxu0 0.0
        %3549 = vmatpush2.msra.mxu0 0.0
        %3550 = vmatprep.subr.mxu0 0.0
        %3551 = vmatpush2.msra.mxu0 0.0
        %3552 = vmatprep.subr.mxu0 0.0
        %3553 = vmatpush2.msra.mxu0 0.0
        %3554 = vmatprep.subr.mxu0 0.0
        %3555 = vmatpush2.msra.mxu0 0.0
        %3556 = vmatprep.subr.mxu0 0.0
        %3557 = vmatpush2.msra.mxu0 0.0
        %3558 = vmatprep.subr.mxu0 0.0
        %3559 = vmatpush2.msra.mxu0 0.0
        %3560 = vmatprep.subr.mxu0 0.0
        %3561 = vmatpush2.msra.mxu0 0.0
        %3562 = vmatprep.subr.mxu0 0.0
        %3563 = vmatpush2.msra.mxu0 0.0
        %3564 = vmatprep.subr.mxu0 0.0
        %3565 = vmatpush2.msra.mxu0 0.0
        %3566 = vmatprep.subr.mxu0 0.0
        %3567 = vmatpush2.msra.mxu0 0.0
        %3568 = vmatprep.subr.mxu0 0.0
        %3569 = vmatpush2.msra.mxu0 0.0
        %3570 = vmatprep.subr.mxu0 0.0
        %3571 = vmatpush2.msra.mxu0 0.0
        %3572 = vmatprep.mubr.f32.mxu0 0.0
        %3573 = vmatmul.mubr.f32.gmra.mxu0 %v3410
        %v3574 = vpop.f32.mrf.mxu0
        %v3575 = vadd.f32 0.0, %v3574
        %v3576 = vpop.f32.mrf.mxu0
        %3577 = vmatprep.mubr.f32.mxu0 0.0
        %3578 = vmatmul.mubr.f32.gmra.mxu0 %v3413
        %v3579 = vpop.f32.mrf.mxu0
        %v3580 = vadd.f32 0.0, %v3579
        %v3581 = vpop.f32.mrf.mxu0
        %3582 = vmatprep.mubr.f32.mxu0 0.0
        %3583 = vmatmul.mubr.f32.gmra.mxu0 %v3416
        %v3584 = vpop.f32.mrf.mxu0
        %v3585 = vadd.f32 0.0, %v3584
        %v3586 = vpop.f32.mrf.mxu0
        %3587 = vmatprep.mubr.f32.mxu0 0.0
        %3588 = vmatmul.mubr.f32.gmra.mxu0 %v3419
        %v3589 = vpop.f32.mrf.mxu0
        %v3590 = vadd.f32 0.0, %v3589
        %v3591 = vpop.f32.mrf.mxu0
        %3592 = vmatprep.mubr.f32.mxu0 0.0
        %3593 = vmatmul.mubr.f32.gmra.mxu0 %v3422
        %v3594 = vpop.f32.mrf.mxu0
        %v3595 = vadd.f32 0.0, %v3594
        %v3596 = vpop.f32.mrf.mxu0
        %3597 = vmatprep.mubr.f32.mxu0 0.0
        %3598 = vmatmul.mubr.f32.gmra.mxu0 %v3425
        %v3599 = vpop.f32.mrf.mxu0
        %v3600 = vadd.f32 0.0, %v3599
        %v3601 = vpop.f32.mrf.mxu0
        %3602 = vmatprep.mubr.f32.mxu0 0.0
        %3603 = vmatmul.mubr.f32.gmra.mxu0 %v3428
        %v3604 = vpop.f32.mrf.mxu0
        %v3605 = vadd.f32 0.0, %v3604
        %v3606 = vpop.f32.mrf.mxu0
        %3607 = vmatprep.mubr.f32.mxu0 0.0
        %3608 = vmatmul.mubr.f32.gmra.mxu0 %v3431
        %v3609 = vpop.f32.mrf.mxu0
        %v3610 = vadd.f32 0.0, %v3609
        %v3611 = vpop.f32.mrf.mxu0
        %3612 = vmatprep.mubr.f32.mxu0 0.0
        %3613 = vmatmul.mubr.f32.gmra.mxu0 %v3434
        %v3614 = vpop.f32.mrf.mxu0
        %v3615 = vadd.f32 0.0, %v3614
        %v3616 = vpop.f32.mrf.mxu0
        %3617 = vmatprep.mubr.f32.mxu0 0.0
        %3618 = vmatmul.mubr.f32.gmra.mxu0 %v3437
        %v3619 = vpop.f32.mrf.mxu0
        %v3620 = vadd.f32 0.0, %v3619
        %v3621 = vpop.f32.mrf.mxu0
        %3622 = vmatprep.mubr.f32.mxu0 0.0
        %3623 = vmatmul.mubr.f32.gmra.mxu0 %v3440
        %v3624 = vpop.f32.mrf.mxu0
        %v3625 = vadd.f32 0.0, %v3624
        %v3626 = vpop.f32.mrf.mxu0
        %3627 = vmatprep.mubr.f32.mxu0 0.0
        %3628 = vmatmul.mubr.f32.gmra.mxu0 %v3443
        %v3629 = vpop.f32.mrf.mxu0
        %v3630 = vadd.f32 0.0, %v3629
        %v3631 = vpop.f32.mrf.mxu0
        %3632 = vmatprep.mubr.f32.mxu0 0.0
        %3633 = vmatmul.mubr.f32.gmra.mxu0 %v3446
        %v3634 = vpop.f32.mrf.mxu0
        %v3635 = vadd.f32 0.0, %v3634
        %v3636 = vpop.f32.mrf.mxu0
        %3637 = vmatprep.mubr.f32.mxu0 0.0
        %3638 = vmatmul.mubr.f32.gmra.mxu0 %v3449
        %v3639 = vpop.f32.mrf.mxu0
        %v3640 = vadd.f32 0.0, %v3639
        %v3641 = vpop.f32.mrf.mxu0
        %3642 = vmatprep.mubr.f32.mxu0 0.0
        %3643 = vmatmul.mubr.f32.gmra.mxu0 %v3452
        %v3644 = vpop.f32.mrf.mxu0
        %v3645 = vadd.f32 0.0, %v3644
        %v3646 = vpop.f32.mrf.mxu0
        %3647 = vmatprep.mubr.f32.mxu0 0.0
        %3648 = vmatmul.mubr.f32.gmra.mxu0 %v3455
        %v3649 = vpop.f32.mrf.mxu0
        %v3650 = vadd.f32 0.0, %v3649
        %v3651 = vpop.f32.mrf.mxu0
        %3652 = vmatprep.mubr.f32.mxu0 0.0
        %3653 = vmatmul.mubr.f32.gmra.mxu0 %v3458
        %v3654 = vpop.f32.mrf.mxu0
        %v3655 = vadd.f32 0.0, %v3654
        %v3656 = vpop.f32.mrf.mxu0
        %3657 = vmatprep.mubr.f32.mxu0 0.0
        %3658 = vmatmul.mubr.f32.gmra.mxu0 %v3461
        %v3659 = vpop.f32.mrf.mxu0
        %v3660 = vadd.f32 0.0, %v3659
        %v3661 = vpop.f32.mrf.mxu0
        %3662 = vmatprep.mubr.f32.mxu0 0.0
        %3663 = vmatmul.mubr.f32.gmra.mxu0 %v3464
        %v3664 = vpop.f32.mrf.mxu0
        %v3665 = vadd.f32 0.0, %v3664
        %v3666 = vpop.f32.mrf.mxu0
        %3667 = vmatprep.mubr.f32.mxu0 0.0
        %3668 = vmatmul.mubr.f32.gmra.mxu0 %v3467
        %v3669 = vpop.f32.mrf.mxu0
        %v3670 = vadd.f32 0.0, %v3669
        %v3671 = vpop.f32.mrf.mxu0
        %3672 = vmatprep.mubr.f32.mxu0 0.0
        %3673 = vmatmul.mubr.f32.gmra.mxu0 %v3470
        %v3674 = vpop.f32.mrf.mxu0
        %v3675 = vadd.f32 0.0, %v3674
        %v3676 = vpop.f32.mrf.mxu0
        %3677 = vmatprep.mubr.f32.mxu0 0.0
        %3678 = vmatmul.mubr.f32.gmra.mxu0 %v3473
        %v3679 = vpop.f32.mrf.mxu0
        %v3680 = vadd.f32 0.0, %v3679
        %v3681 = vpop.f32.mrf.mxu0
        %3682 = vmatprep.mubr.f32.mxu0 0.0
        %3683 = vmatmul.mubr.f32.gmra.mxu0 %v3476
        %v3684 = vpop.f32.mrf.mxu0
        %v3685 = vadd.f32 0.0, %v3684
        %v3686 = vpop.f32.mrf.mxu0
        %3687 = vmatprep.mubr.f32.mxu0 0.0
        %3688 = vmatmul.mubr.f32.gmra.mxu0 %v3479
        %v3689 = vpop.f32.mrf.mxu0
        %v3690 = vadd.f32 0.0, %v3689
        %v3691 = vpop.f32.mrf.mxu0
        %3692 = vmatprep.mubr.f32.mxu0 0.0
        %3693 = vmatmul.mubr.f32.gmra.mxu0 %v3482
        %v3694 = vpop.f32.mrf.mxu0
        %v3695 = vadd.f32 0.0, %v3694
        %v3696 = vpop.f32.mrf.mxu0
        %3697 = vmatprep.mubr.f32.mxu0 0.0
        %3698 = vmatmul.mubr.f32.gmra.mxu0 %v3485
        %v3699 = vpop.f32.mrf.mxu0
        %v3700 = vadd.f32 0.0, %v3699
        %v3701 = vpop.f32.mrf.mxu0
        %3702 = vmatprep.mubr.f32.mxu0 0.0
        %3703 = vmatmul.mubr.f32.gmra.mxu0 %v3488
        %v3704 = vpop.f32.mrf.mxu0
        %v3705 = vadd.f32 0.0, %v3704
        %v3706 = vpop.f32.mrf.mxu0
        %3707 = vmatprep.mubr.f32.mxu0 0.0
        %3708 = vmatmul.mubr.f32.gmra.mxu0 %v3491
        %v3709 = vpop.f32.mrf.mxu0
        %v3710 = vadd.f32 0.0, %v3709
        %v3711 = vpop.f32.mrf.mxu0
        %3712 = vmatprep.mubr.f32.mxu0 0.0
        %3713 = vmatmul.mubr.f32.gmra.mxu0 %v3494
        %v3714 = vpop.f32.mrf.mxu0
        %v3715 = vadd.f32 0.0, %v3714
        %v3716 = vpop.f32.mrf.mxu0
        %3717 = vmatprep.mubr.f32.mxu0 0.0
        %3718 = vmatmul.mubr.f32.gmra.mxu0 %v3497
        %v3719 = vpop.f32.mrf.mxu0
        %v3720 = vadd.f32 0.0, %v3719
        %v3721 = vpop.f32.mrf.mxu0
        %3722 = vmatprep.mubr.f32.mxu0 0.0
        %3723 = vmatmul.mubr.f32.gmra.mxu0 %v3500
        %v3724 = vpop.f32.mrf.mxu0
        %v3725 = vadd.f32 0.0, %v3724
        %v3726 = vpop.f32.mrf.mxu0
        %3727 = vmatprep.mubr.f32.mxu0 0.0
        %3728 = vmatmul.mubr.f32.gmra.mxu0 %v3503
        %v3729 = vpop.f32.mrf.mxu0
        %v3730 = vadd.f32 0.0, %v3729
        %v3731 = vpop.f32.mrf.mxu0
        %3732 = vdwg.mxu0
        %v3733 = vadd.f32 %v3311, %v3575
        %v3734 = vadd.f32 %v3312, %v3580
        %v3735 = vadd.f32 %v3313, %v3585
        %v3736 = vadd.f32 %v3314, %v3590
        %v3737 = vadd.f32 %v3315, %v3595
        %v3738 = vadd.f32 %v3316, %v3600
        %v3739 = vadd.f32 %v3317, %v3605
        %v3740 = vadd.f32 %v3318, %v3610
        %v3741 = vadd.f32 %v3319, %v3615
        %v3742 = vadd.f32 %v3320, %v3620
        %v3743 = vadd.f32 %v3321, %v3625
        %v3744 = vadd.f32 %v3322, %v3630
        %v3745 = vadd.f32 %v3323, %v3635
        %v3746 = vadd.f32 %v3324, %v3640
        %v3747 = vadd.f32 %v3325, %v3645
        %v3748 = vadd.f32 %v3326, %v3650
        %v3749 = vadd.f32 %v3327, %v3655
        %v3750 = vadd.f32 %v3328, %v3660
        %v3751 = vadd.f32 %v3329, %v3665
        %v3752 = vadd.f32 %v3330, %v3670
        %v3753 = vadd.f32 %v3331, %v3675
        %v3754 = vadd.f32 %v3332, %v3680
        %v3755 = vadd.f32 %v3333, %v3685
        %v3756 = vadd.f32 %v3334, %v3690
        %v3757 = vadd.f32 %v3335, %v3695
        %v3758 = vadd.f32 %v3336, %v3700
        %v3759 = vadd.f32 %v3337, %v3705
        %v3760 = vadd.f32 %v3338, %v3710
        %v3761 = vadd.f32 %v3339, %v3715
        %v3762 = vadd.f32 %v3340, %v3720
        %v3763 = vadd.f32 %v3341, %v3725
        %v3764 = vadd.f32 %v3342, %v3730
        %v3765 = vld [vmem:[%s438 + $0x30] sm:$0xff]
        %v3766 = vld [vmem:[%s438 + $0x38] sm:$0xff]
        %v3767 = vld [vmem:[%s438 + $0x40] sm:$0xff]
        %v3768 = vld [vmem:[%s438 + $0x48] sm:$0xff]
        %v3769 = vld [vmem:[%s438 + $0x50] sm:$0xff]
        %v3770 = vld [vmem:[%s438 + $0x58] sm:$0xff]
        %v3771 = vld [vmem:[%s438 + $0x60] sm:$0xff]
        %v3772 = vld [vmem:[%s438 + $0x68] sm:$0xff]
        %v3773 = vld [vmem:[%s438 + $0x70] sm:$0xff]
        %v3774 = vld [vmem:[%s438 + $0x78] sm:$0xff]
        %v3775 = vld [vmem:[%s438 + $0x80] sm:$0xff]
        %v3776 = vld [vmem:[%s438 + $0x88] sm:$0xff]
        %v3777 = vld [vmem:[%s438 + $0x90] sm:$0xff]
        %v3778 = vld [vmem:[%s438 + $0x98] sm:$0xff]
        %v3779 = vld [vmem:[%s438 + $0xa0] sm:$0xff]
        %v3780 = vld [vmem:[%s438 + $0xa8] sm:$0xff]
        %v3781 = vld [vmem:[%s438 + $0xb0] sm:$0xff]
        %v3782 = vld [vmem:[%s438 + $0xb8] sm:$0xff]
        %v3783 = vld [vmem:[%s438 + $0xc0] sm:$0xff]
        %v3784 = vld [vmem:[%s438 + $0xc8] sm:$0xff]
        %v3785 = vld [vmem:[%s438 + $0xd0] sm:$0xff]
        %v3786 = vld [vmem:[%s438 + $0xd8] sm:$0xff]
        %v3787 = vld [vmem:[%s438 + $0xe0] sm:$0xff]
        %v3788 = vld [vmem:[%s438 + $0xe8] sm:$0xff]
        %v3789 = vld [vmem:[%s438 + $0xf0] sm:$0xff]
        %v3790 = vld [vmem:[%s438 + $0xf8] sm:$0xff]
        %v3791 = vld [vmem:[%s438 + $0x100] sm:$0xff]
        %v3792 = vld [vmem:[%s438 + $0x108] sm:$0xff]
        %v3793 = vld [vmem:[%s438 + $0x110] sm:$0xff]
        %v3794 = vld [vmem:[%s438 + $0x118] sm:$0xff]
        %v3795 = vld [vmem:[%s438 + $0x120] sm:$0xff]
        %v3796 = vld [vmem:[%s438 + $0x128] sm:$0xff]
        %s3797 = scalar_lea.vmem %s1, 28
        %v3798 = vld [vmem:[%s3797] sm:$0x7]
        %v3800 = vsel %vm1037, %v3765, 0
        %v3803 = vsel %vm1037, %v3766, 0
        %v3806 = vsel %vm1037, %v3767, 0
        %v3809 = vsel %vm1037, %v3768, 0
        %v3812 = vsel %vm1037, %v3769, 0
        %v3815 = vsel %vm1037, %v3770, 0
        %v3818 = vsel %vm1037, %v3771, 0
        %v3821 = vsel %vm1037, %v3772, 0
        %v3824 = vsel %vm1037, %v3773, 0
        %v3827 = vsel %vm1037, %v3774, 0
        %v3830 = vsel %vm1037, %v3775, 0
        %v3833 = vsel %vm1037, %v3776, 0
        %v3836 = vsel %vm1037, %v3777, 0
        %v3839 = vsel %vm1037, %v3778, 0
        %v3842 = vsel %vm1037, %v3779, 0
        %v3845 = vsel %vm1037, %v3780, 0
        %v3848 = vsel %vm1037, %v3781, 0
        %v3851 = vsel %vm1037, %v3782, 0
        %v3854 = vsel %vm1037, %v3783, 0
        %v3857 = vsel %vm1037, %v3784, 0
        %v3860 = vsel %vm1037, %v3785, 0
        %v3863 = vsel %vm1037, %v3786, 0
        %v3866 = vsel %vm1037, %v3787, 0
        %v3869 = vsel %vm1037, %v3788, 0
        %v3872 = vsel %vm1037, %v3789, 0
        %v3875 = vsel %vm1037, %v3790, 0
        %v3878 = vsel %vm1037, %v3791, 0
        %v3881 = vsel %vm1037, %v3792, 0
        %v3884 = vsel %vm1037, %v3793, 0
        %v3887 = vsel %vm1037, %v3794, 0
        %v3890 = vsel %vm1037, %v3795, 0
        %v3893 = vsel %vm1037, %v3796, 0
        %v3896 = vsel %vm1134, %v3798, 0
        %3898 = vmatprep.subr.mxu0 0.0
        %3899 = vmatpush1.msra.mxu0 0.0
        %3900 = vmatprep.subr.mxu0 0.0
        %3901 = vmatpush1.msra.mxu0 0.0
        %3902 = vmatprep.subr.mxu0 0.0
        %3903 = vmatpush1.msra.mxu0 0.0
        %3904 = vmatprep.subr.mxu0 0.0
        %3905 = vmatpush1.msra.mxu0 0.0
        %3906 = vmatprep.subr.mxu0 0.0
        %3907 = vmatpush1.msra.mxu0 0.0
        %3908 = vmatprep.subr.mxu0 0.0
        %3909 = vmatpush1.msra.mxu0 0.0
        %3910 = vmatprep.subr.mxu0 0.0
        %3911 = vmatpush1.msra.mxu0 0.0
        %3912 = vmatprep.subr.mxu0 0.0
        %3913 = vmatpush1.msra.mxu0 0.0
        %3914 = vmatprep.subr.mxu0 0.0
        %3915 = vmatpush1.msra.mxu0 0.0
        %3916 = vmatprep.subr.mxu0 0.0
        %3917 = vmatpush1.msra.mxu0 0.0
        %3918 = vmatprep.subr.mxu0 0.0
        %3919 = vmatpush1.msra.mxu0 0.0
        %3920 = vmatprep.subr.mxu0 0.0
        %3921 = vmatpush1.msra.mxu0 0.0
        %3922 = vmatprep.subr.mxu0 0.0
        %3923 = vmatpush1.msra.mxu0 0.0
        %3924 = vmatprep.subr.mxu0 0.0
        %3925 = vmatpush1.msra.mxu0 0.0
        %3926 = vmatprep.subr.mxu0 0.0
        %3927 = vmatpush1.msra.mxu0 0.0
        %3928 = vmatprep.subr.mxu0 0.0
        %3929 = vmatpush1.msra.mxu0 %v3896
        %3930 = vmatprep.subr.mxu0 0.0
        %3931 = vmatpush2.msra.mxu0 0.0
        %3932 = vmatprep.subr.mxu0 0.0
        %3933 = vmatpush2.msra.mxu0 0.0
        %3934 = vmatprep.subr.mxu0 0.0
        %3935 = vmatpush2.msra.mxu0 0.0
        %3936 = vmatprep.subr.mxu0 0.0
        %3937 = vmatpush2.msra.mxu0 0.0
        %3938 = vmatprep.subr.mxu0 0.0
        %3939 = vmatpush2.msra.mxu0 0.0
        %3940 = vmatprep.subr.mxu0 0.0
        %3941 = vmatpush2.msra.mxu0 0.0
        %3942 = vmatprep.subr.mxu0 0.0
        %3943 = vmatpush2.msra.mxu0 0.0
        %3944 = vmatprep.subr.mxu0 0.0
        %3945 = vmatpush2.msra.mxu0 0.0
        %3946 = vmatprep.subr.mxu0 0.0
        %3947 = vmatpush2.msra.mxu0 0.0
        %3948 = vmatprep.subr.mxu0 0.0
        %3949 = vmatpush2.msra.mxu0 0.0
        %3950 = vmatprep.subr.mxu0 0.0
        %3951 = vmatpush2.msra.mxu0 0.0
        %3952 = vmatprep.subr.mxu0 0.0
        %3953 = vmatpush2.msra.mxu0 0.0
        %3954 = vmatprep.subr.mxu0 0.0
        %3955 = vmatpush2.msra.mxu0 0.0
        %3956 = vmatprep.subr.mxu0 0.0
        %3957 = vmatpush2.msra.mxu0 0.0
        %3958 = vmatprep.subr.mxu0 0.0
        %3959 = vmatpush2.msra.mxu0 0.0
        %3960 = vmatprep.subr.mxu0 0.0
        %3961 = vmatpush2.msra.mxu0 0.0
        %3962 = vmatprep.mubr.f32.mxu0 0.0
        %3963 = vmatmul.mubr.f32.gmra.mxu0 %v3800
        %v3964 = vpop.f32.mrf.mxu0
        %v3965 = vadd.f32 0.0, %v3964
        %v3966 = vpop.f32.mrf.mxu0
        %3967 = vmatprep.mubr.f32.mxu0 0.0
        %3968 = vmatmul.mubr.f32.gmra.mxu0 %v3803
        %v3969 = vpop.f32.mrf.mxu0
        %v3970 = vadd.f32 0.0, %v3969
        %v3971 = vpop.f32.mrf.mxu0
        %3972 = vmatprep.mubr.f32.mxu0 0.0
        %3973 = vmatmul.mubr.f32.gmra.mxu0 %v3806
        %v3974 = vpop.f32.mrf.mxu0
        %v3975 = vadd.f32 0.0, %v3974
        %v3976 = vpop.f32.mrf.mxu0
        %3977 = vmatprep.mubr.f32.mxu0 0.0
        %3978 = vmatmul.mubr.f32.gmra.mxu0 %v3809
        %v3979 = vpop.f32.mrf.mxu0
        %v3980 = vadd.f32 0.0, %v3979
        %v3981 = vpop.f32.mrf.mxu0
        %3982 = vmatprep.mubr.f32.mxu0 0.0
        %3983 = vmatmul.mubr.f32.gmra.mxu0 %v3812
        %v3984 = vpop.f32.mrf.mxu0
        %v3985 = vadd.f32 0.0, %v3984
        %v3986 = vpop.f32.mrf.mxu0
        %3987 = vmatprep.mubr.f32.mxu0 0.0
        %3988 = vmatmul.mubr.f32.gmra.mxu0 %v3815
        %v3989 = vpop.f32.mrf.mxu0
        %v3990 = vadd.f32 0.0, %v3989
        %v3991 = vpop.f32.mrf.mxu0
        %3992 = vmatprep.mubr.f32.mxu0 0.0
        %3993 = vmatmul.mubr.f32.gmra.mxu0 %v3818
        %v3994 = vpop.f32.mrf.mxu0
        %v3995 = vadd.f32 0.0, %v3994
        %v3996 = vpop.f32.mrf.mxu0
        %3997 = vmatprep.mubr.f32.mxu0 0.0
        %3998 = vmatmul.mubr.f32.gmra.mxu0 %v3821
        %v3999 = vpop.f32.mrf.mxu0
        %v4000 = vadd.f32 0.0, %v3999
        %v4001 = vpop.f32.mrf.mxu0
        %4002 = vmatprep.mubr.f32.mxu0 0.0
        %4003 = vmatmul.mubr.f32.gmra.mxu0 %v3824
        %v4004 = vpop.f32.mrf.mxu0
        %v4005 = vadd.f32 0.0, %v4004
        %v4006 = vpop.f32.mrf.mxu0
        %4007 = vmatprep.mubr.f32.mxu0 0.0
        %4008 = vmatmul.mubr.f32.gmra.mxu0 %v3827
        %v4009 = vpop.f32.mrf.mxu0
        %v4010 = vadd.f32 0.0, %v4009
        %v4011 = vpop.f32.mrf.mxu0
        %4012 = vmatprep.mubr.f32.mxu0 0.0
        %4013 = vmatmul.mubr.f32.gmra.mxu0 %v3830
        %v4014 = vpop.f32.mrf.mxu0
        %v4015 = vadd.f32 0.0, %v4014
        %v4016 = vpop.f32.mrf.mxu0
        %4017 = vmatprep.mubr.f32.mxu0 0.0
        %4018 = vmatmul.mubr.f32.gmra.mxu0 %v3833
        %v4019 = vpop.f32.mrf.mxu0
        %v4020 = vadd.f32 0.0, %v4019
        %v4021 = vpop.f32.mrf.mxu0
        %4022 = vmatprep.mubr.f32.mxu0 0.0
        %4023 = vmatmul.mubr.f32.gmra.mxu0 %v3836
        %v4024 = vpop.f32.mrf.mxu0
        %v4025 = vadd.f32 0.0, %v4024
        %v4026 = vpop.f32.mrf.mxu0
        %4027 = vmatprep.mubr.f32.mxu0 0.0
        %4028 = vmatmul.mubr.f32.gmra.mxu0 %v3839
        %v4029 = vpop.f32.mrf.mxu0
        %v4030 = vadd.f32 0.0, %v4029
        %v4031 = vpop.f32.mrf.mxu0
        %4032 = vmatprep.mubr.f32.mxu0 0.0
        %4033 = vmatmul.mubr.f32.gmra.mxu0 %v3842
        %v4034 = vpop.f32.mrf.mxu0
        %v4035 = vadd.f32 0.0, %v4034
        %v4036 = vpop.f32.mrf.mxu0
        %4037 = vmatprep.mubr.f32.mxu0 0.0
        %4038 = vmatmul.mubr.f32.gmra.mxu0 %v3845
        %v4039 = vpop.f32.mrf.mxu0
        %v4040 = vadd.f32 0.0, %v4039
        %v4041 = vpop.f32.mrf.mxu0
        %4042 = vmatprep.mubr.f32.mxu0 0.0
        %4043 = vmatmul.mubr.f32.gmra.mxu0 %v3848
        %v4044 = vpop.f32.mrf.mxu0
        %v4045 = vadd.f32 0.0, %v4044
        %v4046 = vpop.f32.mrf.mxu0
        %4047 = vmatprep.mubr.f32.mxu0 0.0
        %4048 = vmatmul.mubr.f32.gmra.mxu0 %v3851
        %v4049 = vpop.f32.mrf.mxu0
        %v4050 = vadd.f32 0.0, %v4049
        %v4051 = vpop.f32.mrf.mxu0
        %4052 = vmatprep.mubr.f32.mxu0 0.0
        %4053 = vmatmul.mubr.f32.gmra.mxu0 %v3854
        %v4054 = vpop.f32.mrf.mxu0
        %v4055 = vadd.f32 0.0, %v4054
        %v4056 = vpop.f32.mrf.mxu0
        %4057 = vmatprep.mubr.f32.mxu0 0.0
        %4058 = vmatmul.mubr.f32.gmra.mxu0 %v3857
        %v4059 = vpop.f32.mrf.mxu0
        %v4060 = vadd.f32 0.0, %v4059
        %v4061 = vpop.f32.mrf.mxu0
        %4062 = vmatprep.mubr.f32.mxu0 0.0
        %4063 = vmatmul.mubr.f32.gmra.mxu0 %v3860
        %v4064 = vpop.f32.mrf.mxu0
        %v4065 = vadd.f32 0.0, %v4064
        %v4066 = vpop.f32.mrf.mxu0
        %4067 = vmatprep.mubr.f32.mxu0 0.0
        %4068 = vmatmul.mubr.f32.gmra.mxu0 %v3863
        %v4069 = vpop.f32.mrf.mxu0
        %v4070 = vadd.f32 0.0, %v4069
        %v4071 = vpop.f32.mrf.mxu0
        %4072 = vmatprep.mubr.f32.mxu0 0.0
        %4073 = vmatmul.mubr.f32.gmra.mxu0 %v3866
        %v4074 = vpop.f32.mrf.mxu0
        %v4075 = vadd.f32 0.0, %v4074
        %v4076 = vpop.f32.mrf.mxu0
        %4077 = vmatprep.mubr.f32.mxu0 0.0
        %4078 = vmatmul.mubr.f32.gmra.mxu0 %v3869
        %v4079 = vpop.f32.mrf.mxu0
        %v4080 = vadd.f32 0.0, %v4079
        %v4081 = vpop.f32.mrf.mxu0
        %4082 = vmatprep.mubr.f32.mxu0 0.0
        %4083 = vmatmul.mubr.f32.gmra.mxu0 %v3872
        %v4084 = vpop.f32.mrf.mxu0
        %v4085 = vadd.f32 0.0, %v4084
        %v4086 = vpop.f32.mrf.mxu0
        %4087 = vmatprep.mubr.f32.mxu0 0.0
        %4088 = vmatmul.mubr.f32.gmra.mxu0 %v3875
        %v4089 = vpop.f32.mrf.mxu0
        %v4090 = vadd.f32 0.0, %v4089
        %v4091 = vpop.f32.mrf.mxu0
        %4092 = vmatprep.mubr.f32.mxu0 0.0
        %4093 = vmatmul.mubr.f32.gmra.mxu0 %v3878
        %v4094 = vpop.f32.mrf.mxu0
        %v4095 = vadd.f32 0.0, %v4094
        %v4096 = vpop.f32.mrf.mxu0
        %4097 = vmatprep.mubr.f32.mxu0 0.0
        %4098 = vmatmul.mubr.f32.gmra.mxu0 %v3881
        %v4099 = vpop.f32.mrf.mxu0
        %v4100 = vadd.f32 0.0, %v4099
        %v4101 = vpop.f32.mrf.mxu0
        %4102 = vmatprep.mubr.f32.mxu0 0.0
        %4103 = vmatmul.mubr.f32.gmra.mxu0 %v3884
        %v4104 = vpop.f32.mrf.mxu0
        %v4105 = vadd.f32 0.0, %v4104
        %v4106 = vpop.f32.mrf.mxu0
        %4107 = vmatprep.mubr.f32.mxu0 0.0
        %4108 = vmatmul.mubr.f32.gmra.mxu0 %v3887
        %v4109 = vpop.f32.mrf.mxu0
        %v4110 = vadd.f32 0.0, %v4109
        %v4111 = vpop.f32.mrf.mxu0
        %4112 = vmatprep.mubr.f32.mxu0 0.0
        %4113 = vmatmul.mubr.f32.gmra.mxu0 %v3890
        %v4114 = vpop.f32.mrf.mxu0
        %v4115 = vadd.f32 0.0, %v4114
        %v4116 = vpop.f32.mrf.mxu0
        %4117 = vmatprep.mubr.f32.mxu0 0.0
        %4118 = vmatmul.mubr.f32.gmra.mxu0 %v3893
        %v4119 = vpop.f32.mrf.mxu0
        %v4120 = vadd.f32 0.0, %v4119
        %v4121 = vpop.f32.mrf.mxu0
        %4122 = vdwg.mxu0
        %v4123 = vadd.f32 %v3733, %v3965
        %v4124 = vadd.f32 %v3734, %v3970
        %v4125 = vadd.f32 %v3735, %v3975
        %v4126 = vadd.f32 %v3736, %v3980
        %v4127 = vadd.f32 %v3737, %v3985
        %v4128 = vadd.f32 %v3738, %v3990
        %v4129 = vadd.f32 %v3739, %v3995
        %v4130 = vadd.f32 %v3740, %v4000
        %v4131 = vadd.f32 %v3741, %v4005
        %v4132 = vadd.f32 %v3742, %v4010
        %v4133 = vadd.f32 %v3743, %v4015
        %v4134 = vadd.f32 %v3744, %v4020
        %v4135 = vadd.f32 %v3745, %v4025
        %v4136 = vadd.f32 %v3746, %v4030
        %v4137 = vadd.f32 %v3747, %v4035
        %v4138 = vadd.f32 %v3748, %v4040
        %v4139 = vadd.f32 %v3749, %v4045
        %v4140 = vadd.f32 %v3750, %v4050
        %v4141 = vadd.f32 %v3751, %v4055
        %v4142 = vadd.f32 %v3752, %v4060
        %v4143 = vadd.f32 %v3753, %v4065
        %v4144 = vadd.f32 %v3754, %v4070
        %v4145 = vadd.f32 %v3755, %v4075
        %v4146 = vadd.f32 %v3756, %v4080
        %v4147 = vadd.f32 %v3757, %v4085
        %v4148 = vadd.f32 %v3758, %v4090
        %v4149 = vadd.f32 %v3759, %v4095
        %v4150 = vadd.f32 %v3760, %v4100
        %v4151 = vadd.f32 %v3761, %v4105
        %v4152 = vadd.f32 %v3762, %v4110
        %v4153 = vadd.f32 %v3763, %v4115
        %v4154 = vadd.f32 %v3764, %v4120
        %v4155 = vld [vmem:[%s438 + $0x31] sm:$0xff]
        %v4156 = vld [vmem:[%s438 + $0x39] sm:$0xff]
        %v4157 = vld [vmem:[%s438 + $0x41] sm:$0xff]
        %v4158 = vld [vmem:[%s438 + $0x49] sm:$0xff]
        %v4159 = vld [vmem:[%s438 + $0x51] sm:$0xff]
        %v4160 = vld [vmem:[%s438 + $0x59] sm:$0xff]
        %v4161 = vld [vmem:[%s438 + $0x61] sm:$0xff]
        %v4162 = vld [vmem:[%s438 + $0x69] sm:$0xff]
        %v4163 = vld [vmem:[%s438 + $0x71] sm:$0xff]
        %v4164 = vld [vmem:[%s438 + $0x79] sm:$0xff]
        %v4165 = vld [vmem:[%s438 + $0x81] sm:$0xff]
        %v4166 = vld [vmem:[%s438 + $0x89] sm:$0xff]
        %v4167 = vld [vmem:[%s438 + $0x91] sm:$0xff]
        %v4168 = vld [vmem:[%s438 + $0x99] sm:$0xff]
        %v4169 = vld [vmem:[%s438 + $0xa1] sm:$0xff]
        %v4170 = vld [vmem:[%s438 + $0xa9] sm:$0xff]
        %v4171 = vld [vmem:[%s438 + $0xb1] sm:$0xff]
        %v4172 = vld [vmem:[%s438 + $0xb9] sm:$0xff]
        %v4173 = vld [vmem:[%s438 + $0xc1] sm:$0xff]
        %v4174 = vld [vmem:[%s438 + $0xc9] sm:$0xff]
        %v4175 = vld [vmem:[%s438 + $0xd1] sm:$0xff]
        %v4176 = vld [vmem:[%s438 + $0xd9] sm:$0xff]
        %v4177 = vld [vmem:[%s438 + $0xe1] sm:$0xff]
        %v4178 = vld [vmem:[%s438 + $0xe9] sm:$0xff]
        %v4179 = vld [vmem:[%s438 + $0xf1] sm:$0xff]
        %v4180 = vld [vmem:[%s438 + $0xf9] sm:$0xff]
        %v4181 = vld [vmem:[%s438 + $0x101] sm:$0xff]
        %v4182 = vld [vmem:[%s438 + $0x109] sm:$0xff]
        %v4183 = vld [vmem:[%s438 + $0x111] sm:$0xff]
        %v4184 = vld [vmem:[%s438 + $0x119] sm:$0xff]
        %v4185 = vld [vmem:[%s438 + $0x121] sm:$0xff]
        %v4186 = vld [vmem:[%s438 + $0x129] sm:$0xff]
        %v4187 = vsel %vm906, %v4155, 0.0
        %v4188 = vsel %vm907, %v4156, 0.0
        %v4189 = vsel %vm908, %v4157, 0.0
        %v4190 = vsel %vm909, %v4158, 0.0
        %v4191 = vsel %vm910, %v4159, 0.0
        %v4192 = vsel %vm911, %v4160, 0.0
        %v4193 = vsel %vm912, %v4161, 0.0
        %v4194 = vsel %vm913, %v4162, 0.0
        %v4195 = vsel %vm914, %v4163, 0.0
        %v4196 = vsel %vm915, %v4164, 0.0
        %v4197 = vsel %vm916, %v4165, 0.0
        %v4198 = vsel %vm917, %v4166, 0.0
        %v4199 = vsel %vm918, %v4167, 0.0
        %v4200 = vsel %vm919, %v4168, 0.0
        %v4201 = vsel %vm920, %v4169, 0.0
        %v4202 = vsel %vm921, %v4170, 0.0
        %v4203 = vsel %vm922, %v4171, 0.0
        %v4204 = vsel %vm923, %v4172, 0.0
        %v4205 = vsel %vm924, %v4173, 0.0
        %v4206 = vsel %vm925, %v4174, 0.0
        %v4207 = vsel %vm926, %v4175, 0.0
        %v4208 = vsel %vm927, %v4176, 0.0
        %v4209 = vsel %vm928, %v4177, 0.0
        %v4210 = vsel %vm929, %v4178, 0.0
        %v4211 = vsel %vm930, %v4179, 0.0
        %v4212 = vsel %vm931, %v4180, 0.0
        %v4213 = vsel %vm932, %v4181, 0.0
        %v4214 = vsel %vm933, %v4182, 0.0
        %v4215 = vsel %vm934, %v4183, 0.0
        %v4216 = vsel %vm935, %v4184, 0.0
        %v4217 = vsel %vm936, %v4185, 0.0
        %v4218 = vsel %vm937, %v4186, 0.0
        %s4219 = scalar_lea.vmem %s1, 32
        %v4220 = vld [vmem:[%s4219] sm:$0x7]
        %v4222 = vsel %vm1037, %v4187, 0
        %v4225 = vsel %vm1037, %v4188, 0
        %v4228 = vsel %vm1037, %v4189, 0
        %v4231 = vsel %vm1037, %v4190, 0
        %v4234 = vsel %vm1037, %v4191, 0
        %v4237 = vsel %vm1037, %v4192, 0
        %v4240 = vsel %vm1037, %v4193, 0
        %v4243 = vsel %vm1037, %v4194, 0
        %v4246 = vsel %vm1037, %v4195, 0
        %v4249 = vsel %vm1037, %v4196, 0
        %v4252 = vsel %vm1037, %v4197, 0
        %v4255 = vsel %vm1037, %v4198, 0
        %v4258 = vsel %vm1037, %v4199, 0
        %v4261 = vsel %vm1037, %v4200, 0
        %v4264 = vsel %vm1037, %v4201, 0
        %v4267 = vsel %vm1037, %v4202, 0
        %v4270 = vsel %vm1037, %v4203, 0
        %v4273 = vsel %vm1037, %v4204, 0
        %v4276 = vsel %vm1037, %v4205, 0
        %v4279 = vsel %vm1037, %v4206, 0
        %v4282 = vsel %vm1037, %v4207, 0
        %v4285 = vsel %vm1037, %v4208, 0
        %v4288 = vsel %vm1037, %v4209, 0
        %v4291 = vsel %vm1037, %v4210, 0
        %v4294 = vsel %vm1037, %v4211, 0
        %v4297 = vsel %vm1037, %v4212, 0
        %v4300 = vsel %vm1037, %v4213, 0
        %v4303 = vsel %vm1037, %v4214, 0
        %v4306 = vsel %vm1037, %v4215, 0
        %v4309 = vsel %vm1037, %v4216, 0
        %v4312 = vsel %vm1037, %v4217, 0
        %v4315 = vsel %vm1037, %v4218, 0
        %v4318 = vsel %vm1134, %v4220, 0
        %4320 = vmatprep.subr.mxu0 0.0
        %4321 = vmatpush1.msra.mxu0 0.0
        %4322 = vmatprep.subr.mxu0 0.0
        %4323 = vmatpush1.msra.mxu0 0.0
        %4324 = vmatprep.subr.mxu0 0.0
        %4325 = vmatpush1.msra.mxu0 0.0
        %4326 = vmatprep.subr.mxu0 0.0
        %4327 = vmatpush1.msra.mxu0 0.0
        %4328 = vmatprep.subr.mxu0 0.0
        %4329 = vmatpush1.msra.mxu0 0.0
        %4330 = vmatprep.subr.mxu0 0.0
        %4331 = vmatpush1.msra.mxu0 0.0
        %4332 = vmatprep.subr.mxu0 0.0
        %4333 = vmatpush1.msra.mxu0 0.0
        %4334 = vmatprep.subr.mxu0 0.0
        %4335 = vmatpush1.msra.mxu0 0.0
        %4336 = vmatprep.subr.mxu0 0.0
        %4337 = vmatpush1.msra.mxu0 0.0
        %4338 = vmatprep.subr.mxu0 0.0
        %4339 = vmatpush1.msra.mxu0 0.0
        %4340 = vmatprep.subr.mxu0 0.0
        %4341 = vmatpush1.msra.mxu0 0.0
        %4342 = vmatprep.subr.mxu0 0.0
        %4343 = vmatpush1.msra.mxu0 0.0
        %4344 = vmatprep.subr.mxu0 0.0
        %4345 = vmatpush1.msra.mxu0 0.0
        %4346 = vmatprep.subr.mxu0 0.0
        %4347 = vmatpush1.msra.mxu0 0.0
        %4348 = vmatprep.subr.mxu0 0.0
        %4349 = vmatpush1.msra.mxu0 0.0
        %4350 = vmatprep.subr.mxu0 0.0
        %4351 = vmatpush1.msra.mxu0 %v4318
        %4352 = vmatprep.subr.mxu0 0.0
        %4353 = vmatpush2.msra.mxu0 0.0
        %4354 = vmatprep.subr.mxu0 0.0
        %4355 = vmatpush2.msra.mxu0 0.0
        %4356 = vmatprep.subr.mxu0 0.0
        %4357 = vmatpush2.msra.mxu0 0.0
        %4358 = vmatprep.subr.mxu0 0.0
        %4359 = vmatpush2.msra.mxu0 0.0
        %4360 = vmatprep.subr.mxu0 0.0
        %4361 = vmatpush2.msra.mxu0 0.0
        %4362 = vmatprep.subr.mxu0 0.0
        %4363 = vmatpush2.msra.mxu0 0.0
        %4364 = vmatprep.subr.mxu0 0.0
        %4365 = vmatpush2.msra.mxu0 0.0
        %4366 = vmatprep.subr.mxu0 0.0
        %4367 = vmatpush2.msra.mxu0 0.0
        %4368 = vmatprep.subr.mxu0 0.0
        %4369 = vmatpush2.msra.mxu0 0.0
        %4370 = vmatprep.subr.mxu0 0.0
        %4371 = vmatpush2.msra.mxu0 0.0
        %4372 = vmatprep.subr.mxu0 0.0
        %4373 = vmatpush2.msra.mxu0 0.0
        %4374 = vmatprep.subr.mxu0 0.0
        %4375 = vmatpush2.msra.mxu0 0.0
        %4376 = vmatprep.subr.mxu0 0.0
        %4377 = vmatpush2.msra.mxu0 0.0
        %4378 = vmatprep.subr.mxu0 0.0
        %4379 = vmatpush2.msra.mxu0 0.0
        %4380 = vmatprep.subr.mxu0 0.0
        %4381 = vmatpush2.msra.mxu0 0.0
        %4382 = vmatprep.subr.mxu0 0.0
        %4383 = vmatpush2.msra.mxu0 0.0
        %4384 = vmatprep.mubr.f32.mxu0 0.0
        %4385 = vmatmul.mubr.f32.gmra.mxu0 %v4222
        %v4386 = vpop.f32.mrf.mxu0
        %v4387 = vadd.f32 0.0, %v4386
        %v4388 = vpop.f32.mrf.mxu0
        %4389 = vmatprep.mubr.f32.mxu0 0.0
        %4390 = vmatmul.mubr.f32.gmra.mxu0 %v4225
        %v4391 = vpop.f32.mrf.mxu0
        %v4392 = vadd.f32 0.0, %v4391
        %v4393 = vpop.f32.mrf.mxu0
        %4394 = vmatprep.mubr.f32.mxu0 0.0
        %4395 = vmatmul.mubr.f32.gmra.mxu0 %v4228
        %v4396 = vpop.f32.mrf.mxu0
        %v4397 = vadd.f32 0.0, %v4396
        %v4398 = vpop.f32.mrf.mxu0
        %4399 = vmatprep.mubr.f32.mxu0 0.0
        %4400 = vmatmul.mubr.f32.gmra.mxu0 %v4231
        %v4401 = vpop.f32.mrf.mxu0
        %v4402 = vadd.f32 0.0, %v4401
        %v4403 = vpop.f32.mrf.mxu0
        %4404 = vmatprep.mubr.f32.mxu0 0.0
        %4405 = vmatmul.mubr.f32.gmra.mxu0 %v4234
        %v4406 = vpop.f32.mrf.mxu0
        %v4407 = vadd.f32 0.0, %v4406
        %v4408 = vpop.f32.mrf.mxu0
        %4409 = vmatprep.mubr.f32.mxu0 0.0
        %4410 = vmatmul.mubr.f32.gmra.mxu0 %v4237
        %v4411 = vpop.f32.mrf.mxu0
        %v4412 = vadd.f32 0.0, %v4411
        %v4413 = vpop.f32.mrf.mxu0
        %4414 = vmatprep.mubr.f32.mxu0 0.0
        %4415 = vmatmul.mubr.f32.gmra.mxu0 %v4240
        %v4416 = vpop.f32.mrf.mxu0
        %v4417 = vadd.f32 0.0, %v4416
        %v4418 = vpop.f32.mrf.mxu0
        %4419 = vmatprep.mubr.f32.mxu0 0.0
        %4420 = vmatmul.mubr.f32.gmra.mxu0 %v4243
        %v4421 = vpop.f32.mrf.mxu0
        %v4422 = vadd.f32 0.0, %v4421
        %v4423 = vpop.f32.mrf.mxu0
        %4424 = vmatprep.mubr.f32.mxu0 0.0
        %4425 = vmatmul.mubr.f32.gmra.mxu0 %v4246
        %v4426 = vpop.f32.mrf.mxu0
        %v4427 = vadd.f32 0.0, %v4426
        %v4428 = vpop.f32.mrf.mxu0
        %4429 = vmatprep.mubr.f32.mxu0 0.0
        %4430 = vmatmul.mubr.f32.gmra.mxu0 %v4249
        %v4431 = vpop.f32.mrf.mxu0
        %v4432 = vadd.f32 0.0, %v4431
        %v4433 = vpop.f32.mrf.mxu0
        %4434 = vmatprep.mubr.f32.mxu0 0.0
        %4435 = vmatmul.mubr.f32.gmra.mxu0 %v4252
        %v4436 = vpop.f32.mrf.mxu0
        %v4437 = vadd.f32 0.0, %v4436
        %v4438 = vpop.f32.mrf.mxu0
        %4439 = vmatprep.mubr.f32.mxu0 0.0
        %4440 = vmatmul.mubr.f32.gmra.mxu0 %v4255
        %v4441 = vpop.f32.mrf.mxu0
        %v4442 = vadd.f32 0.0, %v4441
        %v4443 = vpop.f32.mrf.mxu0
        %4444 = vmatprep.mubr.f32.mxu0 0.0
        %4445 = vmatmul.mubr.f32.gmra.mxu0 %v4258
        %v4446 = vpop.f32.mrf.mxu0
        %v4447 = vadd.f32 0.0, %v4446
        %v4448 = vpop.f32.mrf.mxu0
        %4449 = vmatprep.mubr.f32.mxu0 0.0
        %4450 = vmatmul.mubr.f32.gmra.mxu0 %v4261
        %v4451 = vpop.f32.mrf.mxu0
        %v4452 = vadd.f32 0.0, %v4451
        %v4453 = vpop.f32.mrf.mxu0
        %4454 = vmatprep.mubr.f32.mxu0 0.0
        %4455 = vmatmul.mubr.f32.gmra.mxu0 %v4264
        %v4456 = vpop.f32.mrf.mxu0
        %v4457 = vadd.f32 0.0, %v4456
        %v4458 = vpop.f32.mrf.mxu0
        %4459 = vmatprep.mubr.f32.mxu0 0.0
        %4460 = vmatmul.mubr.f32.gmra.mxu0 %v4267
        %v4461 = vpop.f32.mrf.mxu0
        %v4462 = vadd.f32 0.0, %v4461
        %v4463 = vpop.f32.mrf.mxu0
        %4464 = vmatprep.mubr.f32.mxu0 0.0
        %4465 = vmatmul.mubr.f32.gmra.mxu0 %v4270
        %v4466 = vpop.f32.mrf.mxu0
        %v4467 = vadd.f32 0.0, %v4466
        %v4468 = vpop.f32.mrf.mxu0
        %4469 = vmatprep.mubr.f32.mxu0 0.0
        %4470 = vmatmul.mubr.f32.gmra.mxu0 %v4273
        %v4471 = vpop.f32.mrf.mxu0
        %v4472 = vadd.f32 0.0, %v4471
        %v4473 = vpop.f32.mrf.mxu0
        %4474 = vmatprep.mubr.f32.mxu0 0.0
        %4475 = vmatmul.mubr.f32.gmra.mxu0 %v4276
        %v4476 = vpop.f32.mrf.mxu0
        %v4477 = vadd.f32 0.0, %v4476
        %v4478 = vpop.f32.mrf.mxu0
        %4479 = vmatprep.mubr.f32.mxu0 0.0
        %4480 = vmatmul.mubr.f32.gmra.mxu0 %v4279
        %v4481 = vpop.f32.mrf.mxu0
        %v4482 = vadd.f32 0.0, %v4481
        %v4483 = vpop.f32.mrf.mxu0
        %4484 = vmatprep.mubr.f32.mxu0 0.0
        %4485 = vmatmul.mubr.f32.gmra.mxu0 %v4282
        %v4486 = vpop.f32.mrf.mxu0
        %v4487 = vadd.f32 0.0, %v4486
        %v4488 = vpop.f32.mrf.mxu0
        %4489 = vmatprep.mubr.f32.mxu0 0.0
        %4490 = vmatmul.mubr.f32.gmra.mxu0 %v4285
        %v4491 = vpop.f32.mrf.mxu0
        %v4492 = vadd.f32 0.0, %v4491
        %v4493 = vpop.f32.mrf.mxu0
        %4494 = vmatprep.mubr.f32.mxu0 0.0
        %4495 = vmatmul.mubr.f32.gmra.mxu0 %v4288
        %v4496 = vpop.f32.mrf.mxu0
        %v4497 = vadd.f32 0.0, %v4496
        %v4498 = vpop.f32.mrf.mxu0
        %4499 = vmatprep.mubr.f32.mxu0 0.0
        %4500 = vmatmul.mubr.f32.gmra.mxu0 %v4291
        %v4501 = vpop.f32.mrf.mxu0
        %v4502 = vadd.f32 0.0, %v4501
        %v4503 = vpop.f32.mrf.mxu0
        %4504 = vmatprep.mubr.f32.mxu0 0.0
        %4505 = vmatmul.mubr.f32.gmra.mxu0 %v4294
        %v4506 = vpop.f32.mrf.mxu0
        %v4507 = vadd.f32 0.0, %v4506
        %v4508 = vpop.f32.mrf.mxu0
        %4509 = vmatprep.mubr.f32.mxu0 0.0
        %4510 = vmatmul.mubr.f32.gmra.mxu0 %v4297
        %v4511 = vpop.f32.mrf.mxu0
        %v4512 = vadd.f32 0.0, %v4511
        %v4513 = vpop.f32.mrf.mxu0
        %4514 = vmatprep.mubr.f32.mxu0 0.0
        %4515 = vmatmul.mubr.f32.gmra.mxu0 %v4300
        %v4516 = vpop.f32.mrf.mxu0
        %v4517 = vadd.f32 0.0, %v4516
        %v4518 = vpop.f32.mrf.mxu0
        %4519 = vmatprep.mubr.f32.mxu0 0.0
        %4520 = vmatmul.mubr.f32.gmra.mxu0 %v4303
        %v4521 = vpop.f32.mrf.mxu0
        %v4522 = vadd.f32 0.0, %v4521
        %v4523 = vpop.f32.mrf.mxu0
        %4524 = vmatprep.mubr.f32.mxu0 0.0
        %4525 = vmatmul.mubr.f32.gmra.mxu0 %v4306
        %v4526 = vpop.f32.mrf.mxu0
        %v4527 = vadd.f32 0.0, %v4526
        %v4528 = vpop.f32.mrf.mxu0
        %4529 = vmatprep.mubr.f32.mxu0 0.0
        %4530 = vmatmul.mubr.f32.gmra.mxu0 %v4309
        %v4531 = vpop.f32.mrf.mxu0
        %v4532 = vadd.f32 0.0, %v4531
        %v4533 = vpop.f32.mrf.mxu0
        %4534 = vmatprep.mubr.f32.mxu0 0.0
        %4535 = vmatmul.mubr.f32.gmra.mxu0 %v4312
        %v4536 = vpop.f32.mrf.mxu0
        %v4537 = vadd.f32 0.0, %v4536
        %v4538 = vpop.f32.mrf.mxu0
        %4539 = vmatprep.mubr.f32.mxu0 0.0
        %4540 = vmatmul.mubr.f32.gmra.mxu0 %v4315
        %v4541 = vpop.f32.mrf.mxu0
        %v4542 = vadd.f32 0.0, %v4541
        %v4543 = vpop.f32.mrf.mxu0
        %4544 = vdwg.mxu0
        %v4545 = vadd.f32 %v4123, %v4387
        %v4546 = vadd.f32 %v4124, %v4392
        %v4547 = vadd.f32 %v4125, %v4397
        %v4548 = vadd.f32 %v4126, %v4402
        %v4549 = vadd.f32 %v4127, %v4407
        %v4550 = vadd.f32 %v4128, %v4412
        %v4551 = vadd.f32 %v4129, %v4417
        %v4552 = vadd.f32 %v4130, %v4422
        %v4553 = vadd.f32 %v4131, %v4427
        %v4554 = vadd.f32 %v4132, %v4432
        %v4555 = vadd.f32 %v4133, %v4437
        %v4556 = vadd.f32 %v4134, %v4442
        %v4557 = vadd.f32 %v4135, %v4447
        %v4558 = vadd.f32 %v4136, %v4452
        %v4559 = vadd.f32 %v4137, %v4457
        %v4560 = vadd.f32 %v4138, %v4462
        %v4561 = vadd.f32 %v4139, %v4467
        %v4562 = vadd.f32 %v4140, %v4472
        %v4563 = vadd.f32 %v4141, %v4477
        %v4564 = vadd.f32 %v4142, %v4482
        %v4565 = vadd.f32 %v4143, %v4487
        %v4566 = vadd.f32 %v4144, %v4492
        %v4567 = vadd.f32 %v4145, %v4497
        %v4568 = vadd.f32 %v4146, %v4502
        %v4569 = vadd.f32 %v4147, %v4507
        %v4570 = vadd.f32 %v4148, %v4512
        %v4571 = vadd.f32 %v4149, %v4517
        %v4572 = vadd.f32 %v4150, %v4522
        %v4573 = vadd.f32 %v4151, %v4527
        %v4574 = vadd.f32 %v4152, %v4532
        %v4575 = vadd.f32 %v4153, %v4537
        %v4576 = vadd.f32 %v4154, %v4542
        %v4577 = vld [vmem:[%s2] sm:$0x1]
        %v4579 = vlaneseq
        %v4580 = vshrl.u32 %v4579, 7
        %v4581 = vsub.s32 0, %v4580
        %v4582 = vrot.slane %v4577, %v4581
        %v4584 = vmul.f32 %v4545, %v4582
        %v4585 = vmul.f32 %v4546, %v4582
        %v4586 = vmul.f32 %v4547, %v4582
        %v4587 = vmul.f32 %v4548, %v4582
        %v4588 = vmul.f32 %v4549, %v4582
        %v4589 = vmul.f32 %v4550, %v4582
        %v4590 = vmul.f32 %v4551, %v4582
        %v4591 = vmul.f32 %v4552, %v4582
        %v4592 = vmul.f32 %v4553, %v4582
        %v4593 = vmul.f32 %v4554, %v4582
        %v4594 = vmul.f32 %v4555, %v4582
        %v4595 = vmul.f32 %v4556, %v4582
        %v4596 = vmul.f32 %v4557, %v4582
        %v4597 = vmul.f32 %v4558, %v4582
        %v4598 = vmul.f32 %v4559, %v4582
        %v4599 = vmul.f32 %v4560, %v4582
        %v4600 = vmul.f32 %v4561, %v4582
        %v4601 = vmul.f32 %v4562, %v4582
        %v4602 = vmul.f32 %v4563, %v4582
        %v4603 = vmul.f32 %v4564, %v4582
        %v4604 = vmul.f32 %v4565, %v4582
        %v4605 = vmul.f32 %v4566, %v4582
        %v4606 = vmul.f32 %v4567, %v4582
        %v4607 = vmul.f32 %v4568, %v4582
        %v4608 = vmul.f32 %v4569, %v4582
        %v4609 = vmul.f32 %v4570, %v4582
        %v4610 = vmul.f32 %v4571, %v4582
        %v4611 = vmul.f32 %v4572, %v4582
        %v4612 = vmul.f32 %v4573, %v4582
        %v4613 = vmul.f32 %v4574, %v4582
        %v4614 = vmul.f32 %v4575, %v4582
        %v4615 = vmul.f32 %v4576, %v4582
        %v4616 = vld [vmem:[%s3] sm:$0x1]
        %v4618 = vlaneseq
        %v4619 = vshrl.u32 %v4618, 7
        %v4620 = vsub.s32 0, %v4619
        %v4621 = vrot.slane %v4616, %v4620
        %v4623 = vadd.f32 %v4584, %v4621
        %v4624 = vadd.f32 %v4585, %v4621
        %v4625 = vadd.f32 %v4586, %v4621
        %v4626 = vadd.f32 %v4587, %v4621
        %v4627 = vadd.f32 %v4588, %v4621
        %v4628 = vadd.f32 %v4589, %v4621
        %v4629 = vadd.f32 %v4590, %v4621
        %v4630 = vadd.f32 %v4591, %v4621
        %v4631 = vadd.f32 %v4592, %v4621
        %v4632 = vadd.f32 %v4593, %v4621
        %v4633 = vadd.f32 %v4594, %v4621
        %v4634 = vadd.f32 %v4595, %v4621
        %v4635 = vadd.f32 %v4596, %v4621
        %v4636 = vadd.f32 %v4597, %v4621
        %v4637 = vadd.f32 %v4598, %v4621
        %v4638 = vadd.f32 %v4599, %v4621
        %v4639 = vadd.f32 %v4600, %v4621
        %v4640 = vadd.f32 %v4601, %v4621
        %v4641 = vadd.f32 %v4602, %v4621
        %v4642 = vadd.f32 %v4603, %v4621
        %v4643 = vadd.f32 %v4604, %v4621
        %v4644 = vadd.f32 %v4605, %v4621
        %v4645 = vadd.f32 %v4606, %v4621
        %v4646 = vadd.f32 %v4607, %v4621
        %v4647 = vadd.f32 %v4608, %v4621
        %v4648 = vadd.f32 %v4609, %v4621
        %v4649 = vadd.f32 %v4610, %v4621
        %v4650 = vadd.f32 %v4611, %v4621
        %v4651 = vadd.f32 %v4612, %v4621
        %v4652 = vadd.f32 %v4613, %v4621
        %v4653 = vadd.f32 %v4614, %v4621
        %v4654 = vadd.f32 %v4615, %v4621
        %vm4655 = vcmp.gt.f32.partialorder %v4623, 0.0
        %vm4656 = vcmp.gt.f32.partialorder %v4624, 0.0
        %vm4657 = vcmp.gt.f32.partialorder %v4625, 0.0
        %vm4658 = vcmp.gt.f32.partialorder %v4626, 0.0
        %vm4659 = vcmp.gt.f32.partialorder %v4627, 0.0
        %vm4660 = vcmp.gt.f32.partialorder %v4628, 0.0
        %vm4661 = vcmp.gt.f32.partialorder %v4629, 0.0
        %vm4662 = vcmp.gt.f32.partialorder %v4630, 0.0
        %vm4663 = vcmp.gt.f32.partialorder %v4631, 0.0
        %vm4664 = vcmp.gt.f32.partialorder %v4632, 0.0
        %vm4665 = vcmp.gt.f32.partialorder %v4633, 0.0
        %vm4666 = vcmp.gt.f32.partialorder %v4634, 0.0
        %vm4667 = vcmp.gt.f32.partialorder %v4635, 0.0
        %vm4668 = vcmp.gt.f32.partialorder %v4636, 0.0
        %vm4669 = vcmp.gt.f32.partialorder %v4637, 0.0
        %vm4670 = vcmp.gt.f32.partialorder %v4638, 0.0
        %vm4671 = vcmp.gt.f32.partialorder %v4639, 0.0
        %vm4672 = vcmp.gt.f32.partialorder %v4640, 0.0
        %vm4673 = vcmp.gt.f32.partialorder %v4641, 0.0
        %vm4674 = vcmp.gt.f32.partialorder %v4642, 0.0
        %vm4675 = vcmp.gt.f32.partialorder %v4643, 0.0
        %vm4676 = vcmp.gt.f32.partialorder %v4644, 0.0
        %vm4677 = vcmp.gt.f32.partialorder %v4645, 0.0
        %vm4678 = vcmp.gt.f32.partialorder %v4646, 0.0
        %vm4679 = vcmp.gt.f32.partialorder %v4647, 0.0
        %vm4680 = vcmp.gt.f32.partialorder %v4648, 0.0
        %vm4681 = vcmp.gt.f32.partialorder %v4649, 0.0
        %vm4682 = vcmp.gt.f32.partialorder %v4650, 0.0
        %vm4683 = vcmp.gt.f32.partialorder %v4651, 0.0
        %vm4684 = vcmp.gt.f32.partialorder %v4652, 0.0
        %vm4685 = vcmp.gt.f32.partialorder %v4653, 0.0
        %vm4686 = vcmp.gt.f32.partialorder %v4654, 0.0
        %v4687 = vmul.f32 %v4623, 0.1
        %v4688 = vmul.f32 %v4624, 0.1
        %v4689 = vmul.f32 %v4625, 0.1
        %v4690 = vmul.f32 %v4626, 0.1
        %v4691 = vmul.f32 %v4627, 0.1
        %v4692 = vmul.f32 %v4628, 0.1
        %v4693 = vmul.f32 %v4629, 0.1
        %v4694 = vmul.f32 %v4630, 0.1
        %v4695 = vmul.f32 %v4631, 0.1
        %v4696 = vmul.f32 %v4632, 0.1
        %v4697 = vmul.f32 %v4633, 0.1
        %v4698 = vmul.f32 %v4634, 0.1
        %v4699 = vmul.f32 %v4635, 0.1
        %v4700 = vmul.f32 %v4636, 0.1
        %v4701 = vmul.f32 %v4637, 0.1
        %v4702 = vmul.f32 %v4638, 0.1
        %v4703 = vmul.f32 %v4639, 0.1
        %v4704 = vmul.f32 %v4640, 0.1
        %v4705 = vmul.f32 %v4641, 0.1
        %v4706 = vmul.f32 %v4642, 0.1
        %v4707 = vmul.f32 %v4643, 0.1
        %v4708 = vmul.f32 %v4644, 0.1
        %v4709 = vmul.f32 %v4645, 0.1
        %v4710 = vmul.f32 %v4646, 0.1
        %v4711 = vmul.f32 %v4647, 0.1
        %v4712 = vmul.f32 %v4648, 0.1
        %v4713 = vmul.f32 %v4649, 0.1
        %v4714 = vmul.f32 %v4650, 0.1
        %v4715 = vmul.f32 %v4651, 0.1
        %v4716 = vmul.f32 %v4652, 0.1
        %v4717 = vmul.f32 %v4653, 0.1
        %v4718 = vmul.f32 %v4654, 0.1
        %v4719 = vsel %vm4655, %v4623, %v4687
        %v4720 = vsel %vm4656, %v4624, %v4688
        %v4721 = vsel %vm4657, %v4625, %v4689
        %v4722 = vsel %vm4658, %v4626, %v4690
        %v4723 = vsel %vm4659, %v4627, %v4691
        %v4724 = vsel %vm4660, %v4628, %v4692
        %v4725 = vsel %vm4661, %v4629, %v4693
        %v4726 = vsel %vm4662, %v4630, %v4694
        %v4727 = vsel %vm4663, %v4631, %v4695
        %v4728 = vsel %vm4664, %v4632, %v4696
        %v4729 = vsel %vm4665, %v4633, %v4697
        %v4730 = vsel %vm4666, %v4634, %v4698
        %v4731 = vsel %vm4667, %v4635, %v4699
        %v4732 = vsel %vm4668, %v4636, %v4700
        %v4733 = vsel %vm4669, %v4637, %v4701
        %v4734 = vsel %vm4670, %v4638, %v4702
        %v4735 = vsel %vm4671, %v4639, %v4703
        %v4736 = vsel %vm4672, %v4640, %v4704
        %v4737 = vsel %vm4673, %v4641, %v4705
        %v4738 = vsel %vm4674, %v4642, %v4706
        %v4739 = vsel %vm4675, %v4643, %v4707
        %v4740 = vsel %vm4676, %v4644, %v4708
        %v4741 = vsel %vm4677, %v4645, %v4709
        %v4742 = vsel %vm4678, %v4646, %v4710
        %v4743 = vsel %vm4679, %v4647, %v4711
        %v4744 = vsel %vm4680, %v4648, %v4712
        %v4745 = vsel %vm4681, %v4649, %v4713
        %v4746 = vsel %vm4682, %v4650, %v4714
        %v4747 = vsel %vm4683, %v4651, %v4715
        %v4748 = vsel %vm4684, %v4652, %v4716
        %v4749 = vsel %vm4685, %v4653, %v4717
        %v4750 = vsel %vm4686, %v4654, %v4718
        %4751 = vst.msk [vmem:[#allocation4] sm:$0xff] %vm439, %v4719
        %4752 = vst.msk [vmem:[#allocation4 + $0x8] sm:$0xff] %vm439, %v4720
        %4753 = vst.msk [vmem:[#allocation4 + $0x10] sm:$0xff] %vm439, %v4721
        %4754 = vst.msk [vmem:[#allocation4 + $0x18] sm:$0xff] %vm439, %v4722
        %4755 = vst.msk [vmem:[#allocation4 + $0x20] sm:$0xff] %vm439, %v4723
        %4756 = vst.msk [vmem:[#allocation4 + $0x28] sm:$0xff] %vm439, %v4724
        %4757 = vst.msk [vmem:[#allocation4 + $0x30] sm:$0xff] %vm439, %v4725
        %4758 = vst.msk [vmem:[#allocation4 + $0x38] sm:$0xff] %vm439, %v4726
        %4759 = vst.msk [vmem:[#allocation4 + $0x40] sm:$0xff] %vm439, %v4727
        %4760 = vst.msk [vmem:[#allocation4 + $0x48] sm:$0xff] %vm439, %v4728
        %4761 = vst.msk [vmem:[#allocation4 + $0x50] sm:$0xff] %vm439, %v4729
        %4762 = vst.msk [vmem:[#allocation4 + $0x58] sm:$0xff] %vm439, %v4730
        %4763 = vst.msk [vmem:[#allocation4 + $0x60] sm:$0xff] %vm439, %v4731
        %4764 = vst.msk [vmem:[#allocation4 + $0x68] sm:$0xff] %vm439, %v4732
        %4765 = vst.msk [vmem:[#allocation4 + $0x70] sm:$0xff] %vm439, %v4733
        %4766 = vst.msk [vmem:[#allocation4 + $0x78] sm:$0xff] %vm439, %v4734
        %4767 = vst.msk [vmem:[#allocation4 + $0x80] sm:$0xff] %vm439, %v4735
        %4768 = vst.msk [vmem:[#allocation4 + $0x88] sm:$0xff] %vm439, %v4736
        %4769 = vst.msk [vmem:[#allocation4 + $0x90] sm:$0xff] %vm439, %v4737
        %4770 = vst.msk [vmem:[#allocation4 + $0x98] sm:$0xff] %vm439, %v4738
        %4771 = vst.msk [vmem:[#allocation4 + $0xa0] sm:$0xff] %vm439, %v4739
        %4772 = vst.msk [vmem:[#allocation4 + $0xa8] sm:$0xff] %vm439, %v4740
        %4773 = vst.msk [vmem:[#allocation4 + $0xb0] sm:$0xff] %vm439, %v4741
        %4774 = vst.msk [vmem:[#allocation4 + $0xb8] sm:$0xff] %vm439, %v4742
        %4775 = vst.msk [vmem:[#allocation4 + $0xc0] sm:$0xff] %vm439, %v4743
        %4776 = vst.msk [vmem:[#allocation4 + $0xc8] sm:$0xff] %vm439, %v4744
        %4777 = vst.msk [vmem:[#allocation4 + $0xd0] sm:$0xff] %vm439, %v4745
        %4778 = vst.msk [vmem:[#allocation4 + $0xd8] sm:$0xff] %vm439, %v4746
        %4779 = vst.msk [vmem:[#allocation4 + $0xe0] sm:$0xff] %vm439, %v4747
        %4780 = vst.msk [vmem:[#allocation4 + $0xe8] sm:$0xff] %vm439, %v4748
        %4781 = vst.msk [vmem:[#allocation4 + $0xf0] sm:$0xff] %vm439, %v4749
        %4782 = vst.msk [vmem:[#allocation4 + $0xf8] sm:$0xff] %vm439, %v4750
        %4783 = vst.msk [vmem:[#allocation4 + $0x100] sm:$0xff] %vm439, 0.0
        %4784 = vst.msk [vmem:[#allocation4 + $0x108] sm:$0xff] %vm439, 0.0
        %4785 = vst.msk [vmem:[#allocation4 + $0x110] sm:$0xff] %vm439, 0.0
        %v4786 = vld [vmem:[#allocation4] sm:$0xff]
        %v4787 = vld [vmem:[#allocation4 + $0x8] sm:$0xff]
        %v4788 = vld [vmem:[#allocation4 + $0x10] sm:$0xff]
        %v4789 = vld [vmem:[#allocation4 + $0x18] sm:$0xff]
        %v4790 = vld [vmem:[#allocation4 + $0x20] sm:$0xff]
        %v4791 = vld [vmem:[#allocation4 + $0x28] sm:$0xff]
        %v4792 = vld [vmem:[#allocation4 + $0x30] sm:$0xff]
        %v4793 = vld [vmem:[#allocation4 + $0x38] sm:$0xff]
        %v4794 = vld [vmem:[#allocation4 + $0x40] sm:$0xff]
        %v4795 = vld [vmem:[#allocation4 + $0x48] sm:$0xff]
        %v4796 = vld [vmem:[#allocation4 + $0x50] sm:$0xff]
        %v4797 = vld [vmem:[#allocation4 + $0x58] sm:$0xff]
        %v4798 = vld [vmem:[#allocation4 + $0x60] sm:$0xff]
        %v4799 = vld [vmem:[#allocation4 + $0x68] sm:$0xff]
        %v4800 = vld [vmem:[#allocation4 + $0x70] sm:$0xff]
        %v4801 = vld [vmem:[#allocation4 + $0x78] sm:$0xff]
        %v4802 = vld [vmem:[#allocation4 + $0x80] sm:$0xff]
        %v4803 = vld [vmem:[#allocation4 + $0x88] sm:$0xff]
        %v4804 = vld [vmem:[#allocation4 + $0x90] sm:$0xff]
        %v4805 = vld [vmem:[#allocation4 + $0x98] sm:$0xff]
        %v4806 = vld [vmem:[#allocation4 + $0xa0] sm:$0xff]
        %v4807 = vld [vmem:[#allocation4 + $0xa8] sm:$0xff]
        %v4808 = vld [vmem:[#allocation4 + $0xb0] sm:$0xff]
        %v4809 = vld [vmem:[#allocation4 + $0xb8] sm:$0xff]
        %v4810 = vld [vmem:[#allocation4 + $0xc0] sm:$0xff]
        %v4811 = vld [vmem:[#allocation4 + $0xc8] sm:$0xff]
        %v4812 = vld [vmem:[#allocation4 + $0xd0] sm:$0xff]
        %v4813 = vld [vmem:[#allocation4 + $0xd8] sm:$0xff]
        %v4814 = vld [vmem:[#allocation4 + $0xe0] sm:$0xff]
        %v4815 = vld [vmem:[#allocation4 + $0xe8] sm:$0xff]
        %v4816 = vld [vmem:[#allocation4 + $0xf0] sm:$0xff]
        %v4817 = vld [vmem:[#allocation4 + $0xf8] sm:$0xff]
        %v4818 = vld [vmem:[#allocation4 + $0x1] sm:$0xff]
        %v4819 = vld [vmem:[#allocation4 + $0x9] sm:$0xff]
        %v4820 = vld [vmem:[#allocation4 + $0x11] sm:$0xff]
        %v4821 = vld [vmem:[#allocation4 + $0x19] sm:$0xff]
        %v4822 = vld [vmem:[#allocation4 + $0x21] sm:$0xff]
        %v4823 = vld [vmem:[#allocation4 + $0x29] sm:$0xff]
        %v4824 = vld [vmem:[#allocation4 + $0x31] sm:$0xff]
        %v4825 = vld [vmem:[#allocation4 + $0x39] sm:$0xff]
        %v4826 = vld [vmem:[#allocation4 + $0x41] sm:$0xff]
        %v4827 = vld [vmem:[#allocation4 + $0x49] sm:$0xff]
        %v4828 = vld [vmem:[#allocation4 + $0x51] sm:$0xff]
        %v4829 = vld [vmem:[#allocation4 + $0x59] sm:$0xff]
        %v4830 = vld [vmem:[#allocation4 + $0x61] sm:$0xff]
        %v4831 = vld [vmem:[#allocation4 + $0x69] sm:$0xff]
        %v4832 = vld [vmem:[#allocation4 + $0x71] sm:$0xff]
        %v4833 = vld [vmem:[#allocation4 + $0x79] sm:$0xff]
        %v4834 = vld [vmem:[#allocation4 + $0x81] sm:$0xff]
        %v4835 = vld [vmem:[#allocation4 + $0x89] sm:$0xff]
        %v4836 = vld [vmem:[#allocation4 + $0x91] sm:$0xff]
        %v4837 = vld [vmem:[#allocation4 + $0x99] sm:$0xff]
        %v4838 = vld [vmem:[#allocation4 + $0xa1] sm:$0xff]
        %v4839 = vld [vmem:[#allocation4 + $0xa9] sm:$0xff]
        %v4840 = vld [vmem:[#allocation4 + $0xb1] sm:$0xff]
        %v4841 = vld [vmem:[#allocation4 + $0xb9] sm:$0xff]
        %v4842 = vld [vmem:[#allocation4 + $0xc1] sm:$0xff]
        %v4843 = vld [vmem:[#allocation4 + $0xc9] sm:$0xff]
        %v4844 = vld [vmem:[#allocation4 + $0xd1] sm:$0xff]
        %v4845 = vld [vmem:[#allocation4 + $0xd9] sm:$0xff]
        %v4846 = vld [vmem:[#allocation4 + $0xe1] sm:$0xff]
        %v4847 = vld [vmem:[#allocation4 + $0xe9] sm:$0xff]
        %v4848 = vld [vmem:[#allocation4 + $0xf1] sm:$0xff]
        %v4849 = vld [vmem:[#allocation4 + $0xf9] sm:$0xff]
        %v4850 = vmax.f32 %v4786, %v4818
        %v4851 = vmax.f32 %v4787, %v4819
        %v4852 = vmax.f32 %v4788, %v4820
        %v4853 = vmax.f32 %v4789, %v4821
        %v4854 = vmax.f32 %v4790, %v4822
        %v4855 = vmax.f32 %v4791, %v4823
        %v4856 = vmax.f32 %v4792, %v4824
        %v4857 = vmax.f32 %v4793, %v4825
        %v4858 = vmax.f32 %v4794, %v4826
        %v4859 = vmax.f32 %v4795, %v4827
        %v4860 = vmax.f32 %v4796, %v4828
        %v4861 = vmax.f32 %v4797, %v4829
        %v4862 = vmax.f32 %v4798, %v4830
        %v4863 = vmax.f32 %v4799, %v4831
        %v4864 = vmax.f32 %v4800, %v4832
        %v4865 = vmax.f32 %v4801, %v4833
        %v4866 = vmax.f32 %v4802, %v4834
        %v4867 = vmax.f32 %v4803, %v4835
        %v4868 = vmax.f32 %v4804, %v4836
        %v4869 = vmax.f32 %v4805, %v4837
        %v4870 = vmax.f32 %v4806, %v4838
        %v4871 = vmax.f32 %v4807, %v4839
        %v4872 = vmax.f32 %v4808, %v4840
        %v4873 = vmax.f32 %v4809, %v4841
        %v4874 = vmax.f32 %v4810, %v4842
        %v4875 = vmax.f32 %v4811, %v4843
        %v4876 = vmax.f32 %v4812, %v4844
        %v4877 = vmax.f32 %v4813, %v4845
        %v4878 = vmax.f32 %v4814, %v4846
        %v4879 = vmax.f32 %v4815, %v4847
        %v4880 = vmax.f32 %v4816, %v4848
        %v4881 = vmax.f32 %v4817, %v4849
        %v4882 = vld [vmem:[#allocation4 + $0x100] sm:$0xff]
        %v4883 = vld [vmem:[#allocation4 + $0x108] sm:$0xff]
        %v4884 = vld [vmem:[#allocation4 + $0x101] sm:$0xff]
        %v4885 = vld [vmem:[#allocation4 + $0x109] sm:$0xff]
        %v4886 = vmax.f32 %v4882, %v4884
        %v4887 = vmax.f32 %v4883, %v4885
        %v4888 = vmax.f32 %v4850, %v4852
        %v4889 = vmax.f32 %v4851, %v4853
        %v4890 = vmax.f32 %v4852, %v4854
        %v4891 = vmax.f32 %v4853, %v4855
        %v4892 = vmax.f32 %v4854, %v4856
        %v4893 = vmax.f32 %v4855, %v4857
        %v4894 = vmax.f32 %v4856, %v4858
        %v4895 = vmax.f32 %v4857, %v4859
        %v4896 = vmax.f32 %v4858, %v4860
        %v4897 = vmax.f32 %v4859, %v4861
        %v4898 = vmax.f32 %v4860, %v4862
        %v4899 = vmax.f32 %v4861, %v4863
        %v4900 = vmax.f32 %v4862, %v4864
        %v4901 = vmax.f32 %v4863, %v4865
        %v4902 = vmax.f32 %v4864, %v4866
        %v4903 = vmax.f32 %v4865, %v4867
        %v4904 = vmax.f32 %v4866, %v4868
        %v4905 = vmax.f32 %v4867, %v4869
        %v4906 = vmax.f32 %v4868, %v4870
        %v4907 = vmax.f32 %v4869, %v4871
        %v4908 = vmax.f32 %v4870, %v4872
        %v4909 = vmax.f32 %v4871, %v4873
        %v4910 = vmax.f32 %v4872, %v4874
        %v4911 = vmax.f32 %v4873, %v4875
        %v4912 = vmax.f32 %v4874, %v4876
        %v4913 = vmax.f32 %v4875, %v4877
        %v4914 = vmax.f32 %v4876, %v4878
        %v4915 = vmax.f32 %v4877, %v4879
        %v4916 = vmax.f32 %v4878, %v4880
        %v4917 = vmax.f32 %v4879, %v4881
        %v4918 = vmax.f32 %v4880, %v4886
        %v4919 = vmax.f32 %v4881, %v4887
        %v4920 = vld [vmem:[%s4] sm:$0xff]
        %v4921 = vld [vmem:[%s4 + $0x8] sm:$0xff]
        %v4922 = vld [vmem:[%s4 + $0x10] sm:$0xff]
        %v4923 = vld [vmem:[%s4 + $0x18] sm:$0xff]
        %v4924 = vld [vmem:[%s4 + $0x20] sm:$0xff]
        %v4925 = vld [vmem:[%s4 + $0x28] sm:$0xff]
        %v4926 = vld [vmem:[%s4 + $0x30] sm:$0xff]
        %v4927 = vld [vmem:[%s4 + $0x38] sm:$0xff]
        %v4928 = vld [vmem:[%s4 + $0x40] sm:$0xff]
        %v4929 = vld [vmem:[%s4 + $0x48] sm:$0xff]
        %v4930 = vld [vmem:[%s4 + $0x50] sm:$0xff]
        %v4931 = vld [vmem:[%s4 + $0x58] sm:$0xff]
        %v4932 = vld [vmem:[%s4 + $0x60] sm:$0xff]
        %v4933 = vld [vmem:[%s4 + $0x68] sm:$0xff]
        %v4934 = vld [vmem:[%s4 + $0x70] sm:$0xff]
        %v4935 = vld [vmem:[%s4 + $0x78] sm:$0xff]
        %4936 = vmatprep.subr.mxu0 0.0
        %4937 = vmatpush1.msra.mxu0 %v4903
        %4938 = vmatprep.subr.mxu0 0.0
        %4939 = vmatpush1.msra.mxu0 %v4902
        %4940 = vmatprep.subr.mxu0 0.0
        %4941 = vmatpush1.msra.mxu0 %v4901
        %4942 = vmatprep.subr.mxu0 0.0
        %4943 = vmatpush1.msra.mxu0 %v4900
        %4944 = vmatprep.subr.mxu0 0.0
        %4945 = vmatpush1.msra.mxu0 %v4899
        %4946 = vmatprep.subr.mxu0 0.0
        %4947 = vmatpush1.msra.mxu0 %v4898
        %4948 = vmatprep.subr.mxu0 0.0
        %4949 = vmatpush1.msra.mxu0 %v4897
        %4950 = vmatprep.subr.mxu0 0.0
        %4951 = vmatpush1.msra.mxu0 %v4896
        %4952 = vmatprep.subr.mxu0 0.0
        %4953 = vmatpush1.msra.mxu0 %v4895
        %4954 = vmatprep.subr.mxu0 0.0
        %4955 = vmatpush1.msra.mxu0 %v4894
        %4956 = vmatprep.subr.mxu0 0.0
        %4957 = vmatpush1.msra.mxu0 %v4893
        %4958 = vmatprep.subr.mxu0 0.0
        %4959 = vmatpush1.msra.mxu0 %v4892
        %4960 = vmatprep.subr.mxu0 0.0
        %4961 = vmatpush1.msra.mxu0 %v4891
        %4962 = vmatprep.subr.mxu0 0.0
        %4963 = vmatpush1.msra.mxu0 %v4890
        %4964 = vmatprep.subr.mxu0 0.0
        %4965 = vmatpush1.msra.mxu0 %v4889
        %4966 = vmatprep.subr.mxu0 0.0
        %4967 = vmatpush1.msra.mxu0 %v4888
        %4968 = vmatprep.subr.mxu0 0.0
        %4969 = vmatpush2.msra.mxu0 %v4919
        %4970 = vmatprep.subr.mxu0 0.0
        %4971 = vmatpush2.msra.mxu0 %v4918
        %4972 = vmatprep.subr.mxu0 0.0
        %4973 = vmatpush2.msra.mxu0 %v4917
        %4974 = vmatprep.subr.mxu0 0.0
        %4975 = vmatpush2.msra.mxu0 %v4916
        %4976 = vmatprep.subr.mxu0 0.0
        %4977 = vmatpush2.msra.mxu0 %v4915
        %4978 = vmatprep.subr.mxu0 0.0
        %4979 = vmatpush2.msra.mxu0 %v4914
        %4980 = vmatprep.subr.mxu0 0.0
        %4981 = vmatpush2.msra.mxu0 %v4913
        %4982 = vmatprep.subr.mxu0 0.0
        %4983 = vmatpush2.msra.mxu0 %v4912
        %4984 = vmatprep.subr.mxu0 0.0
        %4985 = vmatpush2.msra.mxu0 %v4911
        %4986 = vmatprep.subr.mxu0 0.0
        %4987 = vmatpush2.msra.mxu0 %v4910
        %4988 = vmatprep.subr.mxu0 0.0
        %4989 = vmatpush2.msra.mxu0 %v4909
        %4990 = vmatprep.subr.mxu0 0.0
        %4991 = vmatpush2.msra.mxu0 %v4908
        %4992 = vmatprep.subr.mxu0 0.0
        %4993 = vmatpush2.msra.mxu0 %v4907
        %4994 = vmatprep.subr.mxu0 0.0
        %4995 = vmatpush2.msra.mxu0 %v4906
        %4996 = vmatprep.subr.mxu0 0.0
        %4997 = vmatpush2.msra.mxu0 %v4905
        %4998 = vmatprep.subr.mxu0 0.0
        %4999 = vmatpush2.msra.mxu0 %v4904
        %5000 = vmatprep.mubr.f32.mxu0 %v4921
        %5001 = vmatmul.mubr.f32.gmra.mxu0 %v4920
        %v5002 = vpop.f32.mrf.mxu0
        %v5003 = vadd.f32 0.0, %v5002
        %v5004 = vpop.f32.mrf.mxu0
        %5005 = vmatprep.mubr.f32.mxu0 %v4923
        %5006 = vmatmul.mubr.f32.gmra.mxu0 %v4922
        %v5007 = vpop.f32.mrf.mxu0
        %v5008 = vadd.f32 0.0, %v5007
        %v5009 = vpop.f32.mrf.mxu0
        %5010 = vmatprep.mubr.f32.mxu0 %v4925
        %5011 = vmatmul.mubr.f32.gmra.mxu0 %v4924
        %v5012 = vpop.f32.mrf.mxu0
        %v5013 = vadd.f32 0.0, %v5012
        %v5014 = vpop.f32.mrf.mxu0
        %5015 = vmatprep.mubr.f32.mxu0 %v4927
        %5016 = vmatmul.mubr.f32.gmra.mxu0 %v4926
        %v5017 = vpop.f32.mrf.mxu0
        %v5018 = vadd.f32 0.0, %v5017
        %v5019 = vpop.f32.mrf.mxu0
        %5020 = vmatprep.mubr.f32.mxu0 %v4929
        %5021 = vmatmul.mubr.f32.gmra.mxu0 %v4928
        %v5022 = vpop.f32.mrf.mxu0
        %v5023 = vadd.f32 0.0, %v5022
        %v5024 = vpop.f32.mrf.mxu0
        %5025 = vmatprep.mubr.f32.mxu0 %v4931
        %5026 = vmatmul.mubr.f32.gmra.mxu0 %v4930
        %v5027 = vpop.f32.mrf.mxu0
        %v5028 = vadd.f32 0.0, %v5027
        %v5029 = vpop.f32.mrf.mxu0
        %5030 = vmatprep.mubr.f32.mxu0 %v4933
        %5031 = vmatmul.mubr.f32.gmra.mxu0 %v4932
        %v5032 = vpop.f32.mrf.mxu0
        %v5033 = vadd.f32 0.0, %v5032
        %v5034 = vpop.f32.mrf.mxu0
        %5035 = vmatprep.mubr.f32.mxu0 %v4935
        %5036 = vmatmul.mubr.f32.gmra.mxu0 %v4934
        %v5037 = vpop.f32.mrf.mxu0
        %v5038 = vadd.f32 0.0, %v5037
        %v5039 = vpop.f32.mrf.mxu0
        %5040 = vdwg.mxu0
        %5041 = vst.msk [vmem:[#allocation2 + $0x10] sm:$0xff] %vm439, %v5003
        %5042 = vst.msk [vmem:[#allocation2 + $0x18] sm:$0xff] %vm439, %v5008
        %5043 = vst.msk [vmem:[#allocation2 + $0x20] sm:$0xff] %vm439, %v5013
        %5044 = vst.msk [vmem:[#allocation2 + $0x28] sm:$0xff] %vm439, %v5018
        %5045 = vst.msk [vmem:[#allocation2 + $0x30] sm:$0xff] %vm439, %v5023
        %5046 = vst.msk [vmem:[#allocation2 + $0x38] sm:$0xff] %vm439, %v5028
        %5047 = vst.msk [vmem:[#allocation2 + $0x40] sm:$0xff] %vm439, %v5033
        %5048 = vst.msk [vmem:[#allocation2 + $0x48] sm:$0xff] %vm439, %v5038
        %vm5049 = vcmp.lt.s32.totalorder %v458, 0
        %v5050 = vsub.s32 0, %v458
        %v5051 = vsel %vm5049, %v5050, %v458
        %v5052 = vshrl.u32 %v5051, 3
        %v5053 = vand.u32 %v5051, 7
        %v5054 = vsub.s32 0, %v5053
        %v5055 = vsel %vm5049, %v5054, %v5053
        %vm5056 = vcmp.lt.s32.totalorder %v459, 0
        %v5057 = vsub.s32 0, %v459
        %v5058 = vsel %vm5056, %v5057, %v459
        %v5059 = vshrl.u32 %v5058, 3
        %v5060 = vand.u32 %v5058, 7
        %v5061 = vsub.s32 0, %v5060
        %v5062 = vsel %vm5056, %v5061, %v5060
        %vm5063 = vcmp.lt.s32.totalorder %v460, 0
        %v5064 = vsub.s32 0, %v460
        %v5065 = vsel %vm5063, %v5064, %v460
        %v5066 = vshrl.u32 %v5065, 3
        %v5067 = vand.u32 %v5065, 7
        %v5068 = vsub.s32 0, %v5067
        %v5069 = vsel %vm5063, %v5068, %v5067
        %vm5070 = vcmp.lt.s32.totalorder %v461, 0
        %v5071 = vsub.s32 0, %v461
        %v5072 = vsel %vm5070, %v5071, %v461
        %v5073 = vshrl.u32 %v5072, 3
        %v5074 = vand.u32 %v5072, 7
        %v5075 = vsub.s32 0, %v5074
        %v5076 = vsel %vm5070, %v5075, %v5074
        %vm5077 = vcmp.lt.s32.totalorder %v462, 0
        %v5078 = vsub.s32 0, %v462
        %v5079 = vsel %vm5077, %v5078, %v462
        %v5080 = vshrl.u32 %v5079, 3
        %v5081 = vand.u32 %v5079, 7
        %v5082 = vsub.s32 0, %v5081
        %v5083 = vsel %vm5077, %v5082, %v5081
        %vm5084 = vcmp.lt.s32.totalorder %v463, 0
        %v5085 = vsub.s32 0, %v463
        %v5086 = vsel %vm5084, %v5085, %v463
        %v5087 = vshrl.u32 %v5086, 3
        %v5088 = vand.u32 %v5086, 7
        %v5089 = vsub.s32 0, %v5088
        %v5090 = vsel %vm5084, %v5089, %v5088
        %vm5091 = vcmp.lt.s32.totalorder %v464, 0
        %v5092 = vsub.s32 0, %v464
        %v5093 = vsel %vm5091, %v5092, %v464
        %v5094 = vshrl.u32 %v5093, 3
        %v5095 = vand.u32 %v5093, 7
        %v5096 = vsub.s32 0, %v5095
        %v5097 = vsel %vm5091, %v5096, %v5095
        %vm5098 = vcmp.lt.s32.totalorder %v465, 0
        %v5099 = vsub.s32 0, %v465
        %v5100 = vsel %vm5098, %v5099, %v465
        %v5101 = vshrl.u32 %v5100, 3
        %v5102 = vand.u32 %v5100, 7
        %v5103 = vsub.s32 0, %v5102
        %v5104 = vsel %vm5098, %v5103, %v5102
        %vm5105 = vcmp.ne.s32.totalorder %v5055, 0
        %vm5106 = vcmp.ne.s32.totalorder %v5062, 0
        %vm5107 = vcmp.ne.s32.totalorder %v5069, 0
        %vm5108 = vcmp.ne.s32.totalorder %v5076, 0
        %vm5109 = vcmp.ne.s32.totalorder %v5083, 0
        %vm5110 = vcmp.ne.s32.totalorder %v5090, 0
        %vm5111 = vcmp.ne.s32.totalorder %v5097, 0
        %vm5112 = vcmp.ne.s32.totalorder %v5104, 0
        %vm5113 = vcmp.lt.s32.totalorder %v5055, 0
        %vm5114 = vcmp.lt.s32.totalorder %v5062, 0
        %vm5115 = vcmp.lt.s32.totalorder %v5069, 0
        %vm5116 = vcmp.lt.s32.totalorder %v5076, 0
        %vm5117 = vcmp.lt.s32.totalorder %v5083, 0
        %vm5118 = vcmp.lt.s32.totalorder %v5090, 0
        %vm5119 = vcmp.lt.s32.totalorder %v5097, 0
        %vm5120 = vcmp.lt.s32.totalorder %v5104, 0
        %vm5121 = vmand %vm5113, %vm5105
        %vm5122 = vmand %vm5114, %vm5106
        %vm5123 = vmand %vm5115, %vm5107
        %vm5124 = vmand %vm5116, %vm5108
        %vm5125 = vmand %vm5117, %vm5109
        %vm5126 = vmand %vm5118, %vm5110
        %vm5127 = vmand %vm5119, %vm5111
        %vm5128 = vmand %vm5120, %vm5112
        %v5129 = vadd.s32 %v5055, 8
        %v5130 = vadd.s32 %v5062, 8
        %v5131 = vadd.s32 %v5069, 8
        %v5132 = vadd.s32 %v5076, 8
        %v5133 = vadd.s32 %v5083, 8
        %v5134 = vadd.s32 %v5090, 8
        %v5135 = vadd.s32 %v5097, 8
        %v5136 = vadd.s32 %v5104, 8
        %v5137 = vsel %vm5121, %v5129, %v5055
        %v5138 = vsel %vm5122, %v5130, %v5062
        %v5139 = vsel %vm5123, %v5131, %v5069
        %v5140 = vsel %vm5124, %v5132, %v5076
        %v5141 = vsel %vm5125, %v5133, %v5083
        %v5142 = vsel %vm5126, %v5134, %v5090
        %v5143 = vsel %vm5127, %v5135, %v5097
        %v5144 = vsel %vm5128, %v5136, %v5104
        %vm5145 = vcmp.ne.s32.totalorder %v5137, 0
        %vm5146 = vcmp.ne.s32.totalorder %v5138, 0
        %vm5147 = vcmp.ne.s32.totalorder %v5139, 0
        %vm5148 = vcmp.ne.s32.totalorder %v5140, 0
        %vm5149 = vcmp.ne.s32.totalorder %v5141, 0
        %vm5150 = vcmp.ne.s32.totalorder %v5142, 0
        %vm5151 = vcmp.ne.s32.totalorder %v5143, 0
        %vm5152 = vcmp.ne.s32.totalorder %v5144, 0
        %vm5153 = vcmp.ne.s32.totalorder %v5137, 7
        %vm5154 = vcmp.ne.s32.totalorder %v5138, 7
        %vm5155 = vcmp.ne.s32.totalorder %v5139, 7
        %vm5156 = vcmp.ne.s32.totalorder %v5140, 7
        %vm5157 = vcmp.ne.s32.totalorder %v5141, 7
        %vm5158 = vcmp.ne.s32.totalorder %v5142, 7
        %vm5159 = vcmp.ne.s32.totalorder %v5143, 7
        %vm5160 = vcmp.ne.s32.totalorder %v5144, 7
        %v5161 = vld [vmem:[#allocation2 + $0x7] sm:$0xff]
        %v5162 = vld [vmem:[#allocation2 + $0xf] sm:$0xff]
        %v5163 = vld [vmem:[#allocation2 + $0x17] sm:$0xff]
        %v5164 = vld [vmem:[#allocation2 + $0x1f] sm:$0xff]
        %v5165 = vld [vmem:[#allocation2 + $0x27] sm:$0xff]
        %v5166 = vld [vmem:[#allocation2 + $0x2f] sm:$0xff]
        %v5167 = vld [vmem:[#allocation2 + $0x37] sm:$0xff]
        %v5168 = vld [vmem:[#allocation2 + $0x3f] sm:$0xff]
        %v5169 = vsel %vm5145, %v5161, 0.0
        %v5170 = vsel %vm5146, %v5162, 0.0
        %v5171 = vsel %vm5147, %v5163, 0.0
        %v5172 = vsel %vm5148, %v5164, 0.0
        %v5173 = vsel %vm5149, %v5165, 0.0
        %v5174 = vsel %vm5150, %v5166, 0.0
        %v5175 = vsel %vm5151, %v5167, 0.0
        %v5176 = vsel %vm5152, %v5168, 0.0
        %v5177 = vld [vmem:[%s5] sm:$0xff]
        %v5178 = vld [vmem:[%s5 + $0x8] sm:$0xff]
        %v5179 = vld [vmem:[%s5 + $0x10] sm:$0xff]
        %v5180 = vld [vmem:[%s5 + $0x18] sm:$0xff]
        %v5181 = vld [vmem:[#allocation2 + $0x8] sm:$0xff]
        %v5182 = vld [vmem:[#allocation2 + $0x10] sm:$0xff]
        %v5183 = vld [vmem:[#allocation2 + $0x18] sm:$0xff]
        %v5184 = vld [vmem:[#allocation2 + $0x20] sm:$0xff]
        %v5185 = vld [vmem:[#allocation2 + $0x28] sm:$0xff]
        %v5186 = vld [vmem:[#allocation2 + $0x30] sm:$0xff]
        %v5187 = vld [vmem:[#allocation2 + $0x38] sm:$0xff]
        %v5188 = vld [vmem:[#allocation2 + $0x40] sm:$0xff]
        %s5189 = scalar_lea.vmem %s5, 32
        %v5190 = vld [vmem:[%s5189] sm:$0xff]
        %v5191 = vld [vmem:[%s5189 + $0x8] sm:$0xff]
        %v5192 = vld [vmem:[%s5189 + $0x10] sm:$0xff]
        %v5193 = vld [vmem:[%s5189 + $0x18] sm:$0xff]
        %v5195 = vsel %vm439, %v5181, 0
        %v5198 = vsel %vm439, %v5182, 0
        %v5201 = vsel %vm439, %v5183, 0
        %v5204 = vsel %vm439, %v5184, 0
        %v5207 = vsel %vm439, %v5185, 0
        %v5210 = vsel %vm439, %v5186, 0
        %v5213 = vsel %vm439, %v5187, 0
        %v5216 = vsel %vm439, %v5188, 0
        %5218 = vmatprep.subr.mxu0 0.0
        %5219 = vmatpush1.msra.mxu0 0.0
        %5220 = vmatprep.subr.mxu0 0.0
        %5221 = vmatpush1.msra.mxu0 0.0
        %5222 = vmatprep.subr.mxu0 0.0
        %5223 = vmatpush1.msra.mxu0 0.0
        %5224 = vmatprep.subr.mxu0 0.0
        %5225 = vmatpush1.msra.mxu0 0.0
        %5226 = vmatprep.subr.mxu0 0.0
        %5227 = vmatpush1.msra.mxu0 0.0
        %5228 = vmatprep.subr.mxu0 0.0
        %5229 = vmatpush1.msra.mxu0 0.0
        %5230 = vmatprep.subr.mxu0 0.0
        %5231 = vmatpush1.msra.mxu0 0.0
        %5232 = vmatprep.subr.mxu0 0.0
        %5233 = vmatpush1.msra.mxu0 0.0
        %5234 = vmatprep.subr.mxu0 0.0
        %5235 = vmatpush1.msra.mxu0 0.0
        %5236 = vmatprep.subr.mxu0 0.0
        %5237 = vmatpush1.msra.mxu0 0.0
        %5238 = vmatprep.subr.mxu0 0.0
        %5239 = vmatpush1.msra.mxu0 0.0
        %5240 = vmatprep.subr.mxu0 0.0
        %5241 = vmatpush1.msra.mxu0 0.0
        %5242 = vmatprep.subr.mxu0 0.0
        %5243 = vmatpush1.msra.mxu0 %v5193
        %5244 = vmatprep.subr.mxu0 0.0
        %5245 = vmatpush1.msra.mxu0 %v5192
        %5246 = vmatprep.subr.mxu0 0.0
        %5247 = vmatpush1.msra.mxu0 %v5191
        %5248 = vmatprep.subr.mxu0 0.0
        %5249 = vmatpush1.msra.mxu0 %v5190
        %5250 = vmatprep.subr.mxu0 0.0
        %5251 = vmatpush2.msra.mxu0 0.0
        %5252 = vmatprep.subr.mxu0 0.0
        %5253 = vmatpush2.msra.mxu0 0.0
        %5254 = vmatprep.subr.mxu0 0.0
        %5255 = vmatpush2.msra.mxu0 0.0
        %5256 = vmatprep.subr.mxu0 0.0
        %5257 = vmatpush2.msra.mxu0 0.0
        %5258 = vmatprep.subr.mxu0 0.0
        %5259 = vmatpush2.msra.mxu0 0.0
        %5260 = vmatprep.subr.mxu0 0.0
        %5261 = vmatpush2.msra.mxu0 0.0
        %5262 = vmatprep.subr.mxu0 0.0
        %5263 = vmatpush2.msra.mxu0 0.0
        %5264 = vmatprep.subr.mxu0 0.0
        %5265 = vmatpush2.msra.mxu0 0.0
        %5266 = vmatprep.subr.mxu0 0.0
        %5267 = vmatpush2.msra.mxu0 0.0
        %5268 = vmatprep.subr.mxu0 0.0
        %5269 = vmatpush2.msra.mxu0 0.0
        %5270 = vmatprep.subr.mxu0 0.0
        %5271 = vmatpush2.msra.mxu0 0.0
        %5272 = vmatprep.subr.mxu0 0.0
        %5273 = vmatpush2.msra.mxu0 0.0
        %5274 = vmatprep.subr.mxu0 0.0
        %5275 = vmatpush2.msra.mxu0 0.0
        %5276 = vmatprep.subr.mxu0 0.0
        %5277 = vmatpush2.msra.mxu0 0.0
        %5278 = vmatprep.subr.mxu0 0.0
        %5279 = vmatpush2.msra.mxu0 0.0
        %5280 = vmatprep.subr.mxu0 0.0
        %5281 = vmatpush2.msra.mxu0 0.0
        %5282 = vmatprep.mubr.f32.mxu0 0.0
        %5283 = vmatmul.mubr.f32.gmra.mxu0 %v5195
        %v5284 = vpop.f32.mrf.mxu0
        %v5285 = vadd.f32 0.0, %v5284
        %v5286 = vpop.f32.mrf.mxu0
        %5287 = vmatprep.mubr.f32.mxu0 0.0
        %5288 = vmatmul.mubr.f32.gmra.mxu0 %v5198
        %v5289 = vpop.f32.mrf.mxu0
        %v5290 = vadd.f32 0.0, %v5289
        %v5291 = vpop.f32.mrf.mxu0
        %5292 = vmatprep.mubr.f32.mxu0 0.0
        %5293 = vmatmul.mubr.f32.gmra.mxu0 %v5201
        %v5294 = vpop.f32.mrf.mxu0
        %v5295 = vadd.f32 0.0, %v5294
        %v5296 = vpop.f32.mrf.mxu0
        %5297 = vmatprep.mubr.f32.mxu0 0.0
        %5298 = vmatmul.mubr.f32.gmra.mxu0 %v5204
        %v5299 = vpop.f32.mrf.mxu0
        %v5300 = vadd.f32 0.0, %v5299
        %v5301 = vpop.f32.mrf.mxu0
        %5302 = vmatprep.mubr.f32.mxu0 0.0
        %5303 = vmatmul.mubr.f32.gmra.mxu0 %v5207
        %v5304 = vpop.f32.mrf.mxu0
        %v5305 = vadd.f32 0.0, %v5304
        %v5306 = vpop.f32.mrf.mxu0
        %5307 = vmatprep.mubr.f32.mxu0 0.0
        %5308 = vmatmul.mubr.f32.gmra.mxu0 %v5210
        %v5309 = vpop.f32.mrf.mxu0
        %v5310 = vadd.f32 0.0, %v5309
        %v5311 = vpop.f32.mrf.mxu0
        %5312 = vmatprep.mubr.f32.mxu0 0.0
        %5313 = vmatmul.mubr.f32.gmra.mxu0 %v5213
        %v5314 = vpop.f32.mrf.mxu0
        %v5315 = vadd.f32 0.0, %v5314
        %v5316 = vpop.f32.mrf.mxu0
        %5317 = vmatprep.mubr.f32.mxu0 0.0
        %5318 = vmatmul.mubr.f32.gmra.mxu0 %v5216
        %v5319 = vpop.f32.mrf.mxu0
        %v5320 = vadd.f32 0.0, %v5319
        %v5321 = vpop.f32.mrf.mxu0
        %5322 = vdwg.mxu0
        %v5324 = vsel %vm439, %v5169, 0
        %v5327 = vsel %vm439, %v5170, 0
        %v5330 = vsel %vm439, %v5171, 0
        %v5333 = vsel %vm439, %v5172, 0
        %v5336 = vsel %vm439, %v5173, 0
        %v5339 = vsel %vm439, %v5174, 0
        %v5342 = vsel %vm439, %v5175, 0
        %v5345 = vsel %vm439, %v5176, 0
        %5347 = vmatprep.subr.mxu0 0.0
        %5348 = vmatpush1.msra.mxu0 0.0
        %5349 = vmatprep.subr.mxu0 0.0
        %5350 = vmatpush1.msra.mxu0 0.0
        %5351 = vmatprep.subr.mxu0 0.0
        %5352 = vmatpush1.msra.mxu0 0.0
        %5353 = vmatprep.subr.mxu0 0.0
        %5354 = vmatpush1.msra.mxu0 0.0
        %5355 = vmatprep.subr.mxu0 0.0
        %5356 = vmatpush1.msra.mxu0 0.0
        %5357 = vmatprep.subr.mxu0 0.0
        %5358 = vmatpush1.msra.mxu0 0.0
        %5359 = vmatprep.subr.mxu0 0.0
        %5360 = vmatpush1.msra.mxu0 0.0
        %5361 = vmatprep.subr.mxu0 0.0
        %5362 = vmatpush1.msra.mxu0 0.0
        %5363 = vmatprep.subr.mxu0 0.0
        %5364 = vmatpush1.msra.mxu0 0.0
        %5365 = vmatprep.subr.mxu0 0.0
        %5366 = vmatpush1.msra.mxu0 0.0
        %5367 = vmatprep.subr.mxu0 0.0
        %5368 = vmatpush1.msra.mxu0 0.0
        %5369 = vmatprep.subr.mxu0 0.0
        %5370 = vmatpush1.msra.mxu0 0.0
        %5371 = vmatprep.subr.mxu0 0.0
        %5372 = vmatpush1.msra.mxu0 %v5180
        %5373 = vmatprep.subr.mxu0 0.0
        %5374 = vmatpush1.msra.mxu0 %v5179
        %5375 = vmatprep.subr.mxu0 0.0
        %5376 = vmatpush1.msra.mxu0 %v5178
        %5377 = vmatprep.subr.mxu0 0.0
        %5378 = vmatpush1.msra.mxu0 %v5177
        %5379 = vmatprep.subr.mxu0 0.0
        %5380 = vmatpush2.msra.mxu0 0.0
        %5381 = vmatprep.subr.mxu0 0.0
        %5382 = vmatpush2.msra.mxu0 0.0
        %5383 = vmatprep.subr.mxu0 0.0
        %5384 = vmatpush2.msra.mxu0 0.0
        %5385 = vmatprep.subr.mxu0 0.0
        %5386 = vmatpush2.msra.mxu0 0.0
        %5387 = vmatprep.subr.mxu0 0.0
        %5388 = vmatpush2.msra.mxu0 0.0
        %5389 = vmatprep.subr.mxu0 0.0
        %5390 = vmatpush2.msra.mxu0 0.0
        %5391 = vmatprep.subr.mxu0 0.0
        %5392 = vmatpush2.msra.mxu0 0.0
        %5393 = vmatprep.subr.mxu0 0.0
        %5394 = vmatpush2.msra.mxu0 0.0
        %5395 = vmatprep.subr.mxu0 0.0
        %5396 = vmatpush2.msra.mxu0 0.0
        %5397 = vmatprep.subr.mxu0 0.0
        %5398 = vmatpush2.msra.mxu0 0.0
        %5399 = vmatprep.subr.mxu0 0.0
        %5400 = vmatpush2.msra.mxu0 0.0
        %5401 = vmatprep.subr.mxu0 0.0
        %5402 = vmatpush2.msra.mxu0 0.0
        %5403 = vmatprep.subr.mxu0 0.0
        %5404 = vmatpush2.msra.mxu0 0.0
        %5405 = vmatprep.subr.mxu0 0.0
        %5406 = vmatpush2.msra.mxu0 0.0
        %5407 = vmatprep.subr.mxu0 0.0
        %5408 = vmatpush2.msra.mxu0 0.0
        %5409 = vmatprep.subr.mxu0 0.0
        %5410 = vmatpush2.msra.mxu0 0.0
        %5411 = vmatprep.mubr.f32.mxu0 0.0
        %5412 = vmatmul.mubr.f32.gmra.mxu0 %v5324
        %v5413 = vpop.f32.mrf.mxu0
        %v5414 = vadd.f32 %v5285, %v5413
        %v5415 = vpop.f32.mrf.mxu0
        %5416 = vmatprep.mubr.f32.mxu0 0.0
        %5417 = vmatmul.mubr.f32.gmra.mxu0 %v5327
        %v5418 = vpop.f32.mrf.mxu0
        %v5419 = vadd.f32 %v5290, %v5418
        %v5420 = vpop.f32.mrf.mxu0
        %5421 = vmatprep.mubr.f32.mxu0 0.0
        %5422 = vmatmul.mubr.f32.gmra.mxu0 %v5330
        %v5423 = vpop.f32.mrf.mxu0
        %v5424 = vadd.f32 %v5295, %v5423
        %v5425 = vpop.f32.mrf.mxu0
        %5426 = vmatprep.mubr.f32.mxu0 0.0
        %5427 = vmatmul.mubr.f32.gmra.mxu0 %v5333
        %v5428 = vpop.f32.mrf.mxu0
        %v5429 = vadd.f32 %v5300, %v5428
        %v5430 = vpop.f32.mrf.mxu0
        %5431 = vmatprep.mubr.f32.mxu0 0.0
        %5432 = vmatmul.mubr.f32.gmra.mxu0 %v5336
        %v5433 = vpop.f32.mrf.mxu0
        %v5434 = vadd.f32 %v5305, %v5433
        %v5435 = vpop.f32.mrf.mxu0
        %5436 = vmatprep.mubr.f32.mxu0 0.0
        %5437 = vmatmul.mubr.f32.gmra.mxu0 %v5339
        %v5438 = vpop.f32.mrf.mxu0
        %v5439 = vadd.f32 %v5310, %v5438
        %v5440 = vpop.f32.mrf.mxu0
        %5441 = vmatprep.mubr.f32.mxu0 0.0
        %5442 = vmatmul.mubr.f32.gmra.mxu0 %v5342
        %v5443 = vpop.f32.mrf.mxu0
        %v5444 = vadd.f32 %v5315, %v5443
        %v5445 = vpop.f32.mrf.mxu0
        %5446 = vmatprep.mubr.f32.mxu0 0.0
        %5447 = vmatmul.mubr.f32.gmra.mxu0 %v5345
        %v5448 = vpop.f32.mrf.mxu0
        %v5449 = vadd.f32 %v5320, %v5448
        %v5450 = vpop.f32.mrf.mxu0
        %5451 = vdwg.mxu0
        %v5452 = vld [vmem:[#allocation2 + $0x9] sm:$0xff]
        %v5453 = vld [vmem:[#allocation2 + $0x11] sm:$0xff]
        %v5454 = vld [vmem:[#allocation2 + $0x19] sm:$0xff]
        %v5455 = vld [vmem:[#allocation2 + $0x21] sm:$0xff]
        %v5456 = vld [vmem:[#allocation2 + $0x29] sm:$0xff]
        %v5457 = vld [vmem:[#allocation2 + $0x31] sm:$0xff]
        %v5458 = vld [vmem:[#allocation2 + $0x39] sm:$0xff]
        %v5459 = vld [vmem:[#allocation2 + $0x41] sm:$0xff]
        %v5460 = vsel %vm5153, %v5452, 0.0
        %v5461 = vsel %vm5154, %v5453, 0.0
        %v5462 = vsel %vm5155, %v5454, 0.0
        %v5463 = vsel %vm5156, %v5455, 0.0
        %v5464 = vsel %vm5157, %v5456, 0.0
        %v5465 = vsel %vm5158, %v5457, 0.0
        %v5466 = vsel %vm5159, %v5458, 0.0
        %v5467 = vsel %vm5160, %v5459, 0.0
        %s5468 = scalar_lea.vmem %s5, 64
        %v5469 = vld [vmem:[%s5468] sm:$0xff]
        %v5470 = vld [vmem:[%s5468 + $0x8] sm:$0xff]
        %v5471 = vld [vmem:[%s5468 + $0x10] sm:$0xff]
        %v5472 = vld [vmem:[%s5468 + $0x18] sm:$0xff]
        %v5474 = vsel %vm439, %v5460, 0
        %v5477 = vsel %vm439, %v5461, 0
        %v5480 = vsel %vm439, %v5462, 0
        %v5483 = vsel %vm439, %v5463, 0
        %v5486 = vsel %vm439, %v5464, 0
        %v5489 = vsel %vm439, %v5465, 0
        %v5492 = vsel %vm439, %v5466, 0
        %v5495 = vsel %vm439, %v5467, 0
        %5497 = vmatprep.subr.mxu0 0.0
        %5498 = vmatpush1.msra.mxu0 0.0
        %5499 = vmatprep.subr.mxu0 0.0
        %5500 = vmatpush1.msra.mxu0 0.0
        %5501 = vmatprep.subr.mxu0 0.0
        %5502 = vmatpush1.msra.mxu0 0.0
        %5503 = vmatprep.subr.mxu0 0.0
        %5504 = vmatpush1.msra.mxu0 0.0
        %5505 = vmatprep.subr.mxu0 0.0
        %5506 = vmatpush1.msra.mxu0 0.0
        %5507 = vmatprep.subr.mxu0 0.0
        %5508 = vmatpush1.msra.mxu0 0.0
        %5509 = vmatprep.subr.mxu0 0.0
        %5510 = vmatpush1.msra.mxu0 0.0
        %5511 = vmatprep.subr.mxu0 0.0
        %5512 = vmatpush1.msra.mxu0 0.0
        %5513 = vmatprep.subr.mxu0 0.0
        %5514 = vmatpush1.msra.mxu0 0.0
        %5515 = vmatprep.subr.mxu0 0.0
        %5516 = vmatpush1.msra.mxu0 0.0
        %5517 = vmatprep.subr.mxu0 0.0
        %5518 = vmatpush1.msra.mxu0 0.0
        %5519 = vmatprep.subr.mxu0 0.0
        %5520 = vmatpush1.msra.mxu0 0.0
        %5521 = vmatprep.subr.mxu0 0.0
        %5522 = vmatpush1.msra.mxu0 %v5472
        %5523 = vmatprep.subr.mxu0 0.0
        %5524 = vmatpush1.msra.mxu0 %v5471
        %5525 = vmatprep.subr.mxu0 0.0
        %5526 = vmatpush1.msra.mxu0 %v5470
        %5527 = vmatprep.subr.mxu0 0.0
        %5528 = vmatpush1.msra.mxu0 %v5469
        %5529 = vmatprep.subr.mxu0 0.0
        %5530 = vmatpush2.msra.mxu0 0.0
        %5531 = vmatprep.subr.mxu0 0.0
        %5532 = vmatpush2.msra.mxu0 0.0
        %5533 = vmatprep.subr.mxu0 0.0
        %5534 = vmatpush2.msra.mxu0 0.0
        %5535 = vmatprep.subr.mxu0 0.0
        %5536 = vmatpush2.msra.mxu0 0.0
        %5537 = vmatprep.subr.mxu0 0.0
        %5538 = vmatpush2.msra.mxu0 0.0
        %5539 = vmatprep.subr.mxu0 0.0
        %5540 = vmatpush2.msra.mxu0 0.0
        %5541 = vmatprep.subr.mxu0 0.0
        %5542 = vmatpush2.msra.mxu0 0.0
        %5543 = vmatprep.subr.mxu0 0.0
        %5544 = vmatpush2.msra.mxu0 0.0
        %5545 = vmatprep.subr.mxu0 0.0
        %5546 = vmatpush2.msra.mxu0 0.0
        %5547 = vmatprep.subr.mxu0 0.0
        %5548 = vmatpush2.msra.mxu0 0.0
        %5549 = vmatprep.subr.mxu0 0.0
        %5550 = vmatpush2.msra.mxu0 0.0
        %5551 = vmatprep.subr.mxu0 0.0
        %5552 = vmatpush2.msra.mxu0 0.0
        %5553 = vmatprep.subr.mxu0 0.0
        %5554 = vmatpush2.msra.mxu0 0.0
        %5555 = vmatprep.subr.mxu0 0.0
        %5556 = vmatpush2.msra.mxu0 0.0
        %5557 = vmatprep.subr.mxu0 0.0
        %5558 = vmatpush2.msra.mxu0 0.0
        %5559 = vmatprep.subr.mxu0 0.0
        %5560 = vmatpush2.msra.mxu0 0.0
        %5561 = vmatprep.mubr.f32.mxu0 0.0
        %5562 = vmatmul.mubr.f32.gmra.mxu0 %v5474
        %v5563 = vpop.f32.mrf.mxu0
        %v5564 = vadd.f32 0.0, %v5563
        %v5565 = vpop.f32.mrf.mxu0
        %5566 = vmatprep.mubr.f32.mxu0 0.0
        %5567 = vmatmul.mubr.f32.gmra.mxu0 %v5477
        %v5568 = vpop.f32.mrf.mxu0
        %v5569 = vadd.f32 0.0, %v5568
        %v5570 = vpop.f32.mrf.mxu0
        %5571 = vmatprep.mubr.f32.mxu0 0.0
        %5572 = vmatmul.mubr.f32.gmra.mxu0 %v5480
        %v5573 = vpop.f32.mrf.mxu0
        %v5574 = vadd.f32 0.0, %v5573
        %v5575 = vpop.f32.mrf.mxu0
        %5576 = vmatprep.mubr.f32.mxu0 0.0
        %5577 = vmatmul.mubr.f32.gmra.mxu0 %v5483
        %v5578 = vpop.f32.mrf.mxu0
        %v5579 = vadd.f32 0.0, %v5578
        %v5580 = vpop.f32.mrf.mxu0
        %5581 = vmatprep.mubr.f32.mxu0 0.0
        %5582 = vmatmul.mubr.f32.gmra.mxu0 %v5486
        %v5583 = vpop.f32.mrf.mxu0
        %v5584 = vadd.f32 0.0, %v5583
        %v5585 = vpop.f32.mrf.mxu0
        %5586 = vmatprep.mubr.f32.mxu0 0.0
        %5587 = vmatmul.mubr.f32.gmra.mxu0 %v5489
        %v5588 = vpop.f32.mrf.mxu0
        %v5589 = vadd.f32 0.0, %v5588
        %v5590 = vpop.f32.mrf.mxu0
        %5591 = vmatprep.mubr.f32.mxu0 0.0
        %5592 = vmatmul.mubr.f32.gmra.mxu0 %v5492
        %v5593 = vpop.f32.mrf.mxu0
        %v5594 = vadd.f32 0.0, %v5593
        %v5595 = vpop.f32.mrf.mxu0
        %5596 = vmatprep.mubr.f32.mxu0 0.0
        %5597 = vmatmul.mubr.f32.gmra.mxu0 %v5495
        %v5598 = vpop.f32.mrf.mxu0
        %v5599 = vadd.f32 0.0, %v5598
        %v5600 = vpop.f32.mrf.mxu0
        %5601 = vdwg.mxu0
        %v5602 = vadd.f32 %v5414, %v5564
        %v5603 = vadd.f32 %v5419, %v5569
        %v5604 = vadd.f32 %v5424, %v5574
        %v5605 = vadd.f32 %v5429, %v5579
        %v5606 = vadd.f32 %v5434, %v5584
        %v5607 = vadd.f32 %v5439, %v5589
        %v5608 = vadd.f32 %v5444, %v5594
        %v5609 = vadd.f32 %v5449, %v5599
        %v5610 = vld [vmem:[#allocation2 + $0xf] sm:$0xff]
        %v5611 = vld [vmem:[#allocation2 + $0x17] sm:$0xff]
        %v5612 = vld [vmem:[#allocation2 + $0x1f] sm:$0xff]
        %v5613 = vld [vmem:[#allocation2 + $0x27] sm:$0xff]
        %v5614 = vld [vmem:[#allocation2 + $0x2f] sm:$0xff]
        %v5615 = vld [vmem:[#allocation2 + $0x37] sm:$0xff]
        %v5616 = vld [vmem:[#allocation2 + $0x3f] sm:$0xff]
        %v5617 = vld [vmem:[#allocation2 + $0x47] sm:$0xff]
        %v5618 = vsel %vm5145, %v5610, 0.0
        %v5619 = vsel %vm5146, %v5611, 0.0
        %v5620 = vsel %vm5147, %v5612, 0.0
        %v5621 = vsel %vm5148, %v5613, 0.0
        %v5622 = vsel %vm5149, %v5614, 0.0
        %v5623 = vsel %vm5150, %v5615, 0.0
        %v5624 = vsel %vm5151, %v5616, 0.0
        %v5625 = vsel %vm5152, %v5617, 0.0
        %s5626 = scalar_lea.vmem %s5, 96
        %v5627 = vld [vmem:[%s5626] sm:$0xff]
        %v5628 = vld [vmem:[%s5626 + $0x8] sm:$0xff]
        %v5629 = vld [vmem:[%s5626 + $0x10] sm:$0xff]
        %v5630 = vld [vmem:[%s5626 + $0x18] sm:$0xff]
        %v5632 = vsel %vm439, %v5618, 0
        %v5635 = vsel %vm439, %v5619, 0
        %v5638 = vsel %vm439, %v5620, 0
        %v5641 = vsel %vm439, %v5621, 0
        %v5644 = vsel %vm439, %v5622, 0
        %v5647 = vsel %vm439, %v5623, 0
        %v5650 = vsel %vm439, %v5624, 0
        %v5653 = vsel %vm439, %v5625, 0
        %5655 = vmatprep.subr.mxu0 0.0
        %5656 = vmatpush1.msra.mxu0 0.0
        %5657 = vmatprep.subr.mxu0 0.0
        %5658 = vmatpush1.msra.mxu0 0.0
        %5659 = vmatprep.subr.mxu0 0.0
        %5660 = vmatpush1.msra.mxu0 0.0
        %5661 = vmatprep.subr.mxu0 0.0
        %5662 = vmatpush1.msra.mxu0 0.0
        %5663 = vmatprep.subr.mxu0 0.0
        %5664 = vmatpush1.msra.mxu0 0.0
        %5665 = vmatprep.subr.mxu0 0.0
        %5666 = vmatpush1.msra.mxu0 0.0
        %5667 = vmatprep.subr.mxu0 0.0
        %5668 = vmatpush1.msra.mxu0 0.0
        %5669 = vmatprep.subr.mxu0 0.0
        %5670 = vmatpush1.msra.mxu0 0.0
        %5671 = vmatprep.subr.mxu0 0.0
        %5672 = vmatpush1.msra.mxu0 0.0
        %5673 = vmatprep.subr.mxu0 0.0
        %5674 = vmatpush1.msra.mxu0 0.0
        %5675 = vmatprep.subr.mxu0 0.0
        %5676 = vmatpush1.msra.mxu0 0.0
        %5677 = vmatprep.subr.mxu0 0.0
        %5678 = vmatpush1.msra.mxu0 0.0
        %5679 = vmatprep.subr.mxu0 0.0
        %5680 = vmatpush1.msra.mxu0 %v5630
        %5681 = vmatprep.subr.mxu0 0.0
        %5682 = vmatpush1.msra.mxu0 %v5629
        %5683 = vmatprep.subr.mxu0 0.0
        %5684 = vmatpush1.msra.mxu0 %v5628
        %5685 = vmatprep.subr.mxu0 0.0
        %5686 = vmatpush1.msra.mxu0 %v5627
        %5687 = vmatprep.subr.mxu0 0.0
        %5688 = vmatpush2.msra.mxu0 0.0
        %5689 = vmatprep.subr.mxu0 0.0
        %5690 = vmatpush2.msra.mxu0 0.0
        %5691 = vmatprep.subr.mxu0 0.0
        %5692 = vmatpush2.msra.mxu0 0.0
        %5693 = vmatprep.subr.mxu0 0.0
        %5694 = vmatpush2.msra.mxu0 0.0
        %5695 = vmatprep.subr.mxu0 0.0
        %5696 = vmatpush2.msra.mxu0 0.0
        %5697 = vmatprep.subr.mxu0 0.0
        %5698 = vmatpush2.msra.mxu0 0.0
        %5699 = vmatprep.subr.mxu0 0.0
        %5700 = vmatpush2.msra.mxu0 0.0
        %5701 = vmatprep.subr.mxu0 0.0
        %5702 = vmatpush2.msra.mxu0 0.0
        %5703 = vmatprep.subr.mxu0 0.0
        %5704 = vmatpush2.msra.mxu0 0.0
        %5705 = vmatprep.subr.mxu0 0.0
        %5706 = vmatpush2.msra.mxu0 0.0
        %5707 = vmatprep.subr.mxu0 0.0
        %5708 = vmatpush2.msra.mxu0 0.0
        %5709 = vmatprep.subr.mxu0 0.0
        %5710 = vmatpush2.msra.mxu0 0.0
        %5711 = vmatprep.subr.mxu0 0.0
        %5712 = vmatpush2.msra.mxu0 0.0
        %5713 = vmatprep.subr.mxu0 0.0
        %5714 = vmatpush2.msra.mxu0 0.0
        %5715 = vmatprep.subr.mxu0 0.0
        %5716 = vmatpush2.msra.mxu0 0.0
        %5717 = vmatprep.subr.mxu0 0.0
        %5718 = vmatpush2.msra.mxu0 0.0
        %5719 = vmatprep.mubr.f32.mxu0 0.0
        %5720 = vmatmul.mubr.f32.gmra.mxu0 %v5632
        %v5721 = vpop.f32.mrf.mxu0
        %v5722 = vadd.f32 0.0, %v5721
        %v5723 = vpop.f32.mrf.mxu0
        %5724 = vmatprep.mubr.f32.mxu0 0.0
        %5725 = vmatmul.mubr.f32.gmra.mxu0 %v5635
        %v5726 = vpop.f32.mrf.mxu0
        %v5727 = vadd.f32 0.0, %v5726
        %v5728 = vpop.f32.mrf.mxu0
        %5729 = vmatprep.mubr.f32.mxu0 0.0
        %5730 = vmatmul.mubr.f32.gmra.mxu0 %v5638
        %v5731 = vpop.f32.mrf.mxu0
        %v5732 = vadd.f32 0.0, %v5731
        %v5733 = vpop.f32.mrf.mxu0
        %5734 = vmatprep.mubr.f32.mxu0 0.0
        %5735 = vmatmul.mubr.f32.gmra.mxu0 %v5641
        %v5736 = vpop.f32.mrf.mxu0
        %v5737 = vadd.f32 0.0, %v5736
        %v5738 = vpop.f32.mrf.mxu0
        %5739 = vmatprep.mubr.f32.mxu0 0.0
        %5740 = vmatmul.mubr.f32.gmra.mxu0 %v5644
        %v5741 = vpop.f32.mrf.mxu0
        %v5742 = vadd.f32 0.0, %v5741
        %v5743 = vpop.f32.mrf.mxu0
        %5744 = vmatprep.mubr.f32.mxu0 0.0
        %5745 = vmatmul.mubr.f32.gmra.mxu0 %v5647
        %v5746 = vpop.f32.mrf.mxu0
        %v5747 = vadd.f32 0.0, %v5746
        %v5748 = vpop.f32.mrf.mxu0
        %5749 = vmatprep.mubr.f32.mxu0 0.0
        %5750 = vmatmul.mubr.f32.gmra.mxu0 %v5650
        %v5751 = vpop.f32.mrf.mxu0
        %v5752 = vadd.f32 0.0, %v5751
        %v5753 = vpop.f32.mrf.mxu0
        %5754 = vmatprep.mubr.f32.mxu0 0.0
        %5755 = vmatmul.mubr.f32.gmra.mxu0 %v5653
        %v5756 = vpop.f32.mrf.mxu0
        %v5757 = vadd.f32 0.0, %v5756
        %v5758 = vpop.f32.mrf.mxu0
        %5759 = vdwg.mxu0
        %v5760 = vadd.f32 %v5602, %v5722
        %v5761 = vadd.f32 %v5603, %v5727
        %v5762 = vadd.f32 %v5604, %v5732
        %v5763 = vadd.f32 %v5605, %v5737
        %v5764 = vadd.f32 %v5606, %v5742
        %v5765 = vadd.f32 %v5607, %v5747
        %v5766 = vadd.f32 %v5608, %v5752
        %v5767 = vadd.f32 %v5609, %v5757
        %v5768 = vld [vmem:[#allocation2 + $0x10] sm:$0xff]
        %v5769 = vld [vmem:[#allocation2 + $0x18] sm:$0xff]
        %v5770 = vld [vmem:[#allocation2 + $0x20] sm:$0xff]
        %v5771 = vld [vmem:[#allocation2 + $0x28] sm:$0xff]
        %v5772 = vld [vmem:[#allocation2 + $0x30] sm:$0xff]
        %v5773 = vld [vmem:[#allocation2 + $0x38] sm:$0xff]
        %v5774 = vld [vmem:[#allocation2 + $0x40] sm:$0xff]
        %v5775 = vld [vmem:[#allocation2 + $0x48] sm:$0xff]
        %s5776 = scalar_lea.vmem %s5, 128
        %v5777 = vld [vmem:[%s5776] sm:$0xff]
        %v5778 = vld [vmem:[%s5776 + $0x8] sm:$0xff]
        %v5779 = vld [vmem:[%s5776 + $0x10] sm:$0xff]
        %v5780 = vld [vmem:[%s5776 + $0x18] sm:$0xff]
        %v5782 = vsel %vm439, %v5768, 0
        %v5785 = vsel %vm439, %v5769, 0
        %v5788 = vsel %vm439, %v5770, 0
        %v5791 = vsel %vm439, %v5771, 0
        %v5794 = vsel %vm439, %v5772, 0
        %v5797 = vsel %vm439, %v5773, 0
        %v5800 = vsel %vm439, %v5774, 0
        %v5803 = vsel %vm439, %v5775, 0
        %5805 = vmatprep.subr.mxu0 0.0
        %5806 = vmatpush1.msra.mxu0 0.0
        %5807 = vmatprep.subr.mxu0 0.0
        %5808 = vmatpush1.msra.mxu0 0.0
        %5809 = vmatprep.subr.mxu0 0.0
        %5810 = vmatpush1.msra.mxu0 0.0
        %5811 = vmatprep.subr.mxu0 0.0
        %5812 = vmatpush1.msra.mxu0 0.0
        %5813 = vmatprep.subr.mxu0 0.0
        %5814 = vmatpush1.msra.mxu0 0.0
        %5815 = vmatprep.subr.mxu0 0.0
        %5816 = vmatpush1.msra.mxu0 0.0
        %5817 = vmatprep.subr.mxu0 0.0
        %5818 = vmatpush1.msra.mxu0 0.0
        %5819 = vmatprep.subr.mxu0 0.0
        %5820 = vmatpush1.msra.mxu0 0.0
        %5821 = vmatprep.subr.mxu0 0.0
        %5822 = vmatpush1.msra.mxu0 0.0
        %5823 = vmatprep.subr.mxu0 0.0
        %5824 = vmatpush1.msra.mxu0 0.0
        %5825 = vmatprep.subr.mxu0 0.0
        %5826 = vmatpush1.msra.mxu0 0.0
        %5827 = vmatprep.subr.mxu0 0.0
        %5828 = vmatpush1.msra.mxu0 0.0
        %5829 = vmatprep.subr.mxu0 0.0
        %5830 = vmatpush1.msra.mxu0 %v5780
        %5831 = vmatprep.subr.mxu0 0.0
        %5832 = vmatpush1.msra.mxu0 %v5779
        %5833 = vmatprep.subr.mxu0 0.0
        %5834 = vmatpush1.msra.mxu0 %v5778
        %5835 = vmatprep.subr.mxu0 0.0
        %5836 = vmatpush1.msra.mxu0 %v5777
        %5837 = vmatprep.subr.mxu0 0.0
        %5838 = vmatpush2.msra.mxu0 0.0
        %5839 = vmatprep.subr.mxu0 0.0
        %5840 = vmatpush2.msra.mxu0 0.0
        %5841 = vmatprep.subr.mxu0 0.0
        %5842 = vmatpush2.msra.mxu0 0.0
        %5843 = vmatprep.subr.mxu0 0.0
        %5844 = vmatpush2.msra.mxu0 0.0
        %5845 = vmatprep.subr.mxu0 0.0
        %5846 = vmatpush2.msra.mxu0 0.0
        %5847 = vmatprep.subr.mxu0 0.0
        %5848 = vmatpush2.msra.mxu0 0.0
        %5849 = vmatprep.subr.mxu0 0.0
        %5850 = vmatpush2.msra.mxu0 0.0
        %5851 = vmatprep.subr.mxu0 0.0
        %5852 = vmatpush2.msra.mxu0 0.0
        %5853 = vmatprep.subr.mxu0 0.0
        %5854 = vmatpush2.msra.mxu0 0.0
        %5855 = vmatprep.subr.mxu0 0.0
        %5856 = vmatpush2.msra.mxu0 0.0
        %5857 = vmatprep.subr.mxu0 0.0
        %5858 = vmatpush2.msra.mxu0 0.0
        %5859 = vmatprep.subr.mxu0 0.0
        %5860 = vmatpush2.msra.mxu0 0.0
        %5861 = vmatprep.subr.mxu0 0.0
        %5862 = vmatpush2.msra.mxu0 0.0
        %5863 = vmatprep.subr.mxu0 0.0
        %5864 = vmatpush2.msra.mxu0 0.0
        %5865 = vmatprep.subr.mxu0 0.0
        %5866 = vmatpush2.msra.mxu0 0.0
        %5867 = vmatprep.subr.mxu0 0.0
        %5868 = vmatpush2.msra.mxu0 0.0
        %5869 = vmatprep.mubr.f32.mxu0 0.0
        %5870 = vmatmul.mubr.f32.gmra.mxu0 %v5782
        %v5871 = vpop.f32.mrf.mxu0
        %v5872 = vadd.f32 0.0, %v5871
        %v5873 = vpop.f32.mrf.mxu0
        %5874 = vmatprep.mubr.f32.mxu0 0.0
        %5875 = vmatmul.mubr.f32.gmra.mxu0 %v5785
        %v5876 = vpop.f32.mrf.mxu0
        %v5877 = vadd.f32 0.0, %v5876
        %v5878 = vpop.f32.mrf.mxu0
        %5879 = vmatprep.mubr.f32.mxu0 0.0
        %5880 = vmatmul.mubr.f32.gmra.mxu0 %v5788
        %v5881 = vpop.f32.mrf.mxu0
        %v5882 = vadd.f32 0.0, %v5881
        %v5883 = vpop.f32.mrf.mxu0
        %5884 = vmatprep.mubr.f32.mxu0 0.0
        %5885 = vmatmul.mubr.f32.gmra.mxu0 %v5791
        %v5886 = vpop.f32.mrf.mxu0
        %v5887 = vadd.f32 0.0, %v5886
        %v5888 = vpop.f32.mrf.mxu0
        %5889 = vmatprep.mubr.f32.mxu0 0.0
        %5890 = vmatmul.mubr.f32.gmra.mxu0 %v5794
        %v5891 = vpop.f32.mrf.mxu0
        %v5892 = vadd.f32 0.0, %v5891
        %v5893 = vpop.f32.mrf.mxu0
        %5894 = vmatprep.mubr.f32.mxu0 0.0
        %5895 = vmatmul.mubr.f32.gmra.mxu0 %v5797
        %v5896 = vpop.f32.mrf.mxu0
        %v5897 = vadd.f32 0.0, %v5896
        %v5898 = vpop.f32.mrf.mxu0
        %5899 = vmatprep.mubr.f32.mxu0 0.0
        %5900 = vmatmul.mubr.f32.gmra.mxu0 %v5800
        %v5901 = vpop.f32.mrf.mxu0
        %v5902 = vadd.f32 0.0, %v5901
        %v5903 = vpop.f32.mrf.mxu0
        %5904 = vmatprep.mubr.f32.mxu0 0.0
        %5905 = vmatmul.mubr.f32.gmra.mxu0 %v5803
        %v5906 = vpop.f32.mrf.mxu0
        %v5907 = vadd.f32 0.0, %v5906
        %v5908 = vpop.f32.mrf.mxu0
        %5909 = vdwg.mxu0
        %v5910 = vadd.f32 %v5760, %v5872
        %v5911 = vadd.f32 %v5761, %v5877
        %v5912 = vadd.f32 %v5762, %v5882
        %v5913 = vadd.f32 %v5763, %v5887
        %v5914 = vadd.f32 %v5764, %v5892
        %v5915 = vadd.f32 %v5765, %v5897
        %v5916 = vadd.f32 %v5766, %v5902
        %v5917 = vadd.f32 %v5767, %v5907
        %v5918 = vld [vmem:[#allocation2 + $0x11] sm:$0xff]
        %v5919 = vld [vmem:[#allocation2 + $0x19] sm:$0xff]
        %v5920 = vld [vmem:[#allocation2 + $0x21] sm:$0xff]
        %v5921 = vld [vmem:[#allocation2 + $0x29] sm:$0xff]
        %v5922 = vld [vmem:[#allocation2 + $0x31] sm:$0xff]
        %v5923 = vld [vmem:[#allocation2 + $0x39] sm:$0xff]
        %v5924 = vld [vmem:[#allocation2 + $0x41] sm:$0xff]
        %v5925 = vld [vmem:[#allocation2 + $0x49] sm:$0xff]
        %v5926 = vsel %vm5153, %v5918, 0.0
        %v5927 = vsel %vm5154, %v5919, 0.0
        %v5928 = vsel %vm5155, %v5920, 0.0
        %v5929 = vsel %vm5156, %v5921, 0.0
        %v5930 = vsel %vm5157, %v5922, 0.0
        %v5931 = vsel %vm5158, %v5923, 0.0
        %v5932 = vsel %vm5159, %v5924, 0.0
        %v5933 = vsel %vm5160, %v5925, 0.0
        %s5934 = scalar_lea.vmem %s5, 160
        %v5935 = vld [vmem:[%s5934] sm:$0xff]
        %v5936 = vld [vmem:[%s5934 + $0x8] sm:$0xff]
        %v5937 = vld [vmem:[%s5934 + $0x10] sm:$0xff]
        %v5938 = vld [vmem:[%s5934 + $0x18] sm:$0xff]
        %v5940 = vsel %vm439, %v5926, 0
        %v5943 = vsel %vm439, %v5927, 0
        %v5946 = vsel %vm439, %v5928, 0
        %v5949 = vsel %vm439, %v5929, 0
        %v5952 = vsel %vm439, %v5930, 0
        %v5955 = vsel %vm439, %v5931, 0
        %v5958 = vsel %vm439, %v5932, 0
        %v5961 = vsel %vm439, %v5933, 0
        %5963 = vmatprep.subr.mxu0 0.0
        %5964 = vmatpush1.msra.mxu0 0.0
        %5965 = vmatprep.subr.mxu0 0.0
        %5966 = vmatpush1.msra.mxu0 0.0
        %5967 = vmatprep.subr.mxu0 0.0
        %5968 = vmatpush1.msra.mxu0 0.0
        %5969 = vmatprep.subr.mxu0 0.0
        %5970 = vmatpush1.msra.mxu0 0.0
        %5971 = vmatprep.subr.mxu0 0.0
        %5972 = vmatpush1.msra.mxu0 0.0
        %5973 = vmatprep.subr.mxu0 0.0
        %5974 = vmatpush1.msra.mxu0 0.0
        %5975 = vmatprep.subr.mxu0 0.0
        %5976 = vmatpush1.msra.mxu0 0.0
        %5977 = vmatprep.subr.mxu0 0.0
        %5978 = vmatpush1.msra.mxu0 0.0
        %5979 = vmatprep.subr.mxu0 0.0
        %5980 = vmatpush1.msra.mxu0 0.0
        %5981 = vmatprep.subr.mxu0 0.0
        %5982 = vmatpush1.msra.mxu0 0.0
        %5983 = vmatprep.subr.mxu0 0.0
        %5984 = vmatpush1.msra.mxu0 0.0
        %5985 = vmatprep.subr.mxu0 0.0
        %5986 = vmatpush1.msra.mxu0 0.0
        %5987 = vmatprep.subr.mxu0 0.0
        %5988 = vmatpush1.msra.mxu0 %v5938
        %5989 = vmatprep.subr.mxu0 0.0
        %5990 = vmatpush1.msra.mxu0 %v5937
        %5991 = vmatprep.subr.mxu0 0.0
        %5992 = vmatpush1.msra.mxu0 %v5936
        %5993 = vmatprep.subr.mxu0 0.0
        %5994 = vmatpush1.msra.mxu0 %v5935
        %5995 = vmatprep.subr.mxu0 0.0
        %5996 = vmatpush2.msra.mxu0 0.0
        %5997 = vmatprep.subr.mxu0 0.0
        %5998 = vmatpush2.msra.mxu0 0.0
        %5999 = vmatprep.subr.mxu0 0.0
        %6000 = vmatpush2.msra.mxu0 0.0
        %6001 = vmatprep.subr.mxu0 0.0
        %6002 = vmatpush2.msra.mxu0 0.0
        %6003 = vmatprep.subr.mxu0 0.0
        %6004 = vmatpush2.msra.mxu0 0.0
        %6005 = vmatprep.subr.mxu0 0.0
        %6006 = vmatpush2.msra.mxu0 0.0
        %6007 = vmatprep.subr.mxu0 0.0
        %6008 = vmatpush2.msra.mxu0 0.0
        %6009 = vmatprep.subr.mxu0 0.0
        %6010 = vmatpush2.msra.mxu0 0.0
        %6011 = vmatprep.subr.mxu0 0.0
        %6012 = vmatpush2.msra.mxu0 0.0
        %6013 = vmatprep.subr.mxu0 0.0
        %6014 = vmatpush2.msra.mxu0 0.0
        %6015 = vmatprep.subr.mxu0 0.0
        %6016 = vmatpush2.msra.mxu0 0.0
        %6017 = vmatprep.subr.mxu0 0.0
        %6018 = vmatpush2.msra.mxu0 0.0
        %6019 = vmatprep.subr.mxu0 0.0
        %6020 = vmatpush2.msra.mxu0 0.0
        %6021 = vmatprep.subr.mxu0 0.0
        %6022 = vmatpush2.msra.mxu0 0.0
        %6023 = vmatprep.subr.mxu0 0.0
        %6024 = vmatpush2.msra.mxu0 0.0
        %6025 = vmatprep.subr.mxu0 0.0
        %6026 = vmatpush2.msra.mxu0 0.0
        %6027 = vmatprep.mubr.f32.mxu0 0.0
        %6028 = vmatmul.mubr.f32.gmra.mxu0 %v5940
        %v6029 = vpop.f32.mrf.mxu0
        %v6030 = vadd.f32 0.0, %v6029
        %v6031 = vpop.f32.mrf.mxu0
        %6032 = vmatprep.mubr.f32.mxu0 0.0
        %6033 = vmatmul.mubr.f32.gmra.mxu0 %v5943
        %v6034 = vpop.f32.mrf.mxu0
        %v6035 = vadd.f32 0.0, %v6034
        %v6036 = vpop.f32.mrf.mxu0
        %6037 = vmatprep.mubr.f32.mxu0 0.0
        %6038 = vmatmul.mubr.f32.gmra.mxu0 %v5946
        %v6039 = vpop.f32.mrf.mxu0
        %v6040 = vadd.f32 0.0, %v6039
        %v6041 = vpop.f32.mrf.mxu0
        %6042 = vmatprep.mubr.f32.mxu0 0.0
        %6043 = vmatmul.mubr.f32.gmra.mxu0 %v5949
        %v6044 = vpop.f32.mrf.mxu0
        %v6045 = vadd.f32 0.0, %v6044
        %v6046 = vpop.f32.mrf.mxu0
        %6047 = vmatprep.mubr.f32.mxu0 0.0
        %6048 = vmatmul.mubr.f32.gmra.mxu0 %v5952
        %v6049 = vpop.f32.mrf.mxu0
        %v6050 = vadd.f32 0.0, %v6049
        %v6051 = vpop.f32.mrf.mxu0
        %6052 = vmatprep.mubr.f32.mxu0 0.0
        %6053 = vmatmul.mubr.f32.gmra.mxu0 %v5955
        %v6054 = vpop.f32.mrf.mxu0
        %v6055 = vadd.f32 0.0, %v6054
        %v6056 = vpop.f32.mrf.mxu0
        %6057 = vmatprep.mubr.f32.mxu0 0.0
        %6058 = vmatmul.mubr.f32.gmra.mxu0 %v5958
        %v6059 = vpop.f32.mrf.mxu0
        %v6060 = vadd.f32 0.0, %v6059
        %v6061 = vpop.f32.mrf.mxu0
        %6062 = vmatprep.mubr.f32.mxu0 0.0
        %6063 = vmatmul.mubr.f32.gmra.mxu0 %v5961
        %v6064 = vpop.f32.mrf.mxu0
        %v6065 = vadd.f32 0.0, %v6064
        %v6066 = vpop.f32.mrf.mxu0
        %6067 = vdwg.mxu0
        %v6068 = vadd.f32 %v5910, %v6030
        %v6069 = vadd.f32 %v5911, %v6035
        %v6070 = vadd.f32 %v5912, %v6040
        %v6071 = vadd.f32 %v5913, %v6045
        %v6072 = vadd.f32 %v5914, %v6050
        %v6073 = vadd.f32 %v5915, %v6055
        %v6074 = vadd.f32 %v5916, %v6060
        %v6075 = vadd.f32 %v5917, %v6065
        %v6076 = vld [vmem:[#allocation2 + $0x17] sm:$0xff]
        %v6077 = vld [vmem:[#allocation2 + $0x1f] sm:$0xff]
        %v6078 = vld [vmem:[#allocation2 + $0x27] sm:$0xff]
        %v6079 = vld [vmem:[#allocation2 + $0x2f] sm:$0xff]
        %v6080 = vld [vmem:[#allocation2 + $0x37] sm:$0xff]
        %v6081 = vld [vmem:[#allocation2 + $0x3f] sm:$0xff]
        %v6082 = vld [vmem:[#allocation2 + $0x47] sm:$0xff]
        %v6083 = vld [vmem:[#allocation2 + $0x4f] sm:$0xff]
        %v6084 = vsel %vm5145, %v6076, 0.0
        %v6085 = vsel %vm5146, %v6077, 0.0
        %v6086 = vsel %vm5147, %v6078, 0.0
        %v6087 = vsel %vm5148, %v6079, 0.0
        %v6088 = vsel %vm5149, %v6080, 0.0
        %v6089 = vsel %vm5150, %v6081, 0.0
        %v6090 = vsel %vm5151, %v6082, 0.0
        %v6091 = vsel %vm5152, %v6083, 0.0
        %s6092 = scalar_lea.vmem %s5, 192
        %v6093 = vld [vmem:[%s6092] sm:$0xff]
        %v6094 = vld [vmem:[%s6092 + $0x8] sm:$0xff]
        %v6095 = vld [vmem:[%s6092 + $0x10] sm:$0xff]
        %v6096 = vld [vmem:[%s6092 + $0x18] sm:$0xff]
        %v6098 = vsel %vm439, %v6084, 0
        %v6101 = vsel %vm439, %v6085, 0
        %v6104 = vsel %vm439, %v6086, 0
        %v6107 = vsel %vm439, %v6087, 0
        %v6110 = vsel %vm439, %v6088, 0
        %v6113 = vsel %vm439, %v6089, 0
        %v6116 = vsel %vm439, %v6090, 0
        %v6119 = vsel %vm439, %v6091, 0
        %6121 = vmatprep.subr.mxu0 0.0
        %6122 = vmatpush1.msra.mxu0 0.0
        %6123 = vmatprep.subr.mxu0 0.0
        %6124 = vmatpush1.msra.mxu0 0.0
        %6125 = vmatprep.subr.mxu0 0.0
        %6126 = vmatpush1.msra.mxu0 0.0
        %6127 = vmatprep.subr.mxu0 0.0
        %6128 = vmatpush1.msra.mxu0 0.0
        %6129 = vmatprep.subr.mxu0 0.0
        %6130 = vmatpush1.msra.mxu0 0.0
        %6131 = vmatprep.subr.mxu0 0.0
        %6132 = vmatpush1.msra.mxu0 0.0
        %6133 = vmatprep.subr.mxu0 0.0
        %6134 = vmatpush1.msra.mxu0 0.0
        %6135 = vmatprep.subr.mxu0 0.0
        %6136 = vmatpush1.msra.mxu0 0.0
        %6137 = vmatprep.subr.mxu0 0.0
        %6138 = vmatpush1.msra.mxu0 0.0
        %6139 = vmatprep.subr.mxu0 0.0
        %6140 = vmatpush1.msra.mxu0 0.0
        %6141 = vmatprep.subr.mxu0 0.0
        %6142 = vmatpush1.msra.mxu0 0.0
        %6143 = vmatprep.subr.mxu0 0.0
        %6144 = vmatpush1.msra.mxu0 0.0
        %6145 = vmatprep.subr.mxu0 0.0
        %6146 = vmatpush1.msra.mxu0 %v6096
        %6147 = vmatprep.subr.mxu0 0.0
        %6148 = vmatpush1.msra.mxu0 %v6095
        %6149 = vmatprep.subr.mxu0 0.0
        %6150 = vmatpush1.msra.mxu0 %v6094
        %6151 = vmatprep.subr.mxu0 0.0
        %6152 = vmatpush1.msra.mxu0 %v6093
        %6153 = vmatprep.subr.mxu0 0.0
        %6154 = vmatpush2.msra.mxu0 0.0
        %6155 = vmatprep.subr.mxu0 0.0
        %6156 = vmatpush2.msra.mxu0 0.0
        %6157 = vmatprep.subr.mxu0 0.0
        %6158 = vmatpush2.msra.mxu0 0.0
        %6159 = vmatprep.subr.mxu0 0.0
        %6160 = vmatpush2.msra.mxu0 0.0
        %6161 = vmatprep.subr.mxu0 0.0
        %6162 = vmatpush2.msra.mxu0 0.0
        %6163 = vmatprep.subr.mxu0 0.0
        %6164 = vmatpush2.msra.mxu0 0.0
        %6165 = vmatprep.subr.mxu0 0.0
        %6166 = vmatpush2.msra.mxu0 0.0
        %6167 = vmatprep.subr.mxu0 0.0
        %6168 = vmatpush2.msra.mxu0 0.0
        %6169 = vmatprep.subr.mxu0 0.0
        %6170 = vmatpush2.msra.mxu0 0.0
        %6171 = vmatprep.subr.mxu0 0.0
        %6172 = vmatpush2.msra.mxu0 0.0
        %6173 = vmatprep.subr.mxu0 0.0
        %6174 = vmatpush2.msra.mxu0 0.0
        %6175 = vmatprep.subr.mxu0 0.0
        %6176 = vmatpush2.msra.mxu0 0.0
        %6177 = vmatprep.subr.mxu0 0.0
        %6178 = vmatpush2.msra.mxu0 0.0
        %6179 = vmatprep.subr.mxu0 0.0
        %6180 = vmatpush2.msra.mxu0 0.0
        %6181 = vmatprep.subr.mxu0 0.0
        %6182 = vmatpush2.msra.mxu0 0.0
        %6183 = vmatprep.subr.mxu0 0.0
        %6184 = vmatpush2.msra.mxu0 0.0
        %6185 = vmatprep.mubr.f32.mxu0 0.0
        %6186 = vmatmul.mubr.f32.gmra.mxu0 %v6098
        %v6187 = vpop.f32.mrf.mxu0
        %v6188 = vadd.f32 0.0, %v6187
        %v6189 = vpop.f32.mrf.mxu0
        %6190 = vmatprep.mubr.f32.mxu0 0.0
        %6191 = vmatmul.mubr.f32.gmra.mxu0 %v6101
        %v6192 = vpop.f32.mrf.mxu0
        %v6193 = vadd.f32 0.0, %v6192
        %v6194 = vpop.f32.mrf.mxu0
        %6195 = vmatprep.mubr.f32.mxu0 0.0
        %6196 = vmatmul.mubr.f32.gmra.mxu0 %v6104
        %v6197 = vpop.f32.mrf.mxu0
        %v6198 = vadd.f32 0.0, %v6197
        %v6199 = vpop.f32.mrf.mxu0
        %6200 = vmatprep.mubr.f32.mxu0 0.0
        %6201 = vmatmul.mubr.f32.gmra.mxu0 %v6107
        %v6202 = vpop.f32.mrf.mxu0
        %v6203 = vadd.f32 0.0, %v6202
        %v6204 = vpop.f32.mrf.mxu0
        %6205 = vmatprep.mubr.f32.mxu0 0.0
        %6206 = vmatmul.mubr.f32.gmra.mxu0 %v6110
        %v6207 = vpop.f32.mrf.mxu0
        %v6208 = vadd.f32 0.0, %v6207
        %v6209 = vpop.f32.mrf.mxu0
        %6210 = vmatprep.mubr.f32.mxu0 0.0
        %6211 = vmatmul.mubr.f32.gmra.mxu0 %v6113
        %v6212 = vpop.f32.mrf.mxu0
        %v6213 = vadd.f32 0.0, %v6212
        %v6214 = vpop.f32.mrf.mxu0
        %6215 = vmatprep.mubr.f32.mxu0 0.0
        %6216 = vmatmul.mubr.f32.gmra.mxu0 %v6116
        %v6217 = vpop.f32.mrf.mxu0
        %v6218 = vadd.f32 0.0, %v6217
        %v6219 = vpop.f32.mrf.mxu0
        %6220 = vmatprep.mubr.f32.mxu0 0.0
        %6221 = vmatmul.mubr.f32.gmra.mxu0 %v6119
        %v6222 = vpop.f32.mrf.mxu0
        %v6223 = vadd.f32 0.0, %v6222
        %v6224 = vpop.f32.mrf.mxu0
        %6225 = vdwg.mxu0
        %v6226 = vadd.f32 %v6068, %v6188
        %v6227 = vadd.f32 %v6069, %v6193
        %v6228 = vadd.f32 %v6070, %v6198
        %v6229 = vadd.f32 %v6071, %v6203
        %v6230 = vadd.f32 %v6072, %v6208
        %v6231 = vadd.f32 %v6073, %v6213
        %v6232 = vadd.f32 %v6074, %v6218
        %v6233 = vadd.f32 %v6075, %v6223
        %v6234 = vld [vmem:[#allocation2 + $0x18] sm:$0xff]
        %v6235 = vld [vmem:[#allocation2 + $0x20] sm:$0xff]
        %v6236 = vld [vmem:[#allocation2 + $0x28] sm:$0xff]
        %v6237 = vld [vmem:[#allocation2 + $0x30] sm:$0xff]
        %v6238 = vld [vmem:[#allocation2 + $0x38] sm:$0xff]
        %v6239 = vld [vmem:[#allocation2 + $0x40] sm:$0xff]
        %v6240 = vld [vmem:[#allocation2 + $0x48] sm:$0xff]
        %v6241 = vld [vmem:[#allocation2 + $0x50] sm:$0xff]
        %s6242 = scalar_lea.vmem %s5, 224
        %v6243 = vld [vmem:[%s6242] sm:$0xff]
        %v6244 = vld [vmem:[%s6242 + $0x8] sm:$0xff]
        %v6245 = vld [vmem:[%s6242 + $0x10] sm:$0xff]
        %v6246 = vld [vmem:[%s6242 + $0x18] sm:$0xff]
        %v6248 = vsel %vm439, %v6234, 0
        %v6251 = vsel %vm439, %v6235, 0
        %v6254 = vsel %vm439, %v6236, 0
        %v6257 = vsel %vm439, %v6237, 0
        %v6260 = vsel %vm439, %v6238, 0
        %v6263 = vsel %vm439, %v6239, 0
        %v6266 = vsel %vm439, %v6240, 0
        %v6269 = vsel %vm439, %v6241, 0
        %6271 = vmatprep.subr.mxu0 0.0
        %6272 = vmatpush1.msra.mxu0 0.0
        %6273 = vmatprep.subr.mxu0 0.0
        %6274 = vmatpush1.msra.mxu0 0.0
        %6275 = vmatprep.subr.mxu0 0.0
        %6276 = vmatpush1.msra.mxu0 0.0
        %6277 = vmatprep.subr.mxu0 0.0
        %6278 = vmatpush1.msra.mxu0 0.0
        %6279 = vmatprep.subr.mxu0 0.0
        %6280 = vmatpush1.msra.mxu0 0.0
        %6281 = vmatprep.subr.mxu0 0.0
        %6282 = vmatpush1.msra.mxu0 0.0
        %6283 = vmatprep.subr.mxu0 0.0
        %6284 = vmatpush1.msra.mxu0 0.0
        %6285 = vmatprep.subr.mxu0 0.0
        %6286 = vmatpush1.msra.mxu0 0.0
        %6287 = vmatprep.subr.mxu0 0.0
        %6288 = vmatpush1.msra.mxu0 0.0
        %6289 = vmatprep.subr.mxu0 0.0
        %6290 = vmatpush1.msra.mxu0 0.0
        %6291 = vmatprep.subr.mxu0 0.0
        %6292 = vmatpush1.msra.mxu0 0.0
        %6293 = vmatprep.subr.mxu0 0.0
        %6294 = vmatpush1.msra.mxu0 0.0
        %6295 = vmatprep.subr.mxu0 0.0
        %6296 = vmatpush1.msra.mxu0 %v6246
        %6297 = vmatprep.subr.mxu0 0.0
        %6298 = vmatpush1.msra.mxu0 %v6245
        %6299 = vmatprep.subr.mxu0 0.0
        %6300 = vmatpush1.msra.mxu0 %v6244
        %6301 = vmatprep.subr.mxu0 0.0
        %6302 = vmatpush1.msra.mxu0 %v6243
        %6303 = vmatprep.subr.mxu0 0.0
        %6304 = vmatpush2.msra.mxu0 0.0
        %6305 = vmatprep.subr.mxu0 0.0
        %6306 = vmatpush2.msra.mxu0 0.0
        %6307 = vmatprep.subr.mxu0 0.0
        %6308 = vmatpush2.msra.mxu0 0.0
        %6309 = vmatprep.subr.mxu0 0.0
        %6310 = vmatpush2.msra.mxu0 0.0
        %6311 = vmatprep.subr.mxu0 0.0
        %6312 = vmatpush2.msra.mxu0 0.0
        %6313 = vmatprep.subr.mxu0 0.0
        %6314 = vmatpush2.msra.mxu0 0.0
        %6315 = vmatprep.subr.mxu0 0.0
        %6316 = vmatpush2.msra.mxu0 0.0
        %6317 = vmatprep.subr.mxu0 0.0
        %6318 = vmatpush2.msra.mxu0 0.0
        %6319 = vmatprep.subr.mxu0 0.0
        %6320 = vmatpush2.msra.mxu0 0.0
        %6321 = vmatprep.subr.mxu0 0.0
        %6322 = vmatpush2.msra.mxu0 0.0
        %6323 = vmatprep.subr.mxu0 0.0
        %6324 = vmatpush2.msra.mxu0 0.0
        %6325 = vmatprep.subr.mxu0 0.0
        %6326 = vmatpush2.msra.mxu0 0.0
        %6327 = vmatprep.subr.mxu0 0.0
        %6328 = vmatpush2.msra.mxu0 0.0
        %6329 = vmatprep.subr.mxu0 0.0
        %6330 = vmatpush2.msra.mxu0 0.0
        %6331 = vmatprep.subr.mxu0 0.0
        %6332 = vmatpush2.msra.mxu0 0.0
        %6333 = vmatprep.subr.mxu0 0.0
        %6334 = vmatpush2.msra.mxu0 0.0
        %6335 = vmatprep.mubr.f32.mxu0 0.0
        %6336 = vmatmul.mubr.f32.gmra.mxu0 %v6248
        %v6337 = vpop.f32.mrf.mxu0
        %v6338 = vadd.f32 0.0, %v6337
        %v6339 = vpop.f32.mrf.mxu0
        %6340 = vmatprep.mubr.f32.mxu0 0.0
        %6341 = vmatmul.mubr.f32.gmra.mxu0 %v6251
        %v6342 = vpop.f32.mrf.mxu0
        %v6343 = vadd.f32 0.0, %v6342
        %v6344 = vpop.f32.mrf.mxu0
        %6345 = vmatprep.mubr.f32.mxu0 0.0
        %6346 = vmatmul.mubr.f32.gmra.mxu0 %v6254
        %v6347 = vpop.f32.mrf.mxu0
        %v6348 = vadd.f32 0.0, %v6347
        %v6349 = vpop.f32.mrf.mxu0
        %6350 = vmatprep.mubr.f32.mxu0 0.0
        %6351 = vmatmul.mubr.f32.gmra.mxu0 %v6257
        %v6352 = vpop.f32.mrf.mxu0
        %v6353 = vadd.f32 0.0, %v6352
        %v6354 = vpop.f32.mrf.mxu0
        %6355 = vmatprep.mubr.f32.mxu0 0.0
        %6356 = vmatmul.mubr.f32.gmra.mxu0 %v6260
        %v6357 = vpop.f32.mrf.mxu0
        %v6358 = vadd.f32 0.0, %v6357
        %v6359 = vpop.f32.mrf.mxu0
        %6360 = vmatprep.mubr.f32.mxu0 0.0
        %6361 = vmatmul.mubr.f32.gmra.mxu0 %v6263
        %v6362 = vpop.f32.mrf.mxu0
        %v6363 = vadd.f32 0.0, %v6362
        %v6364 = vpop.f32.mrf.mxu0
        %6365 = vmatprep.mubr.f32.mxu0 0.0
        %6366 = vmatmul.mubr.f32.gmra.mxu0 %v6266
        %v6367 = vpop.f32.mrf.mxu0
        %v6368 = vadd.f32 0.0, %v6367
        %v6369 = vpop.f32.mrf.mxu0
        %6370 = vmatprep.mubr.f32.mxu0 0.0
        %6371 = vmatmul.mubr.f32.gmra.mxu0 %v6269
        %v6372 = vpop.f32.mrf.mxu0
        %v6373 = vadd.f32 0.0, %v6372
        %v6374 = vpop.f32.mrf.mxu0
        %6375 = vdwg.mxu0
        %v6376 = vadd.f32 %v6226, %v6338
        %v6377 = vadd.f32 %v6227, %v6343
        %v6378 = vadd.f32 %v6228, %v6348
        %v6379 = vadd.f32 %v6229, %v6353
        %v6380 = vadd.f32 %v6230, %v6358
        %v6381 = vadd.f32 %v6231, %v6363
        %v6382 = vadd.f32 %v6232, %v6368
        %v6383 = vadd.f32 %v6233, %v6373
        %v6384 = vld [vmem:[#allocation2 + $0x19] sm:$0xff]
        %v6385 = vld [vmem:[#allocation2 + $0x21] sm:$0xff]
        %v6386 = vld [vmem:[#allocation2 + $0x29] sm:$0xff]
        %v6387 = vld [vmem:[#allocation2 + $0x31] sm:$0xff]
        %v6388 = vld [vmem:[#allocation2 + $0x39] sm:$0xff]
        %v6389 = vld [vmem:[#allocation2 + $0x41] sm:$0xff]
        %v6390 = vld [vmem:[#allocation2 + $0x49] sm:$0xff]
        %v6391 = vld [vmem:[#allocation2 + $0x51] sm:$0xff]
        %v6392 = vsel %vm5153, %v6384, 0.0
        %v6393 = vsel %vm5154, %v6385, 0.0
        %v6394 = vsel %vm5155, %v6386, 0.0
        %v6395 = vsel %vm5156, %v6387, 0.0
        %v6396 = vsel %vm5157, %v6388, 0.0
        %v6397 = vsel %vm5158, %v6389, 0.0
        %v6398 = vsel %vm5159, %v6390, 0.0
        %v6399 = vsel %vm5160, %v6391, 0.0
        %s6400 = scalar_lea.vmem %s5, 256
        %v6401 = vld [vmem:[%s6400] sm:$0xff]
        %v6402 = vld [vmem:[%s6400 + $0x8] sm:$0xff]
        %v6403 = vld [vmem:[%s6400 + $0x10] sm:$0xff]
        %v6404 = vld [vmem:[%s6400 + $0x18] sm:$0xff]
        %v6406 = vsel %vm439, %v6392, 0
        %v6409 = vsel %vm439, %v6393, 0
        %v6412 = vsel %vm439, %v6394, 0
        %v6415 = vsel %vm439, %v6395, 0
        %v6418 = vsel %vm439, %v6396, 0
        %v6421 = vsel %vm439, %v6397, 0
        %v6424 = vsel %vm439, %v6398, 0
        %v6427 = vsel %vm439, %v6399, 0
        %6429 = vmatprep.subr.mxu0 0.0
        %6430 = vmatpush1.msra.mxu0 0.0
        %6431 = vmatprep.subr.mxu0 0.0
        %6432 = vmatpush1.msra.mxu0 0.0
        %6433 = vmatprep.subr.mxu0 0.0
        %6434 = vmatpush1.msra.mxu0 0.0
        %6435 = vmatprep.subr.mxu0 0.0
        %6436 = vmatpush1.msra.mxu0 0.0
        %6437 = vmatprep.subr.mxu0 0.0
        %6438 = vmatpush1.msra.mxu0 0.0
        %6439 = vmatprep.subr.mxu0 0.0
        %6440 = vmatpush1.msra.mxu0 0.0
        %6441 = vmatprep.subr.mxu0 0.0
        %6442 = vmatpush1.msra.mxu0 0.0
        %6443 = vmatprep.subr.mxu0 0.0
        %6444 = vmatpush1.msra.mxu0 0.0
        %6445 = vmatprep.subr.mxu0 0.0
        %6446 = vmatpush1.msra.mxu0 0.0
        %6447 = vmatprep.subr.mxu0 0.0
        %6448 = vmatpush1.msra.mxu0 0.0
        %6449 = vmatprep.subr.mxu0 0.0
        %6450 = vmatpush1.msra.mxu0 0.0
        %6451 = vmatprep.subr.mxu0 0.0
        %6452 = vmatpush1.msra.mxu0 0.0
        %6453 = vmatprep.subr.mxu0 0.0
        %6454 = vmatpush1.msra.mxu0 %v6404
        %6455 = vmatprep.subr.mxu0 0.0
        %6456 = vmatpush1.msra.mxu0 %v6403
        %6457 = vmatprep.subr.mxu0 0.0
        %6458 = vmatpush1.msra.mxu0 %v6402
        %6459 = vmatprep.subr.mxu0 0.0
        %6460 = vmatpush1.msra.mxu0 %v6401
        %6461 = vmatprep.subr.mxu0 0.0
        %6462 = vmatpush2.msra.mxu0 0.0
        %6463 = vmatprep.subr.mxu0 0.0
        %6464 = vmatpush2.msra.mxu0 0.0
        %6465 = vmatprep.subr.mxu0 0.0
        %6466 = vmatpush2.msra.mxu0 0.0
        %6467 = vmatprep.subr.mxu0 0.0
        %6468 = vmatpush2.msra.mxu0 0.0
        %6469 = vmatprep.subr.mxu0 0.0
        %6470 = vmatpush2.msra.mxu0 0.0
        %6471 = vmatprep.subr.mxu0 0.0
        %6472 = vmatpush2.msra.mxu0 0.0
        %6473 = vmatprep.subr.mxu0 0.0
        %6474 = vmatpush2.msra.mxu0 0.0
        %6475 = vmatprep.subr.mxu0 0.0
        %6476 = vmatpush2.msra.mxu0 0.0
        %6477 = vmatprep.subr.mxu0 0.0
        %6478 = vmatpush2.msra.mxu0 0.0
        %6479 = vmatprep.subr.mxu0 0.0
        %6480 = vmatpush2.msra.mxu0 0.0
        %6481 = vmatprep.subr.mxu0 0.0
        %6482 = vmatpush2.msra.mxu0 0.0
        %6483 = vmatprep.subr.mxu0 0.0
        %6484 = vmatpush2.msra.mxu0 0.0
        %6485 = vmatprep.subr.mxu0 0.0
        %6486 = vmatpush2.msra.mxu0 0.0
        %6487 = vmatprep.subr.mxu0 0.0
        %6488 = vmatpush2.msra.mxu0 0.0
        %6489 = vmatprep.subr.mxu0 0.0
        %6490 = vmatpush2.msra.mxu0 0.0
        %6491 = vmatprep.subr.mxu0 0.0
        %6492 = vmatpush2.msra.mxu0 0.0
        %6493 = vmatprep.mubr.f32.mxu0 0.0
        %6494 = vmatmul.mubr.f32.gmra.mxu0 %v6406
        %v6495 = vpop.f32.mrf.mxu0
        %v6496 = vadd.f32 0.0, %v6495
        %v6497 = vpop.f32.mrf.mxu0
        %6498 = vmatprep.mubr.f32.mxu0 0.0
        %6499 = vmatmul.mubr.f32.gmra.mxu0 %v6409
        %v6500 = vpop.f32.mrf.mxu0
        %v6501 = vadd.f32 0.0, %v6500
        %v6502 = vpop.f32.mrf.mxu0
        %6503 = vmatprep.mubr.f32.mxu0 0.0
        %6504 = vmatmul.mubr.f32.gmra.mxu0 %v6412
        %v6505 = vpop.f32.mrf.mxu0
        %v6506 = vadd.f32 0.0, %v6505
        %v6507 = vpop.f32.mrf.mxu0
        %6508 = vmatprep.mubr.f32.mxu0 0.0
        %6509 = vmatmul.mubr.f32.gmra.mxu0 %v6415
        %v6510 = vpop.f32.mrf.mxu0
        %v6511 = vadd.f32 0.0, %v6510
        %v6512 = vpop.f32.mrf.mxu0
        %6513 = vmatprep.mubr.f32.mxu0 0.0
        %6514 = vmatmul.mubr.f32.gmra.mxu0 %v6418
        %v6515 = vpop.f32.mrf.mxu0
        %v6516 = vadd.f32 0.0, %v6515
        %v6517 = vpop.f32.mrf.mxu0
        %6518 = vmatprep.mubr.f32.mxu0 0.0
        %6519 = vmatmul.mubr.f32.gmra.mxu0 %v6421
        %v6520 = vpop.f32.mrf.mxu0
        %v6521 = vadd.f32 0.0, %v6520
        %v6522 = vpop.f32.mrf.mxu0
        %6523 = vmatprep.mubr.f32.mxu0 0.0
        %6524 = vmatmul.mubr.f32.gmra.mxu0 %v6424
        %v6525 = vpop.f32.mrf.mxu0
        %v6526 = vadd.f32 0.0, %v6525
        %v6527 = vpop.f32.mrf.mxu0
        %6528 = vmatprep.mubr.f32.mxu0 0.0
        %6529 = vmatmul.mubr.f32.gmra.mxu0 %v6427
        %v6530 = vpop.f32.mrf.mxu0
        %v6531 = vadd.f32 0.0, %v6530
        %v6532 = vpop.f32.mrf.mxu0
        %6533 = vdwg.mxu0
        %v6534 = vadd.f32 %v6376, %v6496
        %v6535 = vadd.f32 %v6377, %v6501
        %v6536 = vadd.f32 %v6378, %v6506
        %v6537 = vadd.f32 %v6379, %v6511
        %v6538 = vadd.f32 %v6380, %v6516
        %v6539 = vadd.f32 %v6381, %v6521
        %v6540 = vadd.f32 %v6382, %v6526
        %v6541 = vadd.f32 %v6383, %v6531
        %v6542 = vld [vmem:[%s6] sm:$0x1]
        %v6544 = vlaneseq
        %v6545 = vshrl.u32 %v6544, 7
        %v6546 = vsub.s32 0, %v6545
        %v6547 = vrot.slane %v6542, %v6546
        %v6549 = vmul.f32 %v6534, %v6547
        %v6550 = vmul.f32 %v6535, %v6547
        %v6551 = vmul.f32 %v6536, %v6547
        %v6552 = vmul.f32 %v6537, %v6547
        %v6553 = vmul.f32 %v6538, %v6547
        %v6554 = vmul.f32 %v6539, %v6547
        %v6555 = vmul.f32 %v6540, %v6547
        %v6556 = vmul.f32 %v6541, %v6547
        %v6557 = vld [vmem:[%s7] sm:$0x1]
        %v6559 = vlaneseq
        %v6560 = vshrl.u32 %v6559, 7
        %v6561 = vsub.s32 0, %v6560
        %v6562 = vrot.slane %v6557, %v6561
        %v6564 = vadd.f32 %v6549, %v6562
        %v6565 = vadd.f32 %v6550, %v6562
        %v6566 = vadd.f32 %v6551, %v6562
        %v6567 = vadd.f32 %v6552, %v6562
        %v6568 = vadd.f32 %v6553, %v6562
        %v6569 = vadd.f32 %v6554, %v6562
        %v6570 = vadd.f32 %v6555, %v6562
        %v6571 = vadd.f32 %v6556, %v6562
        %vm6572 = vcmp.gt.f32.partialorder %v6564, 0.0
        %vm6573 = vcmp.gt.f32.partialorder %v6565, 0.0
        %vm6574 = vcmp.gt.f32.partialorder %v6566, 0.0
        %vm6575 = vcmp.gt.f32.partialorder %v6567, 0.0
        %vm6576 = vcmp.gt.f32.partialorder %v6568, 0.0
        %vm6577 = vcmp.gt.f32.partialorder %v6569, 0.0
        %vm6578 = vcmp.gt.f32.partialorder %v6570, 0.0
        %vm6579 = vcmp.gt.f32.partialorder %v6571, 0.0
        %v6580 = vmul.f32 %v6564, 0.1
        %v6581 = vmul.f32 %v6565, 0.1
        %v6582 = vmul.f32 %v6566, 0.1
        %v6583 = vmul.f32 %v6567, 0.1
        %v6584 = vmul.f32 %v6568, 0.1
        %v6585 = vmul.f32 %v6569, 0.1
        %v6586 = vmul.f32 %v6570, 0.1
        %v6587 = vmul.f32 %v6571, 0.1
        %v6588 = vsel %vm6572, %v6564, %v6580
        %v6589 = vsel %vm6573, %v6565, %v6581
        %v6590 = vsel %vm6574, %v6566, %v6582
        %v6591 = vsel %vm6575, %v6567, %v6583
        %v6592 = vsel %vm6576, %v6568, %v6584
        %v6593 = vsel %vm6577, %v6569, %v6585
        %v6594 = vsel %vm6578, %v6570, %v6586
        %v6595 = vsel %vm6579, %v6571, %v6587
        %6596 = vst.msk [vmem:[#allocation5] sm:$0xff] %vm452, %v6588
        %6597 = vst.msk [vmem:[#allocation5 + $0x8] sm:$0xff] %vm452, %v6589
        %6598 = vst.msk [vmem:[#allocation5 + $0x10] sm:$0xff] %vm452, %v6590
        %6599 = vst.msk [vmem:[#allocation5 + $0x18] sm:$0xff] %vm452, %v6591
        %6600 = vst.msk [vmem:[#allocation5 + $0x20] sm:$0xff] %vm452, %v6592
        %6601 = vst.msk [vmem:[#allocation5 + $0x28] sm:$0xff] %vm452, %v6593
        %6602 = vst.msk [vmem:[#allocation5 + $0x30] sm:$0xff] %vm452, %v6594
        %6603 = vst.msk [vmem:[#allocation5 + $0x38] sm:$0xff] %vm452, %v6595
        %6604 = vst.msk [vmem:[#allocation5 + $0x40] sm:$0xff] %vm452, 0.0
        %6605 = vst.msk [vmem:[#allocation5 + $0x48] sm:$0xff] %vm452, 0.0
        %v6606 = vld [vmem:[#allocation5] sm:$0xff]
        %v6607 = vld [vmem:[#allocation5 + $0x8] sm:$0xff]
        %v6608 = vld [vmem:[#allocation5 + $0x10] sm:$0xff]
        %v6609 = vld [vmem:[#allocation5 + $0x18] sm:$0xff]
        %v6610 = vld [vmem:[#allocation5 + $0x20] sm:$0xff]
        %v6611 = vld [vmem:[#allocation5 + $0x28] sm:$0xff]
        %v6612 = vld [vmem:[#allocation5 + $0x30] sm:$0xff]
        %v6613 = vld [vmem:[#allocation5 + $0x38] sm:$0xff]
        %v6614 = vld [vmem:[#allocation5 + $0x1] sm:$0xff]
        %v6615 = vld [vmem:[#allocation5 + $0x9] sm:$0xff]
        %v6616 = vld [vmem:[#allocation5 + $0x11] sm:$0xff]
        %v6617 = vld [vmem:[#allocation5 + $0x19] sm:$0xff]
        %v6618 = vld [vmem:[#allocation5 + $0x21] sm:$0xff]
        %v6619 = vld [vmem:[#allocation5 + $0x29] sm:$0xff]
        %v6620 = vld [vmem:[#allocation5 + $0x31] sm:$0xff]
        %v6621 = vld [vmem:[#allocation5 + $0x39] sm:$0xff]
        %v6622 = vmax.f32 %v6606, %v6614
        %v6623 = vmax.f32 %v6607, %v6615
        %v6624 = vmax.f32 %v6608, %v6616
        %v6625 = vmax.f32 %v6609, %v6617
        %v6626 = vmax.f32 %v6610, %v6618
        %v6627 = vmax.f32 %v6611, %v6619
        %v6628 = vmax.f32 %v6612, %v6620
        %v6629 = vmax.f32 %v6613, %v6621
        %v6630 = vld [vmem:[#allocation5 + $0x40] sm:$0xff]
        %v6631 = vld [vmem:[#allocation5 + $0x41] sm:$0xff]
        %v6632 = vmax.f32 %v6630, %v6631
        %v6633 = vmax.f32 %v6622, %v6623
        %v6634 = vmax.f32 %v6623, %v6624
        %v6635 = vmax.f32 %v6624, %v6625
        %v6636 = vmax.f32 %v6625, %v6626
        %v6637 = vmax.f32 %v6626, %v6627
        %v6638 = vmax.f32 %v6627, %v6628
        %v6639 = vmax.f32 %v6628, %v6629
        %v6640 = vmax.f32 %v6629, %v6632
        %v6641 = vld [vmem:[%s8] sm:$0xff]
        %v6642 = vld [vmem:[%s8 + $0x8] sm:$0xff]
        %v6644 = vsel %vm452, %v6641, 0
        %v6647 = vsel %vm452, %v6642, 0
        %6649 = vmatprep.subr.mxu0 0.0
        %6650 = vmatpush1.msra.mxu0 0.0
        %6651 = vmatprep.subr.mxu0 0.0
        %6652 = vmatpush1.msra.mxu0 0.0
        %6653 = vmatprep.subr.mxu0 0.0
        %6654 = vmatpush1.msra.mxu0 0.0
        %6655 = vmatprep.subr.mxu0 0.0
        %6656 = vmatpush1.msra.mxu0 0.0
        %6657 = vmatprep.subr.mxu0 0.0
        %6658 = vmatpush1.msra.mxu0 0.0
        %6659 = vmatprep.subr.mxu0 0.0
        %6660 = vmatpush1.msra.mxu0 0.0
        %6661 = vmatprep.subr.mxu0 0.0
        %6662 = vmatpush1.msra.mxu0 0.0
        %6663 = vmatprep.subr.mxu0 0.0
        %6664 = vmatpush1.msra.mxu0 0.0
        %6665 = vmatprep.subr.mxu0 0.0
        %6666 = vmatpush1.msra.mxu0 %v6640
        %6667 = vmatprep.subr.mxu0 0.0
        %6668 = vmatpush1.msra.mxu0 %v6639
        %6669 = vmatprep.subr.mxu0 0.0
        %6670 = vmatpush1.msra.mxu0 %v6638
        %6671 = vmatprep.subr.mxu0 0.0
        %6672 = vmatpush1.msra.mxu0 %v6637
        %6673 = vmatprep.subr.mxu0 0.0
        %6674 = vmatpush1.msra.mxu0 %v6636
        %6675 = vmatprep.subr.mxu0 0.0
        %6676 = vmatpush1.msra.mxu0 %v6635
        %6677 = vmatprep.subr.mxu0 0.0
        %6678 = vmatpush1.msra.mxu0 %v6634
        %6679 = vmatprep.subr.mxu0 0.0
        %6680 = vmatpush1.msra.mxu0 %v6633
        %6681 = vmatprep.subr.mxu0 0.0
        %6682 = vmatpush2.msra.mxu0 0.0
        %6683 = vmatprep.subr.mxu0 0.0
        %6684 = vmatpush2.msra.mxu0 0.0
        %6685 = vmatprep.subr.mxu0 0.0
        %6686 = vmatpush2.msra.mxu0 0.0
        %6687 = vmatprep.subr.mxu0 0.0
        %6688 = vmatpush2.msra.mxu0 0.0
        %6689 = vmatprep.subr.mxu0 0.0
        %6690 = vmatpush2.msra.mxu0 0.0
        %6691 = vmatprep.subr.mxu0 0.0
        %6692 = vmatpush2.msra.mxu0 0.0
        %6693 = vmatprep.subr.mxu0 0.0
        %6694 = vmatpush2.msra.mxu0 0.0
        %6695 = vmatprep.subr.mxu0 0.0
        %6696 = vmatpush2.msra.mxu0 0.0
        %6697 = vmatprep.subr.mxu0 0.0
        %6698 = vmatpush2.msra.mxu0 0.0
        %6699 = vmatprep.subr.mxu0 0.0
        %6700 = vmatpush2.msra.mxu0 0.0
        %6701 = vmatprep.subr.mxu0 0.0
        %6702 = vmatpush2.msra.mxu0 0.0
        %6703 = vmatprep.subr.mxu0 0.0
        %6704 = vmatpush2.msra.mxu0 0.0
        %6705 = vmatprep.subr.mxu0 0.0
        %6706 = vmatpush2.msra.mxu0 0.0
        %6707 = vmatprep.subr.mxu0 0.0
        %6708 = vmatpush2.msra.mxu0 0.0
        %6709 = vmatprep.subr.mxu0 0.0
        %6710 = vmatpush2.msra.mxu0 0.0
        %6711 = vmatprep.subr.mxu0 0.0
        %6712 = vmatpush2.msra.mxu0 0.0
        %6713 = vmatprep.mubr.f32.mxu0 0.0
        %6714 = vmatmul.mubr.f32.gmra.mxu0 %v6644
        %v6715 = vpop.f32.mrf.mxu0
        %v6716 = vadd.f32 0.0, %v6715
        %v6717 = vpop.f32.mrf.mxu0
        %6718 = vmatprep.mubr.f32.mxu0 0.0
        %6719 = vmatmul.mubr.f32.gmra.mxu0 %v6647
        %v6720 = vpop.f32.mrf.mxu0
        %v6721 = vadd.f32 0.0, %v6720
        %v6722 = vpop.f32.mrf.mxu0
        %6723 = vdwg.mxu0
        %6724 = vst.msk [vmem:[#allocation3 + $0x8] sm:$0xff] %vm452, %v6716
        %6725 = vst.msk [vmem:[#allocation3 + $0x10] sm:$0xff] %vm452, %v6721
        %vm6726 = vcmp.lt.s32.totalorder %v458, 0
        %v6727 = vsub.s32 0, %v458
        %v6728 = vsel %vm6726, %v6727, %v458
        %v6729 = vshrl.u32 %v6728, 2
        %v6730 = vand.u32 %v6728, 3
        %v6731 = vsub.s32 0, %v6730
        %v6732 = vsel %vm6726, %v6731, %v6730
        %vm6733 = vcmp.lt.s32.totalorder %v459, 0
        %v6734 = vsub.s32 0, %v459
        %v6735 = vsel %vm6733, %v6734, %v459
        %v6736 = vshrl.u32 %v6735, 2
        %v6737 = vand.u32 %v6735, 3
        %v6738 = vsub.s32 0, %v6737
        %v6739 = vsel %vm6733, %v6738, %v6737
        %vm6740 = vcmp.ne.s32.totalorder %v6732, 0
        %vm6741 = vcmp.ne.s32.totalorder %v6739, 0
        %vm6742 = vcmp.lt.s32.totalorder %v6732, 0
        %vm6743 = vcmp.lt.s32.totalorder %v6739, 0
        %vm6744 = vmand %vm6742, %vm6740
        %vm6745 = vmand %vm6743, %vm6741
        %v6746 = vadd.s32 %v6732, 4
        %v6747 = vadd.s32 %v6739, 4
        %v6748 = vsel %vm6744, %v6746, %v6732
        %v6749 = vsel %vm6745, %v6747, %v6739
        %vm6750 = vcmp.ne.s32.totalorder %v6748, 0
        %vm6751 = vcmp.ne.s32.totalorder %v6749, 0
        %vm6752 = vcmp.ne.s32.totalorder %v6748, 3
        %vm6753 = vcmp.ne.s32.totalorder %v6749, 3
        %v6754 = vld [vmem:[#allocation3 + $0x3] sm:$0xff]
        %v6755 = vld [vmem:[#allocation3 + $0xb] sm:$0xff]
        %v6756 = vsel %vm6750, %v6754, 0.0
        %v6757 = vsel %vm6751, %v6755, 0.0
        %v6758 = vld [vmem:[%s9] sm:$0xff]
        %v6759 = vld [vmem:[%s9 + $0x8] sm:$0xff]
        %v6760 = vld [vmem:[%s9 + $0x10] sm:$0xff]
        %v6761 = vld [vmem:[%s9 + $0x18] sm:$0xff]
        %v6762 = vld [vmem:[%s9 + $0x20] sm:$0xff]
        %v6763 = vld [vmem:[%s9 + $0x28] sm:$0xff]
        %v6764 = vld [vmem:[%s9 + $0x30] sm:$0xff]
        %v6765 = vld [vmem:[%s9 + $0x38] sm:$0xff]
        %v6766 = vld [vmem:[#allocation3 + $0x4] sm:$0xff]
        %v6767 = vld [vmem:[#allocation3 + $0xc] sm:$0xff]
        %s6768 = scalar_lea.vmem %s9, 64
        %v6769 = vld [vmem:[%s6768] sm:$0xff]
        %v6770 = vld [vmem:[%s6768 + $0x8] sm:$0xff]
        %v6771 = vld [vmem:[%s6768 + $0x10] sm:$0xff]
        %v6772 = vld [vmem:[%s6768 + $0x18] sm:$0xff]
        %v6773 = vld [vmem:[%s6768 + $0x20] sm:$0xff]
        %v6774 = vld [vmem:[%s6768 + $0x28] sm:$0xff]
        %v6775 = vld [vmem:[%s6768 + $0x30] sm:$0xff]
        %v6776 = vld [vmem:[%s6768 + $0x38] sm:$0xff]
        %v6778 = vsel %vm452, %v6766, 0
        %v6781 = vsel %vm452, %v6767, 0
        %6783 = vmatprep.subr.mxu0 0.0
        %6784 = vmatpush1.msra.mxu0 0.0
        %6785 = vmatprep.subr.mxu0 0.0
        %6786 = vmatpush1.msra.mxu0 0.0
        %6787 = vmatprep.subr.mxu0 0.0
        %6788 = vmatpush1.msra.mxu0 0.0
        %6789 = vmatprep.subr.mxu0 0.0
        %6790 = vmatpush1.msra.mxu0 0.0
        %6791 = vmatprep.subr.mxu0 0.0
        %6792 = vmatpush1.msra.mxu0 0.0
        %6793 = vmatprep.subr.mxu0 0.0
        %6794 = vmatpush1.msra.mxu0 0.0
        %6795 = vmatprep.subr.mxu0 0.0
        %6796 = vmatpush1.msra.mxu0 0.0
        %6797 = vmatprep.subr.mxu0 0.0
        %6798 = vmatpush1.msra.mxu0 0.0
        %6799 = vmatprep.subr.mxu0 0.0
        %6800 = vmatpush1.msra.mxu0 %v6776
        %6801 = vmatprep.subr.mxu0 0.0
        %6802 = vmatpush1.msra.mxu0 %v6775
        %6803 = vmatprep.subr.mxu0 0.0
        %6804 = vmatpush1.msra.mxu0 %v6774
        %6805 = vmatprep.subr.mxu0 0.0
        %6806 = vmatpush1.msra.mxu0 %v6773
        %6807 = vmatprep.subr.mxu0 0.0
        %6808 = vmatpush1.msra.mxu0 %v6772
        %6809 = vmatprep.subr.mxu0 0.0
        %6810 = vmatpush1.msra.mxu0 %v6771
        %6811 = vmatprep.subr.mxu0 0.0
        %6812 = vmatpush1.msra.mxu0 %v6770
        %6813 = vmatprep.subr.mxu0 0.0
        %6814 = vmatpush1.msra.mxu0 %v6769
        %6815 = vmatprep.subr.mxu0 0.0
        %6816 = vmatpush2.msra.mxu0 0.0
        %6817 = vmatprep.subr.mxu0 0.0
        %6818 = vmatpush2.msra.mxu0 0.0
        %6819 = vmatprep.subr.mxu0 0.0
        %6820 = vmatpush2.msra.mxu0 0.0
        %6821 = vmatprep.subr.mxu0 0.0
        %6822 = vmatpush2.msra.mxu0 0.0
        %6823 = vmatprep.subr.mxu0 0.0
        %6824 = vmatpush2.msra.mxu0 0.0
        %6825 = vmatprep.subr.mxu0 0.0
        %6826 = vmatpush2.msra.mxu0 0.0
        %6827 = vmatprep.subr.mxu0 0.0
        %6828 = vmatpush2.msra.mxu0 0.0
        %6829 = vmatprep.subr.mxu0 0.0
        %6830 = vmatpush2.msra.mxu0 0.0
        %6831 = vmatprep.subr.mxu0 0.0
        %6832 = vmatpush2.msra.mxu0 0.0
        %6833 = vmatprep.subr.mxu0 0.0
        %6834 = vmatpush2.msra.mxu0 0.0
        %6835 = vmatprep.subr.mxu0 0.0
        %6836 = vmatpush2.msra.mxu0 0.0
        %6837 = vmatprep.subr.mxu0 0.0
        %6838 = vmatpush2.msra.mxu0 0.0
        %6839 = vmatprep.subr.mxu0 0.0
        %6840 = vmatpush2.msra.mxu0 0.0
        %6841 = vmatprep.subr.mxu0 0.0
        %6842 = vmatpush2.msra.mxu0 0.0
        %6843 = vmatprep.subr.mxu0 0.0
        %6844 = vmatpush2.msra.mxu0 0.0
        %6845 = vmatprep.subr.mxu0 0.0
        %6846 = vmatpush2.msra.mxu0 0.0
        %6847 = vmatprep.mubr.f32.mxu0 0.0
        %6848 = vmatmul.mubr.f32.gmra.mxu0 %v6778
        %v6849 = vpop.f32.mrf.mxu0
        %v6850 = vadd.f32 0.0, %v6849
        %v6851 = vpop.f32.mrf.mxu0
        %6852 = vmatprep.mubr.f32.mxu0 0.0
        %6853 = vmatmul.mubr.f32.gmra.mxu0 %v6781
        %v6854 = vpop.f32.mrf.mxu0
        %v6855 = vadd.f32 0.0, %v6854
        %v6856 = vpop.f32.mrf.mxu0
        %6857 = vdwg.mxu0
        %v6859 = vsel %vm452, %v6756, 0
        %v6862 = vsel %vm452, %v6757, 0
        %6864 = vmatprep.subr.mxu0 0.0
        %6865 = vmatpush1.msra.mxu0 0.0
        %6866 = vmatprep.subr.mxu0 0.0
        %6867 = vmatpush1.msra.mxu0 0.0
        %6868 = vmatprep.subr.mxu0 0.0
        %6869 = vmatpush1.msra.mxu0 0.0
        %6870 = vmatprep.subr.mxu0 0.0
        %6871 = vmatpush1.msra.mxu0 0.0
        %6872 = vmatprep.subr.mxu0 0.0
        %6873 = vmatpush1.msra.mxu0 0.0
        %6874 = vmatprep.subr.mxu0 0.0
        %6875 = vmatpush1.msra.mxu0 0.0
        %6876 = vmatprep.subr.mxu0 0.0
        %6877 = vmatpush1.msra.mxu0 0.0
        %6878 = vmatprep.subr.mxu0 0.0
        %6879 = vmatpush1.msra.mxu0 0.0
        %6880 = vmatprep.subr.mxu0 0.0
        %6881 = vmatpush1.msra.mxu0 %v6765
        %6882 = vmatprep.subr.mxu0 0.0
        %6883 = vmatpush1.msra.mxu0 %v6764
        %6884 = vmatprep.subr.mxu0 0.0
        %6885 = vmatpush1.msra.mxu0 %v6763
        %6886 = vmatprep.subr.mxu0 0.0
        %6887 = vmatpush1.msra.mxu0 %v6762
        %6888 = vmatprep.subr.mxu0 0.0
        %6889 = vmatpush1.msra.mxu0 %v6761
        %6890 = vmatprep.subr.mxu0 0.0
        %6891 = vmatpush1.msra.mxu0 %v6760
        %6892 = vmatprep.subr.mxu0 0.0
        %6893 = vmatpush1.msra.mxu0 %v6759
        %6894 = vmatprep.subr.mxu0 0.0
        %6895 = vmatpush1.msra.mxu0 %v6758
        %6896 = vmatprep.subr.mxu0 0.0
        %6897 = vmatpush2.msra.mxu0 0.0
        %6898 = vmatprep.subr.mxu0 0.0
        %6899 = vmatpush2.msra.mxu0 0.0
        %6900 = vmatprep.subr.mxu0 0.0
        %6901 = vmatpush2.msra.mxu0 0.0
        %6902 = vmatprep.subr.mxu0 0.0
        %6903 = vmatpush2.msra.mxu0 0.0
        %6904 = vmatprep.subr.mxu0 0.0
        %6905 = vmatpush2.msra.mxu0 0.0
        %6906 = vmatprep.subr.mxu0 0.0
        %6907 = vmatpush2.msra.mxu0 0.0
        %6908 = vmatprep.subr.mxu0 0.0
        %6909 = vmatpush2.msra.mxu0 0.0
        %6910 = vmatprep.subr.mxu0 0.0
        %6911 = vmatpush2.msra.mxu0 0.0
        %6912 = vmatprep.subr.mxu0 0.0
        %6913 = vmatpush2.msra.mxu0 0.0
        %6914 = vmatprep.subr.mxu0 0.0
        %6915 = vmatpush2.msra.mxu0 0.0
        %6916 = vmatprep.subr.mxu0 0.0
        %6917 = vmatpush2.msra.mxu0 0.0
        %6918 = vmatprep.subr.mxu0 0.0
        %6919 = vmatpush2.msra.mxu0 0.0
        %6920 = vmatprep.subr.mxu0 0.0
        %6921 = vmatpush2.msra.mxu0 0.0
        %6922 = vmatprep.subr.mxu0 0.0
        %6923 = vmatpush2.msra.mxu0 0.0
        %6924 = vmatprep.subr.mxu0 0.0
        %6925 = vmatpush2.msra.mxu0 0.0
        %6926 = vmatprep.subr.mxu0 0.0
        %6927 = vmatpush2.msra.mxu0 0.0
        %6928 = vmatprep.mubr.f32.mxu0 0.0
        %6929 = vmatmul.mubr.f32.gmra.mxu0 %v6859
        %v6930 = vpop.f32.mrf.mxu0
        %v6931 = vadd.f32 %v6850, %v6930
        %v6932 = vpop.f32.mrf.mxu0
        %6933 = vmatprep.mubr.f32.mxu0 0.0
        %6934 = vmatmul.mubr.f32.gmra.mxu0 %v6862
        %v6935 = vpop.f32.mrf.mxu0
        %v6936 = vadd.f32 %v6855, %v6935
        %v6937 = vpop.f32.mrf.mxu0
        %6938 = vdwg.mxu0
        %v6939 = vld [vmem:[#allocation3 + $0x5] sm:$0xff]
        %v6940 = vld [vmem:[#allocation3 + $0xd] sm:$0xff]
        %v6941 = vsel %vm6752, %v6939, 0.0
        %v6942 = vsel %vm6753, %v6940, 0.0
        %s6943 = scalar_lea.vmem %s9, 128
        %v6944 = vld [vmem:[%s6943] sm:$0xff]
        %v6945 = vld [vmem:[%s6943 + $0x8] sm:$0xff]
        %v6946 = vld [vmem:[%s6943 + $0x10] sm:$0xff]
        %v6947 = vld [vmem:[%s6943 + $0x18] sm:$0xff]
        %v6948 = vld [vmem:[%s6943 + $0x20] sm:$0xff]
        %v6949 = vld [vmem:[%s6943 + $0x28] sm:$0xff]
        %v6950 = vld [vmem:[%s6943 + $0x30] sm:$0xff]
        %v6951 = vld [vmem:[%s6943 + $0x38] sm:$0xff]
        %v6953 = vsel %vm452, %v6941, 0
        %v6956 = vsel %vm452, %v6942, 0
        %6958 = vmatprep.subr.mxu0 0.0
        %6959 = vmatpush1.msra.mxu0 0.0
        %6960 = vmatprep.subr.mxu0 0.0
        %6961 = vmatpush1.msra.mxu0 0.0
        %6962 = vmatprep.subr.mxu0 0.0
        %6963 = vmatpush1.msra.mxu0 0.0
        %6964 = vmatprep.subr.mxu0 0.0
        %6965 = vmatpush1.msra.mxu0 0.0
        %6966 = vmatprep.subr.mxu0 0.0
        %6967 = vmatpush1.msra.mxu0 0.0
        %6968 = vmatprep.subr.mxu0 0.0
        %6969 = vmatpush1.msra.mxu0 0.0
        %6970 = vmatprep.subr.mxu0 0.0
        %6971 = vmatpush1.msra.mxu0 0.0
        %6972 = vmatprep.subr.mxu0 0.0
        %6973 = vmatpush1.msra.mxu0 0.0
        %6974 = vmatprep.subr.mxu0 0.0
        %6975 = vmatpush1.msra.mxu0 %v6951
        %6976 = vmatprep.subr.mxu0 0.0
        %6977 = vmatpush1.msra.mxu0 %v6950
        %6978 = vmatprep.subr.mxu0 0.0
        %6979 = vmatpush1.msra.mxu0 %v6949
        %6980 = vmatprep.subr.mxu0 0.0
        %6981 = vmatpush1.msra.mxu0 %v6948
        %6982 = vmatprep.subr.mxu0 0.0
        %6983 = vmatpush1.msra.mxu0 %v6947
        %6984 = vmatprep.subr.mxu0 0.0
        %6985 = vmatpush1.msra.mxu0 %v6946
        %6986 = vmatprep.subr.mxu0 0.0
        %6987 = vmatpush1.msra.mxu0 %v6945
        %6988 = vmatprep.subr.mxu0 0.0
        %6989 = vmatpush1.msra.mxu0 %v6944
        %6990 = vmatprep.subr.mxu0 0.0
        %6991 = vmatpush2.msra.mxu0 0.0
        %6992 = vmatprep.subr.mxu0 0.0
        %6993 = vmatpush2.msra.mxu0 0.0
        %6994 = vmatprep.subr.mxu0 0.0
        %6995 = vmatpush2.msra.mxu0 0.0
        %6996 = vmatprep.subr.mxu0 0.0
        %6997 = vmatpush2.msra.mxu0 0.0
        %6998 = vmatprep.subr.mxu0 0.0
        %6999 = vmatpush2.msra.mxu0 0.0
        %7000 = vmatprep.subr.mxu0 0.0
        %7001 = vmatpush2.msra.mxu0 0.0
        %7002 = vmatprep.subr.mxu0 0.0
        %7003 = vmatpush2.msra.mxu0 0.0
        %7004 = vmatprep.subr.mxu0 0.0
        %7005 = vmatpush2.msra.mxu0 0.0
        %7006 = vmatprep.subr.mxu0 0.0
        %7007 = vmatpush2.msra.mxu0 0.0
        %7008 = vmatprep.subr.mxu0 0.0
        %7009 = vmatpush2.msra.mxu0 0.0
        %7010 = vmatprep.subr.mxu0 0.0
        %7011 = vmatpush2.msra.mxu0 0.0
        %7012 = vmatprep.subr.mxu0 0.0
        %7013 = vmatpush2.msra.mxu0 0.0
        %7014 = vmatprep.subr.mxu0 0.0
        %7015 = vmatpush2.msra.mxu0 0.0
        %7016 = vmatprep.subr.mxu0 0.0
        %7017 = vmatpush2.msra.mxu0 0.0
        %7018 = vmatprep.subr.mxu0 0.0
        %7019 = vmatpush2.msra.mxu0 0.0
        %7020 = vmatprep.subr.mxu0 0.0
        %7021 = vmatpush2.msra.mxu0 0.0
        %7022 = vmatprep.mubr.f32.mxu0 0.0
        %7023 = vmatmul.mubr.f32.gmra.mxu0 %v6953
        %v7024 = vpop.f32.mrf.mxu0
        %v7025 = vadd.f32 0.0, %v7024
        %v7026 = vpop.f32.mrf.mxu0
        %7027 = vmatprep.mubr.f32.mxu0 0.0
        %7028 = vmatmul.mubr.f32.gmra.mxu0 %v6956
        %v7029 = vpop.f32.mrf.mxu0
        %v7030 = vadd.f32 0.0, %v7029
        %v7031 = vpop.f32.mrf.mxu0
        %7032 = vdwg.mxu0
        %v7033 = vadd.f32 %v6931, %v7025
        %v7034 = vadd.f32 %v6936, %v7030
        %v7035 = vld [vmem:[#allocation3 + $0x7] sm:$0xff]
        %v7036 = vld [vmem:[#allocation3 + $0xf] sm:$0xff]
        %v7037 = vsel %vm6750, %v7035, 0.0
        %v7038 = vsel %vm6751, %v7036, 0.0
        %s7039 = scalar_lea.vmem %s9, 192
        %v7040 = vld [vmem:[%s7039] sm:$0xff]
        %v7041 = vld [vmem:[%s7039 + $0x8] sm:$0xff]
        %v7042 = vld [vmem:[%s7039 + $0x10] sm:$0xff]
        %v7043 = vld [vmem:[%s7039 + $0x18] sm:$0xff]
        %v7044 = vld [vmem:[%s7039 + $0x20] sm:$0xff]
        %v7045 = vld [vmem:[%s7039 + $0x28] sm:$0xff]
        %v7046 = vld [vmem:[%s7039 + $0x30] sm:$0xff]
        %v7047 = vld [vmem:[%s7039 + $0x38] sm:$0xff]
        %v7049 = vsel %vm452, %v7037, 0
        %v7052 = vsel %vm452, %v7038, 0
        %7054 = vmatprep.subr.mxu0 0.0
        %7055 = vmatpush1.msra.mxu0 0.0
        %7056 = vmatprep.subr.mxu0 0.0
        %7057 = vmatpush1.msra.mxu0 0.0
        %7058 = vmatprep.subr.mxu0 0.0
        %7059 = vmatpush1.msra.mxu0 0.0
        %7060 = vmatprep.subr.mxu0 0.0
        %7061 = vmatpush1.msra.mxu0 0.0
        %7062 = vmatprep.subr.mxu0 0.0
        %7063 = vmatpush1.msra.mxu0 0.0
        %7064 = vmatprep.subr.mxu0 0.0
        %7065 = vmatpush1.msra.mxu0 0.0
        %7066 = vmatprep.subr.mxu0 0.0
        %7067 = vmatpush1.msra.mxu0 0.0
        %7068 = vmatprep.subr.mxu0 0.0
        %7069 = vmatpush1.msra.mxu0 0.0
        %7070 = vmatprep.subr.mxu0 0.0
        %7071 = vmatpush1.msra.mxu0 %v7047
        %7072 = vmatprep.subr.mxu0 0.0
        %7073 = vmatpush1.msra.mxu0 %v7046
        %7074 = vmatprep.subr.mxu0 0.0
        %7075 = vmatpush1.msra.mxu0 %v7045
        %7076 = vmatprep.subr.mxu0 0.0
        %7077 = vmatpush1.msra.mxu0 %v7044
        %7078 = vmatprep.subr.mxu0 0.0
        %7079 = vmatpush1.msra.mxu0 %v7043
        %7080 = vmatprep.subr.mxu0 0.0
        %7081 = vmatpush1.msra.mxu0 %v7042
        %7082 = vmatprep.subr.mxu0 0.0
        %7083 = vmatpush1.msra.mxu0 %v7041
        %7084 = vmatprep.subr.mxu0 0.0
        %7085 = vmatpush1.msra.mxu0 %v7040
        %7086 = vmatprep.subr.mxu0 0.0
        %7087 = vmatpush2.msra.mxu0 0.0
        %7088 = vmatprep.subr.mxu0 0.0
        %7089 = vmatpush2.msra.mxu0 0.0
        %7090 = vmatprep.subr.mxu0 0.0
        %7091 = vmatpush2.msra.mxu0 0.0
        %7092 = vmatprep.subr.mxu0 0.0
        %7093 = vmatpush2.msra.mxu0 0.0
        %7094 = vmatprep.subr.mxu0 0.0
        %7095 = vmatpush2.msra.mxu0 0.0
        %7096 = vmatprep.subr.mxu0 0.0
        %7097 = vmatpush2.msra.mxu0 0.0
        %7098 = vmatprep.subr.mxu0 0.0
        %7099 = vmatpush2.msra.mxu0 0.0
        %7100 = vmatprep.subr.mxu0 0.0
        %7101 = vmatpush2.msra.mxu0 0.0
        %7102 = vmatprep.subr.mxu0 0.0
        %7103 = vmatpush2.msra.mxu0 0.0
        %7104 = vmatprep.subr.mxu0 0.0
        %7105 = vmatpush2.msra.mxu0 0.0
        %7106 = vmatprep.subr.mxu0 0.0
        %7107 = vmatpush2.msra.mxu0 0.0
        %7108 = vmatprep.subr.mxu0 0.0
        %7109 = vmatpush2.msra.mxu0 0.0
        %7110 = vmatprep.subr.mxu0 0.0
        %7111 = vmatpush2.msra.mxu0 0.0
        %7112 = vmatprep.subr.mxu0 0.0
        %7113 = vmatpush2.msra.mxu0 0.0
        %7114 = vmatprep.subr.mxu0 0.0
        %7115 = vmatpush2.msra.mxu0 0.0
        %7116 = vmatprep.subr.mxu0 0.0
        %7117 = vmatpush2.msra.mxu0 0.0
        %7118 = vmatprep.mubr.f32.mxu0 0.0
        %7119 = vmatmul.mubr.f32.gmra.mxu0 %v7049
        %v7120 = vpop.f32.mrf.mxu0
        %v7121 = vadd.f32 0.0, %v7120
        %v7122 = vpop.f32.mrf.mxu0
        %7123 = vmatprep.mubr.f32.mxu0 0.0
        %7124 = vmatmul.mubr.f32.gmra.mxu0 %v7052
        %v7125 = vpop.f32.mrf.mxu0
        %v7126 = vadd.f32 0.0, %v7125
        %v7127 = vpop.f32.mrf.mxu0
        %7128 = vdwg.mxu0
        %v7129 = vadd.f32 %v7033, %v7121
        %v7130 = vadd.f32 %v7034, %v7126
        %v7131 = vld [vmem:[#allocation3 + $0x8] sm:$0xff]
        %v7132 = vld [vmem:[#allocation3 + $0x10] sm:$0xff]
        %s7133 = scalar_lea.vmem %s9, 256
        %v7134 = vld [vmem:[%s7133] sm:$0xff]
        %v7135 = vld [vmem:[%s7133 + $0x8] sm:$0xff]
        %v7136 = vld [vmem:[%s7133 + $0x10] sm:$0xff]
        %v7137 = vld [vmem:[%s7133 + $0x18] sm:$0xff]
        %v7138 = vld [vmem:[%s7133 + $0x20] sm:$0xff]
        %v7139 = vld [vmem:[%s7133 + $0x28] sm:$0xff]
        %v7140 = vld [vmem:[%s7133 + $0x30] sm:$0xff]
        %v7141 = vld [vmem:[%s7133 + $0x38] sm:$0xff]
        %v7143 = vsel %vm452, %v7131, 0
        %v7146 = vsel %vm452, %v7132, 0
        %7148 = vmatprep.subr.mxu0 0.0
        %7149 = vmatpush1.msra.mxu0 0.0
        %7150 = vmatprep.subr.mxu0 0.0
        %7151 = vmatpush1.msra.mxu0 0.0
        %7152 = vmatprep.subr.mxu0 0.0
        %7153 = vmatpush1.msra.mxu0 0.0
        %7154 = vmatprep.subr.mxu0 0.0
        %7155 = vmatpush1.msra.mxu0 0.0
        %7156 = vmatprep.subr.mxu0 0.0
        %7157 = vmatpush1.msra.mxu0 0.0
        %7158 = vmatprep.subr.mxu0 0.0
        %7159 = vmatpush1.msra.mxu0 0.0
        %7160 = vmatprep.subr.mxu0 0.0
        %7161 = vmatpush1.msra.mxu0 0.0
        %7162 = vmatprep.subr.mxu0 0.0
        %7163 = vmatpush1.msra.mxu0 0.0
        %7164 = vmatprep.subr.mxu0 0.0
        %7165 = vmatpush1.msra.mxu0 %v7141
        %7166 = vmatprep.subr.mxu0 0.0
        %7167 = vmatpush1.msra.mxu0 %v7140
        %7168 = vmatprep.subr.mxu0 0.0
        %7169 = vmatpush1.msra.mxu0 %v7139
        %7170 = vmatprep.subr.mxu0 0.0
        %7171 = vmatpush1.msra.mxu0 %v7138
        %7172 = vmatprep.subr.mxu0 0.0
        %7173 = vmatpush1.msra.mxu0 %v7137
        %7174 = vmatprep.subr.mxu0 0.0
        %7175 = vmatpush1.msra.mxu0 %v7136
        %7176 = vmatprep.subr.mxu0 0.0
        %7177 = vmatpush1.msra.mxu0 %v7135
        %7178 = vmatprep.subr.mxu0 0.0
        %7179 = vmatpush1.msra.mxu0 %v7134
        %7180 = vmatprep.subr.mxu0 0.0
        %7181 = vmatpush2.msra.mxu0 0.0
        %7182 = vmatprep.subr.mxu0 0.0
        %7183 = vmatpush2.msra.mxu0 0.0
        %7184 = vmatprep.subr.mxu0 0.0
        %7185 = vmatpush2.msra.mxu0 0.0
        %7186 = vmatprep.subr.mxu0 0.0
        %7187 = vmatpush2.msra.mxu0 0.0
        %7188 = vmatprep.subr.mxu0 0.0
        %7189 = vmatpush2.msra.mxu0 0.0
        %7190 = vmatprep.subr.mxu0 0.0
        %7191 = vmatpush2.msra.mxu0 0.0
        %7192 = vmatprep.subr.mxu0 0.0
        %7193 = vmatpush2.msra.mxu0 0.0
        %7194 = vmatprep.subr.mxu0 0.0
        %7195 = vmatpush2.msra.mxu0 0.0
        %7196 = vmatprep.subr.mxu0 0.0
        %7197 = vmatpush2.msra.mxu0 0.0
        %7198 = vmatprep.subr.mxu0 0.0
        %7199 = vmatpush2.msra.mxu0 0.0
        %7200 = vmatprep.subr.mxu0 0.0
        %7201 = vmatpush2.msra.mxu0 0.0
        %7202 = vmatprep.subr.mxu0 0.0
        %7203 = vmatpush2.msra.mxu0 0.0
        %7204 = vmatprep.subr.mxu0 0.0
        %7205 = vmatpush2.msra.mxu0 0.0
        %7206 = vmatprep.subr.mxu0 0.0
        %7207 = vmatpush2.msra.mxu0 0.0
        %7208 = vmatprep.subr.mxu0 0.0
        %7209 = vmatpush2.msra.mxu0 0.0
        %7210 = vmatprep.subr.mxu0 0.0
        %7211 = vmatpush2.msra.mxu0 0.0
        %7212 = vmatprep.mubr.f32.mxu0 0.0
        %7213 = vmatmul.mubr.f32.gmra.mxu0 %v7143
        %v7214 = vpop.f32.mrf.mxu0
        %v7215 = vadd.f32 0.0, %v7214
        %v7216 = vpop.f32.mrf.mxu0
        %7217 = vmatprep.mubr.f32.mxu0 0.0
        %7218 = vmatmul.mubr.f32.gmra.mxu0 %v7146
        %v7219 = vpop.f32.mrf.mxu0
        %v7220 = vadd.f32 0.0, %v7219
        %v7221 = vpop.f32.mrf.mxu0
        %7222 = vdwg.mxu0
        %v7223 = vadd.f32 %v7129, %v7215
        %v7224 = vadd.f32 %v7130, %v7220
        %v7225 = vld [vmem:[#allocation3 + $0x9] sm:$0xff]
        %v7226 = vld [vmem:[#allocation3 + $0x11] sm:$0xff]
        %v7227 = vsel %vm6752, %v7225, 0.0
        %v7228 = vsel %vm6753, %v7226, 0.0
        %s7229 = scalar_lea.vmem %s9, 320
        %v7230 = vld [vmem:[%s7229] sm:$0xff]
        %v7231 = vld [vmem:[%s7229 + $0x8] sm:$0xff]
        %v7232 = vld [vmem:[%s7229 + $0x10] sm:$0xff]
        %v7233 = vld [vmem:[%s7229 + $0x18] sm:$0xff]
        %v7234 = vld [vmem:[%s7229 + $0x20] sm:$0xff]
        %v7235 = vld [vmem:[%s7229 + $0x28] sm:$0xff]
        %v7236 = vld [vmem:[%s7229 + $0x30] sm:$0xff]
        %v7237 = vld [vmem:[%s7229 + $0x38] sm:$0xff]
        %v7239 = vsel %vm452, %v7227, 0
        %v7242 = vsel %vm452, %v7228, 0
        %7244 = vmatprep.subr.mxu0 0.0
        %7245 = vmatpush1.msra.mxu0 0.0
        %7246 = vmatprep.subr.mxu0 0.0
        %7247 = vmatpush1.msra.mxu0 0.0
        %7248 = vmatprep.subr.mxu0 0.0
        %7249 = vmatpush1.msra.mxu0 0.0
        %7250 = vmatprep.subr.mxu0 0.0
        %7251 = vmatpush1.msra.mxu0 0.0
        %7252 = vmatprep.subr.mxu0 0.0
        %7253 = vmatpush1.msra.mxu0 0.0
        %7254 = vmatprep.subr.mxu0 0.0
        %7255 = vmatpush1.msra.mxu0 0.0
        %7256 = vmatprep.subr.mxu0 0.0
        %7257 = vmatpush1.msra.mxu0 0.0
        %7258 = vmatprep.subr.mxu0 0.0
        %7259 = vmatpush1.msra.mxu0 0.0
        %7260 = vmatprep.subr.mxu0 0.0
        %7261 = vmatpush1.msra.mxu0 %v7237
        %7262 = vmatprep.subr.mxu0 0.0
        %7263 = vmatpush1.msra.mxu0 %v7236
        %7264 = vmatprep.subr.mxu0 0.0
        %7265 = vmatpush1.msra.mxu0 %v7235
        %7266 = vmatprep.subr.mxu0 0.0
        %7267 = vmatpush1.msra.mxu0 %v7234
        %7268 = vmatprep.subr.mxu0 0.0
        %7269 = vmatpush1.msra.mxu0 %v7233
        %7270 = vmatprep.subr.mxu0 0.0
        %7271 = vmatpush1.msra.mxu0 %v7232
        %7272 = vmatprep.subr.mxu0 0.0
        %7273 = vmatpush1.msra.mxu0 %v7231
        %7274 = vmatprep.subr.mxu0 0.0
        %7275 = vmatpush1.msra.mxu0 %v7230
        %7276 = vmatprep.subr.mxu0 0.0
        %7277 = vmatpush2.msra.mxu0 0.0
        %7278 = vmatprep.subr.mxu0 0.0
        %7279 = vmatpush2.msra.mxu0 0.0
        %7280 = vmatprep.subr.mxu0 0.0
        %7281 = vmatpush2.msra.mxu0 0.0
        %7282 = vmatprep.subr.mxu0 0.0
        %7283 = vmatpush2.msra.mxu0 0.0
        %7284 = vmatprep.subr.mxu0 0.0
        %7285 = vmatpush2.msra.mxu0 0.0
        %7286 = vmatprep.subr.mxu0 0.0
        %7287 = vmatpush2.msra.mxu0 0.0
        %7288 = vmatprep.subr.mxu0 0.0
        %7289 = vmatpush2.msra.mxu0 0.0
        %7290 = vmatprep.subr.mxu0 0.0
        %7291 = vmatpush2.msra.mxu0 0.0
        %7292 = vmatprep.subr.mxu0 0.0
        %7293 = vmatpush2.msra.mxu0 0.0
        %7294 = vmatprep.subr.mxu0 0.0
        %7295 = vmatpush2.msra.mxu0 0.0
        %7296 = vmatprep.subr.mxu0 0.0
        %7297 = vmatpush2.msra.mxu0 0.0
        %7298 = vmatprep.subr.mxu0 0.0
        %7299 = vmatpush2.msra.mxu0 0.0
        %7300 = vmatprep.subr.mxu0 0.0
        %7301 = vmatpush2.msra.mxu0 0.0
        %7302 = vmatprep.subr.mxu0 0.0
        %7303 = vmatpush2.msra.mxu0 0.0
        %7304 = vmatprep.subr.mxu0 0.0
        %7305 = vmatpush2.msra.mxu0 0.0
        %7306 = vmatprep.subr.mxu0 0.0
        %7307 = vmatpush2.msra.mxu0 0.0
        %7308 = vmatprep.mubr.f32.mxu0 0.0
        %7309 = vmatmul.mubr.f32.gmra.mxu0 %v7239
        %v7310 = vpop.f32.mrf.mxu0
        %v7311 = vadd.f32 0.0, %v7310
        %v7312 = vpop.f32.mrf.mxu0
        %7313 = vmatprep.mubr.f32.mxu0 0.0
        %7314 = vmatmul.mubr.f32.gmra.mxu0 %v7242
        %v7315 = vpop.f32.mrf.mxu0
        %v7316 = vadd.f32 0.0, %v7315
        %v7317 = vpop.f32.mrf.mxu0
        %7318 = vdwg.mxu0
        %v7319 = vadd.f32 %v7223, %v7311
        %v7320 = vadd.f32 %v7224, %v7316
        %v7321 = vld [vmem:[#allocation3 + $0xb] sm:$0xff]
        %v7322 = vld [vmem:[#allocation3 + $0x13] sm:$0xff]
        %v7323 = vsel %vm6750, %v7321, 0.0
        %v7324 = vsel %vm6751, %v7322, 0.0
        %s7325 = scalar_lea.vmem %s9, 384
        %v7326 = vld [vmem:[%s7325] sm:$0xff]
        %v7327 = vld [vmem:[%s7325 + $0x8] sm:$0xff]
        %v7328 = vld [vmem:[%s7325 + $0x10] sm:$0xff]
        %v7329 = vld [vmem:[%s7325 + $0x18] sm:$0xff]
        %v7330 = vld [vmem:[%s7325 + $0x20] sm:$0xff]
        %v7331 = vld [vmem:[%s7325 + $0x28] sm:$0xff]
        %v7332 = vld [vmem:[%s7325 + $0x30] sm:$0xff]
        %v7333 = vld [vmem:[%s7325 + $0x38] sm:$0xff]
        %v7335 = vsel %vm452, %v7323, 0
        %v7338 = vsel %vm452, %v7324, 0
        %7340 = vmatprep.subr.mxu0 0.0
        %7341 = vmatpush1.msra.mxu0 0.0
        %7342 = vmatprep.subr.mxu0 0.0
        %7343 = vmatpush1.msra.mxu0 0.0
        %7344 = vmatprep.subr.mxu0 0.0
        %7345 = vmatpush1.msra.mxu0 0.0
        %7346 = vmatprep.subr.mxu0 0.0
        %7347 = vmatpush1.msra.mxu0 0.0
        %7348 = vmatprep.subr.mxu0 0.0
        %7349 = vmatpush1.msra.mxu0 0.0
        %7350 = vmatprep.subr.mxu0 0.0
        %7351 = vmatpush1.msra.mxu0 0.0
        %7352 = vmatprep.subr.mxu0 0.0
        %7353 = vmatpush1.msra.mxu0 0.0
        %7354 = vmatprep.subr.mxu0 0.0
        %7355 = vmatpush1.msra.mxu0 0.0
        %7356 = vmatprep.subr.mxu0 0.0
        %7357 = vmatpush1.msra.mxu0 %v7333
        %7358 = vmatprep.subr.mxu0 0.0
        %7359 = vmatpush1.msra.mxu0 %v7332
        %7360 = vmatprep.subr.mxu0 0.0
        %7361 = vmatpush1.msra.mxu0 %v7331
        %7362 = vmatprep.subr.mxu0 0.0
        %7363 = vmatpush1.msra.mxu0 %v7330
        %7364 = vmatprep.subr.mxu0 0.0
        %7365 = vmatpush1.msra.mxu0 %v7329
        %7366 = vmatprep.subr.mxu0 0.0
        %7367 = vmatpush1.msra.mxu0 %v7328
        %7368 = vmatprep.subr.mxu0 0.0
        %7369 = vmatpush1.msra.mxu0 %v7327
        %7370 = vmatprep.subr.mxu0 0.0
        %7371 = vmatpush1.msra.mxu0 %v7326
        %7372 = vmatprep.subr.mxu0 0.0
        %7373 = vmatpush2.msra.mxu0 0.0
        %7374 = vmatprep.subr.mxu0 0.0
        %7375 = vmatpush2.msra.mxu0 0.0
        %7376 = vmatprep.subr.mxu0 0.0
        %7377 = vmatpush2.msra.mxu0 0.0
        %7378 = vmatprep.subr.mxu0 0.0
        %7379 = vmatpush2.msra.mxu0 0.0
        %7380 = vmatprep.subr.mxu0 0.0
        %7381 = vmatpush2.msra.mxu0 0.0
        %7382 = vmatprep.subr.mxu0 0.0
        %7383 = vmatpush2.msra.mxu0 0.0
        %7384 = vmatprep.subr.mxu0 0.0
        %7385 = vmatpush2.msra.mxu0 0.0
        %7386 = vmatprep.subr.mxu0 0.0
        %7387 = vmatpush2.msra.mxu0 0.0
        %7388 = vmatprep.subr.mxu0 0.0
        %7389 = vmatpush2.msra.mxu0 0.0
        %7390 = vmatprep.subr.mxu0 0.0
        %7391 = vmatpush2.msra.mxu0 0.0
        %7392 = vmatprep.subr.mxu0 0.0
        %7393 = vmatpush2.msra.mxu0 0.0
        %7394 = vmatprep.subr.mxu0 0.0
        %7395 = vmatpush2.msra.mxu0 0.0
        %7396 = vmatprep.subr.mxu0 0.0
        %7397 = vmatpush2.msra.mxu0 0.0
        %7398 = vmatprep.subr.mxu0 0.0
        %7399 = vmatpush2.msra.mxu0 0.0
        %7400 = vmatprep.subr.mxu0 0.0
        %7401 = vmatpush2.msra.mxu0 0.0
        %7402 = vmatprep.subr.mxu0 0.0
        %7403 = vmatpush2.msra.mxu0 0.0
        %7404 = vmatprep.mubr.f32.mxu0 0.0
        %7405 = vmatmul.mubr.f32.gmra.mxu0 %v7335
        %v7406 = vpop.f32.mrf.mxu0
        %v7407 = vadd.f32 0.0, %v7406
        %v7408 = vpop.f32.mrf.mxu0
        %7409 = vmatprep.mubr.f32.mxu0 0.0
        %7410 = vmatmul.mubr.f32.gmra.mxu0 %v7338
        %v7411 = vpop.f32.mrf.mxu0
        %v7412 = vadd.f32 0.0, %v7411
        %v7413 = vpop.f32.mrf.mxu0
        %7414 = vdwg.mxu0
        %v7415 = vadd.f32 %v7319, %v7407
        %v7416 = vadd.f32 %v7320, %v7412
        %v7417 = vld [vmem:[#allocation3 + $0xc] sm:$0xff]
        %v7418 = vld [vmem:[#allocation3 + $0x14] sm:$0xff]
        %s7419 = scalar_lea.vmem %s9, 448
        %v7420 = vld [vmem:[%s7419] sm:$0xff]
        %v7421 = vld [vmem:[%s7419 + $0x8] sm:$0xff]
        %v7422 = vld [vmem:[%s7419 + $0x10] sm:$0xff]
        %v7423 = vld [vmem:[%s7419 + $0x18] sm:$0xff]
        %v7424 = vld [vmem:[%s7419 + $0x20] sm:$0xff]
        %v7425 = vld [vmem:[%s7419 + $0x28] sm:$0xff]
        %v7426 = vld [vmem:[%s7419 + $0x30] sm:$0xff]
        %v7427 = vld [vmem:[%s7419 + $0x38] sm:$0xff]
        %v7429 = vsel %vm452, %v7417, 0
        %v7432 = vsel %vm452, %v7418, 0
        %7434 = vmatprep.subr.mxu0 0.0
        %7435 = vmatpush1.msra.mxu0 0.0
        %7436 = vmatprep.subr.mxu0 0.0
        %7437 = vmatpush1.msra.mxu0 0.0
        %7438 = vmatprep.subr.mxu0 0.0
        %7439 = vmatpush1.msra.mxu0 0.0
        %7440 = vmatprep.subr.mxu0 0.0
        %7441 = vmatpush1.msra.mxu0 0.0
        %7442 = vmatprep.subr.mxu0 0.0
        %7443 = vmatpush1.msra.mxu0 0.0
        %7444 = vmatprep.subr.mxu0 0.0
        %7445 = vmatpush1.msra.mxu0 0.0
        %7446 = vmatprep.subr.mxu0 0.0
        %7447 = vmatpush1.msra.mxu0 0.0
        %7448 = vmatprep.subr.mxu0 0.0
        %7449 = vmatpush1.msra.mxu0 0.0
        %7450 = vmatprep.subr.mxu0 0.0
        %7451 = vmatpush1.msra.mxu0 %v7427
        %7452 = vmatprep.subr.mxu0 0.0
        %7453 = vmatpush1.msra.mxu0 %v7426
        %7454 = vmatprep.subr.mxu0 0.0
        %7455 = vmatpush1.msra.mxu0 %v7425
        %7456 = vmatprep.subr.mxu0 0.0
        %7457 = vmatpush1.msra.mxu0 %v7424
        %7458 = vmatprep.subr.mxu0 0.0
        %7459 = vmatpush1.msra.mxu0 %v7423
        %7460 = vmatprep.subr.mxu0 0.0
        %7461 = vmatpush1.msra.mxu0 %v7422
        %7462 = vmatprep.subr.mxu0 0.0
        %7463 = vmatpush1.msra.mxu0 %v7421
        %7464 = vmatprep.subr.mxu0 0.0
        %7465 = vmatpush1.msra.mxu0 %v7420
        %7466 = vmatprep.subr.mxu0 0.0
        %7467 = vmatpush2.msra.mxu0 0.0
        %7468 = vmatprep.subr.mxu0 0.0
        %7469 = vmatpush2.msra.mxu0 0.0
        %7470 = vmatprep.subr.mxu0 0.0
        %7471 = vmatpush2.msra.mxu0 0.0
        %7472 = vmatprep.subr.mxu0 0.0
        %7473 = vmatpush2.msra.mxu0 0.0
        %7474 = vmatprep.subr.mxu0 0.0
        %7475 = vmatpush2.msra.mxu0 0.0
        %7476 = vmatprep.subr.mxu0 0.0
        %7477 = vmatpush2.msra.mxu0 0.0
        %7478 = vmatprep.subr.mxu0 0.0
        %7479 = vmatpush2.msra.mxu0 0.0
        %7480 = vmatprep.subr.mxu0 0.0
        %7481 = vmatpush2.msra.mxu0 0.0
        %7482 = vmatprep.subr.mxu0 0.0
        %7483 = vmatpush2.msra.mxu0 0.0
        %7484 = vmatprep.subr.mxu0 0.0
        %7485 = vmatpush2.msra.mxu0 0.0
        %7486 = vmatprep.subr.mxu0 0.0
        %7487 = vmatpush2.msra.mxu0 0.0
        %7488 = vmatprep.subr.mxu0 0.0
        %7489 = vmatpush2.msra.mxu0 0.0
        %7490 = vmatprep.subr.mxu0 0.0
        %7491 = vmatpush2.msra.mxu0 0.0
        %7492 = vmatprep.subr.mxu0 0.0
        %7493 = vmatpush2.msra.mxu0 0.0
        %7494 = vmatprep.subr.mxu0 0.0
        %7495 = vmatpush2.msra.mxu0 0.0
        %7496 = vmatprep.subr.mxu0 0.0
        %7497 = vmatpush2.msra.mxu0 0.0
        %7498 = vmatprep.mubr.f32.mxu0 0.0
        %7499 = vmatmul.mubr.f32.gmra.mxu0 %v7429
        %v7500 = vpop.f32.mrf.mxu0
        %v7501 = vadd.f32 0.0, %v7500
        %v7502 = vpop.f32.mrf.mxu0
        %7503 = vmatprep.mubr.f32.mxu0 0.0
        %7504 = vmatmul.mubr.f32.gmra.mxu0 %v7432
        %v7505 = vpop.f32.mrf.mxu0
        %v7506 = vadd.f32 0.0, %v7505
        %v7507 = vpop.f32.mrf.mxu0
        %7508 = vdwg.mxu0
        %v7509 = vadd.f32 %v7415, %v7501
        %v7510 = vadd.f32 %v7416, %v7506
        %v7511 = vld [vmem:[#allocation3 + $0xd] sm:$0xff]
        %v7512 = vld [vmem:[#allocation3 + $0x15] sm:$0xff]
        %v7513 = vsel %vm6752, %v7511, 0.0
        %v7514 = vsel %vm6753, %v7512, 0.0
        %s7515 = scalar_lea.vmem %s9, 512
        %v7516 = vld [vmem:[%s7515] sm:$0xff]
        %v7517 = vld [vmem:[%s7515 + $0x8] sm:$0xff]
        %v7518 = vld [vmem:[%s7515 + $0x10] sm:$0xff]
        %v7519 = vld [vmem:[%s7515 + $0x18] sm:$0xff]
        %v7520 = vld [vmem:[%s7515 + $0x20] sm:$0xff]
        %v7521 = vld [vmem:[%s7515 + $0x28] sm:$0xff]
        %v7522 = vld [vmem:[%s7515 + $0x30] sm:$0xff]
        %v7523 = vld [vmem:[%s7515 + $0x38] sm:$0xff]
        %v7525 = vsel %vm452, %v7513, 0
        %v7528 = vsel %vm452, %v7514, 0
        %7530 = vmatprep.subr.mxu0 0.0
        %7531 = vmatpush1.msra.mxu0 0.0
        %7532 = vmatprep.subr.mxu0 0.0
        %7533 = vmatpush1.msra.mxu0 0.0
        %7534 = vmatprep.subr.mxu0 0.0
        %7535 = vmatpush1.msra.mxu0 0.0
        %7536 = vmatprep.subr.mxu0 0.0
        %7537 = vmatpush1.msra.mxu0 0.0
        %7538 = vmatprep.subr.mxu0 0.0
        %7539 = vmatpush1.msra.mxu0 0.0
        %7540 = vmatprep.subr.mxu0 0.0
        %7541 = vmatpush1.msra.mxu0 0.0
        %7542 = vmatprep.subr.mxu0 0.0
        %7543 = vmatpush1.msra.mxu0 0.0
        %7544 = vmatprep.subr.mxu0 0.0
        %7545 = vmatpush1.msra.mxu0 0.0
        %7546 = vmatprep.subr.mxu0 0.0
        %7547 = vmatpush1.msra.mxu0 %v7523
        %7548 = vmatprep.subr.mxu0 0.0
        %7549 = vmatpush1.msra.mxu0 %v7522
        %7550 = vmatprep.subr.mxu0 0.0
        %7551 = vmatpush1.msra.mxu0 %v7521
        %7552 = vmatprep.subr.mxu0 0.0
        %7553 = vmatpush1.msra.mxu0 %v7520
        %7554 = vmatprep.subr.mxu0 0.0
        %7555 = vmatpush1.msra.mxu0 %v7519
        %7556 = vmatprep.subr.mxu0 0.0
        %7557 = vmatpush1.msra.mxu0 %v7518
        %7558 = vmatprep.subr.mxu0 0.0
        %7559 = vmatpush1.msra.mxu0 %v7517
        %7560 = vmatprep.subr.mxu0 0.0
        %7561 = vmatpush1.msra.mxu0 %v7516
        %7562 = vmatprep.subr.mxu0 0.0
        %7563 = vmatpush2.msra.mxu0 0.0
        %7564 = vmatprep.subr.mxu0 0.0
        %7565 = vmatpush2.msra.mxu0 0.0
        %7566 = vmatprep.subr.mxu0 0.0
        %7567 = vmatpush2.msra.mxu0 0.0
        %7568 = vmatprep.subr.mxu0 0.0
        %7569 = vmatpush2.msra.mxu0 0.0
        %7570 = vmatprep.subr.mxu0 0.0
        %7571 = vmatpush2.msra.mxu0 0.0
        %7572 = vmatprep.subr.mxu0 0.0
        %7573 = vmatpush2.msra.mxu0 0.0
        %7574 = vmatprep.subr.mxu0 0.0
        %7575 = vmatpush2.msra.mxu0 0.0
        %7576 = vmatprep.subr.mxu0 0.0
        %7577 = vmatpush2.msra.mxu0 0.0
        %7578 = vmatprep.subr.mxu0 0.0
        %7579 = vmatpush2.msra.mxu0 0.0
        %7580 = vmatprep.subr.mxu0 0.0
        %7581 = vmatpush2.msra.mxu0 0.0
        %7582 = vmatprep.subr.mxu0 0.0
        %7583 = vmatpush2.msra.mxu0 0.0
        %7584 = vmatprep.subr.mxu0 0.0
        %7585 = vmatpush2.msra.mxu0 0.0
        %7586 = vmatprep.subr.mxu0 0.0
        %7587 = vmatpush2.msra.mxu0 0.0
        %7588 = vmatprep.subr.mxu0 0.0
        %7589 = vmatpush2.msra.mxu0 0.0
        %7590 = vmatprep.subr.mxu0 0.0
        %7591 = vmatpush2.msra.mxu0 0.0
        %7592 = vmatprep.subr.mxu0 0.0
        %7593 = vmatpush2.msra.mxu0 0.0
        %7594 = vmatprep.mubr.f32.mxu0 0.0
        %7595 = vmatmul.mubr.f32.gmra.mxu0 %v7525
        %v7596 = vpop.f32.mrf.mxu0
        %v7597 = vadd.f32 0.0, %v7596
        %v7598 = vpop.f32.mrf.mxu0
        %7599 = vmatprep.mubr.f32.mxu0 0.0
        %7600 = vmatmul.mubr.f32.gmra.mxu0 %v7528
        %v7601 = vpop.f32.mrf.mxu0
        %v7602 = vadd.f32 0.0, %v7601
        %v7603 = vpop.f32.mrf.mxu0
        %7604 = vdwg.mxu0
        %v7605 = vadd.f32 %v7509, %v7597
        %v7606 = vadd.f32 %v7510, %v7602
        %v7607 = vld [vmem:[%s10] sm:$0x1]
        %v7609 = vlaneseq
        %v7610 = vshrl.u32 %v7609, 7
        %v7611 = vsub.s32 0, %v7610
        %v7612 = vrot.slane %v7607, %v7611
        %v7614 = vmul.f32 %v7605, %v7612
        %v7615 = vmul.f32 %v7606, %v7612
        %v7616 = vld [vmem:[%s11] sm:$0x1]
        %v7618 = vlaneseq
        %v7619 = vshrl.u32 %v7618, 7
        %v7620 = vsub.s32 0, %v7619
        %v7621 = vrot.slane %v7616, %v7620
        %v7623 = vadd.f32 %v7614, %v7621
        %v7624 = vadd.f32 %v7615, %v7621
        %vm7625 = vcmp.gt.f32.partialorder %v7623, 0.0
        %vm7626 = vcmp.gt.f32.partialorder %v7624, 0.0
        %v7627 = vmul.f32 %v7623, 0.1
        %v7628 = vmul.f32 %v7624, 0.1
        %v7629 = vsel %vm7625, %v7623, %v7627
        %v7630 = vsel %vm7626, %v7624, %v7628
        %7631 = vst [vmem:[#allocation6] sm:$0xff] %v7629
        %7632 = vst [vmem:[#allocation6 + $0x8] sm:$0xff] %v7630
        %7633 = vst [vmem:[#allocation6 + $0x10] sm:$0xff] 0.0
        %7634 = vst [vmem:[#allocation6 + $0x18] sm:$0xf] 0.0
        %v7635 = vld [vmem:[#allocation6] sm:$0xff]
        %v7636 = vld [vmem:[#allocation6 + $0x8] sm:$0xff]
        %v7637 = vld [vmem:[#allocation6 + $0x1] sm:$0xff]
        %v7638 = vld [vmem:[#allocation6 + $0x9] sm:$0xff]
        %v7639 = vmax.f32 %v7635, %v7637
        %v7640 = vmax.f32 %v7636, %v7638
        %v7641 = vld [vmem:[#allocation6 + $0x4] sm:$0xff]
        %v7642 = vld [vmem:[#allocation6 + $0xc] sm:$0xff]
        %v7643 = vld [vmem:[#allocation6 + $0x5] sm:$0xff]
        %v7644 = vld [vmem:[#allocation6 + $0xd] sm:$0xff]
        %v7645 = vmax.f32 %v7641, %v7643
        %v7646 = vmax.f32 %v7642, %v7644
        %v7647 = vmax.f32 %v7639, %v7645
        %v7648 = vmax.f32 %v7640, %v7646
        %v7649 = vld [vmem:[%s12] sm:$0xf]
        %vm7650 = vcmask 130048
        %v7652 = vsel %vm7650, %v7649, 0
        %7654 = vmatprep.subr.mxu0 0.0
        %7655 = vmatpush1.msra.mxu0 0.0
        %7656 = vmatprep.subr.mxu0 0.0
        %7657 = vmatpush1.msra.mxu0 0.0
        %7658 = vmatprep.subr.mxu0 0.0
        %7659 = vmatpush1.msra.mxu0 0.0
        %7660 = vmatprep.subr.mxu0 0.0
        %7661 = vmatpush1.msra.mxu0 0.0
        %7662 = vmatprep.subr.mxu0 0.0
        %7663 = vmatpush1.msra.mxu0 0.0
        %7664 = vmatprep.subr.mxu0 0.0
        %7665 = vmatpush1.msra.mxu0 0.0
        %7666 = vmatprep.subr.mxu0 0.0
        %7667 = vmatpush1.msra.mxu0 0.0
        %7668 = vmatprep.subr.mxu0 0.0
        %7669 = vmatpush1.msra.mxu0 0.0
        %7670 = vmatprep.subr.mxu0 0.0
        %7671 = vmatpush1.msra.mxu0 0.0
        %7672 = vmatprep.subr.mxu0 0.0
        %7673 = vmatpush1.msra.mxu0 0.0
        %7674 = vmatprep.subr.mxu0 0.0
        %7675 = vmatpush1.msra.mxu0 0.0
        %7676 = vmatprep.subr.mxu0 0.0
        %7677 = vmatpush1.msra.mxu0 0.0
        %7678 = vmatprep.subr.mxu0 0.0
        %7679 = vmatpush1.msra.mxu0 0.0
        %7680 = vmatprep.subr.mxu0 0.0
        %7681 = vmatpush1.msra.mxu0 0.0
        %7682 = vmatprep.subr.mxu0 0.0
        %7683 = vmatpush1.msra.mxu0 %v7648
        %7684 = vmatprep.subr.mxu0 0.0
        %7685 = vmatpush1.msra.mxu0 %v7647
        %7686 = vmatprep.subr.mxu0 0.0
        %7687 = vmatpush2.msra.mxu0 0.0
        %7688 = vmatprep.subr.mxu0 0.0
        %7689 = vmatpush2.msra.mxu0 0.0
        %7690 = vmatprep.subr.mxu0 0.0
        %7691 = vmatpush2.msra.mxu0 0.0
        %7692 = vmatprep.subr.mxu0 0.0
        %7693 = vmatpush2.msra.mxu0 0.0
        %7694 = vmatprep.subr.mxu0 0.0
        %7695 = vmatpush2.msra.mxu0 0.0
        %7696 = vmatprep.subr.mxu0 0.0
        %7697 = vmatpush2.msra.mxu0 0.0
        %7698 = vmatprep.subr.mxu0 0.0
        %7699 = vmatpush2.msra.mxu0 0.0
        %7700 = vmatprep.subr.mxu0 0.0
        %7701 = vmatpush2.msra.mxu0 0.0
        %7702 = vmatprep.subr.mxu0 0.0
        %7703 = vmatpush2.msra.mxu0 0.0
        %7704 = vmatprep.subr.mxu0 0.0
        %7705 = vmatpush2.msra.mxu0 0.0
        %7706 = vmatprep.subr.mxu0 0.0
        %7707 = vmatpush2.msra.mxu0 0.0
        %7708 = vmatprep.subr.mxu0 0.0
        %7709 = vmatpush2.msra.mxu0 0.0
        %7710 = vmatprep.subr.mxu0 0.0
        %7711 = vmatpush2.msra.mxu0 0.0
        %7712 = vmatprep.subr.mxu0 0.0
        %7713 = vmatpush2.msra.mxu0 0.0
        %7714 = vmatprep.subr.mxu0 0.0
        %7715 = vmatpush2.msra.mxu0 0.0
        %7716 = vmatprep.subr.mxu0 0.0
        %7717 = vmatpush2.msra.mxu0 0.0
        %7718 = vmatprep.mubr.f32.mxu0 0.0
        %7719 = vmatmul.mubr.f32.gmra.mxu0 %v7652
        %v7720 = vpop.f32.mrf.mxu0
        %v7721 = vadd.f32 0.0, %v7720
        %v7722 = vpop.f32.mrf.mxu0
        %7723 = vdwg.mxu0
        %7724 = vst [vmem:[%s433] sm:$0xf] %v7721
        %s7725 = sand.u32 %s313, 1
        %s7726 = scalar_lea.sflag [#allocation8], %s7725
        %s7727 = sand.u32 %s313, 1
        %s7728 = smul.addr %s7727, 4
        %s7729 = scalar_lea.vmem [#allocation7], %s7728
        // Predicated region
        $region73: #{_lambda_.1} parent=71 // pred_check
          %p7730 = pneg %p323
        $region74: #{_lambda_.1} parent=71 // pred_check_branch
          %7732 = sbr.rel (%p7730) target = $region76
        $region75: #{_lambda_.1} parent=71 // pred_region
          %s7734 = ssub.s32 64, 64
          %7735 = vsyncadd %s7726, %s7734
          %s7736 = smul.addr %s27, 64
          %s7737 = scalar_lea.hbm %s13, %s7736
          %s7739 = sshll.u32 %s7729, 4
          %s7740 = int_to_ptr.vmem [resolvable:$true] %s7739
          %7742 = dma.vmem_to_hbm [thread:$0]  %s7740, 64, %s7737, %s7726
        $region76: #{_lambda_.1} parent=71 // pred_fallthru
          _
      $region72: #{_lambda_.1} parent=5 // pred_fallthru
        _
      %p7743 = scmp.le.s32.totalorder 2, %s22
      // Predicated region
      $region77: #{_lambda_.1} parent=5 // pred_check
        %p7744 = pneg %p7743
      $region78: #{_lambda_.1} parent=5 // pred_check_branch
        %7746 = sbr.rel (%p7744) target = $region80
      $region79: #{_lambda_.1} parent=5 // pred_region
        %s7747 = ssub.s32 %s22, 2
        // Predicated region
        $region81: #{_lambda_.1} parent=79 // pred_check
          %p7748 = pneg %p329
        $region82: #{_lambda_.1} parent=79 // pred_check_branch
          %7750 = sbr.rel (%p7748) target = $region84
        $region83: #{_lambda_.1} parent=79 // pred_region
          %s7751 = sand.u32 %s314, 1
          %s7752 = scalar_lea.sflag [#allocation8], %s7751
          %s7753 = sand.u32 %s314, 1
          %s7754 = smul.addr %s7753, 4
          %s7755 = scalar_lea.vmem [#allocation7], %s7754
          %7756 = dma.done %s7752, 64
        $region84: #{_lambda_.1} parent=79 // pred_fallthru
          _
      $region80: #{_lambda_.1} parent=5 // pred_fallthru
        _
    $region6: #{_lambda_.1} parent=1 // loop_footer
      %s26 = sadd.s32 1, %s22
    $region7: #{_lambda_.1} parent=1 // loop_footer_branch
      %21 = sbr.rel target = $region3
    $region8: #{_lambda_.1} parent=1 // loop_exit
      _
    %7757 = vsyncpa [#allocation8], 1
    %s7758 = scalar_lea.sflag [#allocation8], 1
    %7759 = vsyncpa %s7758, 1

</llo_original>
